<compile_context>
chip_gen: v6e
topology: v6e:2x2x1
jax: 0.10.0
libtpu: 0.0.40
codegen_flags: <defaults>
</compile_context>

<pallas_src>
import functools

import jax
import jax.numpy as jnp
from jax.experimental import pallas as pl
from jax.experimental.pallas import tpu as pltpu


# ----------------------------------------------------------------------------
# Kernels
# ----------------------------------------------------------------------------

def _trunk_kernel(x_ref, w_ref, scale_ref, bias_ref, out_ref, xpad_ref, hpad_ref):
    """Fused trunk: input conv + BN + ReLU followed by all residual blocks.

    x_ref:     (nb, H, W, C)   bf16  input (channels already zero-padded to C)
    w_ref:     (L, 9*C, C)     bf16  im2col-packed conv weights, L = 1 + 2*blocks
    scale_ref: (L, 1, C)       f32   folded BatchNorm scale
    bias_ref:  (L, 1, C)       f32   folded BatchNorm bias
    out_ref:   (nb, H, W, C)   bf16  trunk output
    xpad_ref / hpad_ref: (nb, H+2, W+2, C) bf16 VMEM scratch with a zero halo.
    """
    nb, H, W, C = out_ref.shape
    L = w_ref.shape[0]
    n_blocks = (L - 1) // 2
    M = nb * H * W

    # Zero the scratch each step so the 1-wide halo implements the conv's padding=1
    # (safe under "parallel" batch sharding: no cross-step scratch state).
    xpad_ref[...] = jnp.zeros_like(xpad_ref)
    hpad_ref[...] = jnp.zeros_like(hpad_ref)
    xpad_ref[:, 1:H + 1, 1:W + 1, :] = x_ref[...]

    def conv_bn(pad_ref, layer):
        # im2col: 9 shifted views -> one (M, 9*C) patch matrix -> a single MXU matmul.
        cols = [pad_ref[:, dy:dy + H, dx:dx + W, :].reshape(M, C)
                for dy in range(3) for dx in range(3)]
        patches = jnp.concatenate(cols, axis=-1)                   # (M, 9*C) bf16
        acc = jnp.dot(patches, w_ref[layer],
                      preferred_element_type=jnp.float32)          # (M, C) f32
        return acc * scale_ref[layer] + bias_ref[layer]

    def store_interior(ref, act):
        ref[:, 1:H + 1, 1:W + 1, :] = act.astype(ref.dtype).reshape(nb, H, W, C)

    # Input conv + BN + ReLU.
    x_act = jnp.maximum(conv_bn(xpad_ref, 0), 0.0)                 # (M, C) f32
    if n_blocks > 0:
        store_interior(xpad_ref, x_act)

    # Residual tower (statically unrolled; weights stay resident in VMEM).
    for blk in range(n_blocks):
        h = jnp.maximum(conv_bn(xpad_ref, 1 + 2 * blk), 0.0)
        store_interior(hpad_ref, h)
        # residual add carried in f32
        x_act = jnp.maximum(conv_bn(hpad_ref, 2 + 2 * blk) + x_act, 0.0)
        if blk + 1 < n_blocks:
            store_interior(xpad_ref, x_act)

    out_ref[...] = x_act.astype(out_ref.dtype).reshape(nb, H, W, C)


def _heads_conv_kernel(x_ref, wp_ref, sp_ref, bp_ref, wv_ref, sv_ref, bv_ref,
                       p_ref, v_ref):
    """Both 1x1 head convs + folded BN + ReLU; one image per grid step."""
    _, H, W, C = x_ref.shape
    x = x_ref[0].reshape(H * W, C)                                  # bf16
    p = jnp.dot(x, wp_ref[...], preferred_element_type=jnp.float32)
    p_ref[0] = jnp.maximum(p * sp_ref[...] + bp_ref[...], 0.0).astype(p_ref.dtype)
    v = jnp.dot(x, wv_ref[...], preferred_element_type=jnp.float32)
    v_ref[0] = jnp.maximum(v * sv_ref[...] + bv_ref[...], 0.0).astype(v_ref.dtype)


def _heads_fc_kernel(p_ref, v_ref, wfc_ref, bfc_ref, w1_ref, b1_ref,
                     w2_ref, b2_ref, pol_ref, val_ref):
    """Fused policy FC + softmax and value FC1 + ReLU + FC2 + tanh."""
    logits = jnp.dot(p_ref[...], wfc_ref[...],
                     preferred_element_type=jnp.float32) + bfc_ref[...]
    m = jnp.max(logits, axis=-1, keepdims=True)
    e = jnp.exp(logits - m)
    pol_ref[...] = e / jnp.sum(e, axis=-1, keepdims=True)

    h = jnp.maximum(
        jnp.dot(v_ref[...], w1_ref[...],
                preferred_element_type=jnp.float32) + b1_ref[...], 0.0)
    val_ref[...] = jnp.tanh(
        jnp.dot(h.astype(w2_ref.dtype), w2_ref[...],
                preferred_element_type=jnp.float32) + b2_ref[...])


# ----------------------------------------------------------------------------
# Wrappers (pallas_call plumbing)
# ----------------------------------------------------------------------------

def _pick_batch_block(n, target):
    nb = min(n, target)
    while n % nb:
        nb -= 1
    return nb


def trunk_forward(x_nhwc, w, scale, bias, *, batch_block=8):
    N, H, W, C = x_nhwc.shape
    L = w.shape[0]
    nb = _pick_batch_block(N, batch_block)
    return pl.pallas_call(
        _trunk_kernel,
        out_shape=jax.ShapeDtypeStruct((N, H, W, C), jnp.bfloat16),
        grid=(N // nb,),
        in_specs=[
            pl.BlockSpec((nb, H, W, C), lambda n: (n, 0, 0, 0)),
            pl.BlockSpec((L, 9 * C, C), lambda n: (0, 0, 0)),   # weights: resident
            pl.BlockSpec((L, 1, C), lambda n: (0, 0, 0)),
            pl.BlockSpec((L, 1, C), lambda n: (0, 0, 0)),
        ],
        out_specs=pl.BlockSpec((nb, H, W, C), lambda n: (n, 0, 0, 0)),
        scratch_shapes=[
            pltpu.VMEM((nb, H + 2, W + 2, C), jnp.bfloat16),
            pltpu.VMEM((nb, H + 2, W + 2, C), jnp.bfloat16),
        ],
        compiler_params=pltpu.CompilerParams(
            dimension_semantics=("parallel",),
            vmem_limit_bytes=48 * 1024 * 1024,
        ),
    )(x_nhwc, w, scale, bias)


def heads_conv(x, wp, sp, bp, wv, sv, bv):
    N, H, W, C = x.shape
    HW = H * W
    return pl.pallas_call(
        _heads_conv_kernel,
        out_shape=(jax.ShapeDtypeStruct((N, HW, 2), jnp.bfloat16),
                   jax.ShapeDtypeStruct((N, HW, 1), jnp.bfloat16)),
        grid=(N,),
        in_specs=[
            pl.BlockSpec((1, H, W, C), lambda n: (n, 0, 0, 0)),
            pl.BlockSpec((C, 2), lambda n: (0, 0)),
            pl.BlockSpec((1, 2), lambda n: (0, 0)),
            pl.BlockSpec((1, 2), lambda n: (0, 0)),
            pl.BlockSpec((C, 1), lambda n: (0, 0)),
            pl.BlockSpec((1, 1), lambda n: (0, 0)),
            pl.BlockSpec((1, 1), lambda n: (0, 0)),
        ],
        out_specs=(pl.BlockSpec((1, HW, 2), lambda n: (n, 0, 0)),
                   pl.BlockSpec((1, HW, 1), lambda n: (n, 0, 0))),
        compiler_params=pltpu.CompilerParams(
            dimension_semantics=("parallel",)),
    )(x, wp, sp, bp, wv, sv, bv)


def heads_fc(p_flat, v_flat, wfc, bfc, w1, b1, w2, b2):
    N = p_flat.shape[0]
    P = wfc.shape[1]
    return pl.pallas_call(
        _heads_fc_kernel,
        out_shape=(jax.ShapeDtypeStruct((N, P), jnp.float32),
                   jax.ShapeDtypeStruct((N, 1), jnp.float32)),
    )(p_flat, v_flat, wfc, bfc, w1, b1, w2, b2)


# ----------------------------------------------------------------------------
# Parameters (deterministic synthetic init) and forward pass
# ----------------------------------------------------------------------------

_EPS = 1e-5


def _fold_bn(key, c):
    """Deterministic eval-mode BatchNorm folded to per-channel (scale, bias)."""
    k1, k2, k3, k4 = jax.random.split(key, 4)
    gamma = 1.0 + 0.1 * jax.random.normal(k1, (c,), jnp.float32)
    beta = 0.1 * jax.random.normal(k2, (c,), jnp.float32)
    running_mean = 0.1 * jax.random.normal(k3, (c,), jnp.float32)
    running_var = 1.0 + 0.5 * jax.random.uniform(k4, (c,), jnp.float32)
    scale = gamma / jnp.sqrt(running_var + _EPS)
    bias = beta - running_mean * scale
    return scale.reshape(1, c), bias.reshape(1, c)


def _conv_w(key, cout, cin, kh, kw):
    # PyTorch OIHW init, transposed to HWIO.
    w = 0.1 * jax.random.normal(key, (cout, cin, kh, kw), jnp.float32)
    return jnp.transpose(w, (2, 3, 1, 0))  # (kh, kw, cin, cout)


def init_params(key, board_size, num_res_blocks, num_channels):
    B, C = board_size, num_channels
    HW = B * B
    P = HW + 1
    keys = iter(jax.random.split(key, 4 * num_res_blocks + 16))
    p = {}

    # --- trunk: im2col-packed (9*C, C) weight per conv layer, stacked ----------
    ws, scales, biases = [], [], []
    w_in = _conv_w(next(keys), C, 4, 3, 3)                              # (3,3,4,C)
    w_in = jnp.zeros((3, 3, C, C), jnp.float32).at[:, :, :4, :].set(w_in)
    ws.append(w_in.reshape(9 * C, C))
    s, b = _fold_bn(next(keys), C)
    scales.append(s); biases.append(b)
    for _ in range(num_res_blocks):
        for _ in range(2):
            ws.append(_conv_w(next(keys), C, C, 3, 3).reshape(9 * C, C))
            s, b = _fold_bn(next(keys), C)
            scales.append(s); biases.append(b)
    p["trunk_w"] = jnp.stack(ws).astype(jnp.bfloat16)                   # (L, 9C, C)
    p["trunk_scale"] = jnp.stack(scales)                                # (L, 1, C) f32
    p["trunk_bias"] = jnp.stack(biases)                                 # (L, 1, C) f32

    # --- policy head ------------------------------------------------------------
    p["pol_w"] = _conv_w(next(keys), 2, C, 1, 1).reshape(C, 2).astype(jnp.bfloat16)
    p["pol_s"], p["pol_b"] = _fold_bn(next(keys), 2)
    pol_fc_w = 0.1 * jax.random.normal(next(keys), (P, 2 * HW), jnp.float32)
    # PyTorch flattens NCHW channel-major (column index c*HW + s); our head conv
    # emits (n, s, c) (spatial-major, channel-minor).  Fold the reorder into a
    # one-time row permutation of the FC weight -> no runtime transpose.
    wt = jnp.transpose(pol_fc_w)                                        # (2HW, P), row = c*HW + s
    wt = wt.reshape(2, HW, P).transpose(1, 0, 2).reshape(2 * HW, P)     # row = s*2 + c
    p["pol_fc_w"] = wt.astype(jnp.bfloat16)
    p["pol_fc_b"] = 0.1 * jax.random.normal(next(keys), (1, P), jnp.float32)

    # --- value head -------------------------------------------------------------
    p["val_w"] = _conv_w(next(keys), 1, C, 1, 1).reshape(C, 1).astype(jnp.bfloat16)
    p["val_s"], p["val_b"] = _fold_bn(next(keys), 1)
    val_fc1_w = 0.1 * jax.random.normal(next(keys), (256, HW), jnp.float32)
    p["val_fc1_w"] = jnp.transpose(val_fc1_w).astype(jnp.bfloat16)      # (HW, 256)
    p["val_fc1_b"] = 0.1 * jax.random.normal(next(keys), (1, 256), jnp.float32)
    val_fc2_w = 0.1 * jax.random.normal(next(keys), (1, 256), jnp.float32)
    p["val_fc2_w"] = jnp.transpose(val_fc2_w).astype(jnp.bfloat16)      # (256, 1)
    p["val_fc2_b"] = 0.1 * jax.random.normal(next(keys), (1, 1), jnp.float32)
    return p


def policy_value_forward(params, x_nchw, *, batch_block=8):
    """Forward pass.  x_nchw: (N, 4, B, B) float32.  Returns (policy, value)
    with shapes (N, B*B+1) and (N, 1), matching the PyTorch module."""
    x = jnp.transpose(x_nchw, (0, 2, 3, 1))                             # NCHW -> NHWC
    N, H, W, Cin = x.shape
    C = params["trunk_w"].shape[-1]
    # Zero-pad input channels 4 -> C once so every trunk layer is the same uniform
    # (9*C, C) im2col matmul (padded channels contribute exactly zero).
    x = jnp.pad(x, ((0, 0), (0, 0), (0, 0), (0, C - Cin))).astype(jnp.bfloat16)

    trunk = trunk_forward(x, params["trunk_w"], params["trunk_scale"],
                          params["trunk_bias"], batch_block=batch_block)

    p_act, v_act = heads_conv(trunk, params["pol_w"], params["pol_s"],
                              params["pol_b"], params["val_w"],
                              params["val_s"], params["val_b"])
    # Row-major metadata reshapes only (no transpose): the NCHW channel-major
    # flatten is already folded into pol_fc_w's row order.
    p_flat = p_act.reshape(N, 2 * H * W)
    v_flat = v_act.reshape(N, H * W)

    return heads_fc(p_flat, v_flat, params["pol_fc_w"], params["pol_fc_b"],
                    params["val_fc1_w"], params["val_fc1_b"],
                    params["val_fc2_w"], params["val_fc2_b"])


# ----------------------------------------------------------------------------
# Pure-JAX f32 reference (same packed params) for a correctness cross-check
# ----------------------------------------------------------------------------

def reference_forward(params, x_nchw):
    x = jnp.transpose(x_nchw, (0, 2, 3, 1)).astype(jnp.float32)
    N, H, W, Cin = x.shape
    C = params["trunk_w"].shape[-1]
    x = jnp.pad(x, ((0, 0), (0, 0), (0, 0), (0, C - Cin)))
    w = params["trunk_w"].astype(jnp.float32)
    scale, bias = params["trunk_scale"], params["trunk_bias"]
    L = w.shape[0]
    M = N * H * W

    def conv_bn(act, layer):
        pad = jnp.pad(act, ((0, 0), (1, 1), (1, 1), (0, 0)))
        cols = [pad[:, dy:dy + H, dx:dx + W, :].reshape(M, C)
                for dy in range(3) for dx in range(3)]
        return (jnp.concatenate(cols, axis=-1) @ w[layer]) * scale[layer] + bias[layer]

    a = jnp.maximum(conv_bn(x, 0), 0.0)                                  # (M, C)
    for blk in range((L - 1) // 2):
        h = jnp.maximum(conv_bn(a.reshape(N, H, W, C), 1 + 2 * blk), 0.0)
        a = jnp.maximum(conv_bn(h.reshape(N, H, W, C), 2 + 2 * blk) + a, 0.0)

    xf = a
    p = jnp.maximum((xf @ params["pol_w"].astype(jnp.float32))
                    * params["pol_s"] + params["pol_b"], 0.0)
    logits = (p.reshape(N, 2 * H * W) @ params["pol_fc_w"].astype(jnp.float32)
              + params["pol_fc_b"])
    policy = jax.nn.softmax(logits, axis=-1)
    v = jnp.maximum((xf @ params["val_w"].astype(jnp.float32))
                    * params["val_s"] + params["val_b"], 0.0)
    h1 = jnp.maximum(v.reshape(N, H * W) @ params["val_fc1_w"].astype(jnp.float32)
                     + params["val_fc1_b"], 0.0)
    value = jnp.tanh(h1 @ params["val_fc2_w"].astype(jnp.float32)
                     + params["val_fc2_b"])
    return policy, value


# ----------------------------------------------------------------------------
# Demo
# ----------------------------------------------------------------------------

if __name__ == "__main__":
    BOARD = 8          # small board for the demo (module default is 19)
    RES_BLOCKS = 2     # small tower (module default is 10)
    CHANNELS = 32      # small width (module default is 128)
    BATCH = 2

    root = jax.random.PRNGKey(0)
    k_params, k_x = jax.random.split(root)
    params = init_params(k_params, BOARD, RES_BLOCKS, CHANNELS)
    x = jax.random.normal(k_x, (BATCH, 4, BOARD, BOARD), jnp.float32)

    fwd = jax.jit(functools.partial(policy_value_forward, params))
    policy, value = fwd(x)
    policy = jax.block_until_ready(policy)
    value = jax.block_until_ready(value)

    assert policy.shape == (BATCH, BOARD * BOARD + 1), policy.shape
    assert value.shape == (BATCH, 1), value.shape
    assert bool(jnp.all(jnp.isfinite(policy))) and bool(jnp.all(jnp.isfinite(value)))
    # softmax rows sum to 1
    assert bool(jnp.allclose(jnp.sum(policy, axis=1), 1.0, atol=1e-5))
    # tanh output in [-1, 1]
    assert bool(jnp.all(jnp.abs(value) <= 1.0))

    # Cross-check against a pure-JAX f32 reference of the same math (tolerances
    # account for bf16 activations/weights on the Pallas path).
    pol_ref, val_ref = jax.jit(functools.partial(reference_forward, params))(x)
    assert bool(jnp.max(jnp.abs(policy - pol_ref)) < 1e-2), "policy mismatch"
    assert bool(jnp.max(jnp.abs(value - val_ref)) < 5e-2), "value mismatch"

    print("KERNEL_OK")
</pallas_src>

<mosaic_0001>
module attributes {stable_mosaic.version = 11 : i64} {
  func.func @_trunk_kernel(%arg0: i32, %arg1: memref<2x8x8x32xbf16, #tpu.memory_space<vmem>>, %arg2: memref<5x288x32xbf16, #tpu.memory_space<vmem>>, %arg3: memref<5x1x32xf32, #tpu.memory_space<vmem>>, %arg4: memref<5x1x32xf32, #tpu.memory_space<vmem>>, %arg5: memref<2x8x8x32xbf16, #tpu.memory_space<vmem>>, %arg6: memref<2x10x10x32xbf16, #tpu.memory_space<vmem>>, %arg7: memref<2x10x10x32xbf16, #tpu.memory_space<vmem>>) attributes {dimension_semantics = [#tpu.dimension_semantics<parallel>], iteration_bounds = array<i64: 1>, scalar_prefetch = 0 : i64, scratch_operands = 2 : i64, tpu.core_type = #tpu.core_type<tc>, window_params = [{transform_indices = @transform_0, window_bounds = array<i64: 2, 8, 8, 32>}, {pipeline_mode = #tpu.pipeline_mode<synchronous>, transform_indices = @transform_1, window_bounds = array<i64: 5, 288, 32>}, {pipeline_mode = #tpu.pipeline_mode<synchronous>, transform_indices = @transform_2, window_bounds = array<i64: 5, 1, 32>}, {pipeline_mode = #tpu.pipeline_mode<synchronous>, transform_indices = @transform_3, window_bounds = array<i64: 5, 1, 32>}, {transform_indices = @transform_4, window_bounds = array<i64: 2, 8, 8, 32>}]} {
    %cst = arith.constant 0.000000e+00 : bf16
    %0 = vector.broadcast %cst : bf16 to vector<2x10x10x32xbf16>
    %c0 = arith.constant 0 : index
    %c0_0 = arith.constant 0 : index
    %c0_1 = arith.constant 0 : index
    %c0_2 = arith.constant 0 : index
    %1 = vector.load %arg6[%c0, %c0_0, %c0_1, %c0_2] : memref<2x10x10x32xbf16, #tpu.memory_space<vmem>>, vector<2x10x10x32xbf16>
    tpu.vector_store %arg6[%c0, %c0_0, %c0_1, %c0_2], %0 {strides = array<i32>} : memref<2x10x10x32xbf16, #tpu.memory_space<vmem>>, vector<2x10x10x32xbf16>,
    %cst_3 = arith.constant 0.000000e+00 : bf16
    %2 = vector.broadcast %cst_3 : bf16 to vector<2x10x10x32xbf16>
    %c0_4 = arith.constant 0 : index
    %c0_5 = arith.constant 0 : index
    %c0_6 = arith.constant 0 : index
    %c0_7 = arith.constant 0 : index
    %3 = vector.load %arg7[%c0_4, %c0_5, %c0_6, %c0_7] : memref<2x10x10x32xbf16, #tpu.memory_space<vmem>>, vector<2x10x10x32xbf16>
    tpu.vector_store %arg7[%c0_4, %c0_5, %c0_6, %c0_7], %2 {strides = array<i32>} : memref<2x10x10x32xbf16, #tpu.memory_space<vmem>>, vector<2x10x10x32xbf16>,
    %c0_8 = arith.constant 0 : index
    %c0_9 = arith.constant 0 : index
    %c0_10 = arith.constant 0 : index
    %c0_11 = arith.constant 0 : index
    %4 = vector.load %arg1[%c0_8, %c0_9, %c0_10, %c0_11] : memref<2x8x8x32xbf16, #tpu.memory_space<vmem>>, vector<2x8x8x32xbf16>
    %c0_12 = arith.constant 0 : index
    %c1 = arith.constant 1 : index
    %c1_13 = arith.constant 1 : index
    %c0_14 = arith.constant 0 : index
    %5 = vector.load %arg6[%c0_12, %c1, %c1_13, %c0_14] : memref<2x10x10x32xbf16, #tpu.memory_space<vmem>>, vector<2x8x8x32xbf16>
    tpu.vector_store %arg6[%c0_12, %c1, %c1_13, %c0_14], %4 {strides = array<i32>} : memref<2x10x10x32xbf16, #tpu.memory_space<vmem>>, vector<2x8x8x32xbf16>,
    %c0_15 = arith.constant 0 : index
    %c0_16 = arith.constant 0 : index
    %c0_17 = arith.constant 0 : index
    %c0_18 = arith.constant 0 : index
    %6 = vector.load %arg6[%c0_15, %c0_16, %c0_17, %c0_18] : memref<2x10x10x32xbf16, #tpu.memory_space<vmem>>, vector<2x8x8x32xbf16>
    %7 = vector.shape_cast %6 : vector<2x8x8x32xbf16> to vector<128x32xbf16>
    %c0_19 = arith.constant 0 : index
    %c0_20 = arith.constant 0 : index
    %c1_21 = arith.constant 1 : index
    %c0_22 = arith.constant 0 : index
    %8 = vector.load %arg6[%c0_19, %c0_20, %c1_21, %c0_22] : memref<2x10x10x32xbf16, #tpu.memory_space<vmem>>, vector<2x8x8x32xbf16>
    %9 = vector.shape_cast %8 : vector<2x8x8x32xbf16> to vector<128x32xbf16>
    %c0_23 = arith.constant 0 : index
    %c0_24 = arith.constant 0 : index
    %c2 = arith.constant 2 : index
    %c0_25 = arith.constant 0 : index
    %10 = vector.load %arg6[%c0_23, %c0_24, %c2, %c0_25] : memref<2x10x10x32xbf16, #tpu.memory_space<vmem>>, vector<2x8x8x32xbf16>
    %11 = vector.shape_cast %10 : vector<2x8x8x32xbf16> to vector<128x32xbf16>
    %c0_26 = arith.constant 0 : index
    %c1_27 = arith.constant 1 : index
    %c0_28 = arith.constant 0 : index
    %c0_29 = arith.constant 0 : index
    %12 = vector.load %arg6[%c0_26, %c1_27, %c0_28, %c0_29] : memref<2x10x10x32xbf16, #tpu.memory_space<vmem>>, vector<2x8x8x32xbf16>
    %13 = vector.shape_cast %12 : vector<2x8x8x32xbf16> to vector<128x32xbf16>
    %c0_30 = arith.constant 0 : index
    %c1_31 = arith.constant 1 : index
    %c1_32 = arith.constant 1 : index
    %c0_33 = arith.constant 0 : index
    %14 = vector.load %arg6[%c0_30, %c1_31, %c1_32, %c0_33] : memref<2x10x10x32xbf16, #tpu.memory_space<vmem>>, vector<2x8x8x32xbf16>
    %15 = vector.shape_cast %14 : vector<2x8x8x32xbf16> to vector<128x32xbf16>
    %c0_34 = arith.constant 0 : index
    %c1_35 = arith.constant 1 : index
    %c2_36 = arith.constant 2 : index
    %c0_37 = arith.constant 0 : index
    %16 = vector.load %arg6[%c0_34, %c1_35, %c2_36, %c0_37] : memref<2x10x10x32xbf16, #tpu.memory_space<vmem>>, vector<2x8x8x32xbf16>
    %17 = vector.shape_cast %16 : vector<2x8x8x32xbf16> to vector<128x32xbf16>
    %c0_38 = arith.constant 0 : index
    %c2_39 = arith.constant 2 : index
    %c0_40 = arith.constant 0 : index
    %c0_41 = arith.constant 0 : index
    %18 = vector.load %arg6[%c0_38, %c2_39, %c0_40, %c0_41] : memref<2x10x10x32xbf16, #tpu.memory_space<vmem>>, vector<2x8x8x32xbf16>
    %19 = vector.shape_cast %18 : vector<2x8x8x32xbf16> to vector<128x32xbf16>
    %c0_42 = arith.constant 0 : index
    %c2_43 = arith.constant 2 : index
    %c1_44 = arith.constant 1 : index
    %c0_45 = arith.constant 0 : index
    %20 = vector.load %arg6[%c0_42, %c2_43, %c1_44, %c0_45] : memref<2x10x10x32xbf16, #tpu.memory_space<vmem>>, vector<2x8x8x32xbf16>
    %21 = vector.shape_cast %20 : vector<2x8x8x32xbf16> to vector<128x32xbf16>
    %c0_46 = arith.constant 0 : index
    %c2_47 = arith.constant 2 : index
    %c2_48 = arith.constant 2 : index
    %c0_49 = arith.constant 0 : index
    %22 = vector.load %arg6[%c0_46, %c2_47, %c2_48, %c0_49] : memref<2x10x10x32xbf16, #tpu.memory_space<vmem>>, vector<2x8x8x32xbf16>
    %23 = vector.shape_cast %22 : vector<2x8x8x32xbf16> to vector<128x32xbf16>
    %24 = tpu.concatenate %7, %9, %11, %13, %15, %17, %19, %21, %23 in 1 : vector<128x32xbf16>, vector<128x32xbf16>, vector<128x32xbf16>, vector<128x32xbf16>, vector<128x32xbf16>, vector<128x32xbf16>, vector<128x32xbf16>, vector<128x32xbf16>, vector<128x32xbf16> -> vector<128x288xbf16>
    %c0_50 = arith.constant 0 : index
    %c0_51 = arith.constant 0 : index
    %c0_52 = arith.constant 0 : index
    %25 = vector.load %arg2[%c0_50, %c0_51, %c0_52] : memref<5x288x32xbf16, #tpu.memory_space<vmem>>, vector<1x288x32xbf16>
    %26 = vector.shape_cast %25 : vector<1x288x32xbf16> to vector<288x32xbf16>
    %cst_53 = arith.constant dense<0.000000e+00> : vector<128x32xf32>
    %27 = tpu.matmul %24, %26, %cst_53 {dimension_numbers = #tpu.dot_dimension_numbers<[1], [0], [0], [1], [0, 0, 1, 1], [], []>} : vector<128x288xbf16>, vector<288x32xbf16>, vector<128x32xf32> -> vector<128x32xf32>
    %c0_54 = arith.constant 0 : index
    %c0_55 = arith.constant 0 : index
    %c0_56 = arith.constant 0 : index
    %28 = vector.load %arg3[%c0_54, %c0_55, %c0_56] : memref<5x1x32xf32, #tpu.memory_space<vmem>>, vector<1x1x32xf32>
    %29 = vector.shape_cast %28 : vector<1x1x32xf32> to vector<1x32xf32>
    %30 = vector.broadcast %29 : vector<1x32xf32> to vector<128x32xf32>
    %31 = arith.mulf %27, %30 : vector<128x32xf32>
    %c0_57 = arith.constant 0 : index
    %c0_58 = arith.constant 0 : index
    %c0_59 = arith.constant 0 : index
    %32 = vector.load %arg4[%c0_57, %c0_58, %c0_59] : memref<5x1x32xf32, #tpu.memory_space<vmem>>, vector<1x1x32xf32>
    %33 = vector.shape_cast %32 : vector<1x1x32xf32> to vector<1x32xf32>
    %34 = vector.broadcast %33 : vector<1x32xf32> to vector<128x32xf32>
    %35 = arith.addf %31, %34 : vector<128x32xf32>
    %cst_60 = arith.constant 0.000000e+00 : f32
    %36 = vector.broadcast %cst_60 : f32 to vector<128x32xf32>
    %37 = arith.maximumf %35, %36 : vector<128x32xf32>
    %38 = arith.truncf %37 : vector<128x32xf32> to vector<128x32xbf16>
    %39 = vector.shape_cast %38 : vector<128x32xbf16> to vector<2x8x8x32xbf16>
    %c0_61 = arith.constant 0 : index
    %c1_62 = arith.constant 1 : index
    %c1_63 = arith.constant 1 : index
    %c0_64 = arith.constant 0 : index
    %40 = vector.load %arg6[%c0_61, %c1_62, %c1_63, %c0_64] : memref<2x10x10x32xbf16, #tpu.memory_space<vmem>>, vector<2x8x8x32xbf16>
    tpu.vector_store %arg6[%c0_61, %c1_62, %c1_63, %c0_64], %39 {strides = array<i32>} : memref<2x10x10x32xbf16, #tpu.memory_space<vmem>>, vector<2x8x8x32xbf16>,
    %c0_65 = arith.constant 0 : index
    %c0_66 = arith.constant 0 : index
    %c0_67 = arith.constant 0 : index
    %c0_68 = arith.constant 0 : index
    %41 = vector.load %arg6[%c0_65, %c0_66, %c0_67, %c0_68] : memref<2x10x10x32xbf16, #tpu.memory_space<vmem>>, vector<2x8x8x32xbf16>
    %42 = vector.shape_cast %41 : vector<2x8x8x32xbf16> to vector<128x32xbf16>
    %c0_69 = arith.constant 0 : index
    %c0_70 = arith.constant 0 : index
    %c1_71 = arith.constant 1 : index
    %c0_72 = arith.constant 0 : index
    %43 = vector.load %arg6[%c0_69, %c0_70, %c1_71, %c0_72] : memref<2x10x10x32xbf16, #tpu.memory_space<vmem>>, vector<2x8x8x32xbf16>
    %44 = vector.shape_cast %43 : vector<2x8x8x32xbf16> to vector<128x32xbf16>
    %c0_73 = arith.constant 0 : index
    %c0_74 = arith.constant 0 : index
    %c2_75 = arith.constant 2 : index
    %c0_76 = arith.constant 0 : index
    %45 = vector.load %arg6[%c0_73, %c0_74, %c2_75, %c0_76] : memref<2x10x10x32xbf16, #tpu.memory_space<vmem>>, vector<2x8x8x32xbf16>
    %46 = vector.shape_cast %45 : vector<2x8x8x32xbf16> to vector<128x32xbf16>
    %c0_77 = arith.constant 0 : index
    %c1_78 = arith.constant 1 : index
    %c0_79 = arith.constant 0 : index
    %c0_80 = arith.constant 0 : index
    %47 = vector.load %arg6[%c0_77, %c1_78, %c0_79, %c0_80] : memref<2x10x10x32xbf16, #tpu.memory_space<vmem>>, vector<2x8x8x32xbf16>
    %48 = vector.shape_cast %47 : vector<2x8x8x32xbf16> to vector<128x32xbf16>
    %c0_81 = arith.constant 0 : index
    %c1_82 = arith.constant 1 : index
    %c1_83 = arith.constant 1 : index
    %c0_84 = arith.constant 0 : index
    %49 = vector.load %arg6[%c0_81, %c1_82, %c1_83, %c0_84] : memref<2x10x10x32xbf16, #tpu.memory_space<vmem>>, vector<2x8x8x32xbf16>
    %50 = vector.shape_cast %49 : vector<2x8x8x32xbf16> to vector<128x32xbf16>
    %c0_85 = arith.constant 0 : index
    %c1_86 = arith.constant 1 : index
    %c2_87 = arith.constant 2 : index
    %c0_88 = arith.constant 0 : index
    %51 = vector.load %arg6[%c0_85, %c1_86, %c2_87, %c0_88] : memref<2x10x10x32xbf16, #tpu.memory_space<vmem>>, vector<2x8x8x32xbf16>
    %52 = vector.shape_cast %51 : vector<2x8x8x32xbf16> to vector<128x32xbf16>
    %c0_89 = arith.constant 0 : index
    %c2_90 = arith.constant 2 : index
    %c0_91 = arith.constant 0 : index
    %c0_92 = arith.constant 0 : index
    %53 = vector.load %arg6[%c0_89, %c2_90, %c0_91, %c0_92] : memref<2x10x10x32xbf16, #tpu.memory_space<vmem>>, vector<2x8x8x32xbf16>
    %54 = vector.shape_cast %53 : vector<2x8x8x32xbf16> to vector<128x32xbf16>
    %c0_93 = arith.constant 0 : index
    %c2_94 = arith.constant 2 : index
    %c1_95 = arith.constant 1 : index
    %c0_96 = arith.constant 0 : index
    %55 = vector.load %arg6[%c0_93, %c2_94, %c1_95, %c0_96] : memref<2x10x10x32xbf16, #tpu.memory_space<vmem>>, vector<2x8x8x32xbf16>
    %56 = vector.shape_cast %55 : vector<2x8x8x32xbf16> to vector<128x32xbf16>
    %c0_97 = arith.constant 0 : index
    %c2_98 = arith.constant 2 : index
    %c2_99 = arith.constant 2 : index
    %c0_100 = arith.constant 0 : index
    %57 = vector.load %arg6[%c0_97, %c2_98, %c2_99, %c0_100] : memref<2x10x10x32xbf16, #tpu.memory_space<vmem>>, vector<2x8x8x32xbf16>
    %58 = vector.shape_cast %57 : vector<2x8x8x32xbf16> to vector<128x32xbf16>
    %59 = tpu.concatenate %42, %44, %46, %48, %50, %52, %54, %56, %58 in 1 : vector<128x32xbf16>, vector<128x32xbf16>, vector<128x32xbf16>, vector<128x32xbf16>, vector<128x32xbf16>, vector<128x32xbf16>, vector<128x32xbf16>, vector<128x32xbf16>, vector<128x32xbf16> -> vector<128x288xbf16>
    %c1_101 = arith.constant 1 : index
    %c0_102 = arith.constant 0 : index
    %c0_103 = arith.constant 0 : index
    %60 = vector.load %arg2[%c1_101, %c0_102, %c0_103] : memref<5x288x32xbf16, #tpu.memory_space<vmem>>, vector<1x288x32xbf16>
    %61 = vector.shape_cast %60 : vector<1x288x32xbf16> to vector<288x32xbf16>
    %cst_104 = arith.constant dense<0.000000e+00> : vector<128x32xf32>
    %62 = tpu.matmul %59, %61, %cst_104 {dimension_numbers = #tpu.dot_dimension_numbers<[1], [0], [0], [1], [0, 0, 1, 1], [], []>} : vector<128x288xbf16>, vector<288x32xbf16>, vector<128x32xf32> -> vector<128x32xf32>
    %c1_105 = arith.constant 1 : index
    %c0_106 = arith.constant 0 : index
    %c0_107 = arith.constant 0 : index
    %63 = vector.load %arg3[%c1_105, %c0_106, %c0_107] : memref<5x1x32xf32, #tpu.memory_space<vmem>>, vector<1x1x32xf32>
    %64 = vector.shape_cast %63 : vector<1x1x32xf32> to vector<1x32xf32>
    %65 = vector.broadcast %64 : vector<1x32xf32> to vector<128x32xf32>
    %66 = arith.mulf %62, %65 : vector<128x32xf32>
    %c1_108 = arith.constant 1 : index
    %c0_109 = arith.constant 0 : index
    %c0_110 = arith.constant 0 : index
    %67 = vector.load %arg4[%c1_108, %c0_109, %c0_110] : memref<5x1x32xf32, #tpu.memory_space<vmem>>, vector<1x1x32xf32>
    %68 = vector.shape_cast %67 : vector<1x1x32xf32> to vector<1x32xf32>
    %69 = vector.broadcast %68 : vector<1x32xf32> to vector<128x32xf32>
    %70 = arith.addf %66, %69 : vector<128x32xf32>
    %cst_111 = arith.constant 0.000000e+00 : f32
    %71 = vector.broadcast %cst_111 : f32 to vector<128x32xf32>
    %72 = arith.maximumf %70, %71 : vector<128x32xf32>
    %73 = arith.truncf %72 : vector<128x32xf32> to vector<128x32xbf16>
    %74 = vector.shape_cast %73 : vector<128x32xbf16> to vector<2x8x8x32xbf16>
    %c0_112 = arith.constant 0 : index
    %c1_113 = arith.constant 1 : index
    %c1_114 = arith.constant 1 : index
    %c0_115 = arith.constant 0 : index
    %75 = vector.load %arg7[%c0_112, %c1_113, %c1_114, %c0_115] : memref<2x10x10x32xbf16, #tpu.memory_space<vmem>>, vector<2x8x8x32xbf16>
    tpu.vector_store %arg7[%c0_112, %c1_113, %c1_114, %c0_115], %74 {strides = array<i32>} : memref<2x10x10x32xbf16, #tpu.memory_space<vmem>>, vector<2x8x8x32xbf16>,
    %c0_116 = arith.constant 0 : index
    %c0_117 = arith.constant 0 : index
    %c0_118 = arith.constant 0 : index
    %c0_119 = arith.constant 0 : index
    %76 = vector.load %arg7[%c0_116, %c0_117, %c0_118, %c0_119] : memref<2x10x10x32xbf16, #tpu.memory_space<vmem>>, vector<2x8x8x32xbf16>
    %77 = vector.shape_cast %76 : vector<2x8x8x32xbf16> to vector<128x32xbf16>
    %c0_120 = arith.constant 0 : index
    %c0_121 = arith.constant 0 : index
    %c1_122 = arith.constant 1 : index
    %c0_123 = arith.constant 0 : index
    %78 = vector.load %arg7[%c0_120, %c0_121, %c1_122, %c0_123] : memref<2x10x10x32xbf16, #tpu.memory_space<vmem>>, vector<2x8x8x32xbf16>
    %79 = vector.shape_cast %78 : vector<2x8x8x32xbf16> to vector<128x32xbf16>
    %c0_124 = arith.constant 0 : index
    %c0_125 = arith.constant 0 : index
    %c2_126 = arith.constant 2 : index
    %c0_127 = arith.constant 0 : index
    %80 = vector.load %arg7[%c0_124, %c0_125, %c2_126, %c0_127] : memref<2x10x10x32xbf16, #tpu.memory_space<vmem>>, vector<2x8x8x32xbf16>
    %81 = vector.shape_cast %80 : vector<2x8x8x32xbf16> to vector<128x32xbf16>
    %c0_128 = arith.constant 0 : index
    %c1_129 = arith.constant 1 : index
    %c0_130 = arith.constant 0 : index
    %c0_131 = arith.constant 0 : index
    %82 = vector.load %arg7[%c0_128, %c1_129, %c0_130, %c0_131] : memref<2x10x10x32xbf16, #tpu.memory_space<vmem>>, vector<2x8x8x32xbf16>
    %83 = vector.shape_cast %82 : vector<2x8x8x32xbf16> to vector<128x32xbf16>
    %c0_132 = arith.constant 0 : index
    %c1_133 = arith.constant 1 : index
    %c1_134 = arith.constant 1 : index
    %c0_135 = arith.constant 0 : index
    %84 = vector.load %arg7[%c0_132, %c1_133, %c1_134, %c0_135] : memref<2x10x10x32xbf16, #tpu.memory_space<vmem>>, vector<2x8x8x32xbf16>
    %85 = vector.shape_cast %84 : vector<2x8x8x32xbf16> to vector<128x32xbf16>
    %c0_136 = arith.constant 0 : index
    %c1_137 = arith.constant 1 : index
    %c2_138 = arith.constant 2 : index
    %c0_139 = arith.constant 0 : index
    %86 = vector.load %arg7[%c0_136, %c1_137, %c2_138, %c0_139] : memref<2x10x10x32xbf16, #tpu.memory_space<vmem>>, vector<2x8x8x32xbf16>
    %87 = vector.shape_cast %86 : vector<2x8x8x32xbf16> to vector<128x32xbf16>
    %c0_140 = arith.constant 0 : index
    %c2_141 = arith.constant 2 : index
    %c0_142 = arith.constant 0 : index
    %c0_143 = arith.constant 0 : index
    %88 = vector.load %arg7[%c0_140, %c2_141, %c0_142, %c0_143] : memref<2x10x10x32xbf16, #tpu.memory_space<vmem>>, vector<2x8x8x32xbf16>
    %89 = vector.shape_cast %88 : vector<2x8x8x32xbf16> to vector<128x32xbf16>
    %c0_144 = arith.constant 0 : index
    %c2_145 = arith.constant 2 : index
    %c1_146 = arith.constant 1 : index
    %c0_147 = arith.constant 0 : index
    %90 = vector.load %arg7[%c0_144, %c2_145, %c1_146, %c0_147] : memref<2x10x10x32xbf16, #tpu.memory_space<vmem>>, vector<2x8x8x32xbf16>
    %91 = vector.shape_cast %90 : vector<2x8x8x32xbf16> to vector<128x32xbf16>
    %c0_148 = arith.constant 0 : index
    %c2_149 = arith.constant 2 : index
    %c2_150 = arith.constant 2 : index
    %c0_151 = arith.constant 0 : index
    %92 = vector.load %arg7[%c0_148, %c2_149, %c2_150, %c0_151] : memref<2x10x10x32xbf16, #tpu.memory_space<vmem>>, vector<2x8x8x32xbf16>
    %93 = vector.shape_cast %92 : vector<2x8x8x32xbf16> to vector<128x32xbf16>
    %94 = tpu.concatenate %77, %79, %81, %83, %85, %87, %89, %91, %93 in 1 : vector<128x32xbf16>, vector<128x32xbf16>, vector<128x32xbf16>, vector<128x32xbf16>, vector<128x32xbf16>, vector<128x32xbf16>, vector<128x32xbf16>, vector<128x32xbf16>, vector<128x32xbf16> -> vector<128x288xbf16>
    %c2_152 = arith.constant 2 : index
    %c0_153 = arith.constant 0 : index
    %c0_154 = arith.constant 0 : index
    %95 = vector.load %arg2[%c2_152, %c0_153, %c0_154] : memref<5x288x32xbf16, #tpu.memory_space<vmem>>, vector<1x288x32xbf16>
    %96 = vector.shape_cast %95 : vector<1x288x32xbf16> to vector<288x32xbf16>
    %cst_155 = arith.constant dense<0.000000e+00> : vector<128x32xf32>
    %97 = tpu.matmul %94, %96, %cst_155 {dimension_numbers = #tpu.dot_dimension_numbers<[1], [0], [0], [1], [0, 0, 1, 1], [], []>} : vector<128x288xbf16>, vector<288x32xbf16>, vector<128x32xf32> -> vector<128x32xf32>
    %c2_156 = arith.constant 2 : index
    %c0_157 = arith.constant 0 : index
    %c0_158 = arith.constant 0 : index
    %98 = vector.load %arg3[%c2_156, %c0_157, %c0_158] : memref<5x1x32xf32, #tpu.memory_space<vmem>>, vector<1x1x32xf32>
    %99 = vector.shape_cast %98 : vector<1x1x32xf32> to vector<1x32xf32>
    %100 = vector.broadcast %99 : vector<1x32xf32> to vector<128x32xf32>
    %101 = arith.mulf %97, %100 : vector<128x32xf32>
    %c2_159 = arith.constant 2 : index
    %c0_160 = arith.constant 0 : index
    %c0_161 = arith.constant 0 : index
    %102 = vector.load %arg4[%c2_159, %c0_160, %c0_161] : memref<5x1x32xf32, #tpu.memory_space<vmem>>, vector<1x1x32xf32>
    %103 = vector.shape_cast %102 : vector<1x1x32xf32> to vector<1x32xf32>
    %104 = vector.broadcast %103 : vector<1x32xf32> to vector<128x32xf32>
    %105 = arith.addf %101, %104 : vector<128x32xf32>
    %106 = arith.addf %105, %37 : vector<128x32xf32>
    %cst_162 = arith.constant 0.000000e+00 : f32
    %107 = vector.broadcast %cst_162 : f32 to vector<128x32xf32>
    %108 = arith.maximumf %106, %107 : vector<128x32xf32>
    %109 = arith.truncf %108 : vector<128x32xf32> to vector<128x32xbf16>
    %110 = vector.shape_cast %109 : vector<128x32xbf16> to vector<2x8x8x32xbf16>
    %c0_163 = arith.constant 0 : index
    %c1_164 = arith.constant 1 : index
    %c1_165 = arith.constant 1 : index
    %c0_166 = arith.constant 0 : index
    %111 = vector.load %arg6[%c0_163, %c1_164, %c1_165, %c0_166] : memref<2x10x10x32xbf16, #tpu.memory_space<vmem>>, vector<2x8x8x32xbf16>
    tpu.vector_store %arg6[%c0_163, %c1_164, %c1_165, %c0_166], %110 {strides = array<i32>} : memref<2x10x10x32xbf16, #tpu.memory_space<vmem>>, vector<2x8x8x32xbf16>,
    %c0_167 = arith.constant 0 : index
    %c0_168 = arith.constant 0 : index
    %c0_169 = arith.constant 0 : index
    %c0_170 = arith.constant 0 : index
    %112 = vector.load %arg6[%c0_167, %c0_168, %c0_169, %c0_170] : memref<2x10x10x32xbf16, #tpu.memory_space<vmem>>, vector<2x8x8x32xbf16>
    %113 = vector.shape_cast %112 : vector<2x8x8x32xbf16> to vector<128x32xbf16>
    %c0_171 = arith.constant 0 : index
    %c0_172 = arith.constant 0 : index
    %c1_173 = arith.constant 1 : index
    %c0_174 = arith.constant 0 : index
    %114 = vector.load %arg6[%c0_171, %c0_172, %c1_173, %c0_174] : memref<2x10x10x32xbf16, #tpu.memory_space<vmem>>, vector<2x8x8x32xbf16>
    %115 = vector.shape_cast %114 : vector<2x8x8x32xbf16> to vector<128x32xbf16>
    %c0_175 = arith.constant 0 : index
    %c0_176 = arith.constant 0 : index
    %c2_177 = arith.constant 2 : index
    %c0_178 = arith.constant 0 : index
    %116 = vector.load %arg6[%c0_175, %c0_176, %c2_177, %c0_178] : memref<2x10x10x32xbf16, #tpu.memory_space<vmem>>, vector<2x8x8x32xbf16>
    %117 = vector.shape_cast %116 : vector<2x8x8x32xbf16> to vector<128x32xbf16>
    %c0_179 = arith.constant 0 : index
    %c1_180 = arith.constant 1 : index
    %c0_181 = arith.constant 0 : index
    %c0_182 = arith.constant 0 : index
    %118 = vector.load %arg6[%c0_179, %c1_180, %c0_181, %c0_182] : memref<2x10x10x32xbf16, #tpu.memory_space<vmem>>, vector<2x8x8x32xbf16>
    %119 = vector.shape_cast %118 : vector<2x8x8x32xbf16> to vector<128x32xbf16>
    %c0_183 = arith.constant 0 : index
    %c1_184 = arith.constant 1 : index
    %c1_185 = arith.constant 1 : index
    %c0_186 = arith.constant 0 : index
    %120 = vector.load %arg6[%c0_183, %c1_184, %c1_185, %c0_186] : memref<2x10x10x32xbf16, #tpu.memory_space<vmem>>, vector<2x8x8x32xbf16>
    %121 = vector.shape_cast %120 : vector<2x8x8x32xbf16> to vector<128x32xbf16>
    %c0_187 = arith.constant 0 : index
    %c1_188 = arith.constant 1 : index
    %c2_189 = arith.constant 2 : index
    %c0_190 = arith.constant 0 : index
    %122 = vector.load %arg6[%c0_187, %c1_188, %c2_189, %c0_190] : memref<2x10x10x32xbf16, #tpu.memory_space<vmem>>, vector<2x8x8x32xbf16>
    %123 = vector.shape_cast %122 : vector<2x8x8x32xbf16> to vector<128x32xbf16>
    %c0_191 = arith.constant 0 : index
    %c2_192 = arith.constant 2 : index
    %c0_193 = arith.constant 0 : index
    %c0_194 = arith.constant 0 : index
    %124 = vector.load %arg6[%c0_191, %c2_192, %c0_193, %c0_194] : memref<2x10x10x32xbf16, #tpu.memory_space<vmem>>, vector<2x8x8x32xbf16>
    %125 = vector.shape_cast %124 : vector<2x8x8x32xbf16> to vector<128x32xbf16>
    %c0_195 = arith.constant 0 : index
    %c2_196 = arith.constant 2 : index
    %c1_197 = arith.constant 1 : index
    %c0_198 = arith.constant 0 : index
    %126 = vector.load %arg6[%c0_195, %c2_196, %c1_197, %c0_198] : memref<2x10x10x32xbf16, #tpu.memory_space<vmem>>, vector<2x8x8x32xbf16>
    %127 = vector.shape_cast %126 : vector<2x8x8x32xbf16> to vector<128x32xbf16>
    %c0_199 = arith.constant 0 : index
    %c2_200 = arith.constant 2 : index
    %c2_201 = arith.constant 2 : index
    %c0_202 = arith.constant 0 : index
    %128 = vector.load %arg6[%c0_199, %c2_200, %c2_201, %c0_202] : memref<2x10x10x32xbf16, #tpu.memory_space<vmem>>, vector<2x8x8x32xbf16>
    %129 = vector.shape_cast %128 : vector<2x8x8x32xbf16> to vector<128x32xbf16>
    %130 = tpu.concatenate %113, %115, %117, %119, %121, %123, %125, %127, %129 in 1 : vector<128x32xbf16>, vector<128x32xbf16>, vector<128x32xbf16>, vector<128x32xbf16>, vector<128x32xbf16>, vector<128x32xbf16>, vector<128x32xbf16>, vector<128x32xbf16>, vector<128x32xbf16> -> vector<128x288xbf16>
    %c3 = arith.constant 3 : index
    %c0_203 = arith.constant 0 : index
    %c0_204 = arith.constant 0 : index
    %131 = vector.load %arg2[%c3, %c0_203, %c0_204] : memref<5x288x32xbf16, #tpu.memory_space<vmem>>, vector<1x288x32xbf16>
    %132 = vector.shape_cast %131 : vector<1x288x32xbf16> to vector<288x32xbf16>
    %cst_205 = arith.constant dense<0.000000e+00> : vector<128x32xf32>
    %133 = tpu.matmul %130, %132, %cst_205 {dimension_numbers = #tpu.dot_dimension_numbers<[1], [0], [0], [1], [0, 0, 1, 1], [], []>} : vector<128x288xbf16>, vector<288x32xbf16>, vector<128x32xf32> -> vector<128x32xf32>
    %c3_206 = arith.constant 3 : index
    %c0_207 = arith.constant 0 : index
    %c0_208 = arith.constant 0 : index
    %134 = vector.load %arg3[%c3_206, %c0_207, %c0_208] : memref<5x1x32xf32, #tpu.memory_space<vmem>>, vector<1x1x32xf32>
    %135 = vector.shape_cast %134 : vector<1x1x32xf32> to vector<1x32xf32>
    %136 = vector.broadcast %135 : vector<1x32xf32> to vector<128x32xf32>
    %137 = arith.mulf %133, %136 : vector<128x32xf32>
    %c3_209 = arith.constant 3 : index
    %c0_210 = arith.constant 0 : index
    %c0_211 = arith.constant 0 : index
    %138 = vector.load %arg4[%c3_209, %c0_210, %c0_211] : memref<5x1x32xf32, #tpu.memory_space<vmem>>, vector<1x1x32xf32>
    %139 = vector.shape_cast %138 : vector<1x1x32xf32> to vector<1x32xf32>
    %140 = vector.broadcast %139 : vector<1x32xf32> to vector<128x32xf32>
    %141 = arith.addf %137, %140 : vector<128x32xf32>
    %cst_212 = arith.constant 0.000000e+00 : f32
    %142 = vector.broadcast %cst_212 : f32 to vector<128x32xf32>
    %143 = arith.maximumf %141, %142 : vector<128x32xf32>
    %144 = arith.truncf %143 : vector<128x32xf32> to vector<128x32xbf16>
    %145 = vector.shape_cast %144 : vector<128x32xbf16> to vector<2x8x8x32xbf16>
    %c0_213 = arith.constant 0 : index
    %c1_214 = arith.constant 1 : index
    %c1_215 = arith.constant 1 : index
    %c0_216 = arith.constant 0 : index
    %146 = vector.load %arg7[%c0_213, %c1_214, %c1_215, %c0_216] : memref<2x10x10x32xbf16, #tpu.memory_space<vmem>>, vector<2x8x8x32xbf16>
    tpu.vector_store %arg7[%c0_213, %c1_214, %c1_215, %c0_216], %145 {strides = array<i32>} : memref<2x10x10x32xbf16, #tpu.memory_space<vmem>>, vector<2x8x8x32xbf16>,
    %c0_217 = arith.constant 0 : index
    %c0_218 = arith.constant 0 : index
    %c0_219 = arith.constant 0 : index
    %c0_220 = arith.constant 0 : index
    %147 = vector.load %arg7[%c0_217, %c0_218, %c0_219, %c0_220] : memref<2x10x10x32xbf16, #tpu.memory_space<vmem>>, vector<2x8x8x32xbf16>
    %148 = vector.shape_cast %147 : vector<2x8x8x32xbf16> to vector<128x32xbf16>
    %c0_221 = arith.constant 0 : index
    %c0_222 = arith.constant 0 : index
    %c1_223 = arith.constant 1 : index
    %c0_224 = arith.constant 0 : index
    %149 = vector.load %arg7[%c0_221, %c0_222, %c1_223, %c0_224] : memref<2x10x10x32xbf16, #tpu.memory_space<vmem>>, vector<2x8x8x32xbf16>
    %150 = vector.shape_cast %149 : vector<2x8x8x32xbf16> to vector<128x32xbf16>
    %c0_225 = arith.constant 0 : index
    %c0_226 = arith.constant 0 : index
    %c2_227 = arith.constant 2 : index
    %c0_228 = arith.constant 0 : index
    %151 = vector.load %arg7[%c0_225, %c0_226, %c2_227, %c0_228] : memref<2x10x10x32xbf16, #tpu.memory_space<vmem>>, vector<2x8x8x32xbf16>
    %152 = vector.shape_cast %151 : vector<2x8x8x32xbf16> to vector<128x32xbf16>
    %c0_229 = arith.constant 0 : index
    %c1_230 = arith.constant 1 : index
    %c0_231 = arith.constant 0 : index
    %c0_232 = arith.constant 0 : index
    %153 = vector.load %arg7[%c0_229, %c1_230, %c0_231, %c0_232] : memref<2x10x10x32xbf16, #tpu.memory_space<vmem>>, vector<2x8x8x32xbf16>
    %154 = vector.shape_cast %153 : vector<2x8x8x32xbf16> to vector<128x32xbf16>
    %c0_233 = arith.constant 0 : index
    %c1_234 = arith.constant 1 : index
    %c1_235 = arith.constant 1 : index
    %c0_236 = arith.constant 0 : index
    %155 = vector.load %arg7[%c0_233, %c1_234, %c1_235, %c0_236] : memref<2x10x10x32xbf16, #tpu.memory_space<vmem>>, vector<2x8x8x32xbf16>
    %156 = vector.shape_cast %155 : vector<2x8x8x32xbf16> to vector<128x32xbf16>
    %c0_237 = arith.constant 0 : index
    %c1_238 = arith.constant 1 : index
    %c2_239 = arith.constant 2 : index
    %c0_240 = arith.constant 0 : index
    %157 = vector.load %arg7[%c0_237, %c1_238, %c2_239, %c0_240] : memref<2x10x10x32xbf16, #tpu.memory_space<vmem>>, vector<2x8x8x32xbf16>
    %158 = vector.shape_cast %157 : vector<2x8x8x32xbf16> to vector<128x32xbf16>
    %c0_241 = arith.constant 0 : index
    %c2_242 = arith.constant 2 : index
    %c0_243 = arith.constant 0 : index
    %c0_244 = arith.constant 0 : index
    %159 = vector.load %arg7[%c0_241, %c2_242, %c0_243, %c0_244] : memref<2x10x10x32xbf16, #tpu.memory_space<vmem>>, vector<2x8x8x32xbf16>
    %160 = vector.shape_cast %159 : vector<2x8x8x32xbf16> to vector<128x32xbf16>
    %c0_245 = arith.constant 0 : index
    %c2_246 = arith.constant 2 : index
    %c1_247 = arith.constant 1 : index
    %c0_248 = arith.constant 0 : index
    %161 = vector.load %arg7[%c0_245, %c2_246, %c1_247, %c0_248] : memref<2x10x10x32xbf16, #tpu.memory_space<vmem>>, vector<2x8x8x32xbf16>
    %162 = vector.shape_cast %161 : vector<2x8x8x32xbf16> to vector<128x32xbf16>
    %c0_249 = arith.constant 0 : index
    %c2_250 = arith.constant 2 : index
    %c2_251 = arith.constant 2 : index
    %c0_252 = arith.constant 0 : index
    %163 = vector.load %arg7[%c0_249, %c2_250, %c2_251, %c0_252] : memref<2x10x10x32xbf16, #tpu.memory_space<vmem>>, vector<2x8x8x32xbf16>
    %164 = vector.shape_cast %163 : vector<2x8x8x32xbf16> to vector<128x32xbf16>
    %165 = tpu.concatenate %148, %150, %152, %154, %156, %158, %160, %162, %164 in 1 : vector<128x32xbf16>, vector<128x32xbf16>, vector<128x32xbf16>, vector<128x32xbf16>, vector<128x32xbf16>, vector<128x32xbf16>, vector<128x32xbf16>, vector<128x32xbf16>, vector<128x32xbf16> -> vector<128x288xbf16>
    %c4 = arith.constant 4 : index
    %c0_253 = arith.constant 0 : index
    %c0_254 = arith.constant 0 : index
    %166 = vector.load %arg2[%c4, %c0_253, %c0_254] : memref<5x288x32xbf16, #tpu.memory_space<vmem>>, vector<1x288x32xbf16>
    %167 = vector.shape_cast %166 : vector<1x288x32xbf16> to vector<288x32xbf16>
    %cst_255 = arith.constant dense<0.000000e+00> : vector<128x32xf32>
    %168 = tpu.matmul %165, %167, %cst_255 {dimension_numbers = #tpu.dot_dimension_numbers<[1], [0], [0], [1], [0, 0, 1, 1], [], []>} : vector<128x288xbf16>, vector<288x32xbf16>, vector<128x32xf32> -> vector<128x32xf32>
    %c4_256 = arith.constant 4 : index
    %c0_257 = arith.constant 0 : index
    %c0_258 = arith.constant 0 : index
    %169 = vector.load %arg3[%c4_256, %c0_257, %c0_258] : memref<5x1x32xf32, #tpu.memory_space<vmem>>, vector<1x1x32xf32>
    %170 = vector.shape_cast %169 : vector<1x1x32xf32> to vector<1x32xf32>
    %171 = vector.broadcast %170 : vector<1x32xf32> to vector<128x32xf32>
    %172 = arith.mulf %168, %171 : vector<128x32xf32>
    %c4_259 = arith.constant 4 : index
    %c0_260 = arith.constant 0 : index
    %c0_261 = arith.constant 0 : index
    %173 = vector.load %arg4[%c4_259, %c0_260, %c0_261] : memref<5x1x32xf32, #tpu.memory_space<vmem>>, vector<1x1x32xf32>
    %174 = vector.shape_cast %173 : vector<1x1x32xf32> to vector<1x32xf32>
    %175 = vector.broadcast %174 : vector<1x32xf32> to vector<128x32xf32>
    %176 = arith.addf %172, %175 : vector<128x32xf32>
    %177 = arith.addf %176, %108 : vector<128x32xf32>
    %cst_262 = arith.constant 0.000000e+00 : f32
    %178 = vector.broadcast %cst_262 : f32 to vector<128x32xf32>
    %179 = arith.maximumf %177, %178 : vector<128x32xf32>
    %180 = arith.truncf %179 : vector<128x32xf32> to vector<128x32xbf16>
    %181 = vector.shape_cast %180 : vector<128x32xbf16> to vector<2x8x8x32xbf16>
    %c0_263 = arith.constant 0 : index
    %c0_264 = arith.constant 0 : index
    %c0_265 = arith.constant 0 : index
    %c0_266 = arith.constant 0 : index
    %182 = vector.load %arg5[%c0_263, %c0_264, %c0_265, %c0_266] : memref<2x8x8x32xbf16, #tpu.memory_space<vmem>>, vector<2x8x8x32xbf16>
    tpu.vector_store %arg5[%c0_263, %c0_264, %c0_265, %c0_266], %181 {strides = array<i32>} : memref<2x8x8x32xbf16, #tpu.memory_space<vmem>>, vector<2x8x8x32xbf16>,
    return
  }
  func.func @transform_0(%arg0: i32) -> (i32, i32, i32, i32) {
    %c0_i32 = arith.constant 0 : i32
    %c0_i32_0 = arith.constant 0 : i32
    %c0_i32_1 = arith.constant 0 : i32
    %c0_i32_2 = arith.constant 0 : i32
    return %arg0, %c0_i32, %c0_i32_0, %c0_i32_1 : i32, i32, i32, i32
  }
  func.func @transform_1(%arg0: i32) -> (i32, i32, i32) {
    %c0_i32 = arith.constant 0 : i32
    %c0_i32_0 = arith.constant 0 : i32
    %c0_i32_1 = arith.constant 0 : i32
    %c0_i32_2 = arith.constant 0 : i32
    return %c0_i32, %c0_i32_0, %c0_i32_1 : i32, i32, i32
  }
  func.func @transform_2(%arg0: i32) -> (i32, i32, i32) {
    %c0_i32 = arith.constant 0 : i32
    %c0_i32_0 = arith.constant 0 : i32
    %c0_i32_1 = arith.constant 0 : i32
    %c0_i32_2 = arith.constant 0 : i32
    return %c0_i32, %c0_i32_0, %c0_i32_1 : i32, i32, i32
  }
  func.func @transform_3(%arg0: i32) -> (i32, i32, i32) {
    %c0_i32 = arith.constant 0 : i32
    %c0_i32_0 = arith.constant 0 : i32
    %c0_i32_1 = arith.constant 0 : i32
    %c0_i32_2 = arith.constant 0 : i32
    return %c0_i32, %c0_i32_0, %c0_i32_1 : i32, i32, i32
  }
  func.func @transform_4(%arg0: i32) -> (i32, i32, i32, i32) {
    %c0_i32 = arith.constant 0 : i32
    %c0_i32_0 = arith.constant 0 : i32
    %c0_i32_1 = arith.constant 0 : i32
    %c0_i32_2 = arith.constant 0 : i32
    return %arg0, %c0_i32, %c0_i32_0, %c0_i32_1 : i32, i32, i32, i32
  }
}

module attributes {stable_mosaic.version = 11 : i64} {
  func.func @_heads_conv_kernel(%arg0: i32, %arg1: memref<1x8x8x32xbf16, #tpu.memory_space<vmem>>, %arg2: memref<32x2xbf16, #tpu.memory_space<vmem>>, %arg3: memref<1x2xf32, #tpu.memory_space<vmem>>, %arg4: memref<1x2xf32, #tpu.memory_space<vmem>>, %arg5: memref<32x1xbf16, #tpu.memory_space<vmem>>, %arg6: memref<1x1xf32, #tpu.memory_space<vmem>>, %arg7: memref<1x1xf32, #tpu.memory_space<vmem>>, %arg8: memref<1x64x2xbf16, #tpu.memory_space<vmem>>, %arg9: memref<1x64x1xbf16, #tpu.memory_space<vmem>>) attributes {dimension_semantics = [#tpu.dimension_semantics<parallel>], iteration_bounds = array<i64: 2>, scalar_prefetch = 0 : i64, scratch_operands = 0 : i64, tpu.core_type = #tpu.core_type<tc>, window_params = [{transform_indices = @transform_0, window_bounds = array<i64: 1, 8, 8, 32>}, {pipeline_mode = #tpu.pipeline_mode<synchronous>, transform_indices = @transform_1, window_bounds = array<i64: 32, 2>}, {pipeline_mode = #tpu.pipeline_mode<synchronous>, transform_indices = @transform_2, window_bounds = array<i64: 1, 2>}, {pipeline_mode = #tpu.pipeline_mode<synchronous>, transform_indices = @transform_3, window_bounds = array<i64: 1, 2>}, {pipeline_mode = #tpu.pipeline_mode<synchronous>, transform_indices = @transform_4, window_bounds = array<i64: 32, 1>}, {pipeline_mode = #tpu.pipeline_mode<synchronous>, transform_indices = @transform_5, window_bounds = array<i64: 1, 1>}, {pipeline_mode = #tpu.pipeline_mode<synchronous>, transform_indices = @transform_6, window_bounds = array<i64: 1, 1>}, {transform_indices = @transform_7, window_bounds = array<i64: 1, 64, 2>}, {transform_indices = @transform_8, window_bounds = array<i64: 1, 64, 1>}]} {
    %c0 = arith.constant 0 : index
    %c0_0 = arith.constant 0 : index
    %c0_1 = arith.constant 0 : index
    %c0_2 = arith.constant 0 : index
    %0 = vector.load %arg1[%c0, %c0_0, %c0_1, %c0_2] : memref<1x8x8x32xbf16, #tpu.memory_space<vmem>>, vector<1x8x8x32xbf16>
    %1 = vector.shape_cast %0 : vector<1x8x8x32xbf16> to vector<8x8x32xbf16>
    %2 = vector.shape_cast %1 : vector<8x8x32xbf16> to vector<64x32xbf16>
    %c0_3 = arith.constant 0 : index
    %c0_4 = arith.constant 0 : index
    %3 = vector.load %arg2[%c0_3, %c0_4] : memref<32x2xbf16, #tpu.memory_space<vmem>>, vector<32x2xbf16>
    %cst = arith.constant dense<0.000000e+00> : vector<64x2xf32>
    %4 = tpu.matmul %2, %3, %cst {dimension_numbers = #tpu.dot_dimension_numbers<[1], [0], [0], [1], [0, 0, 1, 1], [], []>} : vector<64x32xbf16>, vector<32x2xbf16>, vector<64x2xf32> -> vector<64x2xf32>
    %c0_5 = arith.constant 0 : index
    %c0_6 = arith.constant 0 : index
    %5 = vector.load %arg3[%c0_5, %c0_6] : memref<1x2xf32, #tpu.memory_space<vmem>>, vector<1x2xf32>
    %6 = vector.broadcast %5 : vector<1x2xf32> to vector<64x2xf32>
    %7 = arith.mulf %4, %6 : vector<64x2xf32>
    %c0_7 = arith.constant 0 : index
    %c0_8 = arith.constant 0 : index
    %8 = vector.load %arg4[%c0_7, %c0_8] : memref<1x2xf32, #tpu.memory_space<vmem>>, vector<1x2xf32>
    %9 = vector.broadcast %8 : vector<1x2xf32> to vector<64x2xf32>
    %10 = arith.addf %7, %9 : vector<64x2xf32>
    %cst_9 = arith.constant 0.000000e+00 : f32
    %11 = vector.broadcast %cst_9 : f32 to vector<64x2xf32>
    %12 = arith.maximumf %10, %11 : vector<64x2xf32>
    %13 = arith.truncf %12 : vector<64x2xf32> to vector<64x2xbf16>
    %c0_10 = arith.constant 0 : index
    %c0_11 = arith.constant 0 : index
    %c0_12 = arith.constant 0 : index
    %14 = vector.load %arg8[%c0_10, %c0_11, %c0_12] : memref<1x64x2xbf16, #tpu.memory_space<vmem>>, vector<1x64x2xbf16>
    %15 = vector.shape_cast %14 : vector<1x64x2xbf16> to vector<64x2xbf16>
    %16 = vector.shape_cast %13 : vector<64x2xbf16> to vector<1x64x2xbf16>
    tpu.vector_store %arg8[%c0_10, %c0_11, %c0_12], %16 {strides = array<i32>} : memref<1x64x2xbf16, #tpu.memory_space<vmem>>, vector<1x64x2xbf16>,
    %c0_13 = arith.constant 0 : index
    %c0_14 = arith.constant 0 : index
    %17 = vector.load %arg5[%c0_13, %c0_14] : memref<32x1xbf16, #tpu.memory_space<vmem>>, vector<32x1xbf16>
    %cst_15 = arith.constant dense<0.000000e+00> : vector<64x1xf32>
    %18 = tpu.matmul %2, %17, %cst_15 {dimension_numbers = #tpu.dot_dimension_numbers<[1], [0], [0], [1], [0, 0, 1, 1], [], []>} : vector<64x32xbf16>, vector<32x1xbf16>, vector<64x1xf32> -> vector<64x1xf32>
    %c0_16 = arith.constant 0 : index
    %c0_17 = arith.constant 0 : index
    %19 = vector.load %arg6[%c0_16, %c0_17] : memref<1x1xf32, #tpu.memory_space<vmem>>, vector<1x1xf32>
    %20 = vector.broadcast %19 : vector<1x1xf32> to vector<64x1xf32>
    %21 = arith.mulf %18, %20 : vector<64x1xf32>
    %c0_18 = arith.constant 0 : index
    %c0_19 = arith.constant 0 : index
    %22 = vector.load %arg7[%c0_18, %c0_19] : memref<1x1xf32, #tpu.memory_space<vmem>>, vector<1x1xf32>
    %23 = vector.broadcast %22 : vector<1x1xf32> to vector<64x1xf32>
    %24 = arith.addf %21, %23 : vector<64x1xf32>
    %cst_20 = arith.constant 0.000000e+00 : f32
    %25 = vector.broadcast %cst_20 : f32 to vector<64x1xf32>
    %26 = arith.maximumf %24, %25 : vector<64x1xf32>
    %27 = arith.truncf %26 : vector<64x1xf32> to vector<64x1xbf16>
    %c0_21 = arith.constant 0 : index
    %c0_22 = arith.constant 0 : index
    %c0_23 = arith.constant 0 : index
    %28 = vector.load %arg9[%c0_21, %c0_22, %c0_23] : memref<1x64x1xbf16, #tpu.memory_space<vmem>>, vector<1x64x1xbf16>
    %29 = vector.shape_cast %28 : vector<1x64x1xbf16> to vector<64x1xbf16>
    %30 = vector.shape_cast %27 : vector<64x1xbf16> to vector<1x64x1xbf16>
    tpu.vector_store %arg9[%c0_21, %c0_22, %c0_23], %30 {strides = array<i32>} : memref<1x64x1xbf16, #tpu.memory_space<vmem>>, vector<1x64x1xbf16>,
    return
  }
  func.func @transform_0(%arg0: i32) -> (i32, i32, i32, i32) {
    %c0_i32 = arith.constant 0 : i32
    %c0_i32_0 = arith.constant 0 : i32
    %c0_i32_1 = arith.constant 0 : i32
    %c0_i32_2 = arith.constant 0 : i32
    return %arg0, %c0_i32, %c0_i32_0, %c0_i32_1 : i32, i32, i32, i32
  }
  func.func @transform_1(%arg0: i32) -> (i32, i32) {
    %c0_i32 = arith.constant 0 : i32
    %c0_i32_0 = arith.constant 0 : i32
    %c0_i32_1 = arith.constant 0 : i32
    return %c0_i32, %c0_i32_0 : i32, i32
  }
  func.func @transform_2(%arg0: i32) -> (i32, i32) {
    %c0_i32 = arith.constant 0 : i32
    %c0_i32_0 = arith.constant 0 : i32
    %c0_i32_1 = arith.constant 0 : i32
    return %c0_i32, %c0_i32_0 : i32, i32
  }
  func.func @transform_3(%arg0: i32) -> (i32, i32) {
    %c0_i32 = arith.constant 0 : i32
    %c0_i32_0 = arith.constant 0 : i32
    %c0_i32_1 = arith.constant 0 : i32
    return %c0_i32, %c0_i32_0 : i32, i32
  }
  func.func @transform_4(%arg0: i32) -> (i32, i32) {
    %c0_i32 = arith.constant 0 : i32
    %c0_i32_0 = arith.constant 0 : i32
    %c0_i32_1 = arith.constant 0 : i32
    return %c0_i32, %c0_i32_0 : i32, i32
  }
  func.func @transform_5(%arg0: i32) -> (i32, i32) {
    %c0_i32 = arith.constant 0 : i32
    %c0_i32_0 = arith.constant 0 : i32
    %c0_i32_1 = arith.constant 0 : i32
    return %c0_i32, %c0_i32_0 : i32, i32
  }
  func.func @transform_6(%arg0: i32) -> (i32, i32) {
    %c0_i32 = arith.constant 0 : i32
    %c0_i32_0 = arith.constant 0 : i32
    %c0_i32_1 = arith.constant 0 : i32
    return %c0_i32, %c0_i32_0 : i32, i32
  }
  func.func @transform_7(%arg0: i32) -> (i32, i32, i32) {
    %c0_i32 = arith.constant 0 : i32
    %c0_i32_0 = arith.constant 0 : i32
    %c0_i32_1 = arith.constant 0 : i32
    return %arg0, %c0_i32, %c0_i32_0 : i32, i32, i32
  }
  func.func @transform_8(%arg0: i32) -> (i32, i32, i32) {
    %c0_i32 = arith.constant 0 : i32
    %c0_i32_0 = arith.constant 0 : i32
    %c0_i32_1 = arith.constant 0 : i32
    return %arg0, %c0_i32, %c0_i32_0 : i32, i32, i32
  }
}

module attributes {stable_mosaic.version = 11 : i64} {
  func.func @_heads_fc_kernel(%arg0: memref<2x128xbf16, #tpu.memory_space<vmem>>, %arg1: memref<2x64xbf16, #tpu.memory_space<vmem>>, %arg2: memref<128x65xbf16, #tpu.memory_space<vmem>>, %arg3: memref<1x65xf32, #tpu.memory_space<vmem>>, %arg4: memref<64x256xbf16, #tpu.memory_space<vmem>>, %arg5: memref<1x256xf32, #tpu.memory_space<vmem>>, %arg6: memref<256x1xbf16, #tpu.memory_space<vmem>>, %arg7: memref<1x1xf32, #tpu.memory_space<vmem>>, %arg8: memref<2x65xf32, #tpu.memory_space<vmem>>, %arg9: memref<2x1xf32, #tpu.memory_space<vmem>>) attributes {dimension_semantics = [], scalar_prefetch = 0 : i64, scratch_operands = 0 : i64, tpu.core_type = #tpu.core_type<tc>} {
    %c0 = arith.constant 0 : index
    %c0_0 = arith.constant 0 : index
    %0 = vector.load %arg0[%c0, %c0_0] : memref<2x128xbf16, #tpu.memory_space<vmem>>, vector<2x128xbf16>
    %c0_1 = arith.constant 0 : index
    %c0_2 = arith.constant 0 : index
    %1 = vector.load %arg2[%c0_1, %c0_2] : memref<128x65xbf16, #tpu.memory_space<vmem>>, vector<128x65xbf16>
    %cst = arith.constant dense<0.000000e+00> : vector<2x65xf32>
    %2 = tpu.matmul %0, %1, %cst {dimension_numbers = #tpu.dot_dimension_numbers<[1], [0], [0], [1], [0, 0, 1, 1], [], []>} : vector<2x128xbf16>, vector<128x65xbf16>, vector<2x65xf32> -> vector<2x65xf32>
    %c0_3 = arith.constant 0 : index
    %c0_4 = arith.constant 0 : index
    %3 = vector.load %arg3[%c0_3, %c0_4] : memref<1x65xf32, #tpu.memory_space<vmem>>, vector<1x65xf32>
    %4 = vector.broadcast %3 : vector<1x65xf32> to vector<2x65xf32>
    %5 = arith.addf %2, %4 : vector<2x65xf32>
    %cst_5 = arith.constant dense<0xFF800000> : vector<2xf32>
    %6 = vector.multi_reduction <maximumf>, %5, %cst_5 [1] : vector<2x65xf32> to vector<2xf32>
    %7 = vector.shape_cast %6 : vector<2xf32> to vector<2x1xf32>
    %8 = vector.broadcast %7 : vector<2x1xf32> to vector<2x65xf32>
    %9 = arith.subf %5, %8 : vector<2x65xf32>
    %10 = math.exp %9 : vector<2x65xf32>
    %cst_6 = arith.constant dense<0.000000e+00> : vector<2xf32>
    %11 = vector.multi_reduction <add>, %10, %cst_6 [1] : vector<2x65xf32> to vector<2xf32>
    %12 = vector.shape_cast %11 : vector<2xf32> to vector<2x1xf32>
    %13 = vector.broadcast %12 : vector<2x1xf32> to vector<2x65xf32>
    %14 = arith.divf %10, %13 : vector<2x65xf32>
    %c0_7 = arith.constant 0 : index
    %c0_8 = arith.constant 0 : index
    %15 = vector.load %arg8[%c0_7, %c0_8] : memref<2x65xf32, #tpu.memory_space<vmem>>, vector<2x65xf32>
    tpu.vector_store %arg8[%c0_7, %c0_8], %14 {strides = array<i32>} : memref<2x65xf32, #tpu.memory_space<vmem>>, vector<2x65xf32>,
    %c0_9 = arith.constant 0 : index
    %c0_10 = arith.constant 0 : index
    %16 = vector.load %arg1[%c0_9, %c0_10] : memref<2x64xbf16, #tpu.memory_space<vmem>>, vector<2x64xbf16>
    %c0_11 = arith.constant 0 : index
    %c0_12 = arith.constant 0 : index
    %17 = vector.load %arg4[%c0_11, %c0_12] : memref<64x256xbf16, #tpu.memory_space<vmem>>, vector<64x256xbf16>
    %cst_13 = arith.constant dense<0.000000e+00> : vector<2x256xf32>
    %18 = tpu.matmul %16, %17, %cst_13 {dimension_numbers = #tpu.dot_dimension_numbers<[1], [0], [0], [1], [0, 0, 1, 1], [], []>} : vector<2x64xbf16>, vector<64x256xbf16>, vector<2x256xf32> -> vector<2x256xf32>
    %c0_14 = arith.constant 0 : index
    %c0_15 = arith.constant 0 : index
    %19 = vector.load %arg5[%c0_14, %c0_15] : memref<1x256xf32, #tpu.memory_space<vmem>>, vector<1x256xf32>
    %20 = vector.broadcast %19 : vector<1x256xf32> to vector<2x256xf32>
    %21 = arith.addf %18, %20 : vector<2x256xf32>
    %cst_16 = arith.constant 0.000000e+00 : f32
    %22 = vector.broadcast %cst_16 : f32 to vector<2x256xf32>
    %23 = arith.maximumf %21, %22 : vector<2x256xf32>
    %24 = arith.truncf %23 : vector<2x256xf32> to vector<2x256xbf16>
    %c0_17 = arith.constant 0 : index
    %c0_18 = arith.constant 0 : index
    %25 = vector.load %arg6[%c0_17, %c0_18] : memref<256x1xbf16, #tpu.memory_space<vmem>>, vector<256x1xbf16>
    %cst_19 = arith.constant dense<0.000000e+00> : vector<2x1xf32>
    %26 = tpu.matmul %24, %25, %cst_19 {dimension_numbers = #tpu.dot_dimension_numbers<[1], [0], [0], [1], [0, 0, 1, 1], [], []>} : vector<2x256xbf16>, vector<256x1xbf16>, vector<2x1xf32> -> vector<2x1xf32>
    %c0_20 = arith.constant 0 : index
    %c0_21 = arith.constant 0 : index
    %27 = vector.load %arg7[%c0_20, %c0_21] : memref<1x1xf32, #tpu.memory_space<vmem>>, vector<1x1xf32>
    %28 = vector.broadcast %27 : vector<1x1xf32> to vector<2x1xf32>
    %29 = arith.addf %26, %28 : vector<2x1xf32>
    %30 = math.tanh %29 : vector<2x1xf32>
    %c0_22 = arith.constant 0 : index
    %c0_23 = arith.constant 0 : index
    %31 = vector.load %arg9[%c0_22, %c0_23] : memref<2x1xf32, #tpu.memory_space<vmem>>, vector<2x1xf32>
    tpu.vector_store %arg9[%c0_22, %c0_23], %30 {strides = array<i32>} : memref<2x1xf32, #tpu.memory_space<vmem>>, vector<2x1xf32>,
    return
  }
}

</mosaic_0001>

<llo_original>
// kernel: policy_value_forward.4
$region0: #{policy_value_forward.4}
  #allocation0 [shape = 'u32[]', space=smem, size = 0x4, offset = 0x4, fixed_abs, tag = 'smem constant byte address 0x4 - core index']
  #allocation1 [shape = 'u32[144,128]{1,0:T(1,128)}', space=vmem, size = 0x12000, scoped, tag = 'internal scratch']
  #allocation2 [shape = 'f32[1,1]{1,0:T(1,128)S(1)}', space=vmem, size = 0x200, scoped, tag = 'scoped memory for policy_value_forward.4']
  #allocation3 [shape = 'f32[1,1]{1,0:T(1,128)S(1)}', space=vmem, size = 0x200, scoped, tag = 'scoped memory for policy_value_forward.4']
  %s0 = inlined_call_operand.vmem [shape: bf16[2,8,8,32], index: 0, kind: input, shape index: {}]
  %s1 = inlined_call_operand.vmem [shape: bf16[32,2], index: 1, kind: input, shape index: {}]
  %s2 = inlined_call_operand.vmem [shape: f32[1,2], index: 2, kind: input, shape index: {}]
  %s3 = inlined_call_operand.vmem [shape: f32[1,2], index: 3, kind: input, shape index: {}]
  %s4 = inlined_call_operand.vmem [shape: bf16[32,1], index: 4, kind: input, shape index: {}]
  %s5 = inlined_call_operand.<no memory space> [shape: f32[1,1], index: 5, kind: input, shape index: {}]
  %s6 = inlined_call_operand.<no memory space> [shape: f32[1,1], index: 6, kind: input, shape index: {}]
  %s7 = inlined_call_operand.vmem [shape: bf16[2,64,2], index: 7, kind: output, shape index: {0}]
  %s8 = inlined_call_operand.vmem [shape: bf16[2,64,1], index: 8, kind: output, shape index: {1}]
  %9 = xla_tuple %s7, %s8
  %s10 = sld [smem:[#allocation0]]
  $region69: #{policy_value_forward.4} parent=0
    _
  %s12 = ssub.s32 1, %s10
  %s13 = scalar_select 0, %s12, %s10
  %v14 = vstv %s5
  %15 = vst [vmem:[#allocation2] sm:$0x1] %v14
  %v16 = vstv %s6
  %17 = vst [vmem:[#allocation3] sm:$0x1] %v16
  loop: start=0, step=1, limit=4
  $region2: #{policy_value_forward.4} parent=0 // loop_pre_header
    _
  $region3: #{policy_value_forward.4} parent=0 // loop_header
    %s19 = sphi 0, %s23
    %p20 = scmp.ge.s32.totalorder %s19, 4
    %s29 = sphi 0, %s31
    %s32 = sphi 0, %s29
    %s33 = sphi 0, %s32
    %s49 = sphi 0, %s33
    %s53 = sphi 0, %s53
    %s55 = sphi 0, %s53
    %s56 = sphi 0, %s55
    %s70 = sphi 0, %s56
    %s74 = sphi 0, %s74
    %s76 = sphi 0, %s74
    %s77 = sphi 0, %s76
    %s91 = sphi 0, %s77
    %s95 = sphi 0, %s95
    %s97 = sphi 0, %s95
    %s98 = sphi 0, %s97
    %s112 = sphi 0, %s98
    %s116 = sphi 0, %s116
    %s118 = sphi 0, %s116
    %s119 = sphi 0, %s118
    %s133 = sphi 0, %s119
    %s137 = sphi 0, %s137
    %s139 = sphi 0, %s137
    %s140 = sphi 0, %s139
    %s154 = sphi 0, %s140
    %s158 = sphi 0, %s158
    %s160 = sphi 0, %s158
    %s161 = sphi 0, %s160
    %s175 = sphi 0, %s161
    %s181 = sphi 0, %s183
    %s184 = sphi 0, %s181
    %s185 = sphi 0, %s184
    %s201 = sphi 0, %s185
    %s207 = sphi 0, %s209
    %s210 = sphi 0, %s207
    %s211 = sphi 0, %s210
    %s227 = sphi 0, %s211
  $region4: #{policy_value_forward.4} parent=0 // loop_header_branch
    %22 = sbr.rel (%p20) target = $region8
  $region5: #{policy_value_forward.4} parent=0 // loop_body
    %s24 = ssub.s32 %s19, 1
    %s25 = ssub.s32 %s19, 2
    %s26 = sadd.s32 %s19, 1
    %s27 = ssub.s32 %s19, %s26
    %p28 = scmp.eq.s32.totalorder %s27, 0
    %s30 = sadd.s32 %s29, 1
    %s31 = scalar_select %p28, %s29, %s30
    %p34 = pneg %p28
    %p35 = scmp.eq.s32.totalorder %s19, 1
    %p36 = por %p34, %p35
    %p37 = scmp.ne.s32.totalorder %s29, %s32
    %p38 = scmp.eq.s32.totalorder %s19, 0
    %p39 = por %p37, %p38
    %p40 = scmp.ne.s32.totalorder %s29, %s32
    %p41 = scmp.eq.s32.totalorder %s24, 1
    %p42 = por %p40, %p41
    %p43 = scmp.ne.s32.totalorder %s32, %s33
    %p44 = scmp.eq.s32.totalorder %s24, 0
    %p45 = por %p43, %p44
    %p46 = scmp.ne.s32.totalorder %s32, %s33
    %p47 = scmp.eq.s32.totalorder %s25, 1
    %p48 = por %p46, %p47
    %p50 = scmp.ne.s32.totalorder %s33, %s49
    %p51 = scmp.eq.s32.totalorder %s25, 0
    %p52 = por %p50, %p51
    %s54 = sadd.s32 %s53, 1
    %p57 = scmp.eq.s32.totalorder %s19, 1
    %p58 = scmp.ne.s32.totalorder %s53, %s55
    %p59 = scmp.eq.s32.totalorder %s19, 0
    %p60 = por %p58, %p59
    %p61 = scmp.ne.s32.totalorder %s53, %s55
    %p62 = scmp.eq.s32.totalorder %s24, 1
    %p63 = por %p61, %p62
    %p64 = scmp.ne.s32.totalorder %s55, %s56
    %p65 = scmp.eq.s32.totalorder %s24, 0
    %p66 = por %p64, %p65
    %p67 = scmp.ne.s32.totalorder %s55, %s56
    %p68 = scmp.eq.s32.totalorder %s25, 1
    %p69 = por %p67, %p68
    %p71 = scmp.ne.s32.totalorder %s56, %s70
    %p72 = scmp.eq.s32.totalorder %s25, 0
    %p73 = por %p71, %p72
    %s75 = sadd.s32 %s74, 1
    %p78 = scmp.eq.s32.totalorder %s19, 1
    %p79 = scmp.ne.s32.totalorder %s74, %s76
    %p80 = scmp.eq.s32.totalorder %s19, 0
    %p81 = por %p79, %p80
    %p82 = scmp.ne.s32.totalorder %s74, %s76
    %p83 = scmp.eq.s32.totalorder %s24, 1
    %p84 = por %p82, %p83
    %p85 = scmp.ne.s32.totalorder %s76, %s77
    %p86 = scmp.eq.s32.totalorder %s24, 0
    %p87 = por %p85, %p86
    %p88 = scmp.ne.s32.totalorder %s76, %s77
    %p89 = scmp.eq.s32.totalorder %s25, 1
    %p90 = por %p88, %p89
    %p92 = scmp.ne.s32.totalorder %s77, %s91
    %p93 = scmp.eq.s32.totalorder %s25, 0
    %p94 = por %p92, %p93
    %s96 = sadd.s32 %s95, 1
    %p99 = scmp.eq.s32.totalorder %s19, 1
    %p100 = scmp.ne.s32.totalorder %s95, %s97
    %p101 = scmp.eq.s32.totalorder %s19, 0
    %p102 = por %p100, %p101
    %p103 = scmp.ne.s32.totalorder %s95, %s97
    %p104 = scmp.eq.s32.totalorder %s24, 1
    %p105 = por %p103, %p104
    %p106 = scmp.ne.s32.totalorder %s97, %s98
    %p107 = scmp.eq.s32.totalorder %s24, 0
    %p108 = por %p106, %p107
    %p109 = scmp.ne.s32.totalorder %s97, %s98
    %p110 = scmp.eq.s32.totalorder %s25, 1
    %p111 = por %p109, %p110
    %p113 = scmp.ne.s32.totalorder %s98, %s112
    %p114 = scmp.eq.s32.totalorder %s25, 0
    %p115 = por %p113, %p114
    %s117 = sadd.s32 %s116, 1
    %p120 = scmp.eq.s32.totalorder %s19, 1
    %p121 = scmp.ne.s32.totalorder %s116, %s118
    %p122 = scmp.eq.s32.totalorder %s19, 0
    %p123 = por %p121, %p122
    %p124 = scmp.ne.s32.totalorder %s116, %s118
    %p125 = scmp.eq.s32.totalorder %s24, 1
    %p126 = por %p124, %p125
    %p127 = scmp.ne.s32.totalorder %s118, %s119
    %p128 = scmp.eq.s32.totalorder %s24, 0
    %p129 = por %p127, %p128
    %p130 = scmp.ne.s32.totalorder %s118, %s119
    %p131 = scmp.eq.s32.totalorder %s25, 1
    %p132 = por %p130, %p131
    %p134 = scmp.ne.s32.totalorder %s119, %s133
    %p135 = scmp.eq.s32.totalorder %s25, 0
    %p136 = por %p134, %p135
    %s138 = sadd.s32 %s137, 1
    %p141 = scmp.eq.s32.totalorder %s19, 1
    %p142 = scmp.ne.s32.totalorder %s137, %s139
    %p143 = scmp.eq.s32.totalorder %s19, 0
    %p144 = por %p142, %p143
    %p145 = scmp.ne.s32.totalorder %s137, %s139
    %p146 = scmp.eq.s32.totalorder %s24, 1
    %p147 = por %p145, %p146
    %p148 = scmp.ne.s32.totalorder %s139, %s140
    %p149 = scmp.eq.s32.totalorder %s24, 0
    %p150 = por %p148, %p149
    %p151 = scmp.ne.s32.totalorder %s139, %s140
    %p152 = scmp.eq.s32.totalorder %s25, 1
    %p153 = por %p151, %p152
    %p155 = scmp.ne.s32.totalorder %s140, %s154
    %p156 = scmp.eq.s32.totalorder %s25, 0
    %p157 = por %p155, %p156
    %s159 = sadd.s32 %s158, 1
    %p162 = scmp.eq.s32.totalorder %s19, 1
    %p163 = scmp.ne.s32.totalorder %s158, %s160
    %p164 = scmp.eq.s32.totalorder %s19, 0
    %p165 = por %p163, %p164
    %p166 = scmp.ne.s32.totalorder %s158, %s160
    %p167 = scmp.eq.s32.totalorder %s24, 1
    %p168 = por %p166, %p167
    %p169 = scmp.ne.s32.totalorder %s160, %s161
    %p170 = scmp.eq.s32.totalorder %s24, 0
    %p171 = por %p169, %p170
    %p172 = scmp.ne.s32.totalorder %s160, %s161
    %p173 = scmp.eq.s32.totalorder %s25, 1
    %p174 = por %p172, %p173
    %p176 = scmp.ne.s32.totalorder %s161, %s175
    %p177 = scmp.eq.s32.totalorder %s25, 0
    %p178 = por %p176, %p177
    %s179 = ssub.s32 %s19, %s26
    %p180 = scmp.eq.s32.totalorder %s179, 0
    %s182 = sadd.s32 %s181, 1
    %s183 = scalar_select %p180, %s181, %s182
    %p186 = pneg %p180
    %p187 = scmp.eq.s32.totalorder %s19, 1
    %p188 = por %p186, %p187
    %p189 = scmp.ne.s32.totalorder %s181, %s184
    %p190 = scmp.eq.s32.totalorder %s19, 0
    %p191 = por %p189, %p190
    %p192 = scmp.ne.s32.totalorder %s181, %s184
    %p193 = scmp.eq.s32.totalorder %s24, 1
    %p194 = por %p192, %p193
    %p195 = scmp.ne.s32.totalorder %s184, %s185
    %p196 = scmp.eq.s32.totalorder %s24, 0
    %p197 = por %p195, %p196
    %p198 = scmp.ne.s32.totalorder %s184, %s185
    %p199 = scmp.eq.s32.totalorder %s25, 1
    %p200 = por %p198, %p199
    %p202 = scmp.ne.s32.totalorder %s185, %s201
    %p203 = scmp.eq.s32.totalorder %s25, 0
    %p204 = por %p202, %p203
    %s205 = ssub.s32 %s19, %s26
    %p206 = scmp.eq.s32.totalorder %s205, 0
    %s208 = sadd.s32 %s207, 1
    %s209 = scalar_select %p206, %s207, %s208
    %p212 = pneg %p206
    %p213 = scmp.eq.s32.totalorder %s19, 1
    %p214 = por %p212, %p213
    %p215 = scmp.ne.s32.totalorder %s207, %s210
    %p216 = scmp.eq.s32.totalorder %s19, 0
    %p217 = por %p215, %p216
    %p218 = scmp.ne.s32.totalorder %s207, %s210
    %p219 = scmp.eq.s32.totalorder %s24, 1
    %p220 = por %p218, %p219
    %p221 = scmp.ne.s32.totalorder %s210, %s211
    %p222 = scmp.eq.s32.totalorder %s24, 0
    %p223 = por %p221, %p222
    %p224 = scmp.ne.s32.totalorder %s210, %s211
    %p225 = scmp.eq.s32.totalorder %s25, 1
    %p226 = por %p224, %p225
    %p228 = scmp.ne.s32.totalorder %s211, %s227
    %p229 = scmp.eq.s32.totalorder %s25, 0
    %p230 = por %p228, %p229
    %p231 = scmp.le.s32.totalorder 1, %s19
    %p232 = scmp.lt.s32.totalorder %s19, 3
    %p233 = pnand %p231, %p232
    %p234 = pneg %p233
    // Predicated region
    $region9: #{policy_value_forward.4} parent=5 // pred_check
      _
    $region10: #{policy_value_forward.4} parent=5 // pred_check_branch
      %236 = sbr.rel (%p233) target = $region12
    $region11: #{policy_value_forward.4} parent=5 // pred_region
      %s237 = ssub.s32 %s19, 1
      // Predicated region
      $region13: #{policy_value_forward.4} parent=11 // pred_check
        %p238 = pneg %p66
      $region14: #{policy_value_forward.4} parent=11 // pred_check_branch
        %240 = sbr.rel (%p238) target = $region16
      $region15: #{policy_value_forward.4} parent=11 // pred_region
        _
      $region16: #{policy_value_forward.4} parent=11 // pred_fallthru
        _
      // Predicated region
      $region17: #{policy_value_forward.4} parent=11 // pred_check
        %p241 = pneg %p87
      $region18: #{policy_value_forward.4} parent=11 // pred_check_branch
        %243 = sbr.rel (%p241) target = $region20
      $region19: #{policy_value_forward.4} parent=11 // pred_region
        _
      $region20: #{policy_value_forward.4} parent=11 // pred_fallthru
        _
      // Predicated region
      $region21: #{policy_value_forward.4} parent=11 // pred_check
        %p244 = pneg %p108
      $region22: #{policy_value_forward.4} parent=11 // pred_check_branch
        %246 = sbr.rel (%p244) target = $region24
      $region23: #{policy_value_forward.4} parent=11 // pred_region
        _
      $region24: #{policy_value_forward.4} parent=11 // pred_fallthru
        _
      // Predicated region
      $region25: #{policy_value_forward.4} parent=11 // pred_check
        %p247 = pneg %p129
      $region26: #{policy_value_forward.4} parent=11 // pred_check_branch
        %249 = sbr.rel (%p247) target = $region28
      $region27: #{policy_value_forward.4} parent=11 // pred_region
        _
      $region28: #{policy_value_forward.4} parent=11 // pred_fallthru
        _
      // Predicated region
      $region29: #{policy_value_forward.4} parent=11 // pred_check
        %p250 = pneg %p150
      $region30: #{policy_value_forward.4} parent=11 // pred_check_branch
        %252 = sbr.rel (%p250) target = $region32
      $region31: #{policy_value_forward.4} parent=11 // pred_region
        _
      $region32: #{policy_value_forward.4} parent=11 // pred_fallthru
        _
      // Predicated region
      $region33: #{policy_value_forward.4} parent=11 // pred_check
        %p253 = pneg %p171
      $region34: #{policy_value_forward.4} parent=11 // pred_check_branch
        %255 = sbr.rel (%p253) target = $region36
      $region35: #{policy_value_forward.4} parent=11 // pred_region
        _
      $region36: #{policy_value_forward.4} parent=11 // pred_fallthru
        _
    $region12: #{policy_value_forward.4} parent=5 // pred_fallthru
      _
    %p256 = scmp.lt.s32.totalorder %s19, 2
    // Predicated region
    $region37: #{policy_value_forward.4} parent=5 // pred_check
      %p257 = pneg %p256
    $region38: #{policy_value_forward.4} parent=5 // pred_check_branch
      %259 = sbr.rel (%p257) target = $region40
    $region39: #{policy_value_forward.4} parent=5 // pred_region
      // Predicated region
      $region41: #{policy_value_forward.4} parent=39 // pred_check
        %p260 = pneg %p39
      $region42: #{policy_value_forward.4} parent=39 // pred_check_branch
        %262 = sbr.rel (%p260) target = $region44
      $region43: #{policy_value_forward.4} parent=39 // pred_region
        %p263 = scmp.lt.s32.totalorder %s19, 1
        %s264 = scalar_select %p263, %s19, 1
        %s265 = smul.addr %s264, 8
        %s266 = smul.addr %s265, 4
        %s267 = scalar_lea.vmem %s0, %s266
      $region44: #{policy_value_forward.4} parent=39 // pred_fallthru
        _
    $region40: #{policy_value_forward.4} parent=5 // pred_fallthru
      _
    %p268 = scmp.le.s32.totalorder 1, %s19
    %p269 = scmp.lt.s32.totalorder %s19, 3
    %p270 = pnand %p268, %p269
    %p271 = pneg %p270
    // Predicated region
    $region45: #{policy_value_forward.4} parent=5 // pred_check
      _
    $region46: #{policy_value_forward.4} parent=5 // pred_check_branch
      %273 = sbr.rel (%p270) target = $region48
    $region47: #{policy_value_forward.4} parent=5 // pred_region
      %s274 = ssub.s32 %s19, 1
      %p275 = scmp.lt.s32.totalorder %s24, 1
      %s276 = scalar_select %p275, %s24, 1
      %s277 = smul.addr %s276, 8
      %s278 = smul.addr %s277, 4
      %s279 = scalar_lea.vmem %s0, %s278
      %p280 = pneg %p45
      %p281 = pneg %p42
      %p282 = pneg %p66
      %p283 = pneg %p63
      %p284 = pneg %p87
      %p285 = pneg %p84
      %p286 = pneg %p108
      %p287 = pneg %p105
      %p288 = pneg %p129
      %p289 = pneg %p126
      %p290 = pneg %p150
      %p291 = pneg %p147
      %p292 = pneg %p171
      %p293 = pneg %p168
      %p294 = pneg %p197
      %p295 = pneg %p194
      %p296 = scmp.lt.s32.totalorder %s24, 1
      %s297 = scalar_select %p296, %s24, 1
      %s298 = smul.addr %s297, 8
      %s299 = smul.addr %s298, 4
      %s300 = scalar_lea.vmem %s7, %s299
      %p301 = pneg %p223
      %p302 = pneg %p220
      %p303 = scmp.lt.s32.totalorder %s24, 1
      %s304 = scalar_select %p303, %s24, 1
      %s305 = smul.addr %s304, 8
      %s306 = smul.addr %s305, 4
      %s307 = scalar_lea.vmem %s8, %s306
      %p308 = scmp.lt.s32.totalorder %s24, 1
      %s309 = scalar_select %p308, %s24, 1
      %s310 = smul.addr %s309, 8
      %s311 = smul.addr %s310, 4
      %s312 = scalar_lea.vmem %s0, %s311
      %p313 = scmp.lt.s32.totalorder %s24, 1
      %s314 = scalar_select %p313, %s24, 1
      %s315 = smul.addr %s314, 8
      %s316 = smul.addr %s315, 4
      %s317 = scalar_lea.vmem %s7, %s316
      %p318 = scmp.lt.s32.totalorder %s24, 1
      %s319 = scalar_select %p318, %s24, 1
      %s320 = smul.addr %s319, 8
      %s321 = smul.addr %s320, 4
      %s322 = scalar_lea.vmem %s8, %s321
      %v324 = vld [vmem:[%s312] sm:$0xf]
      %v325 = vld [vmem:[%s312 + $0x4] sm:$0xf]
      %v326 = vld [vmem:[%s312 + $0x8] sm:$0xf]
      %v327 = vld [vmem:[%s312 + $0xc] sm:$0xf]
      %v328 = vld [vmem:[%s312 + $0x10] sm:$0xf]
      %v329 = vld [vmem:[%s312 + $0x14] sm:$0xf]
      %v330 = vld [vmem:[%s312 + $0x18] sm:$0xf]
      %v331 = vld [vmem:[%s312 + $0x1c] sm:$0xf]
      %v332 = vld [vmem:[%s1] sm:$0xf]
      %v333 = vld [vmem:[%s1 + $0x4] sm:$0xf]
      %v334 = vld [vmem:[%s1 + $0x8] sm:$0xf]
      %v335 = vld [vmem:[%s1 + $0xc] sm:$0xf]
      %v344 = vunpack.c.l.b16 %v324
      %v345 = vunpack.c.l.b16 %v325
      %v346 = vunpack.c.l.b16 %v326
      %v347 = vunpack.c.l.b16 %v327
      %v348 = vunpack.c.l.b16 %v328
      %v349 = vunpack.c.l.b16 %v329
      %v350 = vunpack.c.l.b16 %v330
      %v351 = vunpack.c.l.b16 %v331
      %v352 = vpack.c.b16 %v345, %v344
      %v353 = vpack.c.b16 %v347, %v346
      %v354 = vpack.c.b16 %v349, %v348
      %v355 = vpack.c.b16 %v351, %v350
      %v360 = vunpack.c.l.b16 %v332
      %v361 = vunpack.c.l.b16 %v333
      %v362 = vunpack.c.l.b16 %v334
      %v363 = vunpack.c.l.b16 %v335
      %v364 = vpack.c.b16 %v361, %v360
      %v365 = vpack.c.b16 %v363, %v362
      %vm368 = vcmask 261120
      %v370 = vsel %vm368, %v352, 0
      %v373 = vsel %vm368, %v353, 0
      %v376 = vsel %vm368, %v354, 0
      %v379 = vsel %vm368, %v355, 0
      %381 = vmatprep.subr.bf16.mxu0 0
      %382 = vmatpush1.bf16.msra.mxu0 0
      %383 = vmatprep.subr.bf16.mxu0 0
      %384 = vmatpush1.bf16.msra.mxu0 0
      %385 = vmatprep.subr.bf16.mxu0 0
      %386 = vmatpush1.bf16.msra.mxu0 0
      %387 = vmatprep.subr.bf16.mxu0 0
      %388 = vmatpush1.bf16.msra.mxu0 0
      %389 = vmatprep.subr.bf16.mxu0 0
      %390 = vmatpush1.bf16.msra.mxu0 0
      %391 = vmatprep.subr.bf16.mxu0 0
      %392 = vmatpush1.bf16.msra.mxu0 0
      %393 = vmatprep.subr.bf16.mxu0 0
      %394 = vmatpush1.bf16.msra.mxu0 %v365
      %395 = vmatprep.subr.bf16.mxu0 0
      %396 = vmatpush1.bf16.msra.mxu0 %v364
      %397 = vmatprep.subr.bf16.mxu0 0
      %398 = vmatpush2.bf16.msra.mxu0 0
      %399 = vmatprep.subr.bf16.mxu0 0
      %400 = vmatpush2.bf16.msra.mxu0 0
      %401 = vmatprep.subr.bf16.mxu0 0
      %402 = vmatpush2.bf16.msra.mxu0 0
      %403 = vmatprep.subr.bf16.mxu0 0
      %404 = vmatpush2.bf16.msra.mxu0 0
      %405 = vmatprep.subr.bf16.mxu0 0
      %406 = vmatpush2.bf16.msra.mxu0 0
      %407 = vmatprep.subr.bf16.mxu0 0
      %408 = vmatpush2.bf16.msra.mxu0 0
      %409 = vmatprep.subr.bf16.mxu0 0
      %410 = vmatpush2.bf16.msra.mxu0 0
      %411 = vmatprep.subr.bf16.mxu0 0
      %412 = vmatpush2.bf16.msra.mxu0 0
      %413 = vmatprep.mubr.bf16.mxu0 0
      %414 = vmatmul.mubr.bf16.gmra.mxu0 %v370
      %v415 = vpop.f32.mrf.mxu0
      %v416 = vadd.f32 0.0, %v415
      %v417 = vpop.f32.mrf.mxu0
      %v418 = vpop.f32.mrf.mxu0
      %v419 = vadd.f32 0.0, %v418
      %v420 = vpop.f32.mrf.mxu0
      %421 = vmatprep.mubr.bf16.mxu0 0
      %422 = vmatmul.mubr.bf16.gmra.mxu0 %v373
      %v423 = vpop.f32.mrf.mxu0
      %v424 = vadd.f32 0.0, %v423
      %v425 = vpop.f32.mrf.mxu0
      %v426 = vpop.f32.mrf.mxu0
      %v427 = vadd.f32 0.0, %v426
      %v428 = vpop.f32.mrf.mxu0
      %429 = vmatprep.mubr.bf16.mxu0 0
      %430 = vmatmul.mubr.bf16.gmra.mxu0 %v376
      %v431 = vpop.f32.mrf.mxu0
      %v432 = vadd.f32 0.0, %v431
      %v433 = vpop.f32.mrf.mxu0
      %v434 = vpop.f32.mrf.mxu0
      %v435 = vadd.f32 0.0, %v434
      %v436 = vpop.f32.mrf.mxu0
      %437 = vmatprep.mubr.bf16.mxu0 0
      %438 = vmatmul.mubr.bf16.gmra.mxu0 %v379
      %v439 = vpop.f32.mrf.mxu0
      %v440 = vadd.f32 0.0, %v439
      %v441 = vpop.f32.mrf.mxu0
      %v442 = vpop.f32.mrf.mxu0
      %v443 = vadd.f32 0.0, %v442
      %v444 = vpop.f32.mrf.mxu0
      %445 = vdwg.mxu0
      %v446 = vld [vmem:[%s2] sm:$0x1]
      %v448 = vlaneseq
      %v449 = vshrl.u32 %v448, 7
      %v450 = vsub.s32 0, %v449
      %v451 = vrot.slane %v446, %v450
      %v453 = vmul.f32 %v416, %v451
      %v454 = vmul.f32 %v419, %v451
      %v455 = vmul.f32 %v424, %v451
      %v456 = vmul.f32 %v427, %v451
      %v457 = vmul.f32 %v432, %v451
      %v458 = vmul.f32 %v435, %v451
      %v459 = vmul.f32 %v440, %v451
      %v460 = vmul.f32 %v443, %v451
      %v461 = vld [vmem:[%s3] sm:$0x1]
      %v463 = vlaneseq
      %v464 = vshrl.u32 %v463, 7
      %v465 = vsub.s32 0, %v464
      %v466 = vrot.slane %v461, %v465
      %v468 = vadd.f32 %v453, %v466
      %v469 = vadd.f32 %v454, %v466
      %v470 = vadd.f32 %v455, %v466
      %v471 = vadd.f32 %v456, %v466
      %v472 = vadd.f32 %v457, %v466
      %v473 = vadd.f32 %v458, %v466
      %v474 = vadd.f32 %v459, %v466
      %v475 = vadd.f32 %v460, %v466
      %v476 = vmax.f32 %v468, 0.0
      %v477 = vmax.f32 %v469, 0.0
      %v478 = vmax.f32 %v470, 0.0
      %v479 = vmax.f32 %v471, 0.0
      %v480 = vmax.f32 %v472, 0.0
      %v481 = vmax.f32 %v473, 0.0
      %v482 = vmax.f32 %v474, 0.0
      %v483 = vmax.f32 %v475, 0.0
      %v484 = vpack.c.bf16 %v477, %v476
      %v485 = vpack.c.bf16 %v479, %v478
      %v486 = vpack.c.bf16 %v481, %v480
      %v487 = vpack.c.bf16 %v483, %v482
      %v492 = vunpack.c.l.b16 %v484
      %v493 = vunpack.c.h.b16 %v484
      %v494 = vunpack.c.l.b16 %v485
      %v495 = vunpack.c.h.b16 %v485
      %v496 = vunpack.c.l.b16 %v486
      %v497 = vunpack.c.h.b16 %v486
      %v498 = vunpack.c.l.b16 %v487
      %v499 = vunpack.c.h.b16 %v487
      %v500 = vpack.c.b16 %v492, %v492
      %v501 = vpack.c.b16 %v493, %v493
      %v502 = vpack.c.b16 %v494, %v494
      %v503 = vpack.c.b16 %v495, %v495
      %v504 = vpack.c.b16 %v496, %v496
      %v505 = vpack.c.b16 %v497, %v497
      %v506 = vpack.c.b16 %v498, %v498
      %v507 = vpack.c.b16 %v499, %v499
      %vm516 = vcmask 11264
      %517 = vst.msk [vmem:[%s317] sm:$0xf] %vm516, %v500
      %518 = vst.msk [vmem:[%s317 + $0x4] sm:$0xf] %vm516, %v501
      %519 = vst.msk [vmem:[%s317 + $0x8] sm:$0xf] %vm516, %v502
      %520 = vst.msk [vmem:[%s317 + $0xc] sm:$0xf] %vm516, %v503
      %521 = vst.msk [vmem:[%s317 + $0x10] sm:$0xf] %vm516, %v504
      %522 = vst.msk [vmem:[%s317 + $0x14] sm:$0xf] %vm516, %v505
      %523 = vst.msk [vmem:[%s317 + $0x18] sm:$0xf] %vm516, %v506
      %524 = vst.msk [vmem:[%s317 + $0x1c] sm:$0xf] %vm516, %v507
      %v525 = vld [vmem:[%s4] sm:$0xf]
      %v526 = vld [vmem:[%s4 + $0x4] sm:$0xf]
      %v527 = vld [vmem:[%s4 + $0x8] sm:$0xf]
      %v528 = vld [vmem:[%s4 + $0xc] sm:$0xf]
      %v533 = vunpack.c.l.b16 %v525
      %v534 = vunpack.c.l.b16 %v526
      %v535 = vunpack.c.l.b16 %v527
      %v536 = vunpack.c.l.b16 %v528
      %v537 = vpack.c.b16 %v534, %v533
      %v538 = vpack.c.b16 %v536, %v535
      %541 = vmatprep.subr.bf16.mxu0 0
      %542 = vmatpush1.bf16.msra.mxu0 0
      %543 = vmatprep.subr.bf16.mxu0 0
      %544 = vmatpush1.bf16.msra.mxu0 0
      %545 = vmatprep.subr.bf16.mxu0 0
      %546 = vmatpush1.bf16.msra.mxu0 0
      %547 = vmatprep.subr.bf16.mxu0 0
      %548 = vmatpush1.bf16.msra.mxu0 0
      %549 = vmatprep.subr.bf16.mxu0 0
      %550 = vmatpush1.bf16.msra.mxu0 0
      %551 = vmatprep.subr.bf16.mxu0 0
      %552 = vmatpush1.bf16.msra.mxu0 0
      %553 = vmatprep.subr.bf16.mxu0 0
      %554 = vmatpush1.bf16.msra.mxu0 %v538
      %555 = vmatprep.subr.bf16.mxu0 0
      %556 = vmatpush1.bf16.msra.mxu0 %v537
      %557 = vmatprep.subr.bf16.mxu0 0
      %558 = vmatpush2.bf16.msra.mxu0 0
      %559 = vmatprep.subr.bf16.mxu0 0
      %560 = vmatpush2.bf16.msra.mxu0 0
      %561 = vmatprep.subr.bf16.mxu0 0
      %562 = vmatpush2.bf16.msra.mxu0 0
      %563 = vmatprep.subr.bf16.mxu0 0
      %564 = vmatpush2.bf16.msra.mxu0 0
      %565 = vmatprep.subr.bf16.mxu0 0
      %566 = vmatpush2.bf16.msra.mxu0 0
      %567 = vmatprep.subr.bf16.mxu0 0
      %568 = vmatpush2.bf16.msra.mxu0 0
      %569 = vmatprep.subr.bf16.mxu0 0
      %570 = vmatpush2.bf16.msra.mxu0 0
      %571 = vmatprep.subr.bf16.mxu0 0
      %572 = vmatpush2.bf16.msra.mxu0 0
      %573 = vmatprep.mubr.bf16.mxu0 0
      %574 = vmatmul.mubr.bf16.gmra.mxu0 %v370
      %v575 = vpop.f32.mrf.mxu0
      %v576 = vadd.f32 0.0, %v575
      %v577 = vpop.f32.mrf.mxu0
      %v578 = vpop.f32.mrf.mxu0
      %v579 = vadd.f32 0.0, %v578
      %v580 = vpop.f32.mrf.mxu0
      %581 = vmatprep.mubr.bf16.mxu0 0
      %582 = vmatmul.mubr.bf16.gmra.mxu0 %v373
      %v583 = vpop.f32.mrf.mxu0
      %v584 = vadd.f32 0.0, %v583
      %v585 = vpop.f32.mrf.mxu0
      %v586 = vpop.f32.mrf.mxu0
      %v587 = vadd.f32 0.0, %v586
      %v588 = vpop.f32.mrf.mxu0
      %589 = vmatprep.mubr.bf16.mxu0 0
      %590 = vmatmul.mubr.bf16.gmra.mxu0 %v376
      %v591 = vpop.f32.mrf.mxu0
      %v592 = vadd.f32 0.0, %v591
      %v593 = vpop.f32.mrf.mxu0
      %v594 = vpop.f32.mrf.mxu0
      %v595 = vadd.f32 0.0, %v594
      %v596 = vpop.f32.mrf.mxu0
      %597 = vmatprep.mubr.bf16.mxu0 0
      %598 = vmatmul.mubr.bf16.gmra.mxu0 %v379
      %v599 = vpop.f32.mrf.mxu0
      %v600 = vadd.f32 0.0, %v599
      %v601 = vpop.f32.mrf.mxu0
      %v602 = vpop.f32.mrf.mxu0
      %v603 = vadd.f32 0.0, %v602
      %v604 = vpop.f32.mrf.mxu0
      %605 = vdwg.mxu0
      %v606 = vld [vmem:[#allocation2] sm:$0x1]
      %v608 = vlaneseq
      %v609 = vshrl.u32 %v608, 7
      %v610 = vsub.s32 0, %v609
      %v611 = vrot.slane %v606, %v610
      %v613 = vmul.f32 %v576, %v611
      %v614 = vmul.f32 %v579, %v611
      %v615 = vmul.f32 %v584, %v611
      %v616 = vmul.f32 %v587, %v611
      %v617 = vmul.f32 %v592, %v611
      %v618 = vmul.f32 %v595, %v611
      %v619 = vmul.f32 %v600, %v611
      %v620 = vmul.f32 %v603, %v611
      %v621 = vld [vmem:[#allocation3] sm:$0x1]
      %v623 = vlaneseq
      %v624 = vshrl.u32 %v623, 7
      %v625 = vsub.s32 0, %v624
      %v626 = vrot.slane %v621, %v625
      %v628 = vadd.f32 %v613, %v626
      %v629 = vadd.f32 %v614, %v626
      %v630 = vadd.f32 %v615, %v626
      %v631 = vadd.f32 %v616, %v626
      %v632 = vadd.f32 %v617, %v626
      %v633 = vadd.f32 %v618, %v626
      %v634 = vadd.f32 %v619, %v626
      %v635 = vadd.f32 %v620, %v626
      %v636 = vmax.f32 %v628, 0.0
      %v637 = vmax.f32 %v629, 0.0
      %v638 = vmax.f32 %v630, 0.0
      %v639 = vmax.f32 %v631, 0.0
      %v640 = vmax.f32 %v632, 0.0
      %v641 = vmax.f32 %v633, 0.0
      %v642 = vmax.f32 %v634, 0.0
      %v643 = vmax.f32 %v635, 0.0
      %v644 = vpack.c.bf16 %v637, %v636
      %v645 = vpack.c.bf16 %v639, %v638
      %v646 = vpack.c.bf16 %v641, %v640
      %v647 = vpack.c.bf16 %v643, %v642
      %v652 = vunpack.c.l.b16 %v644
      %v653 = vunpack.c.h.b16 %v644
      %v654 = vunpack.c.l.b16 %v645
      %v655 = vunpack.c.h.b16 %v645
      %v656 = vunpack.c.l.b16 %v646
      %v657 = vunpack.c.h.b16 %v646
      %v658 = vunpack.c.l.b16 %v647
      %v659 = vunpack.c.h.b16 %v647
      %v660 = vpack.c.b16 %v652, %v652
      %v661 = vpack.c.b16 %v653, %v653
      %v662 = vpack.c.b16 %v654, %v654
      %v663 = vpack.c.b16 %v655, %v655
      %v664 = vpack.c.b16 %v656, %v656
      %v665 = vpack.c.b16 %v657, %v657
      %v666 = vpack.c.b16 %v658, %v658
      %v667 = vpack.c.b16 %v659, %v659
      %vm676 = vcmask 3072
      %677 = vst.msk [vmem:[%s322] sm:$0xf] %vm676, %v660
      %678 = vst.msk [vmem:[%s322 + $0x4] sm:$0xf] %vm676, %v661
      %679 = vst.msk [vmem:[%s322 + $0x8] sm:$0xf] %vm676, %v662
      %680 = vst.msk [vmem:[%s322 + $0xc] sm:$0xf] %vm676, %v663
      %681 = vst.msk [vmem:[%s322 + $0x10] sm:$0xf] %vm676, %v664
      %682 = vst.msk [vmem:[%s322 + $0x14] sm:$0xf] %vm676, %v665
      %683 = vst.msk [vmem:[%s322 + $0x18] sm:$0xf] %vm676, %v666
      %684 = vst.msk [vmem:[%s322 + $0x1c] sm:$0xf] %vm676, %v667
      %p685 = scmp.lt.s32.totalorder %s24, 1
      %s686 = scalar_select %p685, %s24, 1
      %s687 = smul.addr %s686, 8
      %s688 = smul.addr %s687, 4
      %s689 = scalar_lea.vmem %s7, %s688
      %p690 = scmp.lt.s32.totalorder %s24, 1
      %s691 = scalar_select %p690, %s24, 1
      %s692 = smul.addr %s691, 8
      %s693 = smul.addr %s692, 4
      %s694 = scalar_lea.vmem %s8, %s693
      // Predicated region
      $region49: #{policy_value_forward.4} parent=47 // pred_check
        %p695 = pneg %p194
      $region50: #{policy_value_forward.4} parent=47 // pred_check_branch
        %697 = sbr.rel (%p695) target = $region52
      $region51: #{policy_value_forward.4} parent=47 // pred_region
        _
      $region52: #{policy_value_forward.4} parent=47 // pred_fallthru
        _
      // Predicated region
      $region53: #{policy_value_forward.4} parent=47 // pred_check
        %p698 = pneg %p220
      $region54: #{policy_value_forward.4} parent=47 // pred_check_branch
        %700 = sbr.rel (%p698) target = $region56
      $region55: #{policy_value_forward.4} parent=47 // pred_region
        _
      $region56: #{policy_value_forward.4} parent=47 // pred_fallthru
        _
    $region48: #{policy_value_forward.4} parent=5 // pred_fallthru
      _
    %p701 = scmp.le.s32.totalorder 2, %s19
    // Predicated region
    $region57: #{policy_value_forward.4} parent=5 // pred_check
      %p702 = pneg %p701
    $region58: #{policy_value_forward.4} parent=5 // pred_check_branch
      %704 = sbr.rel (%p702) target = $region60
    $region59: #{policy_value_forward.4} parent=5 // pred_region
      %s705 = ssub.s32 %s19, 2
      // Predicated region
      $region61: #{policy_value_forward.4} parent=59 // pred_check
        %p706 = pneg %p200
      $region62: #{policy_value_forward.4} parent=59 // pred_check_branch
        %708 = sbr.rel (%p706) target = $region64
      $region63: #{policy_value_forward.4} parent=59 // pred_region
        %p709 = scmp.lt.s32.totalorder %s25, 1
        %s710 = scalar_select %p709, %s25, 1
        %s711 = smul.addr %s710, 8
        %s712 = smul.addr %s711, 4
        %s713 = scalar_lea.vmem %s7, %s712
      $region64: #{policy_value_forward.4} parent=59 // pred_fallthru
        _
      // Predicated region
      $region65: #{policy_value_forward.4} parent=59 // pred_check
        %p714 = pneg %p226
      $region66: #{policy_value_forward.4} parent=59 // pred_check_branch
        %716 = sbr.rel (%p714) target = $region68
      $region67: #{policy_value_forward.4} parent=59 // pred_region
        %p717 = scmp.lt.s32.totalorder %s25, 1
        %s718 = scalar_select %p717, %s25, 1
        %s719 = smul.addr %s718, 8
        %s720 = smul.addr %s719, 4
        %s721 = scalar_lea.vmem %s8, %s720
      $region68: #{policy_value_forward.4} parent=59 // pred_fallthru
        _
    $region60: #{policy_value_forward.4} parent=5 // pred_fallthru
      _
  $region6: #{policy_value_forward.4} parent=0 // loop_footer
    %s23 = sadd.s32 1, %s19
  $region7: #{policy_value_forward.4} parent=0 // loop_footer_branch
    %18 = sbr.rel target = $region3
  $region8: #{policy_value_forward.4} parent=0 // loop_exit
    _

// kernel: policy_value_forward.5
$region0: #{policy_value_forward.5}
  #allocation0 [shape = 'u32[]', space=smem, size = 0x4, offset = 0x4, fixed_abs, tag = 'smem constant byte address 0x4 - core index']
  #allocation1 [shape = 'u32[144,128]{1,0:T(1,128)}', space=vmem, size = 0x12000, scoped, tag = 'internal scratch']
  #allocation2 [shape = 'f32[1,1]{1,0:T(1,128)S(1)}', space=vmem, size = 0x200, scoped, tag = 'scoped memory for policy_value_forward.5']
  %s0 = inlined_call_operand.vmem [shape: bf16[2,128], index: 0, kind: input, shape index: {}]
  %s1 = inlined_call_operand.vmem [shape: bf16[2,64], index: 1, kind: input, shape index: {}]
  %s2 = inlined_call_operand.vmem [shape: bf16[128,65], index: 2, kind: input, shape index: {}]
  %s3 = inlined_call_operand.vmem [shape: f32[1,65], index: 3, kind: input, shape index: {}]
  %s4 = inlined_call_operand.vmem [shape: bf16[64,256], index: 4, kind: input, shape index: {}]
  %s5 = inlined_call_operand.vmem [shape: f32[1,256], index: 5, kind: input, shape index: {}]
  %s6 = inlined_call_operand.vmem [shape: bf16[256,1], index: 6, kind: input, shape index: {}]
  %s7 = inlined_call_operand.<no memory space> [shape: f32[1,1], index: 7, kind: input, shape index: {}]
  %s8 = inlined_call_operand.hbm [shape: f32[2,65], index: 8, kind: output, shape index: {0}]
  %s9 = inlined_call_operand.vmem [shape: f32[2,1], index: 9, kind: output, shape index: {1}]
  %10 = xla_tuple %s8, %s9
  %s11 = sld [smem:[#allocation0]]
  $region50: #{policy_value_forward.5} parent=0
    _
  %s13 = ssub.s32 1, %s11
  %s14 = scalar_select 0, %s13, %s11
  %v15 = vstv %s7
  %16 = vst [vmem:[#allocation2] sm:$0x1] %v15
  $region1: #{policy_value_forward.5} parent=0
    #allocation3 [shape = 'u8[1024]{0}', space=vmem, size = 0x400, scoped, tag = 'output window, operand 0, single buffered']
    #allocation4 [shape = 's32[1]{0}', space=sflag, size = 0x4, scoped, tag = 'scoped memory for policy_value_forward.5']
    %17 = vsyncpa [#allocation4], 0
    // Predicated region
    $region2: #{policy_value_forward.5} parent=1 // pred_check
      _
    $region3: #{policy_value_forward.5} parent=1 // pred_check_branch
      %19 = sbr.rel (0) target = $region5
    $region4: #{policy_value_forward.5} parent=1 // pred_region
      _
    $region5: #{policy_value_forward.5} parent=1 // pred_fallthru
      _
    // Predicated region
    $region6: #{policy_value_forward.5} parent=1 // pred_check
      _
    $region7: #{policy_value_forward.5} parent=1 // pred_check_branch
      %21 = sbr.rel (0) target = $region9
    $region8: #{policy_value_forward.5} parent=1 // pred_region
      _
    $region9: #{policy_value_forward.5} parent=1 // pred_fallthru
      _
    // Predicated region
    $region10: #{policy_value_forward.5} parent=1 // pred_check
      _
    $region11: #{policy_value_forward.5} parent=1 // pred_check_branch
      %23 = sbr.rel (0) target = $region13
    $region12: #{policy_value_forward.5} parent=1 // pred_region
      _
    $region13: #{policy_value_forward.5} parent=1 // pred_fallthru
      _
    // Predicated region
    $region14: #{policy_value_forward.5} parent=1 // pred_check
      _
    $region15: #{policy_value_forward.5} parent=1 // pred_check_branch
      %25 = sbr.rel (0) target = $region17
    $region16: #{policy_value_forward.5} parent=1 // pred_region
      _
    $region17: #{policy_value_forward.5} parent=1 // pred_fallthru
      _
    // Predicated region
    $region18: #{policy_value_forward.5} parent=1 // pred_check
      _
    $region19: #{policy_value_forward.5} parent=1 // pred_check_branch
      %27 = sbr.rel (0) target = $region21
    $region20: #{policy_value_forward.5} parent=1 // pred_region
      _
    $region21: #{policy_value_forward.5} parent=1 // pred_fallthru
      _
    // Predicated region
    $region22: #{policy_value_forward.5} parent=1 // pred_check
      _
    $region23: #{policy_value_forward.5} parent=1 // pred_check_branch
      %29 = sbr.rel (0) target = $region25
    $region24: #{policy_value_forward.5} parent=1 // pred_region
      _
    $region25: #{policy_value_forward.5} parent=1 // pred_fallthru
      _
    // Predicated region
    $region26: #{policy_value_forward.5} parent=1 // pred_check
      _
    $region27: #{policy_value_forward.5} parent=1 // pred_check_branch
      %31 = sbr.rel (0) target = $region29
    $region28: #{policy_value_forward.5} parent=1 // pred_region
      _
    $region29: #{policy_value_forward.5} parent=1 // pred_fallthru
      _
    // Predicated region
    $region30: #{policy_value_forward.5} parent=1 // pred_check
      _
    $region31: #{policy_value_forward.5} parent=1 // pred_check_branch
      %33 = sbr.rel (0) target = $region33
    $region32: #{policy_value_forward.5} parent=1 // pred_region
      _
    $region33: #{policy_value_forward.5} parent=1 // pred_fallthru
      _
    %v35 = vld [vmem:[%s0] sm:$0x1]
    %v36 = vld [vmem:[%s2] sm:$0xf]
    %v37 = vld [vmem:[%s2 + $0x4] sm:$0xf]
    %v38 = vld [vmem:[%s2 + $0x8] sm:$0xf]
    %v39 = vld [vmem:[%s2 + $0xc] sm:$0xf]
    %v40 = vld [vmem:[%s2 + $0x10] sm:$0xf]
    %v41 = vld [vmem:[%s2 + $0x14] sm:$0xf]
    %v42 = vld [vmem:[%s2 + $0x18] sm:$0xf]
    %v43 = vld [vmem:[%s2 + $0x1c] sm:$0xf]
    %v44 = vld [vmem:[%s2 + $0x20] sm:$0xf]
    %v45 = vld [vmem:[%s2 + $0x24] sm:$0xf]
    %v46 = vld [vmem:[%s2 + $0x28] sm:$0xf]
    %v47 = vld [vmem:[%s2 + $0x2c] sm:$0xf]
    %v48 = vld [vmem:[%s2 + $0x30] sm:$0xf]
    %v49 = vld [vmem:[%s2 + $0x34] sm:$0xf]
    %v50 = vld [vmem:[%s2 + $0x38] sm:$0xf]
    %v51 = vld [vmem:[%s2 + $0x3c] sm:$0xf]
    %v52 = vld [vmem:[%s3] sm:$0x1]
    %v54 = vlaneseq
    %v55 = vshrl.u32 %v54, 7
    %v56 = vsub.s32 0, %v55
    %v57 = vrot.slane %v52, %v56
    %v75 = vunpack.c.l.b16 %v36
    %v76 = vunpack.c.l.b16 %v37
    %v77 = vunpack.c.l.b16 %v38
    %v78 = vunpack.c.l.b16 %v39
    %v79 = vunpack.c.l.b16 %v40
    %v80 = vunpack.c.l.b16 %v41
    %v81 = vunpack.c.l.b16 %v42
    %v82 = vunpack.c.l.b16 %v43
    %v83 = vunpack.c.l.b16 %v44
    %v84 = vunpack.c.l.b16 %v45
    %v85 = vunpack.c.l.b16 %v46
    %v86 = vunpack.c.l.b16 %v47
    %v87 = vunpack.c.l.b16 %v48
    %v88 = vunpack.c.l.b16 %v49
    %v89 = vunpack.c.l.b16 %v50
    %v90 = vunpack.c.l.b16 %v51
    %v91 = vpack.c.b16 %v76, %v75
    %v92 = vpack.c.b16 %v78, %v77
    %v93 = vpack.c.b16 %v80, %v79
    %v94 = vpack.c.b16 %v82, %v81
    %v95 = vpack.c.b16 %v84, %v83
    %v96 = vpack.c.b16 %v86, %v85
    %v97 = vpack.c.b16 %v88, %v87
    %v98 = vpack.c.b16 %v90, %v89
    %107 = vmatprep.subr.bf16.mxu0 0
    %108 = vmatpush1.bf16.msra.mxu0 %v98
    %109 = vmatprep.subr.bf16.mxu0 0
    %110 = vmatpush1.bf16.msra.mxu0 %v97
    %111 = vmatprep.subr.bf16.mxu0 0
    %112 = vmatpush1.bf16.msra.mxu0 %v96
    %113 = vmatprep.subr.bf16.mxu0 0
    %114 = vmatpush1.bf16.msra.mxu0 %v95
    %115 = vmatprep.subr.bf16.mxu0 0
    %116 = vmatpush1.bf16.msra.mxu0 %v94
    %117 = vmatprep.subr.bf16.mxu0 0
    %118 = vmatpush1.bf16.msra.mxu0 %v93
    %119 = vmatprep.subr.bf16.mxu0 0
    %120 = vmatpush1.bf16.msra.mxu0 %v92
    %121 = vmatprep.subr.bf16.mxu0 0
    %122 = vmatpush1.bf16.msra.mxu0 %v91
    %123 = vmatprep.subr.bf16.mxu0 0
    %124 = vmatpush2.bf16.msra.mxu0 0
    %125 = vmatprep.subr.bf16.mxu0 0
    %126 = vmatpush2.bf16.msra.mxu0 0
    %127 = vmatprep.subr.bf16.mxu0 0
    %128 = vmatpush2.bf16.msra.mxu0 0
    %129 = vmatprep.subr.bf16.mxu0 0
    %130 = vmatpush2.bf16.msra.mxu0 0
    %131 = vmatprep.subr.bf16.mxu0 0
    %132 = vmatpush2.bf16.msra.mxu0 0
    %133 = vmatprep.subr.bf16.mxu0 0
    %134 = vmatpush2.bf16.msra.mxu0 0
    %135 = vmatprep.subr.bf16.mxu0 0
    %136 = vmatpush2.bf16.msra.mxu0 0
    %137 = vmatprep.subr.bf16.mxu0 0
    %138 = vmatpush2.bf16.msra.mxu0 0
    %139 = vmatprep.mubr.bf16.mxu0 0
    %140 = vmatmul.mubr.bf16.gmra.mxu0 %v35
    %v141 = vpop.f32.mrf.mxu0
    %v142 = vadd.f32 %v57, %v141
    %v143 = vpop.f32.mrf.mxu0
    %v144 = vpop.f32.mrf.mxu0
    %v145 = vpop.f32.mrf.mxu0
    %146 = vdwg.mxu0
    %vm147 = vcmask 525312
    %v148 = vsel %vm147, %v142, -inf
    %149 = vmax.xlane.f32.xlu0 %v148
    %v150 = vpop.xlane.xlu0 %149
    %v151 = vsub.f32 %v142, %v150
    %v152 = vmul.f32 %v151, 1.442695
    %v153 = vpow.pop %v152
    %v154 = vsel %vm147, %v153, 0.0
    %155 = vadd.xlane.f32.xlu0 %v154
    %v156 = vpop.xlane.xlu0 %155
    %v157 = vrcp.pop %v156
    %v158 = vmul.f32 %v153, %v157
    %159 = vst.msk [vmem:[#allocation3] sm:$0x3] %vm147, %v158
    %v160 = vld [vmem:[%s1] sm:$0x1]
    %v161 = vld [vmem:[%s4] sm:$0xff]
    %v162 = vld [vmem:[%s4 + $0x8] sm:$0xff]
    %v163 = vld [vmem:[%s4 + $0x10] sm:$0xff]
    %v164 = vld [vmem:[%s4 + $0x18] sm:$0xff]
    %v165 = vld [vmem:[%s4 + $0x20] sm:$0xff]
    %v166 = vld [vmem:[%s4 + $0x28] sm:$0xff]
    %v167 = vld [vmem:[%s4 + $0x30] sm:$0xff]
    %v168 = vld [vmem:[%s4 + $0x38] sm:$0xff]
    %v169 = vld [vmem:[%s5] sm:$0x3]
    %v171 = vlaneseq
    %v172 = vshrl.u32 %v171, 7
    %v173 = vsub.s32 0, %v172
    %v174 = vrot.slane %v169, %v173
    %v175 = vlaneseq
    %v176 = vshrl.u32 %v175, 7
    %v177 = vsub.s32 1, %v176
    %v178 = vrot.slane %v169, %v177
    %v189 = vunpack.c.l.b16 %v161
    %v190 = vunpack.c.h.b16 %v161
    %v191 = vunpack.c.l.b16 %v162
    %v192 = vunpack.c.h.b16 %v162
    %v193 = vunpack.c.l.b16 %v163
    %v194 = vunpack.c.h.b16 %v163
    %v195 = vunpack.c.l.b16 %v164
    %v196 = vunpack.c.h.b16 %v164
    %v197 = vunpack.c.l.b16 %v165
    %v198 = vunpack.c.h.b16 %v165
    %v199 = vunpack.c.l.b16 %v166
    %v200 = vunpack.c.h.b16 %v166
    %v201 = vunpack.c.l.b16 %v167
    %v202 = vunpack.c.h.b16 %v167
    %v203 = vunpack.c.l.b16 %v168
    %v204 = vunpack.c.h.b16 %v168
    %v205 = vpack.c.b16 %v191, %v189
    %v206 = vpack.c.b16 %v192, %v190
    %v207 = vpack.c.b16 %v195, %v193
    %v208 = vpack.c.b16 %v196, %v194
    %v209 = vpack.c.b16 %v199, %v197
    %v210 = vpack.c.b16 %v200, %v198
    %v211 = vpack.c.b16 %v203, %v201
    %v212 = vpack.c.b16 %v204, %v202
    %vm221 = vcmask 523264
    %v223 = vsel %vm221, %v160, 0
    %225 = vmatprep.subr.bf16.mxu0 0
    %226 = vmatpush1.bf16.msra.mxu0 0
    %227 = vmatprep.subr.bf16.mxu0 0
    %228 = vmatpush1.bf16.msra.mxu0 0
    %229 = vmatprep.subr.bf16.mxu0 0
    %230 = vmatpush1.bf16.msra.mxu0 0
    %231 = vmatprep.subr.bf16.mxu0 0
    %232 = vmatpush1.bf16.msra.mxu0 0
    %233 = vmatprep.subr.bf16.mxu0 %v212
    %234 = vmatpush1.bf16.msra.mxu0 %v211
    %235 = vmatprep.subr.bf16.mxu0 %v210
    %236 = vmatpush1.bf16.msra.mxu0 %v209
    %237 = vmatprep.subr.bf16.mxu0 %v208
    %238 = vmatpush1.bf16.msra.mxu0 %v207
    %239 = vmatprep.subr.bf16.mxu0 %v206
    %240 = vmatpush1.bf16.msra.mxu0 %v205
    %241 = vmatprep.subr.bf16.mxu0 0
    %242 = vmatpush2.bf16.msra.mxu0 0
    %243 = vmatprep.subr.bf16.mxu0 0
    %244 = vmatpush2.bf16.msra.mxu0 0
    %245 = vmatprep.subr.bf16.mxu0 0
    %246 = vmatpush2.bf16.msra.mxu0 0
    %247 = vmatprep.subr.bf16.mxu0 0
    %248 = vmatpush2.bf16.msra.mxu0 0
    %249 = vmatprep.subr.bf16.mxu0 0
    %250 = vmatpush2.bf16.msra.mxu0 0
    %251 = vmatprep.subr.bf16.mxu0 0
    %252 = vmatpush2.bf16.msra.mxu0 0
    %253 = vmatprep.subr.bf16.mxu0 0
    %254 = vmatpush2.bf16.msra.mxu0 0
    %255 = vmatprep.subr.bf16.mxu0 0
    %256 = vmatpush2.bf16.msra.mxu0 0
    %257 = vmatprep.mubr.bf16.mxu0 0
    %258 = vmatmul.mubr.bf16.gmra.mxu0 %v223
    %v259 = vpop.f32.mrf.mxu0
    %v260 = vadd.f32 %v174, %v259
    %v261 = vpop.f32.mrf.mxu0
    %v262 = vadd.f32 %v178, %v261
    %v263 = vpop.f32.mrf.mxu0
    %v264 = vpop.f32.mrf.mxu0
    %265 = vdwg.mxu0
    %v266 = vmax.f32 %v260, 0.0
    %v267 = vmax.f32 %v262, 0.0
    %v268 = vpack.c.bf16 %v266, %v266
    %v269 = vpack.c.bf16 %v267, %v267
    %v270 = vld [vmem:[%s6] sm:$0xf]
    %v271 = vld [vmem:[%s6 + $0x4] sm:$0xf]
    %v272 = vld [vmem:[%s6 + $0x8] sm:$0xf]
    %v273 = vld [vmem:[%s6 + $0xc] sm:$0xf]
    %v274 = vld [vmem:[%s6 + $0x10] sm:$0xf]
    %v275 = vld [vmem:[%s6 + $0x14] sm:$0xf]
    %v276 = vld [vmem:[%s6 + $0x18] sm:$0xf]
    %v277 = vld [vmem:[%s6 + $0x1c] sm:$0xf]
    %v278 = vld [vmem:[%s6 + $0x20] sm:$0xf]
    %v279 = vld [vmem:[%s6 + $0x24] sm:$0xf]
    %v280 = vld [vmem:[%s6 + $0x28] sm:$0xf]
    %v281 = vld [vmem:[%s6 + $0x2c] sm:$0xf]
    %v282 = vld [vmem:[%s6 + $0x30] sm:$0xf]
    %v283 = vld [vmem:[%s6 + $0x34] sm:$0xf]
    %v284 = vld [vmem:[%s6 + $0x38] sm:$0xf]
    %v285 = vld [vmem:[%s6 + $0x3c] sm:$0xf]
    %v286 = vld [vmem:[%s6 + $0x40] sm:$0xf]
    %v287 = vld [vmem:[%s6 + $0x44] sm:$0xf]
    %v288 = vld [vmem:[%s6 + $0x48] sm:$0xf]
    %v289 = vld [vmem:[%s6 + $0x4c] sm:$0xf]
    %v290 = vld [vmem:[%s6 + $0x50] sm:$0xf]
    %v291 = vld [vmem:[%s6 + $0x54] sm:$0xf]
    %v292 = vld [vmem:[%s6 + $0x58] sm:$0xf]
    %v293 = vld [vmem:[%s6 + $0x5c] sm:$0xf]
    %v294 = vld [vmem:[%s6 + $0x60] sm:$0xf]
    %v295 = vld [vmem:[%s6 + $0x64] sm:$0xf]
    %v296 = vld [vmem:[%s6 + $0x68] sm:$0xf]
    %v297 = vld [vmem:[%s6 + $0x6c] sm:$0xf]
    %v298 = vld [vmem:[%s6 + $0x70] sm:$0xf]
    %v299 = vld [vmem:[%s6 + $0x74] sm:$0xf]
    %v300 = vld [vmem:[%s6 + $0x78] sm:$0xf]
    %v301 = vld [vmem:[%s6 + $0x7c] sm:$0xf]
    %v302 = vld [vmem:[#allocation2] sm:$0x1]
    %v304 = vlaneseq
    %v305 = vshrl.u32 %v304, 7
    %v306 = vsub.s32 0, %v305
    %v307 = vrot.slane %v302, %v306
    %v341 = vunpack.c.l.b16 %v270
    %v342 = vunpack.c.l.b16 %v271
    %v343 = vunpack.c.l.b16 %v272
    %v344 = vunpack.c.l.b16 %v273
    %v345 = vunpack.c.l.b16 %v274
    %v346 = vunpack.c.l.b16 %v275
    %v347 = vunpack.c.l.b16 %v276
    %v348 = vunpack.c.l.b16 %v277
    %v349 = vunpack.c.l.b16 %v278
    %v350 = vunpack.c.l.b16 %v279
    %v351 = vunpack.c.l.b16 %v280
    %v352 = vunpack.c.l.b16 %v281
    %v353 = vunpack.c.l.b16 %v282
    %v354 = vunpack.c.l.b16 %v283
    %v355 = vunpack.c.l.b16 %v284
    %v356 = vunpack.c.l.b16 %v285
    %v357 = vunpack.c.l.b16 %v286
    %v358 = vunpack.c.l.b16 %v287
    %v359 = vunpack.c.l.b16 %v288
    %v360 = vunpack.c.l.b16 %v289
    %v361 = vunpack.c.l.b16 %v290
    %v362 = vunpack.c.l.b16 %v291
    %v363 = vunpack.c.l.b16 %v292
    %v364 = vunpack.c.l.b16 %v293
    %v365 = vunpack.c.l.b16 %v294
    %v366 = vunpack.c.l.b16 %v295
    %v367 = vunpack.c.l.b16 %v296
    %v368 = vunpack.c.l.b16 %v297
    %v369 = vunpack.c.l.b16 %v298
    %v370 = vunpack.c.l.b16 %v299
    %v371 = vunpack.c.l.b16 %v300
    %v372 = vunpack.c.l.b16 %v301
    %v373 = vpack.c.b16 %v342, %v341
    %v374 = vpack.c.b16 %v344, %v343
    %v375 = vpack.c.b16 %v346, %v345
    %v376 = vpack.c.b16 %v348, %v347
    %v377 = vpack.c.b16 %v350, %v349
    %v378 = vpack.c.b16 %v352, %v351
    %v379 = vpack.c.b16 %v354, %v353
    %v380 = vpack.c.b16 %v356, %v355
    %v381 = vpack.c.b16 %v358, %v357
    %v382 = vpack.c.b16 %v360, %v359
    %v383 = vpack.c.b16 %v362, %v361
    %v384 = vpack.c.b16 %v364, %v363
    %v385 = vpack.c.b16 %v366, %v365
    %v386 = vpack.c.b16 %v368, %v367
    %v387 = vpack.c.b16 %v370, %v369
    %v388 = vpack.c.b16 %v372, %v371
    %405 = vmatprep.subr.bf16.mxu0 0
    %406 = vmatpush1.bf16.msra.mxu0 %v380
    %407 = vmatprep.subr.bf16.mxu0 0
    %408 = vmatpush1.bf16.msra.mxu0 %v379
    %409 = vmatprep.subr.bf16.mxu0 0
    %410 = vmatpush1.bf16.msra.mxu0 %v378
    %411 = vmatprep.subr.bf16.mxu0 0
    %412 = vmatpush1.bf16.msra.mxu0 %v377
    %413 = vmatprep.subr.bf16.mxu0 0
    %414 = vmatpush1.bf16.msra.mxu0 %v376
    %415 = vmatprep.subr.bf16.mxu0 0
    %416 = vmatpush1.bf16.msra.mxu0 %v375
    %417 = vmatprep.subr.bf16.mxu0 0
    %418 = vmatpush1.bf16.msra.mxu0 %v374
    %419 = vmatprep.subr.bf16.mxu0 0
    %420 = vmatpush1.bf16.msra.mxu0 %v373
    %421 = vmatprep.subr.bf16.mxu0 0
    %422 = vmatpush2.bf16.msra.mxu0 %v388
    %423 = vmatprep.subr.bf16.mxu0 0
    %424 = vmatpush2.bf16.msra.mxu0 %v387
    %425 = vmatprep.subr.bf16.mxu0 0
    %426 = vmatpush2.bf16.msra.mxu0 %v386
    %427 = vmatprep.subr.bf16.mxu0 0
    %428 = vmatpush2.bf16.msra.mxu0 %v385
    %429 = vmatprep.subr.bf16.mxu0 0
    %430 = vmatpush2.bf16.msra.mxu0 %v384
    %431 = vmatprep.subr.bf16.mxu0 0
    %432 = vmatpush2.bf16.msra.mxu0 %v383
    %433 = vmatprep.subr.bf16.mxu0 0
    %434 = vmatpush2.bf16.msra.mxu0 %v382
    %435 = vmatprep.subr.bf16.mxu0 0
    %436 = vmatpush2.bf16.msra.mxu0 %v381
    %437 = vmatprep.mubr.bf16.mxu0 %v269
    %438 = vmatmul.mubr.bf16.gmra.mxu0 %v268
    %v439 = vpop.f32.mrf.mxu0
    %v440 = vadd.f32 %v307, %v439
    %v441 = vpop.f32.mrf.mxu0
    %v442 = vpop.f32.mrf.mxu0
    %v443 = vpop.f32.mrf.mxu0
    %444 = vdwg.mxu0
    %v445 = vtanh.pop %v440
    %vm446 = vcmask 1024
    %447 = vst.msk [vmem:[%s9] sm:$0x3] %vm446, %v445
    // Predicated region
    $region34: #{policy_value_forward.5} parent=1 // pred_check
      _
    $region35: #{policy_value_forward.5} parent=1 // pred_check_branch
      %449 = sbr.rel (0) target = $region37
    $region36: #{policy_value_forward.5} parent=1 // pred_region
      %s451 = ssub.s32 32, 32
      %452 = vsyncadd [#allocation4], %s451
      %s454 = sshll.u32 [#allocation3], 4
      %s455 = int_to_ptr.vmem [resolvable:$true] %s454
      %457 = dma.vmem_to_hbm [thread:$0]  %s455, 32, %s8, [#allocation4]
    $region37: #{policy_value_forward.5} parent=1 // pred_fallthru
      _
    // Predicated region
    $region38: #{policy_value_forward.5} parent=1 // pred_check
      _
    $region39: #{policy_value_forward.5} parent=1 // pred_check_branch
      %459 = sbr.rel (0) target = $region41
    $region40: #{policy_value_forward.5} parent=1 // pred_region
      _
    $region41: #{policy_value_forward.5} parent=1 // pred_fallthru
      _
    // Predicated region
    $region42: #{policy_value_forward.5} parent=1 // pred_check
      _
    $region43: #{policy_value_forward.5} parent=1 // pred_check_branch
      %461 = sbr.rel (0) target = $region45
    $region44: #{policy_value_forward.5} parent=1 // pred_region
      %462 = dma.done [#allocation4], 32
    $region45: #{policy_value_forward.5} parent=1 // pred_fallthru
      _
    // Predicated region
    $region46: #{policy_value_forward.5} parent=1 // pred_check
      _
    $region47: #{policy_value_forward.5} parent=1 // pred_check_branch
      %464 = sbr.rel (0) target = $region49
    $region48: #{policy_value_forward.5} parent=1 // pred_region
      _
    $region49: #{policy_value_forward.5} parent=1 // pred_fallthru
      _
    %465 = vsyncpa [#allocation4], 1

// kernel: policy_value_forward.3
$region0: #{policy_value_forward.3}
  #allocation0 [shape = 'u32[]', space=smem, size = 0x4, offset = 0x4, fixed_abs, tag = 'smem constant byte address 0x4 - core index']
  #allocation1 [shape = 'u32[144,128]{1,0:T(1,128)}', space=vmem, size = 0x12000, scoped, tag = 'internal scratch']
  #allocation2 [shape = 'bf16[2,10,10,32]{3,2,1,0:T(8,128)(2,1)}', space=vmem, size = 0x14000, scoped, tag = 'scratch operand']
  #allocation3 [shape = 'bf16[2,10,10,32]{3,2,1,0:T(8,128)(2,1)}', space=vmem, size = 0x14000, scoped, tag = 'scratch operand']
  %s0 = inlined_call_operand.vmem [shape: bf16[2,8,8,32], index: 0, kind: input, shape index: {}]
  %s1 = inlined_call_operand.hbm [shape: bf16[5,288,32], index: 1, kind: input, shape index: {}]
  %s2 = inlined_call_operand.vmem [shape: f32[5,1,32], index: 2, kind: input, shape index: {}]
  %s3 = inlined_call_operand.vmem [shape: f32[5,1,32], index: 3, kind: input, shape index: {}]
  %s4 = inlined_call_operand.vmem [shape: bf16[2,8,8,32], index: 4, kind: output, shape index: {}]
  %s5 = sld [smem:[#allocation0]]
  $region30: #{policy_value_forward.3} parent=0
    _
  %s7 = ssub.s32 1, %s5
  %s8 = scalar_select 0, %s7, %s5
  $region1: #{policy_value_forward.3} parent=0
    #allocation4 [shape = 'u8[368640]{0}', space=vmem, size = 0x5a000, scoped, tag = 'input window, operand 1, single buffered']
    #allocation5 [shape = 's32[1]{0}', space=sflag, size = 0x4, scoped, tag = 'scoped memory for policy_value_forward.3']
    %9 = vsyncpa [#allocation5], 0
    // Predicated region
    $region2: #{policy_value_forward.3} parent=1 // pred_check
      _
    $region3: #{policy_value_forward.3} parent=1 // pred_check_branch
      %11 = sbr.rel (0) target = $region5
    $region4: #{policy_value_forward.3} parent=1 // pred_region
      _
    $region5: #{policy_value_forward.3} parent=1 // pred_fallthru
      _
    // Predicated region
    $region6: #{policy_value_forward.3} parent=1 // pred_check
      _
    $region7: #{policy_value_forward.3} parent=1 // pred_check_branch
      %13 = sbr.rel (0) target = $region9
    $region8: #{policy_value_forward.3} parent=1 // pred_region
      %s15 = ssub.s32 11520, 11520
      %16 = vsyncadd [#allocation5], %s15
      %s17 = sshll.u32 [#allocation4], 4
      %s18 = int_to_ptr.vmem [resolvable:$true] %s17
      %23 = dma.hbm_to_vmem [thread:$0]  %s1, 11520, %s18, [#allocation5], 64, 64, 4
    $region9: #{policy_value_forward.3} parent=1 // pred_fallthru
      _
    // Predicated region
    $region10: #{policy_value_forward.3} parent=1 // pred_check
      _
    $region11: #{policy_value_forward.3} parent=1 // pred_check_branch
      %25 = sbr.rel (0) target = $region13
    $region12: #{policy_value_forward.3} parent=1 // pred_region
      _
    $region13: #{policy_value_forward.3} parent=1 // pred_fallthru
      _
    // Predicated region
    $region14: #{policy_value_forward.3} parent=1 // pred_check
      _
    $region15: #{policy_value_forward.3} parent=1 // pred_check_branch
      %27 = sbr.rel (0) target = $region17
    $region16: #{policy_value_forward.3} parent=1 // pred_region
      _
    $region17: #{policy_value_forward.3} parent=1 // pred_fallthru
      _
    // Predicated region
    $region18: #{policy_value_forward.3} parent=1 // pred_check
      _
    $region19: #{policy_value_forward.3} parent=1 // pred_check_branch
      %29 = sbr.rel (0) target = $region21
    $region20: #{policy_value_forward.3} parent=1 // pred_region
      %30 = dma.done [#allocation5], 11520
    $region21: #{policy_value_forward.3} parent=1 // pred_fallthru
      _
    %vm32 = vcmask 257024
    %33 = vst.msk [vmem:[#allocation2] sm:$0xf] %vm32, 0
    %vm34 = vcmask 253952
    %35 = vst.msk [vmem:[#allocation2 + $0x4] sm:$0x1] %vm34, 0
    %36 = vst.msk [vmem:[#allocation2 + $0x8] sm:$0xf] %vm32, 0
    %37 = vst.msk [vmem:[#allocation2 + $0xc] sm:$0x1] %vm34, 0
    %38 = vst.msk [vmem:[#allocation2 + $0x10] sm:$0xf] %vm32, 0
    %39 = vst.msk [vmem:[#allocation2 + $0x14] sm:$0x1] %vm34, 0
    %40 = vst.msk [vmem:[#allocation2 + $0x18] sm:$0xf] %vm32, 0
    %41 = vst.msk [vmem:[#allocation2 + $0x1c] sm:$0x1] %vm34, 0
    %42 = vst.msk [vmem:[#allocation2 + $0x20] sm:$0xf] %vm32, 0
    %43 = vst.msk [vmem:[#allocation2 + $0x24] sm:$0x1] %vm34, 0
    %44 = vst.msk [vmem:[#allocation2 + $0x28] sm:$0xf] %vm32, 0
    %45 = vst.msk [vmem:[#allocation2 + $0x2c] sm:$0x1] %vm34, 0
    %46 = vst.msk [vmem:[#allocation2 + $0x30] sm:$0xf] %vm32, 0
    %47 = vst.msk [vmem:[#allocation2 + $0x34] sm:$0x1] %vm34, 0
    %48 = vst.msk [vmem:[#allocation2 + $0x38] sm:$0xf] %vm32, 0
    %49 = vst.msk [vmem:[#allocation2 + $0x3c] sm:$0x1] %vm34, 0
    %50 = vst.msk [vmem:[#allocation2 + $0x40] sm:$0xf] %vm32, 0
    %51 = vst.msk [vmem:[#allocation2 + $0x44] sm:$0x1] %vm34, 0
    %52 = vst.msk [vmem:[#allocation2 + $0x48] sm:$0xf] %vm32, 0
    %53 = vst.msk [vmem:[#allocation2 + $0x4c] sm:$0x1] %vm34, 0
    %54 = vst.msk [vmem:[#allocation2 + $0x50] sm:$0xf] %vm32, 0
    %55 = vst.msk [vmem:[#allocation2 + $0x54] sm:$0x1] %vm34, 0
    %56 = vst.msk [vmem:[#allocation2 + $0x58] sm:$0xf] %vm32, 0
    %57 = vst.msk [vmem:[#allocation2 + $0x5c] sm:$0x1] %vm34, 0
    %58 = vst.msk [vmem:[#allocation2 + $0x60] sm:$0xf] %vm32, 0
    %59 = vst.msk [vmem:[#allocation2 + $0x64] sm:$0x1] %vm34, 0
    %60 = vst.msk [vmem:[#allocation2 + $0x68] sm:$0xf] %vm32, 0
    %61 = vst.msk [vmem:[#allocation2 + $0x6c] sm:$0x1] %vm34, 0
    %62 = vst.msk [vmem:[#allocation2 + $0x70] sm:$0xf] %vm32, 0
    %63 = vst.msk [vmem:[#allocation2 + $0x74] sm:$0x1] %vm34, 0
    %64 = vst.msk [vmem:[#allocation2 + $0x78] sm:$0xf] %vm32, 0
    %65 = vst.msk [vmem:[#allocation2 + $0x7c] sm:$0x1] %vm34, 0
    %66 = vst.msk [vmem:[#allocation2 + $0x80] sm:$0xf] %vm32, 0
    %67 = vst.msk [vmem:[#allocation2 + $0x84] sm:$0x1] %vm34, 0
    %68 = vst.msk [vmem:[#allocation2 + $0x88] sm:$0xf] %vm32, 0
    %69 = vst.msk [vmem:[#allocation2 + $0x8c] sm:$0x1] %vm34, 0
    %70 = vst.msk [vmem:[#allocation2 + $0x90] sm:$0xf] %vm32, 0
    %71 = vst.msk [vmem:[#allocation2 + $0x94] sm:$0x1] %vm34, 0
    %72 = vst.msk [vmem:[#allocation2 + $0x98] sm:$0xf] %vm32, 0
    %73 = vst.msk [vmem:[#allocation2 + $0x9c] sm:$0x1] %vm34, 0
    %74 = vst.msk [vmem:[#allocation3] sm:$0xf] %vm32, 0
    %75 = vst.msk [vmem:[#allocation3 + $0x4] sm:$0x1] %vm34, 0
    %76 = vst.msk [vmem:[#allocation3 + $0x8] sm:$0xf] %vm32, 0
    %77 = vst.msk [vmem:[#allocation3 + $0xc] sm:$0x1] %vm34, 0
    %78 = vst.msk [vmem:[#allocation3 + $0x10] sm:$0xf] %vm32, 0
    %79 = vst.msk [vmem:[#allocation3 + $0x14] sm:$0x1] %vm34, 0
    %80 = vst.msk [vmem:[#allocation3 + $0x18] sm:$0xf] %vm32, 0
    %81 = vst.msk [vmem:[#allocation3 + $0x1c] sm:$0x1] %vm34, 0
    %82 = vst.msk [vmem:[#allocation3 + $0x20] sm:$0xf] %vm32, 0
    %83 = vst.msk [vmem:[#allocation3 + $0x24] sm:$0x1] %vm34, 0
    %84 = vst.msk [vmem:[#allocation3 + $0x28] sm:$0xf] %vm32, 0
    %85 = vst.msk [vmem:[#allocation3 + $0x2c] sm:$0x1] %vm34, 0
    %86 = vst.msk [vmem:[#allocation3 + $0x30] sm:$0xf] %vm32, 0
    %87 = vst.msk [vmem:[#allocation3 + $0x34] sm:$0x1] %vm34, 0
    %88 = vst.msk [vmem:[#allocation3 + $0x38] sm:$0xf] %vm32, 0
    %89 = vst.msk [vmem:[#allocation3 + $0x3c] sm:$0x1] %vm34, 0
    %90 = vst.msk [vmem:[#allocation3 + $0x40] sm:$0xf] %vm32, 0
    %91 = vst.msk [vmem:[#allocation3 + $0x44] sm:$0x1] %vm34, 0
    %92 = vst.msk [vmem:[#allocation3 + $0x48] sm:$0xf] %vm32, 0
    %93 = vst.msk [vmem:[#allocation3 + $0x4c] sm:$0x1] %vm34, 0
    %94 = vst.msk [vmem:[#allocation3 + $0x50] sm:$0xf] %vm32, 0
    %95 = vst.msk [vmem:[#allocation3 + $0x54] sm:$0x1] %vm34, 0
    %96 = vst.msk [vmem:[#allocation3 + $0x58] sm:$0xf] %vm32, 0
    %97 = vst.msk [vmem:[#allocation3 + $0x5c] sm:$0x1] %vm34, 0
    %98 = vst.msk [vmem:[#allocation3 + $0x60] sm:$0xf] %vm32, 0
    %99 = vst.msk [vmem:[#allocation3 + $0x64] sm:$0x1] %vm34, 0
    %100 = vst.msk [vmem:[#allocation3 + $0x68] sm:$0xf] %vm32, 0
    %101 = vst.msk [vmem:[#allocation3 + $0x6c] sm:$0x1] %vm34, 0
    %102 = vst.msk [vmem:[#allocation3 + $0x70] sm:$0xf] %vm32, 0
    %103 = vst.msk [vmem:[#allocation3 + $0x74] sm:$0x1] %vm34, 0
    %104 = vst.msk [vmem:[#allocation3 + $0x78] sm:$0xf] %vm32, 0
    %105 = vst.msk [vmem:[#allocation3 + $0x7c] sm:$0x1] %vm34, 0
    %106 = vst.msk [vmem:[#allocation3 + $0x80] sm:$0xf] %vm32, 0
    %107 = vst.msk [vmem:[#allocation3 + $0x84] sm:$0x1] %vm34, 0
    %108 = vst.msk [vmem:[#allocation3 + $0x88] sm:$0xf] %vm32, 0
    %109 = vst.msk [vmem:[#allocation3 + $0x8c] sm:$0x1] %vm34, 0
    %110 = vst.msk [vmem:[#allocation3 + $0x90] sm:$0xf] %vm32, 0
    %111 = vst.msk [vmem:[#allocation3 + $0x94] sm:$0x1] %vm34, 0
    %112 = vst.msk [vmem:[#allocation3 + $0x98] sm:$0xf] %vm32, 0
    %113 = vst.msk [vmem:[#allocation3 + $0x9c] sm:$0x1] %vm34, 0
    %v114 = vld [vmem:[%s0] sm:$0xf]
    %v115 = vld [vmem:[%s0 + $0x4] sm:$0xf]
    %v116 = vld [vmem:[%s0 + $0x8] sm:$0xf]
    %v117 = vld [vmem:[%s0 + $0xc] sm:$0xf]
    %v118 = vld [vmem:[%s0 + $0x10] sm:$0xf]
    %v119 = vld [vmem:[%s0 + $0x14] sm:$0xf]
    %v120 = vld [vmem:[%s0 + $0x18] sm:$0xf]
    %v121 = vld [vmem:[%s0 + $0x1c] sm:$0xf]
    %v122 = vld [vmem:[%s0 + $0x20] sm:$0xf]
    %v123 = vld [vmem:[%s0 + $0x24] sm:$0xf]
    %v124 = vld [vmem:[%s0 + $0x28] sm:$0xf]
    %v125 = vld [vmem:[%s0 + $0x2c] sm:$0xf]
    %v126 = vld [vmem:[%s0 + $0x30] sm:$0xf]
    %v127 = vld [vmem:[%s0 + $0x34] sm:$0xf]
    %v128 = vld [vmem:[%s0 + $0x38] sm:$0xf]
    %v129 = vld [vmem:[%s0 + $0x3c] sm:$0xf]
    %v131 = vshrl.u32 %v114, 16
    %v133 = vrot.slane %v131, 7
    %v134 = vshll.u32 %v114, 16
    %v136 = vor.u32 %v133, %v134
    %v137 = vrot.slane %v133, 4
    %v139 = vshrl.u32 %v115, 16
    %v141 = vrot.slane %v139, 7
    %v142 = vshll.u32 %v115, 16
    %v144 = vor.u32 %v141, %v142
    %v145 = vrot.slane %v141, 4
    %v147 = vshrl.u32 %v116, 16
    %v149 = vrot.slane %v147, 7
    %v150 = vshll.u32 %v116, 16
    %v152 = vor.u32 %v149, %v150
    %v153 = vrot.slane %v149, 4
    %v155 = vshrl.u32 %v117, 16
    %v157 = vrot.slane %v155, 7
    %v158 = vshll.u32 %v117, 16
    %v160 = vor.u32 %v157, %v158
    %v161 = vrot.slane %v157, 4
    %v163 = vshrl.u32 %v118, 16
    %v165 = vrot.slane %v163, 7
    %v166 = vshll.u32 %v118, 16
    %v168 = vor.u32 %v165, %v166
    %v169 = vrot.slane %v165, 4
    %v171 = vshrl.u32 %v119, 16
    %v173 = vrot.slane %v171, 7
    %v174 = vshll.u32 %v119, 16
    %v176 = vor.u32 %v173, %v174
    %v177 = vrot.slane %v173, 4
    %v179 = vshrl.u32 %v120, 16
    %v181 = vrot.slane %v179, 7
    %v182 = vshll.u32 %v120, 16
    %v184 = vor.u32 %v181, %v182
    %v185 = vrot.slane %v181, 4
    %v187 = vshrl.u32 %v121, 16
    %v189 = vrot.slane %v187, 7
    %v190 = vshll.u32 %v121, 16
    %v192 = vor.u32 %v189, %v190
    %v193 = vrot.slane %v189, 4
    %v195 = vshrl.u32 %v122, 16
    %v197 = vrot.slane %v195, 7
    %v198 = vshll.u32 %v122, 16
    %v200 = vor.u32 %v197, %v198
    %v201 = vrot.slane %v197, 4
    %v203 = vshrl.u32 %v123, 16
    %v205 = vrot.slane %v203, 7
    %v206 = vshll.u32 %v123, 16
    %v208 = vor.u32 %v205, %v206
    %v209 = vrot.slane %v205, 4
    %v211 = vshrl.u32 %v124, 16
    %v213 = vrot.slane %v211, 7
    %v214 = vshll.u32 %v124, 16
    %v216 = vor.u32 %v213, %v214
    %v217 = vrot.slane %v213, 4
    %v219 = vshrl.u32 %v125, 16
    %v221 = vrot.slane %v219, 7
    %v222 = vshll.u32 %v125, 16
    %v224 = vor.u32 %v221, %v222
    %v225 = vrot.slane %v221, 4
    %v227 = vshrl.u32 %v126, 16
    %v229 = vrot.slane %v227, 7
    %v230 = vshll.u32 %v126, 16
    %v232 = vor.u32 %v229, %v230
    %v233 = vrot.slane %v229, 4
    %v235 = vshrl.u32 %v127, 16
    %v237 = vrot.slane %v235, 7
    %v238 = vshll.u32 %v127, 16
    %v240 = vor.u32 %v237, %v238
    %v241 = vrot.slane %v237, 4
    %v243 = vshrl.u32 %v128, 16
    %v245 = vrot.slane %v243, 7
    %v246 = vshll.u32 %v128, 16
    %v248 = vor.u32 %v245, %v246
    %v249 = vrot.slane %v245, 4
    %v251 = vshrl.u32 %v129, 16
    %v253 = vrot.slane %v251, 7
    %v254 = vshll.u32 %v129, 16
    %v256 = vor.u32 %v253, %v254
    %v257 = vrot.slane %v253, 4
    %s290 = scalar_lea.vmem [#allocation2], 8
    %vm291 = vcmask 257024
    %vm292 = vsmask.f32 7938
    %vm293 = vmand %vm291, %vm292
    %v294 = vld [vmem:[%s290] sm:$0xf]
    %v295 = vsel %vm293, %v136, %v294
    %296 = vst [vmem:[%s290] sm:$0xf] %v295
    %vm297 = vcmask 253952
    %vm298 = vsmask.f32 256
    %vm299 = vmand %vm297, %vm298
    %v300 = vld [vmem:[%s290 + $0x4] sm:$0x1]
    %v301 = vsel %vm299, %v137, %v300
    %302 = vst [vmem:[%s290 + $0x4] sm:$0x1] %v301
    %v303 = vld [vmem:[%s290 + $0x8] sm:$0xf]
    %v304 = vsel %vm293, %v144, %v303
    %305 = vst [vmem:[%s290 + $0x8] sm:$0xf] %v304
    %v306 = vld [vmem:[%s290 + $0xc] sm:$0x1]
    %v307 = vsel %vm299, %v145, %v306
    %308 = vst [vmem:[%s290 + $0xc] sm:$0x1] %v307
    %v309 = vld [vmem:[%s290 + $0x10] sm:$0xf]
    %v310 = vsel %vm293, %v152, %v309
    %311 = vst [vmem:[%s290 + $0x10] sm:$0xf] %v310
    %v312 = vld [vmem:[%s290 + $0x14] sm:$0x1]
    %v313 = vsel %vm299, %v153, %v312
    %314 = vst [vmem:[%s290 + $0x14] sm:$0x1] %v313
    %v315 = vld [vmem:[%s290 + $0x18] sm:$0xf]
    %v316 = vsel %vm293, %v160, %v315
    %317 = vst [vmem:[%s290 + $0x18] sm:$0xf] %v316
    %v318 = vld [vmem:[%s290 + $0x1c] sm:$0x1]
    %v319 = vsel %vm299, %v161, %v318
    %320 = vst [vmem:[%s290 + $0x1c] sm:$0x1] %v319
    %v321 = vld [vmem:[%s290 + $0x20] sm:$0xf]
    %v322 = vsel %vm293, %v168, %v321
    %323 = vst [vmem:[%s290 + $0x20] sm:$0xf] %v322
    %v324 = vld [vmem:[%s290 + $0x24] sm:$0x1]
    %v325 = vsel %vm299, %v169, %v324
    %326 = vst [vmem:[%s290 + $0x24] sm:$0x1] %v325
    %v327 = vld [vmem:[%s290 + $0x28] sm:$0xf]
    %v328 = vsel %vm293, %v176, %v327
    %329 = vst [vmem:[%s290 + $0x28] sm:$0xf] %v328
    %v330 = vld [vmem:[%s290 + $0x2c] sm:$0x1]
    %v331 = vsel %vm299, %v177, %v330
    %332 = vst [vmem:[%s290 + $0x2c] sm:$0x1] %v331
    %v333 = vld [vmem:[%s290 + $0x30] sm:$0xf]
    %v334 = vsel %vm293, %v184, %v333
    %335 = vst [vmem:[%s290 + $0x30] sm:$0xf] %v334
    %v336 = vld [vmem:[%s290 + $0x34] sm:$0x1]
    %v337 = vsel %vm299, %v185, %v336
    %338 = vst [vmem:[%s290 + $0x34] sm:$0x1] %v337
    %v339 = vld [vmem:[%s290 + $0x38] sm:$0xf]
    %v340 = vsel %vm293, %v192, %v339
    %341 = vst [vmem:[%s290 + $0x38] sm:$0xf] %v340
    %v342 = vld [vmem:[%s290 + $0x3c] sm:$0x1]
    %v343 = vsel %vm299, %v193, %v342
    %344 = vst [vmem:[%s290 + $0x3c] sm:$0x1] %v343
    %v345 = vld [vmem:[%s290 + $0x50] sm:$0xf]
    %v346 = vsel %vm293, %v200, %v345
    %347 = vst [vmem:[%s290 + $0x50] sm:$0xf] %v346
    %v348 = vld [vmem:[%s290 + $0x54] sm:$0x1]
    %v349 = vsel %vm299, %v201, %v348
    %350 = vst [vmem:[%s290 + $0x54] sm:$0x1] %v349
    %v351 = vld [vmem:[%s290 + $0x58] sm:$0xf]
    %v352 = vsel %vm293, %v208, %v351
    %353 = vst [vmem:[%s290 + $0x58] sm:$0xf] %v352
    %v354 = vld [vmem:[%s290 + $0x5c] sm:$0x1]
    %v355 = vsel %vm299, %v209, %v354
    %356 = vst [vmem:[%s290 + $0x5c] sm:$0x1] %v355
    %v357 = vld [vmem:[%s290 + $0x60] sm:$0xf]
    %v358 = vsel %vm293, %v216, %v357
    %359 = vst [vmem:[%s290 + $0x60] sm:$0xf] %v358
    %v360 = vld [vmem:[%s290 + $0x64] sm:$0x1]
    %v361 = vsel %vm299, %v217, %v360
    %362 = vst [vmem:[%s290 + $0x64] sm:$0x1] %v361
    %v363 = vld [vmem:[%s290 + $0x68] sm:$0xf]
    %v364 = vsel %vm293, %v224, %v363
    %365 = vst [vmem:[%s290 + $0x68] sm:$0xf] %v364
    %v366 = vld [vmem:[%s290 + $0x6c] sm:$0x1]
    %v367 = vsel %vm299, %v225, %v366
    %368 = vst [vmem:[%s290 + $0x6c] sm:$0x1] %v367
    %v369 = vld [vmem:[%s290 + $0x70] sm:$0xf]
    %v370 = vsel %vm293, %v232, %v369
    %371 = vst [vmem:[%s290 + $0x70] sm:$0xf] %v370
    %v372 = vld [vmem:[%s290 + $0x74] sm:$0x1]
    %v373 = vsel %vm299, %v233, %v372
    %374 = vst [vmem:[%s290 + $0x74] sm:$0x1] %v373
    %v375 = vld [vmem:[%s290 + $0x78] sm:$0xf]
    %v376 = vsel %vm293, %v240, %v375
    %377 = vst [vmem:[%s290 + $0x78] sm:$0xf] %v376
    %v378 = vld [vmem:[%s290 + $0x7c] sm:$0x1]
    %v379 = vsel %vm299, %v241, %v378
    %380 = vst [vmem:[%s290 + $0x7c] sm:$0x1] %v379
    %v381 = vld [vmem:[%s290 + $0x80] sm:$0xf]
    %v382 = vsel %vm293, %v248, %v381
    %383 = vst [vmem:[%s290 + $0x80] sm:$0xf] %v382
    %v384 = vld [vmem:[%s290 + $0x84] sm:$0x1]
    %v385 = vsel %vm299, %v249, %v384
    %386 = vst [vmem:[%s290 + $0x84] sm:$0x1] %v385
    %v387 = vld [vmem:[%s290 + $0x88] sm:$0xf]
    %v388 = vsel %vm293, %v256, %v387
    %389 = vst [vmem:[%s290 + $0x88] sm:$0xf] %v388
    %v390 = vld [vmem:[%s290 + $0x8c] sm:$0x1]
    %v391 = vsel %vm299, %v257, %v390
    %392 = vst [vmem:[%s290 + $0x8c] sm:$0x1] %v391
    %v393 = vld [vmem:[#allocation2] sm:$0xf]
    %v394 = vld [vmem:[#allocation2 + $0x8] sm:$0xf]
    %v395 = vld [vmem:[#allocation2 + $0x10] sm:$0xf]
    %v396 = vld [vmem:[#allocation2 + $0x18] sm:$0xf]
    %v397 = vld [vmem:[#allocation2 + $0x20] sm:$0xf]
    %v398 = vld [vmem:[#allocation2 + $0x28] sm:$0xf]
    %v399 = vld [vmem:[#allocation2 + $0x30] sm:$0xf]
    %v400 = vld [vmem:[#allocation2 + $0x38] sm:$0xf]
    %v401 = vld [vmem:[#allocation2 + $0x50] sm:$0xf]
    %v402 = vld [vmem:[#allocation2 + $0x58] sm:$0xf]
    %v403 = vld [vmem:[#allocation2 + $0x60] sm:$0xf]
    %v404 = vld [vmem:[#allocation2 + $0x68] sm:$0xf]
    %v405 = vld [vmem:[#allocation2 + $0x70] sm:$0xf]
    %v406 = vld [vmem:[#allocation2 + $0x78] sm:$0xf]
    %v407 = vld [vmem:[#allocation2 + $0x80] sm:$0xf]
    %v408 = vld [vmem:[#allocation2 + $0x88] sm:$0xf]
    %v409 = vld [vmem:[#allocation2 + $0x4] sm:$0x1]
    %v410 = vld [vmem:[#allocation2 + $0xc] sm:$0x1]
    %v411 = vld [vmem:[#allocation2 + $0x14] sm:$0x1]
    %v412 = vld [vmem:[#allocation2 + $0x1c] sm:$0x1]
    %v413 = vld [vmem:[#allocation2 + $0x24] sm:$0x1]
    %v414 = vld [vmem:[#allocation2 + $0x2c] sm:$0x1]
    %v415 = vld [vmem:[#allocation2 + $0x34] sm:$0x1]
    %v416 = vld [vmem:[#allocation2 + $0x3c] sm:$0x1]
    %v417 = vld [vmem:[#allocation2 + $0x54] sm:$0x1]
    %v418 = vld [vmem:[#allocation2 + $0x5c] sm:$0x1]
    %v419 = vld [vmem:[#allocation2 + $0x64] sm:$0x1]
    %v420 = vld [vmem:[#allocation2 + $0x6c] sm:$0x1]
    %v421 = vld [vmem:[#allocation2 + $0x74] sm:$0x1]
    %v422 = vld [vmem:[#allocation2 + $0x7c] sm:$0x1]
    %v423 = vld [vmem:[#allocation2 + $0x84] sm:$0x1]
    %v424 = vld [vmem:[#allocation2 + $0x8c] sm:$0x1]
    %vm425 = vsmask.f32 3328
    %vm426 = vsmask.f32 7440
    %vm427 = vmor %vm425, %vm426
    %v429 = vshrl.u32 %v393, 16
    %v431 = vrot.slane %v429, 4
    %v432 = vshll.u32 %v393, 16
    %v434 = vrot.slane %v432, 5
    %v435 = vor.u32 %v431, %v434
    %v436 = vrot.slane %v435, 4
    %v438 = vshll.u32 %v409, 16
    %v440 = vrot.slane %v438, 5
    %v441 = vsel %vm427, %v436, %v440
    %v443 = vshrl.u32 %v394, 16
    %v445 = vrot.slane %v443, 4
    %v446 = vshll.u32 %v394, 16
    %v448 = vrot.slane %v446, 5
    %v449 = vor.u32 %v445, %v448
    %v450 = vrot.slane %v449, 4
    %v452 = vshll.u32 %v410, 16
    %v454 = vrot.slane %v452, 5
    %v455 = vsel %vm427, %v450, %v454
    %v457 = vshrl.u32 %v395, 16
    %v459 = vrot.slane %v457, 4
    %v460 = vshll.u32 %v395, 16
    %v462 = vrot.slane %v460, 5
    %v463 = vor.u32 %v459, %v462
    %v464 = vrot.slane %v463, 4
    %v466 = vshll.u32 %v411, 16
    %v468 = vrot.slane %v466, 5
    %v469 = vsel %vm427, %v464, %v468
    %v471 = vshrl.u32 %v396, 16
    %v473 = vrot.slane %v471, 4
    %v474 = vshll.u32 %v396, 16
    %v476 = vrot.slane %v474, 5
    %v477 = vor.u32 %v473, %v476
    %v478 = vrot.slane %v477, 4
    %v480 = vshll.u32 %v412, 16
    %v482 = vrot.slane %v480, 5
    %v483 = vsel %vm427, %v478, %v482
    %v485 = vshrl.u32 %v397, 16
    %v487 = vrot.slane %v485, 4
    %v488 = vshll.u32 %v397, 16
    %v490 = vrot.slane %v488, 5
    %v491 = vor.u32 %v487, %v490
    %v492 = vrot.slane %v491, 4
    %v494 = vshll.u32 %v413, 16
    %v496 = vrot.slane %v494, 5
    %v497 = vsel %vm427, %v492, %v496
    %v499 = vshrl.u32 %v398, 16
    %v501 = vrot.slane %v499, 4
    %v502 = vshll.u32 %v398, 16
    %v504 = vrot.slane %v502, 5
    %v505 = vor.u32 %v501, %v504
    %v506 = vrot.slane %v505, 4
    %v508 = vshll.u32 %v414, 16
    %v510 = vrot.slane %v508, 5
    %v511 = vsel %vm427, %v506, %v510
    %v513 = vshrl.u32 %v399, 16
    %v515 = vrot.slane %v513, 4
    %v516 = vshll.u32 %v399, 16
    %v518 = vrot.slane %v516, 5
    %v519 = vor.u32 %v515, %v518
    %v520 = vrot.slane %v519, 4
    %v522 = vshll.u32 %v415, 16
    %v524 = vrot.slane %v522, 5
    %v525 = vsel %vm427, %v520, %v524
    %v527 = vshrl.u32 %v400, 16
    %v529 = vrot.slane %v527, 4
    %v530 = vshll.u32 %v400, 16
    %v532 = vrot.slane %v530, 5
    %v533 = vor.u32 %v529, %v532
    %v534 = vrot.slane %v533, 4
    %v536 = vshll.u32 %v416, 16
    %v538 = vrot.slane %v536, 5
    %v539 = vsel %vm427, %v534, %v538
    %v541 = vshrl.u32 %v401, 16
    %v543 = vrot.slane %v541, 4
    %v544 = vshll.u32 %v401, 16
    %v546 = vrot.slane %v544, 5
    %v547 = vor.u32 %v543, %v546
    %v548 = vrot.slane %v547, 4
    %v550 = vshll.u32 %v417, 16
    %v552 = vrot.slane %v550, 5
    %v553 = vsel %vm427, %v548, %v552
    %v555 = vshrl.u32 %v402, 16
    %v557 = vrot.slane %v555, 4
    %v558 = vshll.u32 %v402, 16
    %v560 = vrot.slane %v558, 5
    %v561 = vor.u32 %v557, %v560
    %v562 = vrot.slane %v561, 4
    %v564 = vshll.u32 %v418, 16
    %v566 = vrot.slane %v564, 5
    %v567 = vsel %vm427, %v562, %v566
    %v569 = vshrl.u32 %v403, 16
    %v571 = vrot.slane %v569, 4
    %v572 = vshll.u32 %v403, 16
    %v574 = vrot.slane %v572, 5
    %v575 = vor.u32 %v571, %v574
    %v576 = vrot.slane %v575, 4
    %v578 = vshll.u32 %v419, 16
    %v580 = vrot.slane %v578, 5
    %v581 = vsel %vm427, %v576, %v580
    %v583 = vshrl.u32 %v404, 16
    %v585 = vrot.slane %v583, 4
    %v586 = vshll.u32 %v404, 16
    %v588 = vrot.slane %v586, 5
    %v589 = vor.u32 %v585, %v588
    %v590 = vrot.slane %v589, 4
    %v592 = vshll.u32 %v420, 16
    %v594 = vrot.slane %v592, 5
    %v595 = vsel %vm427, %v590, %v594
    %v597 = vshrl.u32 %v405, 16
    %v599 = vrot.slane %v597, 4
    %v600 = vshll.u32 %v405, 16
    %v602 = vrot.slane %v600, 5
    %v603 = vor.u32 %v599, %v602
    %v604 = vrot.slane %v603, 4
    %v606 = vshll.u32 %v421, 16
    %v608 = vrot.slane %v606, 5
    %v609 = vsel %vm427, %v604, %v608
    %v611 = vshrl.u32 %v406, 16
    %v613 = vrot.slane %v611, 4
    %v614 = vshll.u32 %v406, 16
    %v616 = vrot.slane %v614, 5
    %v617 = vor.u32 %v613, %v616
    %v618 = vrot.slane %v617, 4
    %v620 = vshll.u32 %v422, 16
    %v622 = vrot.slane %v620, 5
    %v623 = vsel %vm427, %v618, %v622
    %v625 = vshrl.u32 %v407, 16
    %v627 = vrot.slane %v625, 4
    %v628 = vshll.u32 %v407, 16
    %v630 = vrot.slane %v628, 5
    %v631 = vor.u32 %v627, %v630
    %v632 = vrot.slane %v631, 4
    %v634 = vshll.u32 %v423, 16
    %v636 = vrot.slane %v634, 5
    %v637 = vsel %vm427, %v632, %v636
    %v639 = vshrl.u32 %v408, 16
    %v641 = vrot.slane %v639, 4
    %v642 = vshll.u32 %v408, 16
    %v644 = vrot.slane %v642, 5
    %v645 = vor.u32 %v641, %v644
    %v646 = vrot.slane %v645, 4
    %v648 = vshll.u32 %v424, 16
    %v650 = vrot.slane %v648, 5
    %v651 = vsel %vm427, %v646, %v650
    %v652 = vld [vmem:[#allocation2] sm:$0xe]
    %v653 = vld [vmem:[#allocation2 + $0x8] sm:$0xe]
    %v654 = vld [vmem:[#allocation2 + $0x10] sm:$0xe]
    %v655 = vld [vmem:[#allocation2 + $0x18] sm:$0xe]
    %v656 = vld [vmem:[#allocation2 + $0x20] sm:$0xe]
    %v657 = vld [vmem:[#allocation2 + $0x28] sm:$0xe]
    %v658 = vld [vmem:[#allocation2 + $0x30] sm:$0xe]
    %v659 = vld [vmem:[#allocation2 + $0x38] sm:$0xe]
    %v660 = vld [vmem:[#allocation2 + $0x50] sm:$0xe]
    %v661 = vld [vmem:[#allocation2 + $0x58] sm:$0xe]
    %v662 = vld [vmem:[#allocation2 + $0x60] sm:$0xe]
    %v663 = vld [vmem:[#allocation2 + $0x68] sm:$0xe]
    %v664 = vld [vmem:[#allocation2 + $0x70] sm:$0xe]
    %v665 = vld [vmem:[#allocation2 + $0x78] sm:$0xe]
    %v666 = vld [vmem:[#allocation2 + $0x80] sm:$0xe]
    %v667 = vld [vmem:[#allocation2 + $0x88] sm:$0xe]
    %vm700 = vcmask 1042432
    %vm701 = vcmask 1046532
    %vm702 = vmor %vm700, %vm701
    %v703 = vrot.slane %v652, 5
    %v704 = vrot.slane %v703, 4
    %v705 = vrot.slane %v409, 5
    %v706 = vsel %vm702, %v704, %v705
    %v707 = vrot.slane %v653, 5
    %v708 = vrot.slane %v707, 4
    %v709 = vrot.slane %v410, 5
    %v710 = vsel %vm702, %v708, %v709
    %v711 = vrot.slane %v654, 5
    %v712 = vrot.slane %v711, 4
    %v713 = vrot.slane %v411, 5
    %v714 = vsel %vm702, %v712, %v713
    %v715 = vrot.slane %v655, 5
    %v716 = vrot.slane %v715, 4
    %v717 = vrot.slane %v412, 5
    %v718 = vsel %vm702, %v716, %v717
    %v719 = vrot.slane %v656, 5
    %v720 = vrot.slane %v719, 4
    %v721 = vrot.slane %v413, 5
    %v722 = vsel %vm702, %v720, %v721
    %v723 = vrot.slane %v657, 5
    %v724 = vrot.slane %v723, 4
    %v725 = vrot.slane %v414, 5
    %v726 = vsel %vm702, %v724, %v725
    %v727 = vrot.slane %v658, 5
    %v728 = vrot.slane %v727, 4
    %v729 = vrot.slane %v415, 5
    %v730 = vsel %vm702, %v728, %v729
    %v731 = vrot.slane %v659, 5
    %v732 = vrot.slane %v731, 4
    %v733 = vrot.slane %v416, 5
    %v734 = vsel %vm702, %v732, %v733
    %v735 = vrot.slane %v660, 5
    %v736 = vrot.slane %v735, 4
    %v737 = vrot.slane %v417, 5
    %v738 = vsel %vm702, %v736, %v737
    %v739 = vrot.slane %v661, 5
    %v740 = vrot.slane %v739, 4
    %v741 = vrot.slane %v418, 5
    %v742 = vsel %vm702, %v740, %v741
    %v743 = vrot.slane %v662, 5
    %v744 = vrot.slane %v743, 4
    %v745 = vrot.slane %v419, 5
    %v746 = vsel %vm702, %v744, %v745
    %v747 = vrot.slane %v663, 5
    %v748 = vrot.slane %v747, 4
    %v749 = vrot.slane %v420, 5
    %v750 = vsel %vm702, %v748, %v749
    %v751 = vrot.slane %v664, 5
    %v752 = vrot.slane %v751, 4
    %v753 = vrot.slane %v421, 5
    %v754 = vsel %vm702, %v752, %v753
    %v755 = vrot.slane %v665, 5
    %v756 = vrot.slane %v755, 4
    %v757 = vrot.slane %v422, 5
    %v758 = vsel %vm702, %v756, %v757
    %v759 = vrot.slane %v666, 5
    %v760 = vrot.slane %v759, 4
    %v761 = vrot.slane %v423, 5
    %v762 = vsel %vm702, %v760, %v761
    %v763 = vrot.slane %v667, 5
    %v764 = vrot.slane %v763, 4
    %v765 = vrot.slane %v424, 5
    %v766 = vsel %vm702, %v764, %v765
    %v767 = vld [vmem:[%s290] sm:$0xf]
    %v768 = vld [vmem:[%s290 + $0x8] sm:$0xf]
    %v769 = vld [vmem:[%s290 + $0x10] sm:$0xf]
    %v770 = vld [vmem:[%s290 + $0x18] sm:$0xf]
    %v771 = vld [vmem:[%s290 + $0x20] sm:$0xf]
    %v772 = vld [vmem:[%s290 + $0x28] sm:$0xf]
    %v773 = vld [vmem:[%s290 + $0x30] sm:$0xf]
    %v774 = vld [vmem:[%s290 + $0x38] sm:$0xf]
    %v775 = vld [vmem:[%s290 + $0x50] sm:$0xf]
    %v776 = vld [vmem:[%s290 + $0x58] sm:$0xf]
    %v777 = vld [vmem:[%s290 + $0x60] sm:$0xf]
    %v778 = vld [vmem:[%s290 + $0x68] sm:$0xf]
    %v779 = vld [vmem:[%s290 + $0x70] sm:$0xf]
    %v780 = vld [vmem:[%s290 + $0x78] sm:$0xf]
    %v781 = vld [vmem:[%s290 + $0x80] sm:$0xf]
    %v782 = vld [vmem:[%s290 + $0x88] sm:$0xf]
    %v783 = vld [vmem:[%s290 + $0x4] sm:$0x1]
    %v784 = vld [vmem:[%s290 + $0xc] sm:$0x1]
    %v785 = vld [vmem:[%s290 + $0x14] sm:$0x1]
    %v786 = vld [vmem:[%s290 + $0x1c] sm:$0x1]
    %v787 = vld [vmem:[%s290 + $0x24] sm:$0x1]
    %v788 = vld [vmem:[%s290 + $0x2c] sm:$0x1]
    %v789 = vld [vmem:[%s290 + $0x34] sm:$0x1]
    %v790 = vld [vmem:[%s290 + $0x3c] sm:$0x1]
    %v791 = vld [vmem:[%s290 + $0x54] sm:$0x1]
    %v792 = vld [vmem:[%s290 + $0x5c] sm:$0x1]
    %v793 = vld [vmem:[%s290 + $0x64] sm:$0x1]
    %v794 = vld [vmem:[%s290 + $0x6c] sm:$0x1]
    %v795 = vld [vmem:[%s290 + $0x74] sm:$0x1]
    %v796 = vld [vmem:[%s290 + $0x7c] sm:$0x1]
    %v797 = vld [vmem:[%s290 + $0x84] sm:$0x1]
    %v798 = vld [vmem:[%s290 + $0x8c] sm:$0x1]
    %v800 = vshrl.u32 %v767, 16
    %v802 = vrot.slane %v800, 4
    %v803 = vshll.u32 %v767, 16
    %v805 = vrot.slane %v803, 5
    %v806 = vor.u32 %v802, %v805
    %v807 = vrot.slane %v806, 4
    %v809 = vshll.u32 %v783, 16
    %v811 = vrot.slane %v809, 5
    %v812 = vsel %vm427, %v807, %v811
    %v814 = vshrl.u32 %v768, 16
    %v816 = vrot.slane %v814, 4
    %v817 = vshll.u32 %v768, 16
    %v819 = vrot.slane %v817, 5
    %v820 = vor.u32 %v816, %v819
    %v821 = vrot.slane %v820, 4
    %v823 = vshll.u32 %v784, 16
    %v825 = vrot.slane %v823, 5
    %v826 = vsel %vm427, %v821, %v825
    %v828 = vshrl.u32 %v769, 16
    %v830 = vrot.slane %v828, 4
    %v831 = vshll.u32 %v769, 16
    %v833 = vrot.slane %v831, 5
    %v834 = vor.u32 %v830, %v833
    %v835 = vrot.slane %v834, 4
    %v837 = vshll.u32 %v785, 16
    %v839 = vrot.slane %v837, 5
    %v840 = vsel %vm427, %v835, %v839
    %v842 = vshrl.u32 %v770, 16
    %v844 = vrot.slane %v842, 4
    %v845 = vshll.u32 %v770, 16
    %v847 = vrot.slane %v845, 5
    %v848 = vor.u32 %v844, %v847
    %v849 = vrot.slane %v848, 4
    %v851 = vshll.u32 %v786, 16
    %v853 = vrot.slane %v851, 5
    %v854 = vsel %vm427, %v849, %v853
    %v856 = vshrl.u32 %v771, 16
    %v858 = vrot.slane %v856, 4
    %v859 = vshll.u32 %v771, 16
    %v861 = vrot.slane %v859, 5
    %v862 = vor.u32 %v858, %v861
    %v863 = vrot.slane %v862, 4
    %v865 = vshll.u32 %v787, 16
    %v867 = vrot.slane %v865, 5
    %v868 = vsel %vm427, %v863, %v867
    %v870 = vshrl.u32 %v772, 16
    %v872 = vrot.slane %v870, 4
    %v873 = vshll.u32 %v772, 16
    %v875 = vrot.slane %v873, 5
    %v876 = vor.u32 %v872, %v875
    %v877 = vrot.slane %v876, 4
    %v879 = vshll.u32 %v788, 16
    %v881 = vrot.slane %v879, 5
    %v882 = vsel %vm427, %v877, %v881
    %v884 = vshrl.u32 %v773, 16
    %v886 = vrot.slane %v884, 4
    %v887 = vshll.u32 %v773, 16
    %v889 = vrot.slane %v887, 5
    %v890 = vor.u32 %v886, %v889
    %v891 = vrot.slane %v890, 4
    %v893 = vshll.u32 %v789, 16
    %v895 = vrot.slane %v893, 5
    %v896 = vsel %vm427, %v891, %v895
    %v898 = vshrl.u32 %v774, 16
    %v900 = vrot.slane %v898, 4
    %v901 = vshll.u32 %v774, 16
    %v903 = vrot.slane %v901, 5
    %v904 = vor.u32 %v900, %v903
    %v905 = vrot.slane %v904, 4
    %v907 = vshll.u32 %v790, 16
    %v909 = vrot.slane %v907, 5
    %v910 = vsel %vm427, %v905, %v909
    %v912 = vshrl.u32 %v775, 16
    %v914 = vrot.slane %v912, 4
    %v915 = vshll.u32 %v775, 16
    %v917 = vrot.slane %v915, 5
    %v918 = vor.u32 %v914, %v917
    %v919 = vrot.slane %v918, 4
    %v921 = vshll.u32 %v791, 16
    %v923 = vrot.slane %v921, 5
    %v924 = vsel %vm427, %v919, %v923
    %v926 = vshrl.u32 %v776, 16
    %v928 = vrot.slane %v926, 4
    %v929 = vshll.u32 %v776, 16
    %v931 = vrot.slane %v929, 5
    %v932 = vor.u32 %v928, %v931
    %v933 = vrot.slane %v932, 4
    %v935 = vshll.u32 %v792, 16
    %v937 = vrot.slane %v935, 5
    %v938 = vsel %vm427, %v933, %v937
    %v940 = vshrl.u32 %v777, 16
    %v942 = vrot.slane %v940, 4
    %v943 = vshll.u32 %v777, 16
    %v945 = vrot.slane %v943, 5
    %v946 = vor.u32 %v942, %v945
    %v947 = vrot.slane %v946, 4
    %v949 = vshll.u32 %v793, 16
    %v951 = vrot.slane %v949, 5
    %v952 = vsel %vm427, %v947, %v951
    %v954 = vshrl.u32 %v778, 16
    %v956 = vrot.slane %v954, 4
    %v957 = vshll.u32 %v778, 16
    %v959 = vrot.slane %v957, 5
    %v960 = vor.u32 %v956, %v959
    %v961 = vrot.slane %v960, 4
    %v963 = vshll.u32 %v794, 16
    %v965 = vrot.slane %v963, 5
    %v966 = vsel %vm427, %v961, %v965
    %v968 = vshrl.u32 %v779, 16
    %v970 = vrot.slane %v968, 4
    %v971 = vshll.u32 %v779, 16
    %v973 = vrot.slane %v971, 5
    %v974 = vor.u32 %v970, %v973
    %v975 = vrot.slane %v974, 4
    %v977 = vshll.u32 %v795, 16
    %v979 = vrot.slane %v977, 5
    %v980 = vsel %vm427, %v975, %v979
    %v982 = vshrl.u32 %v780, 16
    %v984 = vrot.slane %v982, 4
    %v985 = vshll.u32 %v780, 16
    %v987 = vrot.slane %v985, 5
    %v988 = vor.u32 %v984, %v987
    %v989 = vrot.slane %v988, 4
    %v991 = vshll.u32 %v796, 16
    %v993 = vrot.slane %v991, 5
    %v994 = vsel %vm427, %v989, %v993
    %v996 = vshrl.u32 %v781, 16
    %v998 = vrot.slane %v996, 4
    %v999 = vshll.u32 %v781, 16
    %v1001 = vrot.slane %v999, 5
    %v1002 = vor.u32 %v998, %v1001
    %v1003 = vrot.slane %v1002, 4
    %v1005 = vshll.u32 %v797, 16
    %v1007 = vrot.slane %v1005, 5
    %v1008 = vsel %vm427, %v1003, %v1007
    %v1010 = vshrl.u32 %v782, 16
    %v1012 = vrot.slane %v1010, 4
    %v1013 = vshll.u32 %v782, 16
    %v1015 = vrot.slane %v1013, 5
    %v1016 = vor.u32 %v1012, %v1015
    %v1017 = vrot.slane %v1016, 4
    %v1019 = vshll.u32 %v798, 16
    %v1021 = vrot.slane %v1019, 5
    %v1022 = vsel %vm427, %v1017, %v1021
    %v1023 = vld [vmem:[%s290] sm:$0xe]
    %v1024 = vld [vmem:[%s290 + $0x8] sm:$0xe]
    %v1025 = vld [vmem:[%s290 + $0x10] sm:$0xe]
    %v1026 = vld [vmem:[%s290 + $0x18] sm:$0xe]
    %v1027 = vld [vmem:[%s290 + $0x20] sm:$0xe]
    %v1028 = vld [vmem:[%s290 + $0x28] sm:$0xe]
    %v1029 = vld [vmem:[%s290 + $0x30] sm:$0xe]
    %v1030 = vld [vmem:[%s290 + $0x38] sm:$0xe]
    %v1031 = vld [vmem:[%s290 + $0x50] sm:$0xe]
    %v1032 = vld [vmem:[%s290 + $0x58] sm:$0xe]
    %v1033 = vld [vmem:[%s290 + $0x60] sm:$0xe]
    %v1034 = vld [vmem:[%s290 + $0x68] sm:$0xe]
    %v1035 = vld [vmem:[%s290 + $0x70] sm:$0xe]
    %v1036 = vld [vmem:[%s290 + $0x78] sm:$0xe]
    %v1037 = vld [vmem:[%s290 + $0x80] sm:$0xe]
    %v1038 = vld [vmem:[%s290 + $0x88] sm:$0xe]
    %v1071 = vrot.slane %v1023, 5
    %v1072 = vrot.slane %v1071, 4
    %v1073 = vrot.slane %v783, 5
    %v1074 = vsel %vm702, %v1072, %v1073
    %v1075 = vrot.slane %v1024, 5
    %v1076 = vrot.slane %v1075, 4
    %v1077 = vrot.slane %v784, 5
    %v1078 = vsel %vm702, %v1076, %v1077
    %v1079 = vrot.slane %v1025, 5
    %v1080 = vrot.slane %v1079, 4
    %v1081 = vrot.slane %v785, 5
    %v1082 = vsel %vm702, %v1080, %v1081
    %v1083 = vrot.slane %v1026, 5
    %v1084 = vrot.slane %v1083, 4
    %v1085 = vrot.slane %v786, 5
    %v1086 = vsel %vm702, %v1084, %v1085
    %v1087 = vrot.slane %v1027, 5
    %v1088 = vrot.slane %v1087, 4
    %v1089 = vrot.slane %v787, 5
    %v1090 = vsel %vm702, %v1088, %v1089
    %v1091 = vrot.slane %v1028, 5
    %v1092 = vrot.slane %v1091, 4
    %v1093 = vrot.slane %v788, 5
    %v1094 = vsel %vm702, %v1092, %v1093
    %v1095 = vrot.slane %v1029, 5
    %v1096 = vrot.slane %v1095, 4
    %v1097 = vrot.slane %v789, 5
    %v1098 = vsel %vm702, %v1096, %v1097
    %v1099 = vrot.slane %v1030, 5
    %v1100 = vrot.slane %v1099, 4
    %v1101 = vrot.slane %v790, 5
    %v1102 = vsel %vm702, %v1100, %v1101
    %v1103 = vrot.slane %v1031, 5
    %v1104 = vrot.slane %v1103, 4
    %v1105 = vrot.slane %v791, 5
    %v1106 = vsel %vm702, %v1104, %v1105
    %v1107 = vrot.slane %v1032, 5
    %v1108 = vrot.slane %v1107, 4
    %v1109 = vrot.slane %v792, 5
    %v1110 = vsel %vm702, %v1108, %v1109
    %v1111 = vrot.slane %v1033, 5
    %v1112 = vrot.slane %v1111, 4
    %v1113 = vrot.slane %v793, 5
    %v1114 = vsel %vm702, %v1112, %v1113
    %v1115 = vrot.slane %v1034, 5
    %v1116 = vrot.slane %v1115, 4
    %v1117 = vrot.slane %v794, 5
    %v1118 = vsel %vm702, %v1116, %v1117
    %v1119 = vrot.slane %v1035, 5
    %v1120 = vrot.slane %v1119, 4
    %v1121 = vrot.slane %v795, 5
    %v1122 = vsel %vm702, %v1120, %v1121
    %v1123 = vrot.slane %v1036, 5
    %v1124 = vrot.slane %v1123, 4
    %v1125 = vrot.slane %v796, 5
    %v1126 = vsel %vm702, %v1124, %v1125
    %v1127 = vrot.slane %v1037, 5
    %v1128 = vrot.slane %v1127, 4
    %v1129 = vrot.slane %v797, 5
    %v1130 = vsel %vm702, %v1128, %v1129
    %v1131 = vrot.slane %v1038, 5
    %v1132 = vrot.slane %v1131, 4
    %v1133 = vrot.slane %v798, 5
    %v1134 = vsel %vm702, %v1132, %v1133
    %s1135 = scalar_lea.vmem [#allocation2], 16
    %v1136 = vld [vmem:[%s1135] sm:$0xf]
    %v1137 = vld [vmem:[%s1135 + $0x8] sm:$0xf]
    %v1138 = vld [vmem:[%s1135 + $0x10] sm:$0xf]
    %v1139 = vld [vmem:[%s1135 + $0x18] sm:$0xf]
    %v1140 = vld [vmem:[%s1135 + $0x20] sm:$0xf]
    %v1141 = vld [vmem:[%s1135 + $0x28] sm:$0xf]
    %v1142 = vld [vmem:[%s1135 + $0x30] sm:$0xf]
    %v1143 = vld [vmem:[%s1135 + $0x38] sm:$0xf]
    %v1144 = vld [vmem:[%s1135 + $0x50] sm:$0xf]
    %v1145 = vld [vmem:[%s1135 + $0x58] sm:$0xf]
    %v1146 = vld [vmem:[%s1135 + $0x60] sm:$0xf]
    %v1147 = vld [vmem:[%s1135 + $0x68] sm:$0xf]
    %v1148 = vld [vmem:[%s1135 + $0x70] sm:$0xf]
    %v1149 = vld [vmem:[%s1135 + $0x78] sm:$0xf]
    %v1150 = vld [vmem:[%s1135 + $0x80] sm:$0xf]
    %v1151 = vld [vmem:[%s1135 + $0x88] sm:$0xf]
    %v1152 = vld [vmem:[%s1135 + $0x4] sm:$0x1]
    %v1153 = vld [vmem:[%s1135 + $0xc] sm:$0x1]
    %v1154 = vld [vmem:[%s1135 + $0x14] sm:$0x1]
    %v1155 = vld [vmem:[%s1135 + $0x1c] sm:$0x1]
    %v1156 = vld [vmem:[%s1135 + $0x24] sm:$0x1]
    %v1157 = vld [vmem:[%s1135 + $0x2c] sm:$0x1]
    %v1158 = vld [vmem:[%s1135 + $0x34] sm:$0x1]
    %v1159 = vld [vmem:[%s1135 + $0x3c] sm:$0x1]
    %v1160 = vld [vmem:[%s1135 + $0x54] sm:$0x1]
    %v1161 = vld [vmem:[%s1135 + $0x5c] sm:$0x1]
    %v1162 = vld [vmem:[%s1135 + $0x64] sm:$0x1]
    %v1163 = vld [vmem:[%s1135 + $0x6c] sm:$0x1]
    %v1164 = vld [vmem:[%s1135 + $0x74] sm:$0x1]
    %v1165 = vld [vmem:[%s1135 + $0x7c] sm:$0x1]
    %v1166 = vld [vmem:[%s1135 + $0x84] sm:$0x1]
    %v1167 = vld [vmem:[%s1135 + $0x8c] sm:$0x1]
    %v1169 = vshrl.u32 %v1136, 16
    %v1171 = vrot.slane %v1169, 4
    %v1172 = vshll.u32 %v1136, 16
    %v1174 = vrot.slane %v1172, 5
    %v1175 = vor.u32 %v1171, %v1174
    %v1176 = vrot.slane %v1175, 4
    %v1178 = vshll.u32 %v1152, 16
    %v1180 = vrot.slane %v1178, 5
    %v1181 = vsel %vm427, %v1176, %v1180
    %v1183 = vshrl.u32 %v1137, 16
    %v1185 = vrot.slane %v1183, 4
    %v1186 = vshll.u32 %v1137, 16
    %v1188 = vrot.slane %v1186, 5
    %v1189 = vor.u32 %v1185, %v1188
    %v1190 = vrot.slane %v1189, 4
    %v1192 = vshll.u32 %v1153, 16
    %v1194 = vrot.slane %v1192, 5
    %v1195 = vsel %vm427, %v1190, %v1194
    %v1197 = vshrl.u32 %v1138, 16
    %v1199 = vrot.slane %v1197, 4
    %v1200 = vshll.u32 %v1138, 16
    %v1202 = vrot.slane %v1200, 5
    %v1203 = vor.u32 %v1199, %v1202
    %v1204 = vrot.slane %v1203, 4
    %v1206 = vshll.u32 %v1154, 16
    %v1208 = vrot.slane %v1206, 5
    %v1209 = vsel %vm427, %v1204, %v1208
    %v1211 = vshrl.u32 %v1139, 16
    %v1213 = vrot.slane %v1211, 4
    %v1214 = vshll.u32 %v1139, 16
    %v1216 = vrot.slane %v1214, 5
    %v1217 = vor.u32 %v1213, %v1216
    %v1218 = vrot.slane %v1217, 4
    %v1220 = vshll.u32 %v1155, 16
    %v1222 = vrot.slane %v1220, 5
    %v1223 = vsel %vm427, %v1218, %v1222
    %v1225 = vshrl.u32 %v1140, 16
    %v1227 = vrot.slane %v1225, 4
    %v1228 = vshll.u32 %v1140, 16
    %v1230 = vrot.slane %v1228, 5
    %v1231 = vor.u32 %v1227, %v1230
    %v1232 = vrot.slane %v1231, 4
    %v1234 = vshll.u32 %v1156, 16
    %v1236 = vrot.slane %v1234, 5
    %v1237 = vsel %vm427, %v1232, %v1236
    %v1239 = vshrl.u32 %v1141, 16
    %v1241 = vrot.slane %v1239, 4
    %v1242 = vshll.u32 %v1141, 16
    %v1244 = vrot.slane %v1242, 5
    %v1245 = vor.u32 %v1241, %v1244
    %v1246 = vrot.slane %v1245, 4
    %v1248 = vshll.u32 %v1157, 16
    %v1250 = vrot.slane %v1248, 5
    %v1251 = vsel %vm427, %v1246, %v1250
    %v1253 = vshrl.u32 %v1142, 16
    %v1255 = vrot.slane %v1253, 4
    %v1256 = vshll.u32 %v1142, 16
    %v1258 = vrot.slane %v1256, 5
    %v1259 = vor.u32 %v1255, %v1258
    %v1260 = vrot.slane %v1259, 4
    %v1262 = vshll.u32 %v1158, 16
    %v1264 = vrot.slane %v1262, 5
    %v1265 = vsel %vm427, %v1260, %v1264
    %v1267 = vshrl.u32 %v1143, 16
    %v1269 = vrot.slane %v1267, 4
    %v1270 = vshll.u32 %v1143, 16
    %v1272 = vrot.slane %v1270, 5
    %v1273 = vor.u32 %v1269, %v1272
    %v1274 = vrot.slane %v1273, 4
    %v1276 = vshll.u32 %v1159, 16
    %v1278 = vrot.slane %v1276, 5
    %v1279 = vsel %vm427, %v1274, %v1278
    %v1281 = vshrl.u32 %v1144, 16
    %v1283 = vrot.slane %v1281, 4
    %v1284 = vshll.u32 %v1144, 16
    %v1286 = vrot.slane %v1284, 5
    %v1287 = vor.u32 %v1283, %v1286
    %v1288 = vrot.slane %v1287, 4
    %v1290 = vshll.u32 %v1160, 16
    %v1292 = vrot.slane %v1290, 5
    %v1293 = vsel %vm427, %v1288, %v1292
    %v1295 = vshrl.u32 %v1145, 16
    %v1297 = vrot.slane %v1295, 4
    %v1298 = vshll.u32 %v1145, 16
    %v1300 = vrot.slane %v1298, 5
    %v1301 = vor.u32 %v1297, %v1300
    %v1302 = vrot.slane %v1301, 4
    %v1304 = vshll.u32 %v1161, 16
    %v1306 = vrot.slane %v1304, 5
    %v1307 = vsel %vm427, %v1302, %v1306
    %v1309 = vshrl.u32 %v1146, 16
    %v1311 = vrot.slane %v1309, 4
    %v1312 = vshll.u32 %v1146, 16
    %v1314 = vrot.slane %v1312, 5
    %v1315 = vor.u32 %v1311, %v1314
    %v1316 = vrot.slane %v1315, 4
    %v1318 = vshll.u32 %v1162, 16
    %v1320 = vrot.slane %v1318, 5
    %v1321 = vsel %vm427, %v1316, %v1320
    %v1323 = vshrl.u32 %v1147, 16
    %v1325 = vrot.slane %v1323, 4
    %v1326 = vshll.u32 %v1147, 16
    %v1328 = vrot.slane %v1326, 5
    %v1329 = vor.u32 %v1325, %v1328
    %v1330 = vrot.slane %v1329, 4
    %v1332 = vshll.u32 %v1163, 16
    %v1334 = vrot.slane %v1332, 5
    %v1335 = vsel %vm427, %v1330, %v1334
    %v1337 = vshrl.u32 %v1148, 16
    %v1339 = vrot.slane %v1337, 4
    %v1340 = vshll.u32 %v1148, 16
    %v1342 = vrot.slane %v1340, 5
    %v1343 = vor.u32 %v1339, %v1342
    %v1344 = vrot.slane %v1343, 4
    %v1346 = vshll.u32 %v1164, 16
    %v1348 = vrot.slane %v1346, 5
    %v1349 = vsel %vm427, %v1344, %v1348
    %v1351 = vshrl.u32 %v1149, 16
    %v1353 = vrot.slane %v1351, 4
    %v1354 = vshll.u32 %v1149, 16
    %v1356 = vrot.slane %v1354, 5
    %v1357 = vor.u32 %v1353, %v1356
    %v1358 = vrot.slane %v1357, 4
    %v1360 = vshll.u32 %v1165, 16
    %v1362 = vrot.slane %v1360, 5
    %v1363 = vsel %vm427, %v1358, %v1362
    %v1365 = vshrl.u32 %v1150, 16
    %v1367 = vrot.slane %v1365, 4
    %v1368 = vshll.u32 %v1150, 16
    %v1370 = vrot.slane %v1368, 5
    %v1371 = vor.u32 %v1367, %v1370
    %v1372 = vrot.slane %v1371, 4
    %v1374 = vshll.u32 %v1166, 16
    %v1376 = vrot.slane %v1374, 5
    %v1377 = vsel %vm427, %v1372, %v1376
    %v1379 = vshrl.u32 %v1151, 16
    %v1381 = vrot.slane %v1379, 4
    %v1382 = vshll.u32 %v1151, 16
    %v1384 = vrot.slane %v1382, 5
    %v1385 = vor.u32 %v1381, %v1384
    %v1386 = vrot.slane %v1385, 4
    %v1388 = vshll.u32 %v1167, 16
    %v1390 = vrot.slane %v1388, 5
    %v1391 = vsel %vm427, %v1386, %v1390
    %v1392 = vld [vmem:[%s1135] sm:$0xe]
    %v1393 = vld [vmem:[%s1135 + $0x8] sm:$0xe]
    %v1394 = vld [vmem:[%s1135 + $0x10] sm:$0xe]
    %v1395 = vld [vmem:[%s1135 + $0x18] sm:$0xe]
    %v1396 = vld [vmem:[%s1135 + $0x20] sm:$0xe]
    %v1397 = vld [vmem:[%s1135 + $0x28] sm:$0xe]
    %v1398 = vld [vmem:[%s1135 + $0x30] sm:$0xe]
    %v1399 = vld [vmem:[%s1135 + $0x38] sm:$0xe]
    %v1400 = vld [vmem:[%s1135 + $0x50] sm:$0xe]
    %v1401 = vld [vmem:[%s1135 + $0x58] sm:$0xe]
    %v1402 = vld [vmem:[%s1135 + $0x60] sm:$0xe]
    %v1403 = vld [vmem:[%s1135 + $0x68] sm:$0xe]
    %v1404 = vld [vmem:[%s1135 + $0x70] sm:$0xe]
    %v1405 = vld [vmem:[%s1135 + $0x78] sm:$0xe]
    %v1406 = vld [vmem:[%s1135 + $0x80] sm:$0xe]
    %v1407 = vld [vmem:[%s1135 + $0x88] sm:$0xe]
    %v1440 = vrot.slane %v1392, 5
    %v1441 = vrot.slane %v1440, 4
    %v1442 = vrot.slane %v1152, 5
    %v1443 = vsel %vm702, %v1441, %v1442
    %v1444 = vrot.slane %v1393, 5
    %v1445 = vrot.slane %v1444, 4
    %v1446 = vrot.slane %v1153, 5
    %v1447 = vsel %vm702, %v1445, %v1446
    %v1448 = vrot.slane %v1394, 5
    %v1449 = vrot.slane %v1448, 4
    %v1450 = vrot.slane %v1154, 5
    %v1451 = vsel %vm702, %v1449, %v1450
    %v1452 = vrot.slane %v1395, 5
    %v1453 = vrot.slane %v1452, 4
    %v1454 = vrot.slane %v1155, 5
    %v1455 = vsel %vm702, %v1453, %v1454
    %v1456 = vrot.slane %v1396, 5
    %v1457 = vrot.slane %v1456, 4
    %v1458 = vrot.slane %v1156, 5
    %v1459 = vsel %vm702, %v1457, %v1458
    %v1460 = vrot.slane %v1397, 5
    %v1461 = vrot.slane %v1460, 4
    %v1462 = vrot.slane %v1157, 5
    %v1463 = vsel %vm702, %v1461, %v1462
    %v1464 = vrot.slane %v1398, 5
    %v1465 = vrot.slane %v1464, 4
    %v1466 = vrot.slane %v1158, 5
    %v1467 = vsel %vm702, %v1465, %v1466
    %v1468 = vrot.slane %v1399, 5
    %v1469 = vrot.slane %v1468, 4
    %v1470 = vrot.slane %v1159, 5
    %v1471 = vsel %vm702, %v1469, %v1470
    %v1472 = vrot.slane %v1400, 5
    %v1473 = vrot.slane %v1472, 4
    %v1474 = vrot.slane %v1160, 5
    %v1475 = vsel %vm702, %v1473, %v1474
    %v1476 = vrot.slane %v1401, 5
    %v1477 = vrot.slane %v1476, 4
    %v1478 = vrot.slane %v1161, 5
    %v1479 = vsel %vm702, %v1477, %v1478
    %v1480 = vrot.slane %v1402, 5
    %v1481 = vrot.slane %v1480, 4
    %v1482 = vrot.slane %v1162, 5
    %v1483 = vsel %vm702, %v1481, %v1482
    %v1484 = vrot.slane %v1403, 5
    %v1485 = vrot.slane %v1484, 4
    %v1486 = vrot.slane %v1163, 5
    %v1487 = vsel %vm702, %v1485, %v1486
    %v1488 = vrot.slane %v1404, 5
    %v1489 = vrot.slane %v1488, 4
    %v1490 = vrot.slane %v1164, 5
    %v1491 = vsel %vm702, %v1489, %v1490
    %v1492 = vrot.slane %v1405, 5
    %v1493 = vrot.slane %v1492, 4
    %v1494 = vrot.slane %v1165, 5
    %v1495 = vsel %vm702, %v1493, %v1494
    %v1496 = vrot.slane %v1406, 5
    %v1497 = vrot.slane %v1496, 4
    %v1498 = vrot.slane %v1166, 5
    %v1499 = vsel %vm702, %v1497, %v1498
    %v1500 = vrot.slane %v1407, 5
    %v1501 = vrot.slane %v1500, 4
    %v1502 = vrot.slane %v1167, 5
    %v1503 = vsel %vm702, %v1501, %v1502
    %v1520 = vunpack.c.l.b16 %v393
    %v1521 = vunpack.c.l.b16 %v394
    %v1522 = vunpack.c.l.b16 %v395
    %v1523 = vunpack.c.l.b16 %v396
    %v1524 = vunpack.c.l.b16 %v397
    %v1525 = vunpack.c.l.b16 %v398
    %v1526 = vunpack.c.l.b16 %v399
    %v1527 = vunpack.c.l.b16 %v400
    %v1528 = vunpack.c.l.b16 %v401
    %v1529 = vunpack.c.l.b16 %v402
    %v1530 = vunpack.c.l.b16 %v403
    %v1531 = vunpack.c.l.b16 %v404
    %v1532 = vunpack.c.l.b16 %v405
    %v1533 = vunpack.c.l.b16 %v406
    %v1534 = vunpack.c.l.b16 %v407
    %v1535 = vunpack.c.l.b16 %v408
    %v1536 = vpack.c.b16 %v1521, %v1520
    %v1537 = vpack.c.b16 %v1523, %v1522
    %v1538 = vpack.c.b16 %v1525, %v1524
    %v1539 = vpack.c.b16 %v1527, %v1526
    %v1540 = vpack.c.b16 %v1529, %v1528
    %v1541 = vpack.c.b16 %v1531, %v1530
    %v1542 = vpack.c.b16 %v1533, %v1532
    %v1543 = vpack.c.b16 %v1535, %v1534
    %v1544 = vunpack.c.l.b16 %v441
    %v1545 = vunpack.c.l.b16 %v455
    %v1546 = vunpack.c.l.b16 %v469
    %v1547 = vunpack.c.l.b16 %v483
    %v1548 = vunpack.c.l.b16 %v497
    %v1549 = vunpack.c.l.b16 %v511
    %v1550 = vunpack.c.l.b16 %v525
    %v1551 = vunpack.c.l.b16 %v539
    %v1552 = vunpack.c.l.b16 %v553
    %v1553 = vunpack.c.l.b16 %v567
    %v1554 = vunpack.c.l.b16 %v581
    %v1555 = vunpack.c.l.b16 %v595
    %v1556 = vunpack.c.l.b16 %v609
    %v1557 = vunpack.c.l.b16 %v623
    %v1558 = vunpack.c.l.b16 %v637
    %v1559 = vunpack.c.l.b16 %v651
    %v1560 = vpack.c.b16 %v1545, %v1544
    %v1561 = vpack.c.b16 %v1547, %v1546
    %v1562 = vpack.c.b16 %v1549, %v1548
    %v1563 = vpack.c.b16 %v1551, %v1550
    %v1564 = vpack.c.b16 %v1553, %v1552
    %v1565 = vpack.c.b16 %v1555, %v1554
    %v1566 = vpack.c.b16 %v1557, %v1556
    %v1567 = vpack.c.b16 %v1559, %v1558
    %1568 = vrot.lane.b32.xlu0 %v1560, 32
    %v1569 = vpop.permute.xlu0 %1568
    %1570 = vrot.lane.b32.xlu0 %v1561, 32
    %v1571 = vpop.permute.xlu0 %1570
    %1572 = vrot.lane.b32.xlu0 %v1562, 32
    %v1573 = vpop.permute.xlu0 %1572
    %1574 = vrot.lane.b32.xlu0 %v1563, 32
    %v1575 = vpop.permute.xlu0 %1574
    %1576 = vrot.lane.b32.xlu0 %v1564, 32
    %v1577 = vpop.permute.xlu0 %1576
    %1578 = vrot.lane.b32.xlu0 %v1565, 32
    %v1579 = vpop.permute.xlu0 %1578
    %1580 = vrot.lane.b32.xlu0 %v1566, 32
    %v1581 = vpop.permute.xlu0 %1580
    %1582 = vrot.lane.b32.xlu0 %v1567, 32
    %v1583 = vpop.permute.xlu0 %1582
    %v1584 = vunpack.c.l.b16 %v706
    %v1585 = vunpack.c.l.b16 %v710
    %v1586 = vunpack.c.l.b16 %v714
    %v1587 = vunpack.c.l.b16 %v718
    %v1588 = vunpack.c.l.b16 %v722
    %v1589 = vunpack.c.l.b16 %v726
    %v1590 = vunpack.c.l.b16 %v730
    %v1591 = vunpack.c.l.b16 %v734
    %v1592 = vunpack.c.l.b16 %v738
    %v1593 = vunpack.c.l.b16 %v742
    %v1594 = vunpack.c.l.b16 %v746
    %v1595 = vunpack.c.l.b16 %v750
    %v1596 = vunpack.c.l.b16 %v754
    %v1597 = vunpack.c.l.b16 %v758
    %v1598 = vunpack.c.l.b16 %v762
    %v1599 = vunpack.c.l.b16 %v766
    %v1600 = vpack.c.b16 %v1585, %v1584
    %v1601 = vpack.c.b16 %v1587, %v1586
    %v1602 = vpack.c.b16 %v1589, %v1588
    %v1603 = vpack.c.b16 %v1591, %v1590
    %v1604 = vpack.c.b16 %v1593, %v1592
    %v1605 = vpack.c.b16 %v1595, %v1594
    %v1606 = vpack.c.b16 %v1597, %v1596
    %v1607 = vpack.c.b16 %v1599, %v1598
    %1608 = vrot.lane.b32.xlu0 %v1600, 64
    %v1609 = vpop.permute.xlu0 %1608
    %1610 = vrot.lane.b32.xlu0 %v1601, 64
    %v1611 = vpop.permute.xlu0 %1610
    %1612 = vrot.lane.b32.xlu0 %v1602, 64
    %v1613 = vpop.permute.xlu0 %1612
    %1614 = vrot.lane.b32.xlu0 %v1603, 64
    %v1615 = vpop.permute.xlu0 %1614
    %1616 = vrot.lane.b32.xlu0 %v1604, 64
    %v1617 = vpop.permute.xlu0 %1616
    %1618 = vrot.lane.b32.xlu0 %v1605, 64
    %v1619 = vpop.permute.xlu0 %1618
    %1620 = vrot.lane.b32.xlu0 %v1606, 64
    %v1621 = vpop.permute.xlu0 %1620
    %1622 = vrot.lane.b32.xlu0 %v1607, 64
    %v1623 = vpop.permute.xlu0 %1622
    %v1640 = vunpack.c.l.b16 %v767
    %v1641 = vunpack.c.l.b16 %v768
    %v1642 = vunpack.c.l.b16 %v769
    %v1643 = vunpack.c.l.b16 %v770
    %v1644 = vunpack.c.l.b16 %v771
    %v1645 = vunpack.c.l.b16 %v772
    %v1646 = vunpack.c.l.b16 %v773
    %v1647 = vunpack.c.l.b16 %v774
    %v1648 = vunpack.c.l.b16 %v775
    %v1649 = vunpack.c.l.b16 %v776
    %v1650 = vunpack.c.l.b16 %v777
    %v1651 = vunpack.c.l.b16 %v778
    %v1652 = vunpack.c.l.b16 %v779
    %v1653 = vunpack.c.l.b16 %v780
    %v1654 = vunpack.c.l.b16 %v781
    %v1655 = vunpack.c.l.b16 %v782
    %v1656 = vpack.c.b16 %v1641, %v1640
    %v1657 = vpack.c.b16 %v1643, %v1642
    %v1658 = vpack.c.b16 %v1645, %v1644
    %v1659 = vpack.c.b16 %v1647, %v1646
    %v1660 = vpack.c.b16 %v1649, %v1648
    %v1661 = vpack.c.b16 %v1651, %v1650
    %v1662 = vpack.c.b16 %v1653, %v1652
    %v1663 = vpack.c.b16 %v1655, %v1654
    %1664 = vrot.lane.b32.xlu0 %v1656, 96
    %v1665 = vpop.permute.xlu0 %1664
    %1666 = vrot.lane.b32.xlu0 %v1657, 96
    %v1667 = vpop.permute.xlu0 %1666
    %1668 = vrot.lane.b32.xlu0 %v1658, 96
    %v1669 = vpop.permute.xlu0 %1668
    %1670 = vrot.lane.b32.xlu0 %v1659, 96
    %v1671 = vpop.permute.xlu0 %1670
    %1672 = vrot.lane.b32.xlu0 %v1660, 96
    %v1673 = vpop.permute.xlu0 %1672
    %1674 = vrot.lane.b32.xlu0 %v1661, 96
    %v1675 = vpop.permute.xlu0 %1674
    %1676 = vrot.lane.b32.xlu0 %v1662, 96
    %v1677 = vpop.permute.xlu0 %1676
    %1678 = vrot.lane.b32.xlu0 %v1663, 96
    %v1679 = vpop.permute.xlu0 %1678
    %v1680 = vunpack.c.l.b16 %v812
    %v1681 = vunpack.c.l.b16 %v826
    %v1682 = vunpack.c.l.b16 %v840
    %v1683 = vunpack.c.l.b16 %v854
    %v1684 = vunpack.c.l.b16 %v868
    %v1685 = vunpack.c.l.b16 %v882
    %v1686 = vunpack.c.l.b16 %v896
    %v1687 = vunpack.c.l.b16 %v910
    %v1688 = vunpack.c.l.b16 %v924
    %v1689 = vunpack.c.l.b16 %v938
    %v1690 = vunpack.c.l.b16 %v952
    %v1691 = vunpack.c.l.b16 %v966
    %v1692 = vunpack.c.l.b16 %v980
    %v1693 = vunpack.c.l.b16 %v994
    %v1694 = vunpack.c.l.b16 %v1008
    %v1695 = vunpack.c.l.b16 %v1022
    %v1696 = vpack.c.b16 %v1681, %v1680
    %v1697 = vpack.c.b16 %v1683, %v1682
    %v1698 = vpack.c.b16 %v1685, %v1684
    %v1699 = vpack.c.b16 %v1687, %v1686
    %v1700 = vpack.c.b16 %v1689, %v1688
    %v1701 = vpack.c.b16 %v1691, %v1690
    %v1702 = vpack.c.b16 %v1693, %v1692
    %v1703 = vpack.c.b16 %v1695, %v1694
    %v1704 = vunpack.c.l.b16 %v1074
    %v1705 = vunpack.c.l.b16 %v1078
    %v1706 = vunpack.c.l.b16 %v1082
    %v1707 = vunpack.c.l.b16 %v1086
    %v1708 = vunpack.c.l.b16 %v1090
    %v1709 = vunpack.c.l.b16 %v1094
    %v1710 = vunpack.c.l.b16 %v1098
    %v1711 = vunpack.c.l.b16 %v1102
    %v1712 = vunpack.c.l.b16 %v1106
    %v1713 = vunpack.c.l.b16 %v1110
    %v1714 = vunpack.c.l.b16 %v1114
    %v1715 = vunpack.c.l.b16 %v1118
    %v1716 = vunpack.c.l.b16 %v1122
    %v1717 = vunpack.c.l.b16 %v1126
    %v1718 = vunpack.c.l.b16 %v1130
    %v1719 = vunpack.c.l.b16 %v1134
    %v1720 = vpack.c.b16 %v1705, %v1704
    %v1721 = vpack.c.b16 %v1707, %v1706
    %v1722 = vpack.c.b16 %v1709, %v1708
    %v1723 = vpack.c.b16 %v1711, %v1710
    %v1724 = vpack.c.b16 %v1713, %v1712
    %v1725 = vpack.c.b16 %v1715, %v1714
    %v1726 = vpack.c.b16 %v1717, %v1716
    %v1727 = vpack.c.b16 %v1719, %v1718
    %1728 = vrot.lane.b32.xlu0 %v1720, 32
    %v1729 = vpop.permute.xlu0 %1728
    %1730 = vrot.lane.b32.xlu0 %v1721, 32
    %v1731 = vpop.permute.xlu0 %1730
    %1732 = vrot.lane.b32.xlu0 %v1722, 32
    %v1733 = vpop.permute.xlu0 %1732
    %1734 = vrot.lane.b32.xlu0 %v1723, 32
    %v1735 = vpop.permute.xlu0 %1734
    %1736 = vrot.lane.b32.xlu0 %v1724, 32
    %v1737 = vpop.permute.xlu0 %1736
    %1738 = vrot.lane.b32.xlu0 %v1725, 32
    %v1739 = vpop.permute.xlu0 %1738
    %1740 = vrot.lane.b32.xlu0 %v1726, 32
    %v1741 = vpop.permute.xlu0 %1740
    %1742 = vrot.lane.b32.xlu0 %v1727, 32
    %v1743 = vpop.permute.xlu0 %1742
    %v1760 = vunpack.c.l.b16 %v1136
    %v1761 = vunpack.c.l.b16 %v1137
    %v1762 = vunpack.c.l.b16 %v1138
    %v1763 = vunpack.c.l.b16 %v1139
    %v1764 = vunpack.c.l.b16 %v1140
    %v1765 = vunpack.c.l.b16 %v1141
    %v1766 = vunpack.c.l.b16 %v1142
    %v1767 = vunpack.c.l.b16 %v1143
    %v1768 = vunpack.c.l.b16 %v1144
    %v1769 = vunpack.c.l.b16 %v1145
    %v1770 = vunpack.c.l.b16 %v1146
    %v1771 = vunpack.c.l.b16 %v1147
    %v1772 = vunpack.c.l.b16 %v1148
    %v1773 = vunpack.c.l.b16 %v1149
    %v1774 = vunpack.c.l.b16 %v1150
    %v1775 = vunpack.c.l.b16 %v1151
    %v1776 = vpack.c.b16 %v1761, %v1760
    %v1777 = vpack.c.b16 %v1763, %v1762
    %v1778 = vpack.c.b16 %v1765, %v1764
    %v1779 = vpack.c.b16 %v1767, %v1766
    %v1780 = vpack.c.b16 %v1769, %v1768
    %v1781 = vpack.c.b16 %v1771, %v1770
    %v1782 = vpack.c.b16 %v1773, %v1772
    %v1783 = vpack.c.b16 %v1775, %v1774
    %1784 = vrot.lane.b32.xlu0 %v1776, 64
    %v1785 = vpop.permute.xlu0 %1784
    %1786 = vrot.lane.b32.xlu0 %v1777, 64
    %v1787 = vpop.permute.xlu0 %1786
    %1788 = vrot.lane.b32.xlu0 %v1778, 64
    %v1789 = vpop.permute.xlu0 %1788
    %1790 = vrot.lane.b32.xlu0 %v1779, 64
    %v1791 = vpop.permute.xlu0 %1790
    %1792 = vrot.lane.b32.xlu0 %v1780, 64
    %v1793 = vpop.permute.xlu0 %1792
    %1794 = vrot.lane.b32.xlu0 %v1781, 64
    %v1795 = vpop.permute.xlu0 %1794
    %1796 = vrot.lane.b32.xlu0 %v1782, 64
    %v1797 = vpop.permute.xlu0 %1796
    %1798 = vrot.lane.b32.xlu0 %v1783, 64
    %v1799 = vpop.permute.xlu0 %1798
    %v1800 = vunpack.c.l.b16 %v1181
    %v1801 = vunpack.c.l.b16 %v1195
    %v1802 = vunpack.c.l.b16 %v1209
    %v1803 = vunpack.c.l.b16 %v1223
    %v1804 = vunpack.c.l.b16 %v1237
    %v1805 = vunpack.c.l.b16 %v1251
    %v1806 = vunpack.c.l.b16 %v1265
    %v1807 = vunpack.c.l.b16 %v1279
    %v1808 = vunpack.c.l.b16 %v1293
    %v1809 = vunpack.c.l.b16 %v1307
    %v1810 = vunpack.c.l.b16 %v1321
    %v1811 = vunpack.c.l.b16 %v1335
    %v1812 = vunpack.c.l.b16 %v1349
    %v1813 = vunpack.c.l.b16 %v1363
    %v1814 = vunpack.c.l.b16 %v1377
    %v1815 = vunpack.c.l.b16 %v1391
    %v1816 = vpack.c.b16 %v1801, %v1800
    %v1817 = vpack.c.b16 %v1803, %v1802
    %v1818 = vpack.c.b16 %v1805, %v1804
    %v1819 = vpack.c.b16 %v1807, %v1806
    %v1820 = vpack.c.b16 %v1809, %v1808
    %v1821 = vpack.c.b16 %v1811, %v1810
    %v1822 = vpack.c.b16 %v1813, %v1812
    %v1823 = vpack.c.b16 %v1815, %v1814
    %1824 = vrot.lane.b32.xlu0 %v1816, 96
    %v1825 = vpop.permute.xlu0 %1824
    %1826 = vrot.lane.b32.xlu0 %v1817, 96
    %v1827 = vpop.permute.xlu0 %1826
    %1828 = vrot.lane.b32.xlu0 %v1818, 96
    %v1829 = vpop.permute.xlu0 %1828
    %1830 = vrot.lane.b32.xlu0 %v1819, 96
    %v1831 = vpop.permute.xlu0 %1830
    %1832 = vrot.lane.b32.xlu0 %v1820, 96
    %v1833 = vpop.permute.xlu0 %1832
    %1834 = vrot.lane.b32.xlu0 %v1821, 96
    %v1835 = vpop.permute.xlu0 %1834
    %1836 = vrot.lane.b32.xlu0 %v1822, 96
    %v1837 = vpop.permute.xlu0 %1836
    %1838 = vrot.lane.b32.xlu0 %v1823, 96
    %v1839 = vpop.permute.xlu0 %1838
    %v1840 = vunpack.c.l.b16 %v1443
    %v1841 = vunpack.c.l.b16 %v1447
    %v1842 = vunpack.c.l.b16 %v1451
    %v1843 = vunpack.c.l.b16 %v1455
    %v1844 = vunpack.c.l.b16 %v1459
    %v1845 = vunpack.c.l.b16 %v1463
    %v1846 = vunpack.c.l.b16 %v1467
    %v1847 = vunpack.c.l.b16 %v1471
    %v1848 = vunpack.c.l.b16 %v1475
    %v1849 = vunpack.c.l.b16 %v1479
    %v1850 = vunpack.c.l.b16 %v1483
    %v1851 = vunpack.c.l.b16 %v1487
    %v1852 = vunpack.c.l.b16 %v1491
    %v1853 = vunpack.c.l.b16 %v1495
    %v1854 = vunpack.c.l.b16 %v1499
    %v1855 = vunpack.c.l.b16 %v1503
    %v1856 = vpack.c.b16 %v1841, %v1840
    %v1857 = vpack.c.b16 %v1843, %v1842
    %v1858 = vpack.c.b16 %v1845, %v1844
    %v1859 = vpack.c.b16 %v1847, %v1846
    %v1860 = vpack.c.b16 %v1849, %v1848
    %v1861 = vpack.c.b16 %v1851, %v1850
    %v1862 = vpack.c.b16 %v1853, %v1852
    %v1863 = vpack.c.b16 %v1855, %v1854
    %vm1864 = vcmask 261120
    %v1867 = vsel %vm1864, %v1536, %v1569
    %v1870 = vsel %vm1864, %v1537, %v1571
    %v1873 = vsel %vm1864, %v1538, %v1573
    %v1876 = vsel %vm1864, %v1539, %v1575
    %v1879 = vsel %vm1864, %v1540, %v1577
    %v1882 = vsel %vm1864, %v1541, %v1579
    %v1885 = vsel %vm1864, %v1542, %v1581
    %v1888 = vsel %vm1864, %v1543, %v1583
    %vm1889 = vcmask 523264
    %v1891 = vsel %vm1889, %v1867, %v1609
    %v1893 = vsel %vm1889, %v1870, %v1611
    %v1895 = vsel %vm1889, %v1873, %v1613
    %v1897 = vsel %vm1889, %v1876, %v1615
    %v1899 = vsel %vm1889, %v1879, %v1617
    %v1901 = vsel %vm1889, %v1882, %v1619
    %v1903 = vsel %vm1889, %v1885, %v1621
    %v1905 = vsel %vm1889, %v1888, %v1623
    %vm1906 = vcmask 785408
    %v1908 = vsel %vm1906, %v1891, %v1665
    %v1911 = vsel %vm1906, %v1893, %v1667
    %v1914 = vsel %vm1906, %v1895, %v1669
    %v1917 = vsel %vm1906, %v1897, %v1671
    %v1920 = vsel %vm1906, %v1899, %v1673
    %v1923 = vsel %vm1906, %v1901, %v1675
    %v1926 = vsel %vm1906, %v1903, %v1677
    %v1929 = vsel %vm1906, %v1905, %v1679
    %v1933 = vsel %vm1864, %v1696, %v1729
    %v1936 = vsel %vm1864, %v1697, %v1731
    %v1939 = vsel %vm1864, %v1698, %v1733
    %v1942 = vsel %vm1864, %v1699, %v1735
    %v1945 = vsel %vm1864, %v1700, %v1737
    %v1948 = vsel %vm1864, %v1701, %v1739
    %v1951 = vsel %vm1864, %v1702, %v1741
    %v1954 = vsel %vm1864, %v1703, %v1743
    %v1956 = vsel %vm1889, %v1933, %v1785
    %v1958 = vsel %vm1889, %v1936, %v1787
    %v1960 = vsel %vm1889, %v1939, %v1789
    %v1962 = vsel %vm1889, %v1942, %v1791
    %v1964 = vsel %vm1889, %v1945, %v1793
    %v1966 = vsel %vm1889, %v1948, %v1795
    %v1968 = vsel %vm1889, %v1951, %v1797
    %v1970 = vsel %vm1889, %v1954, %v1799
    %v1972 = vsel %vm1906, %v1956, %v1825
    %v1975 = vsel %vm1906, %v1958, %v1827
    %v1978 = vsel %vm1906, %v1960, %v1829
    %v1981 = vsel %vm1906, %v1962, %v1831
    %v1984 = vsel %vm1906, %v1964, %v1833
    %v1987 = vsel %vm1906, %v1966, %v1835
    %v1990 = vsel %vm1906, %v1968, %v1837
    %v1993 = vsel %vm1906, %v1970, %v1839
    %v1995 = vld [vmem:[#allocation4] sm:$0xf]
    %v1996 = vld [vmem:[#allocation4 + $0x4] sm:$0xf]
    %v1997 = vld [vmem:[#allocation4 + $0x8] sm:$0xf]
    %v1998 = vld [vmem:[#allocation4 + $0xc] sm:$0xf]
    %v1999 = vld [vmem:[#allocation4 + $0x10] sm:$0xf]
    %v2000 = vld [vmem:[#allocation4 + $0x14] sm:$0xf]
    %v2001 = vld [vmem:[#allocation4 + $0x18] sm:$0xf]
    %v2002 = vld [vmem:[#allocation4 + $0x1c] sm:$0xf]
    %v2003 = vld [vmem:[#allocation4 + $0x20] sm:$0xf]
    %v2004 = vld [vmem:[#allocation4 + $0x24] sm:$0xf]
    %v2005 = vld [vmem:[#allocation4 + $0x28] sm:$0xf]
    %v2006 = vld [vmem:[#allocation4 + $0x2c] sm:$0xf]
    %v2007 = vld [vmem:[#allocation4 + $0x30] sm:$0xf]
    %v2008 = vld [vmem:[#allocation4 + $0x34] sm:$0xf]
    %v2009 = vld [vmem:[#allocation4 + $0x38] sm:$0xf]
    %v2010 = vld [vmem:[#allocation4 + $0x3c] sm:$0xf]
    %v2011 = vld [vmem:[#allocation4 + $0x40] sm:$0xf]
    %v2012 = vld [vmem:[#allocation4 + $0x44] sm:$0xf]
    %v2013 = vld [vmem:[#allocation4 + $0x48] sm:$0xf]
    %v2014 = vld [vmem:[#allocation4 + $0x4c] sm:$0xf]
    %v2015 = vld [vmem:[#allocation4 + $0x50] sm:$0xf]
    %v2016 = vld [vmem:[#allocation4 + $0x54] sm:$0xf]
    %v2017 = vld [vmem:[#allocation4 + $0x58] sm:$0xf]
    %v2018 = vld [vmem:[#allocation4 + $0x5c] sm:$0xf]
    %v2019 = vld [vmem:[#allocation4 + $0x60] sm:$0xf]
    %v2020 = vld [vmem:[#allocation4 + $0x64] sm:$0xf]
    %v2021 = vld [vmem:[#allocation4 + $0x68] sm:$0xf]
    %v2022 = vld [vmem:[#allocation4 + $0x6c] sm:$0xf]
    %v2023 = vld [vmem:[#allocation4 + $0x70] sm:$0xf]
    %v2024 = vld [vmem:[#allocation4 + $0x74] sm:$0xf]
    %v2025 = vld [vmem:[#allocation4 + $0x78] sm:$0xf]
    %v2026 = vld [vmem:[#allocation4 + $0x7c] sm:$0xf]
    %v2027 = vld [vmem:[#allocation4 + $0x80] sm:$0xf]
    %v2028 = vld [vmem:[#allocation4 + $0x84] sm:$0xf]
    %v2029 = vld [vmem:[#allocation4 + $0x88] sm:$0xf]
    %v2030 = vld [vmem:[#allocation4 + $0x8c] sm:$0xf]
    %v2067 = vunpack.c.l.b16 %v1995
    %v2068 = vunpack.c.l.b16 %v1996
    %v2069 = vunpack.c.l.b16 %v1997
    %v2070 = vunpack.c.l.b16 %v1998
    %v2071 = vunpack.c.l.b16 %v1999
    %v2072 = vunpack.c.l.b16 %v2000
    %v2073 = vunpack.c.l.b16 %v2001
    %v2074 = vunpack.c.l.b16 %v2002
    %v2075 = vunpack.c.l.b16 %v2003
    %v2076 = vunpack.c.l.b16 %v2004
    %v2077 = vunpack.c.l.b16 %v2005
    %v2078 = vunpack.c.l.b16 %v2006
    %v2079 = vunpack.c.l.b16 %v2007
    %v2080 = vunpack.c.l.b16 %v2008
    %v2081 = vunpack.c.l.b16 %v2009
    %v2082 = vunpack.c.l.b16 %v2010
    %v2083 = vunpack.c.l.b16 %v2011
    %v2084 = vunpack.c.l.b16 %v2012
    %v2085 = vunpack.c.l.b16 %v2013
    %v2086 = vunpack.c.l.b16 %v2014
    %v2087 = vunpack.c.l.b16 %v2015
    %v2088 = vunpack.c.l.b16 %v2016
    %v2089 = vunpack.c.l.b16 %v2017
    %v2090 = vunpack.c.l.b16 %v2018
    %v2091 = vunpack.c.l.b16 %v2019
    %v2092 = vunpack.c.l.b16 %v2020
    %v2093 = vunpack.c.l.b16 %v2021
    %v2094 = vunpack.c.l.b16 %v2022
    %v2095 = vunpack.c.l.b16 %v2023
    %v2096 = vunpack.c.l.b16 %v2024
    %v2097 = vunpack.c.l.b16 %v2025
    %v2098 = vunpack.c.l.b16 %v2026
    %v2099 = vunpack.c.l.b16 %v2027
    %v2100 = vunpack.c.l.b16 %v2028
    %v2101 = vunpack.c.l.b16 %v2029
    %v2102 = vunpack.c.l.b16 %v2030
    %v2103 = vpack.c.b16 %v2068, %v2067
    %v2104 = vpack.c.b16 %v2070, %v2069
    %v2105 = vpack.c.b16 %v2072, %v2071
    %v2106 = vpack.c.b16 %v2074, %v2073
    %v2107 = vpack.c.b16 %v2076, %v2075
    %v2108 = vpack.c.b16 %v2078, %v2077
    %v2109 = vpack.c.b16 %v2080, %v2079
    %v2110 = vpack.c.b16 %v2082, %v2081
    %v2111 = vpack.c.b16 %v2084, %v2083
    %v2112 = vpack.c.b16 %v2086, %v2085
    %v2113 = vpack.c.b16 %v2088, %v2087
    %v2114 = vpack.c.b16 %v2090, %v2089
    %v2115 = vpack.c.b16 %v2092, %v2091
    %v2116 = vpack.c.b16 %v2094, %v2093
    %v2117 = vpack.c.b16 %v2096, %v2095
    %v2118 = vpack.c.b16 %v2098, %v2097
    %v2119 = vpack.c.b16 %v2100, %v2099
    %v2120 = vpack.c.b16 %v2102, %v2101
    %v2140 = vsel %vm1864, %v1856, 0
    %v2143 = vsel %vm1864, %v1857, 0
    %v2146 = vsel %vm1864, %v1858, 0
    %v2149 = vsel %vm1864, %v1859, 0
    %v2152 = vsel %vm1864, %v1860, 0
    %v2155 = vsel %vm1864, %v1861, 0
    %v2158 = vsel %vm1864, %v1862, 0
    %v2161 = vsel %vm1864, %v1863, 0
    %2163 = vmatprep.subr.bf16.mxu0 0
    %2164 = vmatpush1.bf16.msra.mxu0 %v2110
    %2165 = vmatprep.subr.bf16.mxu0 0
    %2166 = vmatpush1.bf16.msra.mxu0 %v2109
    %2167 = vmatprep.subr.bf16.mxu0 0
    %2168 = vmatpush1.bf16.msra.mxu0 %v2108
    %2169 = vmatprep.subr.bf16.mxu0 0
    %2170 = vmatpush1.bf16.msra.mxu0 %v2107
    %2171 = vmatprep.subr.bf16.mxu0 0
    %2172 = vmatpush1.bf16.msra.mxu0 %v2106
    %2173 = vmatprep.subr.bf16.mxu0 0
    %2174 = vmatpush1.bf16.msra.mxu0 %v2105
    %2175 = vmatprep.subr.bf16.mxu0 0
    %2176 = vmatpush1.bf16.msra.mxu0 %v2104
    %2177 = vmatprep.subr.bf16.mxu0 0
    %2178 = vmatpush1.bf16.msra.mxu0 %v2103
    %2179 = vmatprep.subr.bf16.mxu0 0
    %2180 = vmatpush2.bf16.msra.mxu0 %v2118
    %2181 = vmatprep.subr.bf16.mxu0 0
    %2182 = vmatpush2.bf16.msra.mxu0 %v2117
    %2183 = vmatprep.subr.bf16.mxu0 0
    %2184 = vmatpush2.bf16.msra.mxu0 %v2116
    %2185 = vmatprep.subr.bf16.mxu0 0
    %2186 = vmatpush2.bf16.msra.mxu0 %v2115
    %2187 = vmatprep.subr.bf16.mxu0 0
    %2188 = vmatpush2.bf16.msra.mxu0 %v2114
    %2189 = vmatprep.subr.bf16.mxu0 0
    %2190 = vmatpush2.bf16.msra.mxu0 %v2113
    %2191 = vmatprep.subr.bf16.mxu0 0
    %2192 = vmatpush2.bf16.msra.mxu0 %v2112
    %2193 = vmatprep.subr.bf16.mxu0 0
    %2194 = vmatpush2.bf16.msra.mxu0 %v2111
    %2195 = vmatprep.mubr.bf16.mxu0 %v1972
    %2196 = vmatmul.mubr.bf16.gmra.mxu0 %v1908
    %v2197 = vpop.f32.mrf.mxu0
    %v2198 = vadd.f32 0.0, %v2197
    %v2199 = vpop.f32.mrf.mxu0
    %v2200 = vpop.f32.mrf.mxu0
    %v2201 = vadd.f32 0.0, %v2200
    %v2202 = vpop.f32.mrf.mxu0
    %2203 = vmatprep.mubr.bf16.mxu0 %v1975
    %2204 = vmatmul.mubr.bf16.gmra.mxu0 %v1911
    %v2205 = vpop.f32.mrf.mxu0
    %v2206 = vadd.f32 0.0, %v2205
    %v2207 = vpop.f32.mrf.mxu0
    %v2208 = vpop.f32.mrf.mxu0
    %v2209 = vadd.f32 0.0, %v2208
    %v2210 = vpop.f32.mrf.mxu0
    %2211 = vmatprep.mubr.bf16.mxu0 %v1978
    %2212 = vmatmul.mubr.bf16.gmra.mxu0 %v1914
    %v2213 = vpop.f32.mrf.mxu0
    %v2214 = vadd.f32 0.0, %v2213
    %v2215 = vpop.f32.mrf.mxu0
    %v2216 = vpop.f32.mrf.mxu0
    %v2217 = vadd.f32 0.0, %v2216
    %v2218 = vpop.f32.mrf.mxu0
    %2219 = vmatprep.mubr.bf16.mxu0 %v1981
    %2220 = vmatmul.mubr.bf16.gmra.mxu0 %v1917
    %v2221 = vpop.f32.mrf.mxu0
    %v2222 = vadd.f32 0.0, %v2221
    %v2223 = vpop.f32.mrf.mxu0
    %v2224 = vpop.f32.mrf.mxu0
    %v2225 = vadd.f32 0.0, %v2224
    %v2226 = vpop.f32.mrf.mxu0
    %2227 = vmatprep.mubr.bf16.mxu0 %v1984
    %2228 = vmatmul.mubr.bf16.gmra.mxu0 %v1920
    %v2229 = vpop.f32.mrf.mxu0
    %v2230 = vadd.f32 0.0, %v2229
    %v2231 = vpop.f32.mrf.mxu0
    %v2232 = vpop.f32.mrf.mxu0
    %v2233 = vadd.f32 0.0, %v2232
    %v2234 = vpop.f32.mrf.mxu0
    %2235 = vmatprep.mubr.bf16.mxu0 %v1987
    %2236 = vmatmul.mubr.bf16.gmra.mxu0 %v1923
    %v2237 = vpop.f32.mrf.mxu0
    %v2238 = vadd.f32 0.0, %v2237
    %v2239 = vpop.f32.mrf.mxu0
    %v2240 = vpop.f32.mrf.mxu0
    %v2241 = vadd.f32 0.0, %v2240
    %v2242 = vpop.f32.mrf.mxu0
    %2243 = vmatprep.mubr.bf16.mxu0 %v1990
    %2244 = vmatmul.mubr.bf16.gmra.mxu0 %v1926
    %v2245 = vpop.f32.mrf.mxu0
    %v2246 = vadd.f32 0.0, %v2245
    %v2247 = vpop.f32.mrf.mxu0
    %v2248 = vpop.f32.mrf.mxu0
    %v2249 = vadd.f32 0.0, %v2248
    %v2250 = vpop.f32.mrf.mxu0
    %2251 = vmatprep.mubr.bf16.mxu0 %v1993
    %2252 = vmatmul.mubr.bf16.gmra.mxu0 %v1929
    %v2253 = vpop.f32.mrf.mxu0
    %v2254 = vadd.f32 0.0, %v2253
    %v2255 = vpop.f32.mrf.mxu0
    %v2256 = vpop.f32.mrf.mxu0
    %v2257 = vadd.f32 0.0, %v2256
    %v2258 = vpop.f32.mrf.mxu0
    %2259 = vdwg.mxu0
    %2260 = vmatprep.subr.bf16.mxu0 0
    %2261 = vmatpush1.bf16.msra.mxu0 0
    %2262 = vmatprep.subr.bf16.mxu0 0
    %2263 = vmatpush1.bf16.msra.mxu0 0
    %2264 = vmatprep.subr.bf16.mxu0 0
    %2265 = vmatpush1.bf16.msra.mxu0 0
    %2266 = vmatprep.subr.bf16.mxu0 0
    %2267 = vmatpush1.bf16.msra.mxu0 0
    %2268 = vmatprep.subr.bf16.mxu0 0
    %2269 = vmatpush1.bf16.msra.mxu0 0
    %2270 = vmatprep.subr.bf16.mxu0 0
    %2271 = vmatpush1.bf16.msra.mxu0 0
    %2272 = vmatprep.subr.bf16.mxu0 0
    %2273 = vmatpush1.bf16.msra.mxu0 %v2120
    %2274 = vmatprep.subr.bf16.mxu0 0
    %2275 = vmatpush1.bf16.msra.mxu0 %v2119
    %2276 = vmatprep.subr.bf16.mxu0 0
    %2277 = vmatpush2.bf16.msra.mxu0 0
    %2278 = vmatprep.subr.bf16.mxu0 0
    %2279 = vmatpush2.bf16.msra.mxu0 0
    %2280 = vmatprep.subr.bf16.mxu0 0
    %2281 = vmatpush2.bf16.msra.mxu0 0
    %2282 = vmatprep.subr.bf16.mxu0 0
    %2283 = vmatpush2.bf16.msra.mxu0 0
    %2284 = vmatprep.subr.bf16.mxu0 0
    %2285 = vmatpush2.bf16.msra.mxu0 0
    %2286 = vmatprep.subr.bf16.mxu0 0
    %2287 = vmatpush2.bf16.msra.mxu0 0
    %2288 = vmatprep.subr.bf16.mxu0 0
    %2289 = vmatpush2.bf16.msra.mxu0 0
    %2290 = vmatprep.subr.bf16.mxu0 0
    %2291 = vmatpush2.bf16.msra.mxu0 0
    %2292 = vmatprep.mubr.bf16.mxu0 0
    %2293 = vmatmul.mubr.bf16.gmra.mxu0 %v2140
    %v2294 = vpop.f32.mrf.mxu0
    %v2295 = vadd.f32 %v2198, %v2294
    %v2296 = vpop.f32.mrf.mxu0
    %v2297 = vpop.f32.mrf.mxu0
    %v2298 = vadd.f32 %v2201, %v2297
    %v2299 = vpop.f32.mrf.mxu0
    %2300 = vmatprep.mubr.bf16.mxu0 0
    %2301 = vmatmul.mubr.bf16.gmra.mxu0 %v2143
    %v2302 = vpop.f32.mrf.mxu0
    %v2303 = vadd.f32 %v2206, %v2302
    %v2304 = vpop.f32.mrf.mxu0
    %v2305 = vpop.f32.mrf.mxu0
    %v2306 = vadd.f32 %v2209, %v2305
    %v2307 = vpop.f32.mrf.mxu0
    %2308 = vmatprep.mubr.bf16.mxu0 0
    %2309 = vmatmul.mubr.bf16.gmra.mxu0 %v2146
    %v2310 = vpop.f32.mrf.mxu0
    %v2311 = vadd.f32 %v2214, %v2310
    %v2312 = vpop.f32.mrf.mxu0
    %v2313 = vpop.f32.mrf.mxu0
    %v2314 = vadd.f32 %v2217, %v2313
    %v2315 = vpop.f32.mrf.mxu0
    %2316 = vmatprep.mubr.bf16.mxu0 0
    %2317 = vmatmul.mubr.bf16.gmra.mxu0 %v2149
    %v2318 = vpop.f32.mrf.mxu0
    %v2319 = vadd.f32 %v2222, %v2318
    %v2320 = vpop.f32.mrf.mxu0
    %v2321 = vpop.f32.mrf.mxu0
    %v2322 = vadd.f32 %v2225, %v2321
    %v2323 = vpop.f32.mrf.mxu0
    %2324 = vmatprep.mubr.bf16.mxu0 0
    %2325 = vmatmul.mubr.bf16.gmra.mxu0 %v2152
    %v2326 = vpop.f32.mrf.mxu0
    %v2327 = vadd.f32 %v2230, %v2326
    %v2328 = vpop.f32.mrf.mxu0
    %v2329 = vpop.f32.mrf.mxu0
    %v2330 = vadd.f32 %v2233, %v2329
    %v2331 = vpop.f32.mrf.mxu0
    %2332 = vmatprep.mubr.bf16.mxu0 0
    %2333 = vmatmul.mubr.bf16.gmra.mxu0 %v2155
    %v2334 = vpop.f32.mrf.mxu0
    %v2335 = vadd.f32 %v2238, %v2334
    %v2336 = vpop.f32.mrf.mxu0
    %v2337 = vpop.f32.mrf.mxu0
    %v2338 = vadd.f32 %v2241, %v2337
    %v2339 = vpop.f32.mrf.mxu0
    %2340 = vmatprep.mubr.bf16.mxu0 0
    %2341 = vmatmul.mubr.bf16.gmra.mxu0 %v2158
    %v2342 = vpop.f32.mrf.mxu0
    %v2343 = vadd.f32 %v2246, %v2342
    %v2344 = vpop.f32.mrf.mxu0
    %v2345 = vpop.f32.mrf.mxu0
    %v2346 = vadd.f32 %v2249, %v2345
    %v2347 = vpop.f32.mrf.mxu0
    %2348 = vmatprep.mubr.bf16.mxu0 0
    %2349 = vmatmul.mubr.bf16.gmra.mxu0 %v2161
    %v2350 = vpop.f32.mrf.mxu0
    %v2351 = vadd.f32 %v2254, %v2350
    %v2352 = vpop.f32.mrf.mxu0
    %v2353 = vpop.f32.mrf.mxu0
    %v2354 = vadd.f32 %v2257, %v2353
    %v2355 = vpop.f32.mrf.mxu0
    %2356 = vdwg.mxu0
    %v2357 = vld [vmem:[%s2] sm:$0x1]
    %v2359 = vlaneseq
    %v2360 = vshrl.u32 %v2359, 7
    %v2361 = vsub.s32 0, %v2360
    %v2362 = vrot.slane %v2357, %v2361
    %v2364 = vmul.f32 %v2295, %v2362
    %v2365 = vmul.f32 %v2298, %v2362
    %v2366 = vmul.f32 %v2303, %v2362
    %v2367 = vmul.f32 %v2306, %v2362
    %v2368 = vmul.f32 %v2311, %v2362
    %v2369 = vmul.f32 %v2314, %v2362
    %v2370 = vmul.f32 %v2319, %v2362
    %v2371 = vmul.f32 %v2322, %v2362
    %v2372 = vmul.f32 %v2327, %v2362
    %v2373 = vmul.f32 %v2330, %v2362
    %v2374 = vmul.f32 %v2335, %v2362
    %v2375 = vmul.f32 %v2338, %v2362
    %v2376 = vmul.f32 %v2343, %v2362
    %v2377 = vmul.f32 %v2346, %v2362
    %v2378 = vmul.f32 %v2351, %v2362
    %v2379 = vmul.f32 %v2354, %v2362
    %v2380 = vld [vmem:[%s3] sm:$0x1]
    %v2382 = vlaneseq
    %v2383 = vshrl.u32 %v2382, 7
    %v2384 = vsub.s32 0, %v2383
    %v2385 = vrot.slane %v2380, %v2384
    %v2387 = vadd.f32 %v2364, %v2385
    %v2388 = vadd.f32 %v2365, %v2385
    %v2389 = vadd.f32 %v2366, %v2385
    %v2390 = vadd.f32 %v2367, %v2385
    %v2391 = vadd.f32 %v2368, %v2385
    %v2392 = vadd.f32 %v2369, %v2385
    %v2393 = vadd.f32 %v2370, %v2385
    %v2394 = vadd.f32 %v2371, %v2385
    %v2395 = vadd.f32 %v2372, %v2385
    %v2396 = vadd.f32 %v2373, %v2385
    %v2397 = vadd.f32 %v2374, %v2385
    %v2398 = vadd.f32 %v2375, %v2385
    %v2399 = vadd.f32 %v2376, %v2385
    %v2400 = vadd.f32 %v2377, %v2385
    %v2401 = vadd.f32 %v2378, %v2385
    %v2402 = vadd.f32 %v2379, %v2385
    %v2403 = vmax.f32 %v2387, 0.0
    %v2404 = vmax.f32 %v2388, 0.0
    %v2405 = vmax.f32 %v2389, 0.0
    %v2406 = vmax.f32 %v2390, 0.0
    %v2407 = vmax.f32 %v2391, 0.0
    %v2408 = vmax.f32 %v2392, 0.0
    %v2409 = vmax.f32 %v2393, 0.0
    %v2410 = vmax.f32 %v2394, 0.0
    %v2411 = vmax.f32 %v2395, 0.0
    %v2412 = vmax.f32 %v2396, 0.0
    %v2413 = vmax.f32 %v2397, 0.0
    %v2414 = vmax.f32 %v2398, 0.0
    %v2415 = vmax.f32 %v2399, 0.0
    %v2416 = vmax.f32 %v2400, 0.0
    %v2417 = vmax.f32 %v2401, 0.0
    %v2418 = vmax.f32 %v2402, 0.0
    %v2419 = vpack.c.bf16 %v2404, %v2403
    %v2420 = vpack.c.bf16 %v2406, %v2405
    %v2421 = vpack.c.bf16 %v2408, %v2407
    %v2422 = vpack.c.bf16 %v2410, %v2409
    %v2423 = vpack.c.bf16 %v2412, %v2411
    %v2424 = vpack.c.bf16 %v2414, %v2413
    %v2425 = vpack.c.bf16 %v2416, %v2415
    %v2426 = vpack.c.bf16 %v2418, %v2417
    %v2435 = vunpack.c.l.b16 %v2419
    %v2436 = vunpack.c.h.b16 %v2419
    %v2437 = vunpack.c.l.b16 %v2420
    %v2438 = vunpack.c.h.b16 %v2420
    %v2439 = vunpack.c.l.b16 %v2421
    %v2440 = vunpack.c.h.b16 %v2421
    %v2441 = vunpack.c.l.b16 %v2422
    %v2442 = vunpack.c.h.b16 %v2422
    %v2443 = vunpack.c.l.b16 %v2423
    %v2444 = vunpack.c.h.b16 %v2423
    %v2445 = vunpack.c.l.b16 %v2424
    %v2446 = vunpack.c.h.b16 %v2424
    %v2447 = vunpack.c.l.b16 %v2425
    %v2448 = vunpack.c.h.b16 %v2425
    %v2449 = vunpack.c.l.b16 %v2426
    %v2450 = vunpack.c.h.b16 %v2426
    %v2451 = vpack.c.b16 %v2435, %v2435
    %v2452 = vpack.c.b16 %v2436, %v2436
    %v2453 = vpack.c.b16 %v2437, %v2437
    %v2454 = vpack.c.b16 %v2438, %v2438
    %v2455 = vpack.c.b16 %v2439, %v2439
    %v2456 = vpack.c.b16 %v2440, %v2440
    %v2457 = vpack.c.b16 %v2441, %v2441
    %v2458 = vpack.c.b16 %v2442, %v2442
    %v2459 = vpack.c.b16 %v2443, %v2443
    %v2460 = vpack.c.b16 %v2444, %v2444
    %v2461 = vpack.c.b16 %v2445, %v2445
    %v2462 = vpack.c.b16 %v2446, %v2446
    %v2463 = vpack.c.b16 %v2447, %v2447
    %v2464 = vpack.c.b16 %v2448, %v2448
    %v2465 = vpack.c.b16 %v2449, %v2449
    %v2466 = vpack.c.b16 %v2450, %v2450
    %v2468 = vshrl.u32 %v2451, 16
    %v2470 = vrot.slane %v2468, 7
    %v2471 = vshll.u32 %v2451, 16
    %v2473 = vor.u32 %v2470, %v2471
    %v2474 = vrot.slane %v2470, 4
    %v2476 = vshrl.u32 %v2452, 16
    %v2478 = vrot.slane %v2476, 7
    %v2479 = vshll.u32 %v2452, 16
    %v2481 = vor.u32 %v2478, %v2479
    %v2482 = vrot.slane %v2478, 4
    %v2484 = vshrl.u32 %v2453, 16
    %v2486 = vrot.slane %v2484, 7
    %v2487 = vshll.u32 %v2453, 16
    %v2489 = vor.u32 %v2486, %v2487
    %v2490 = vrot.slane %v2486, 4
    %v2492 = vshrl.u32 %v2454, 16
    %v2494 = vrot.slane %v2492, 7
    %v2495 = vshll.u32 %v2454, 16
    %v2497 = vor.u32 %v2494, %v2495
    %v2498 = vrot.slane %v2494, 4
    %v2500 = vshrl.u32 %v2455, 16
    %v2502 = vrot.slane %v2500, 7
    %v2503 = vshll.u32 %v2455, 16
    %v2505 = vor.u32 %v2502, %v2503
    %v2506 = vrot.slane %v2502, 4
    %v2508 = vshrl.u32 %v2456, 16
    %v2510 = vrot.slane %v2508, 7
    %v2511 = vshll.u32 %v2456, 16
    %v2513 = vor.u32 %v2510, %v2511
    %v2514 = vrot.slane %v2510, 4
    %v2516 = vshrl.u32 %v2457, 16
    %v2518 = vrot.slane %v2516, 7
    %v2519 = vshll.u32 %v2457, 16
    %v2521 = vor.u32 %v2518, %v2519
    %v2522 = vrot.slane %v2518, 4
    %v2524 = vshrl.u32 %v2458, 16
    %v2526 = vrot.slane %v2524, 7
    %v2527 = vshll.u32 %v2458, 16
    %v2529 = vor.u32 %v2526, %v2527
    %v2530 = vrot.slane %v2526, 4
    %v2532 = vshrl.u32 %v2459, 16
    %v2534 = vrot.slane %v2532, 7
    %v2535 = vshll.u32 %v2459, 16
    %v2537 = vor.u32 %v2534, %v2535
    %v2538 = vrot.slane %v2534, 4
    %v2540 = vshrl.u32 %v2460, 16
    %v2542 = vrot.slane %v2540, 7
    %v2543 = vshll.u32 %v2460, 16
    %v2545 = vor.u32 %v2542, %v2543
    %v2546 = vrot.slane %v2542, 4
    %v2548 = vshrl.u32 %v2461, 16
    %v2550 = vrot.slane %v2548, 7
    %v2551 = vshll.u32 %v2461, 16
    %v2553 = vor.u32 %v2550, %v2551
    %v2554 = vrot.slane %v2550, 4
    %v2556 = vshrl.u32 %v2462, 16
    %v2558 = vrot.slane %v2556, 7
    %v2559 = vshll.u32 %v2462, 16
    %v2561 = vor.u32 %v2558, %v2559
    %v2562 = vrot.slane %v2558, 4
    %v2564 = vshrl.u32 %v2463, 16
    %v2566 = vrot.slane %v2564, 7
    %v2567 = vshll.u32 %v2463, 16
    %v2569 = vor.u32 %v2566, %v2567
    %v2570 = vrot.slane %v2566, 4
    %v2572 = vshrl.u32 %v2464, 16
    %v2574 = vrot.slane %v2572, 7
    %v2575 = vshll.u32 %v2464, 16
    %v2577 = vor.u32 %v2574, %v2575
    %v2578 = vrot.slane %v2574, 4
    %v2580 = vshrl.u32 %v2465, 16
    %v2582 = vrot.slane %v2580, 7
    %v2583 = vshll.u32 %v2465, 16
    %v2585 = vor.u32 %v2582, %v2583
    %v2586 = vrot.slane %v2582, 4
    %v2588 = vshrl.u32 %v2466, 16
    %v2590 = vrot.slane %v2588, 7
    %v2591 = vshll.u32 %v2466, 16
    %v2593 = vor.u32 %v2590, %v2591
    %v2594 = vrot.slane %v2590, 4
    %v2627 = vsel %vm293, %v2473, %v767
    %2628 = vst [vmem:[%s290] sm:$0xf] %v2627
    %v2629 = vld [vmem:[%s290 + $0x4] sm:$0x1]
    %v2630 = vsel %vm299, %v2474, %v2629
    %2631 = vst [vmem:[%s290 + $0x4] sm:$0x1] %v2630
    %v2632 = vld [vmem:[%s290 + $0x8] sm:$0xf]
    %v2633 = vsel %vm293, %v2481, %v2632
    %2634 = vst [vmem:[%s290 + $0x8] sm:$0xf] %v2633
    %v2635 = vld [vmem:[%s290 + $0xc] sm:$0x1]
    %v2636 = vsel %vm299, %v2482, %v2635
    %2637 = vst [vmem:[%s290 + $0xc] sm:$0x1] %v2636
    %v2638 = vld [vmem:[%s290 + $0x10] sm:$0xf]
    %v2639 = vsel %vm293, %v2489, %v2638
    %2640 = vst [vmem:[%s290 + $0x10] sm:$0xf] %v2639
    %v2641 = vld [vmem:[%s290 + $0x14] sm:$0x1]
    %v2642 = vsel %vm299, %v2490, %v2641
    %2643 = vst [vmem:[%s290 + $0x14] sm:$0x1] %v2642
    %v2644 = vld [vmem:[%s290 + $0x18] sm:$0xf]
    %v2645 = vsel %vm293, %v2497, %v2644
    %2646 = vst [vmem:[%s290 + $0x18] sm:$0xf] %v2645
    %v2647 = vld [vmem:[%s290 + $0x1c] sm:$0x1]
    %v2648 = vsel %vm299, %v2498, %v2647
    %2649 = vst [vmem:[%s290 + $0x1c] sm:$0x1] %v2648
    %v2650 = vld [vmem:[%s290 + $0x20] sm:$0xf]
    %v2651 = vsel %vm293, %v2505, %v2650
    %2652 = vst [vmem:[%s290 + $0x20] sm:$0xf] %v2651
    %v2653 = vld [vmem:[%s290 + $0x24] sm:$0x1]
    %v2654 = vsel %vm299, %v2506, %v2653
    %2655 = vst [vmem:[%s290 + $0x24] sm:$0x1] %v2654
    %v2656 = vld [vmem:[%s290 + $0x28] sm:$0xf]
    %v2657 = vsel %vm293, %v2513, %v2656
    %2658 = vst [vmem:[%s290 + $0x28] sm:$0xf] %v2657
    %v2659 = vld [vmem:[%s290 + $0x2c] sm:$0x1]
    %v2660 = vsel %vm299, %v2514, %v2659
    %2661 = vst [vmem:[%s290 + $0x2c] sm:$0x1] %v2660
    %v2662 = vld [vmem:[%s290 + $0x30] sm:$0xf]
    %v2663 = vsel %vm293, %v2521, %v2662
    %2664 = vst [vmem:[%s290 + $0x30] sm:$0xf] %v2663
    %v2665 = vld [vmem:[%s290 + $0x34] sm:$0x1]
    %v2666 = vsel %vm299, %v2522, %v2665
    %2667 = vst [vmem:[%s290 + $0x34] sm:$0x1] %v2666
    %v2668 = vld [vmem:[%s290 + $0x38] sm:$0xf]
    %v2669 = vsel %vm293, %v2529, %v2668
    %2670 = vst [vmem:[%s290 + $0x38] sm:$0xf] %v2669
    %v2671 = vld [vmem:[%s290 + $0x3c] sm:$0x1]
    %v2672 = vsel %vm299, %v2530, %v2671
    %2673 = vst [vmem:[%s290 + $0x3c] sm:$0x1] %v2672
    %v2674 = vld [vmem:[%s290 + $0x50] sm:$0xf]
    %v2675 = vsel %vm293, %v2537, %v2674
    %2676 = vst [vmem:[%s290 + $0x50] sm:$0xf] %v2675
    %v2677 = vld [vmem:[%s290 + $0x54] sm:$0x1]
    %v2678 = vsel %vm299, %v2538, %v2677
    %2679 = vst [vmem:[%s290 + $0x54] sm:$0x1] %v2678
    %v2680 = vld [vmem:[%s290 + $0x58] sm:$0xf]
    %v2681 = vsel %vm293, %v2545, %v2680
    %2682 = vst [vmem:[%s290 + $0x58] sm:$0xf] %v2681
    %v2683 = vld [vmem:[%s290 + $0x5c] sm:$0x1]
    %v2684 = vsel %vm299, %v2546, %v2683
    %2685 = vst [vmem:[%s290 + $0x5c] sm:$0x1] %v2684
    %v2686 = vld [vmem:[%s290 + $0x60] sm:$0xf]
    %v2687 = vsel %vm293, %v2553, %v2686
    %2688 = vst [vmem:[%s290 + $0x60] sm:$0xf] %v2687
    %v2689 = vld [vmem:[%s290 + $0x64] sm:$0x1]
    %v2690 = vsel %vm299, %v2554, %v2689
    %2691 = vst [vmem:[%s290 + $0x64] sm:$0x1] %v2690
    %v2692 = vld [vmem:[%s290 + $0x68] sm:$0xf]
    %v2693 = vsel %vm293, %v2561, %v2692
    %2694 = vst [vmem:[%s290 + $0x68] sm:$0xf] %v2693
    %v2695 = vld [vmem:[%s290 + $0x6c] sm:$0x1]
    %v2696 = vsel %vm299, %v2562, %v2695
    %2697 = vst [vmem:[%s290 + $0x6c] sm:$0x1] %v2696
    %v2698 = vld [vmem:[%s290 + $0x70] sm:$0xf]
    %v2699 = vsel %vm293, %v2569, %v2698
    %2700 = vst [vmem:[%s290 + $0x70] sm:$0xf] %v2699
    %v2701 = vld [vmem:[%s290 + $0x74] sm:$0x1]
    %v2702 = vsel %vm299, %v2570, %v2701
    %2703 = vst [vmem:[%s290 + $0x74] sm:$0x1] %v2702
    %v2704 = vld [vmem:[%s290 + $0x78] sm:$0xf]
    %v2705 = vsel %vm293, %v2577, %v2704
    %2706 = vst [vmem:[%s290 + $0x78] sm:$0xf] %v2705
    %v2707 = vld [vmem:[%s290 + $0x7c] sm:$0x1]
    %v2708 = vsel %vm299, %v2578, %v2707
    %2709 = vst [vmem:[%s290 + $0x7c] sm:$0x1] %v2708
    %v2710 = vld [vmem:[%s290 + $0x80] sm:$0xf]
    %v2711 = vsel %vm293, %v2585, %v2710
    %2712 = vst [vmem:[%s290 + $0x80] sm:$0xf] %v2711
    %v2713 = vld [vmem:[%s290 + $0x84] sm:$0x1]
    %v2714 = vsel %vm299, %v2586, %v2713
    %2715 = vst [vmem:[%s290 + $0x84] sm:$0x1] %v2714
    %v2716 = vld [vmem:[%s290 + $0x88] sm:$0xf]
    %v2717 = vsel %vm293, %v2593, %v2716
    %2718 = vst [vmem:[%s290 + $0x88] sm:$0xf] %v2717
    %v2719 = vld [vmem:[%s290 + $0x8c] sm:$0x1]
    %v2720 = vsel %vm299, %v2594, %v2719
    %2721 = vst [vmem:[%s290 + $0x8c] sm:$0x1] %v2720
    %v2722 = vld [vmem:[#allocation2] sm:$0xf]
    %v2723 = vld [vmem:[#allocation2 + $0x8] sm:$0xf]
    %v2724 = vld [vmem:[#allocation2 + $0x10] sm:$0xf]
    %v2725 = vld [vmem:[#allocation2 + $0x18] sm:$0xf]
    %v2726 = vld [vmem:[#allocation2 + $0x20] sm:$0xf]
    %v2727 = vld [vmem:[#allocation2 + $0x28] sm:$0xf]
    %v2728 = vld [vmem:[#allocation2 + $0x30] sm:$0xf]
    %v2729 = vld [vmem:[#allocation2 + $0x38] sm:$0xf]
    %v2730 = vld [vmem:[#allocation2 + $0x50] sm:$0xf]
    %v2731 = vld [vmem:[#allocation2 + $0x58] sm:$0xf]
    %v2732 = vld [vmem:[#allocation2 + $0x60] sm:$0xf]
    %v2733 = vld [vmem:[#allocation2 + $0x68] sm:$0xf]
    %v2734 = vld [vmem:[#allocation2 + $0x70] sm:$0xf]
    %v2735 = vld [vmem:[#allocation2 + $0x78] sm:$0xf]
    %v2736 = vld [vmem:[#allocation2 + $0x80] sm:$0xf]
    %v2737 = vld [vmem:[#allocation2 + $0x88] sm:$0xf]
    %v2738 = vld [vmem:[#allocation2 + $0x4] sm:$0x1]
    %v2739 = vld [vmem:[#allocation2 + $0xc] sm:$0x1]
    %v2740 = vld [vmem:[#allocation2 + $0x14] sm:$0x1]
    %v2741 = vld [vmem:[#allocation2 + $0x1c] sm:$0x1]
    %v2742 = vld [vmem:[#allocation2 + $0x24] sm:$0x1]
    %v2743 = vld [vmem:[#allocation2 + $0x2c] sm:$0x1]
    %v2744 = vld [vmem:[#allocation2 + $0x34] sm:$0x1]
    %v2745 = vld [vmem:[#allocation2 + $0x3c] sm:$0x1]
    %v2746 = vld [vmem:[#allocation2 + $0x54] sm:$0x1]
    %v2747 = vld [vmem:[#allocation2 + $0x5c] sm:$0x1]
    %v2748 = vld [vmem:[#allocation2 + $0x64] sm:$0x1]
    %v2749 = vld [vmem:[#allocation2 + $0x6c] sm:$0x1]
    %v2750 = vld [vmem:[#allocation2 + $0x74] sm:$0x1]
    %v2751 = vld [vmem:[#allocation2 + $0x7c] sm:$0x1]
    %v2752 = vld [vmem:[#allocation2 + $0x84] sm:$0x1]
    %v2753 = vld [vmem:[#allocation2 + $0x8c] sm:$0x1]
    %v2755 = vshrl.u32 %v2722, 16
    %v2757 = vrot.slane %v2755, 4
    %v2758 = vshll.u32 %v2722, 16
    %v2760 = vrot.slane %v2758, 5
    %v2761 = vor.u32 %v2757, %v2760
    %v2762 = vrot.slane %v2761, 4
    %v2764 = vshll.u32 %v2738, 16
    %v2766 = vrot.slane %v2764, 5
    %v2767 = vsel %vm427, %v2762, %v2766
    %v2769 = vshrl.u32 %v2723, 16
    %v2771 = vrot.slane %v2769, 4
    %v2772 = vshll.u32 %v2723, 16
    %v2774 = vrot.slane %v2772, 5
    %v2775 = vor.u32 %v2771, %v2774
    %v2776 = vrot.slane %v2775, 4
    %v2778 = vshll.u32 %v2739, 16
    %v2780 = vrot.slane %v2778, 5
    %v2781 = vsel %vm427, %v2776, %v2780
    %v2783 = vshrl.u32 %v2724, 16
    %v2785 = vrot.slane %v2783, 4
    %v2786 = vshll.u32 %v2724, 16
    %v2788 = vrot.slane %v2786, 5
    %v2789 = vor.u32 %v2785, %v2788
    %v2790 = vrot.slane %v2789, 4
    %v2792 = vshll.u32 %v2740, 16
    %v2794 = vrot.slane %v2792, 5
    %v2795 = vsel %vm427, %v2790, %v2794
    %v2797 = vshrl.u32 %v2725, 16
    %v2799 = vrot.slane %v2797, 4
    %v2800 = vshll.u32 %v2725, 16
    %v2802 = vrot.slane %v2800, 5
    %v2803 = vor.u32 %v2799, %v2802
    %v2804 = vrot.slane %v2803, 4
    %v2806 = vshll.u32 %v2741, 16
    %v2808 = vrot.slane %v2806, 5
    %v2809 = vsel %vm427, %v2804, %v2808
    %v2811 = vshrl.u32 %v2726, 16
    %v2813 = vrot.slane %v2811, 4
    %v2814 = vshll.u32 %v2726, 16
    %v2816 = vrot.slane %v2814, 5
    %v2817 = vor.u32 %v2813, %v2816
    %v2818 = vrot.slane %v2817, 4
    %v2820 = vshll.u32 %v2742, 16
    %v2822 = vrot.slane %v2820, 5
    %v2823 = vsel %vm427, %v2818, %v2822
    %v2825 = vshrl.u32 %v2727, 16
    %v2827 = vrot.slane %v2825, 4
    %v2828 = vshll.u32 %v2727, 16
    %v2830 = vrot.slane %v2828, 5
    %v2831 = vor.u32 %v2827, %v2830
    %v2832 = vrot.slane %v2831, 4
    %v2834 = vshll.u32 %v2743, 16
    %v2836 = vrot.slane %v2834, 5
    %v2837 = vsel %vm427, %v2832, %v2836
    %v2839 = vshrl.u32 %v2728, 16
    %v2841 = vrot.slane %v2839, 4
    %v2842 = vshll.u32 %v2728, 16
    %v2844 = vrot.slane %v2842, 5
    %v2845 = vor.u32 %v2841, %v2844
    %v2846 = vrot.slane %v2845, 4
    %v2848 = vshll.u32 %v2744, 16
    %v2850 = vrot.slane %v2848, 5
    %v2851 = vsel %vm427, %v2846, %v2850
    %v2853 = vshrl.u32 %v2729, 16
    %v2855 = vrot.slane %v2853, 4
    %v2856 = vshll.u32 %v2729, 16
    %v2858 = vrot.slane %v2856, 5
    %v2859 = vor.u32 %v2855, %v2858
    %v2860 = vrot.slane %v2859, 4
    %v2862 = vshll.u32 %v2745, 16
    %v2864 = vrot.slane %v2862, 5
    %v2865 = vsel %vm427, %v2860, %v2864
    %v2867 = vshrl.u32 %v2730, 16
    %v2869 = vrot.slane %v2867, 4
    %v2870 = vshll.u32 %v2730, 16
    %v2872 = vrot.slane %v2870, 5
    %v2873 = vor.u32 %v2869, %v2872
    %v2874 = vrot.slane %v2873, 4
    %v2876 = vshll.u32 %v2746, 16
    %v2878 = vrot.slane %v2876, 5
    %v2879 = vsel %vm427, %v2874, %v2878
    %v2881 = vshrl.u32 %v2731, 16
    %v2883 = vrot.slane %v2881, 4
    %v2884 = vshll.u32 %v2731, 16
    %v2886 = vrot.slane %v2884, 5
    %v2887 = vor.u32 %v2883, %v2886
    %v2888 = vrot.slane %v2887, 4
    %v2890 = vshll.u32 %v2747, 16
    %v2892 = vrot.slane %v2890, 5
    %v2893 = vsel %vm427, %v2888, %v2892
    %v2895 = vshrl.u32 %v2732, 16
    %v2897 = vrot.slane %v2895, 4
    %v2898 = vshll.u32 %v2732, 16
    %v2900 = vrot.slane %v2898, 5
    %v2901 = vor.u32 %v2897, %v2900
    %v2902 = vrot.slane %v2901, 4
    %v2904 = vshll.u32 %v2748, 16
    %v2906 = vrot.slane %v2904, 5
    %v2907 = vsel %vm427, %v2902, %v2906
    %v2909 = vshrl.u32 %v2733, 16
    %v2911 = vrot.slane %v2909, 4
    %v2912 = vshll.u32 %v2733, 16
    %v2914 = vrot.slane %v2912, 5
    %v2915 = vor.u32 %v2911, %v2914
    %v2916 = vrot.slane %v2915, 4
    %v2918 = vshll.u32 %v2749, 16
    %v2920 = vrot.slane %v2918, 5
    %v2921 = vsel %vm427, %v2916, %v2920
    %v2923 = vshrl.u32 %v2734, 16
    %v2925 = vrot.slane %v2923, 4
    %v2926 = vshll.u32 %v2734, 16
    %v2928 = vrot.slane %v2926, 5
    %v2929 = vor.u32 %v2925, %v2928
    %v2930 = vrot.slane %v2929, 4
    %v2932 = vshll.u32 %v2750, 16
    %v2934 = vrot.slane %v2932, 5
    %v2935 = vsel %vm427, %v2930, %v2934
    %v2937 = vshrl.u32 %v2735, 16
    %v2939 = vrot.slane %v2937, 4
    %v2940 = vshll.u32 %v2735, 16
    %v2942 = vrot.slane %v2940, 5
    %v2943 = vor.u32 %v2939, %v2942
    %v2944 = vrot.slane %v2943, 4
    %v2946 = vshll.u32 %v2751, 16
    %v2948 = vrot.slane %v2946, 5
    %v2949 = vsel %vm427, %v2944, %v2948
    %v2951 = vshrl.u32 %v2736, 16
    %v2953 = vrot.slane %v2951, 4
    %v2954 = vshll.u32 %v2736, 16
    %v2956 = vrot.slane %v2954, 5
    %v2957 = vor.u32 %v2953, %v2956
    %v2958 = vrot.slane %v2957, 4
    %v2960 = vshll.u32 %v2752, 16
    %v2962 = vrot.slane %v2960, 5
    %v2963 = vsel %vm427, %v2958, %v2962
    %v2965 = vshrl.u32 %v2737, 16
    %v2967 = vrot.slane %v2965, 4
    %v2968 = vshll.u32 %v2737, 16
    %v2970 = vrot.slane %v2968, 5
    %v2971 = vor.u32 %v2967, %v2970
    %v2972 = vrot.slane %v2971, 4
    %v2974 = vshll.u32 %v2753, 16
    %v2976 = vrot.slane %v2974, 5
    %v2977 = vsel %vm427, %v2972, %v2976
    %v2978 = vld [vmem:[#allocation2] sm:$0xe]
    %v2979 = vld [vmem:[#allocation2 + $0x8] sm:$0xe]
    %v2980 = vld [vmem:[#allocation2 + $0x10] sm:$0xe]
    %v2981 = vld [vmem:[#allocation2 + $0x18] sm:$0xe]
    %v2982 = vld [vmem:[#allocation2 + $0x20] sm:$0xe]
    %v2983 = vld [vmem:[#allocation2 + $0x28] sm:$0xe]
    %v2984 = vld [vmem:[#allocation2 + $0x30] sm:$0xe]
    %v2985 = vld [vmem:[#allocation2 + $0x38] sm:$0xe]
    %v2986 = vld [vmem:[#allocation2 + $0x50] sm:$0xe]
    %v2987 = vld [vmem:[#allocation2 + $0x58] sm:$0xe]
    %v2988 = vld [vmem:[#allocation2 + $0x60] sm:$0xe]
    %v2989 = vld [vmem:[#allocation2 + $0x68] sm:$0xe]
    %v2990 = vld [vmem:[#allocation2 + $0x70] sm:$0xe]
    %v2991 = vld [vmem:[#allocation2 + $0x78] sm:$0xe]
    %v2992 = vld [vmem:[#allocation2 + $0x80] sm:$0xe]
    %v2993 = vld [vmem:[#allocation2 + $0x88] sm:$0xe]
    %v3026 = vrot.slane %v2978, 5
    %v3027 = vrot.slane %v3026, 4
    %v3028 = vrot.slane %v2738, 5
    %v3029 = vsel %vm702, %v3027, %v3028
    %v3030 = vrot.slane %v2979, 5
    %v3031 = vrot.slane %v3030, 4
    %v3032 = vrot.slane %v2739, 5
    %v3033 = vsel %vm702, %v3031, %v3032
    %v3034 = vrot.slane %v2980, 5
    %v3035 = vrot.slane %v3034, 4
    %v3036 = vrot.slane %v2740, 5
    %v3037 = vsel %vm702, %v3035, %v3036
    %v3038 = vrot.slane %v2981, 5
    %v3039 = vrot.slane %v3038, 4
    %v3040 = vrot.slane %v2741, 5
    %v3041 = vsel %vm702, %v3039, %v3040
    %v3042 = vrot.slane %v2982, 5
    %v3043 = vrot.slane %v3042, 4
    %v3044 = vrot.slane %v2742, 5
    %v3045 = vsel %vm702, %v3043, %v3044
    %v3046 = vrot.slane %v2983, 5
    %v3047 = vrot.slane %v3046, 4
    %v3048 = vrot.slane %v2743, 5
    %v3049 = vsel %vm702, %v3047, %v3048
    %v3050 = vrot.slane %v2984, 5
    %v3051 = vrot.slane %v3050, 4
    %v3052 = vrot.slane %v2744, 5
    %v3053 = vsel %vm702, %v3051, %v3052
    %v3054 = vrot.slane %v2985, 5
    %v3055 = vrot.slane %v3054, 4
    %v3056 = vrot.slane %v2745, 5
    %v3057 = vsel %vm702, %v3055, %v3056
    %v3058 = vrot.slane %v2986, 5
    %v3059 = vrot.slane %v3058, 4
    %v3060 = vrot.slane %v2746, 5
    %v3061 = vsel %vm702, %v3059, %v3060
    %v3062 = vrot.slane %v2987, 5
    %v3063 = vrot.slane %v3062, 4
    %v3064 = vrot.slane %v2747, 5
    %v3065 = vsel %vm702, %v3063, %v3064
    %v3066 = vrot.slane %v2988, 5
    %v3067 = vrot.slane %v3066, 4
    %v3068 = vrot.slane %v2748, 5
    %v3069 = vsel %vm702, %v3067, %v3068
    %v3070 = vrot.slane %v2989, 5
    %v3071 = vrot.slane %v3070, 4
    %v3072 = vrot.slane %v2749, 5
    %v3073 = vsel %vm702, %v3071, %v3072
    %v3074 = vrot.slane %v2990, 5
    %v3075 = vrot.slane %v3074, 4
    %v3076 = vrot.slane %v2750, 5
    %v3077 = vsel %vm702, %v3075, %v3076
    %v3078 = vrot.slane %v2991, 5
    %v3079 = vrot.slane %v3078, 4
    %v3080 = vrot.slane %v2751, 5
    %v3081 = vsel %vm702, %v3079, %v3080
    %v3082 = vrot.slane %v2992, 5
    %v3083 = vrot.slane %v3082, 4
    %v3084 = vrot.slane %v2752, 5
    %v3085 = vsel %vm702, %v3083, %v3084
    %v3086 = vrot.slane %v2993, 5
    %v3087 = vrot.slane %v3086, 4
    %v3088 = vrot.slane %v2753, 5
    %v3089 = vsel %vm702, %v3087, %v3088
    %v3090 = vld [vmem:[%s290] sm:$0xf]
    %v3091 = vld [vmem:[%s290 + $0x8] sm:$0xf]
    %v3092 = vld [vmem:[%s290 + $0x10] sm:$0xf]
    %v3093 = vld [vmem:[%s290 + $0x18] sm:$0xf]
    %v3094 = vld [vmem:[%s290 + $0x20] sm:$0xf]
    %v3095 = vld [vmem:[%s290 + $0x28] sm:$0xf]
    %v3096 = vld [vmem:[%s290 + $0x30] sm:$0xf]
    %v3097 = vld [vmem:[%s290 + $0x38] sm:$0xf]
    %v3098 = vld [vmem:[%s290 + $0x50] sm:$0xf]
    %v3099 = vld [vmem:[%s290 + $0x58] sm:$0xf]
    %v3100 = vld [vmem:[%s290 + $0x60] sm:$0xf]
    %v3101 = vld [vmem:[%s290 + $0x68] sm:$0xf]
    %v3102 = vld [vmem:[%s290 + $0x70] sm:$0xf]
    %v3103 = vld [vmem:[%s290 + $0x78] sm:$0xf]
    %v3104 = vld [vmem:[%s290 + $0x80] sm:$0xf]
    %v3105 = vld [vmem:[%s290 + $0x88] sm:$0xf]
    %v3106 = vld [vmem:[%s290 + $0x4] sm:$0x1]
    %v3107 = vld [vmem:[%s290 + $0xc] sm:$0x1]
    %v3108 = vld [vmem:[%s290 + $0x14] sm:$0x1]
    %v3109 = vld [vmem:[%s290 + $0x1c] sm:$0x1]
    %v3110 = vld [vmem:[%s290 + $0x24] sm:$0x1]
    %v3111 = vld [vmem:[%s290 + $0x2c] sm:$0x1]
    %v3112 = vld [vmem:[%s290 + $0x34] sm:$0x1]
    %v3113 = vld [vmem:[%s290 + $0x3c] sm:$0x1]
    %v3114 = vld [vmem:[%s290 + $0x54] sm:$0x1]
    %v3115 = vld [vmem:[%s290 + $0x5c] sm:$0x1]
    %v3116 = vld [vmem:[%s290 + $0x64] sm:$0x1]
    %v3117 = vld [vmem:[%s290 + $0x6c] sm:$0x1]
    %v3118 = vld [vmem:[%s290 + $0x74] sm:$0x1]
    %v3119 = vld [vmem:[%s290 + $0x7c] sm:$0x1]
    %v3120 = vld [vmem:[%s290 + $0x84] sm:$0x1]
    %v3121 = vld [vmem:[%s290 + $0x8c] sm:$0x1]
    %v3123 = vshrl.u32 %v3090, 16
    %v3125 = vrot.slane %v3123, 4
    %v3126 = vshll.u32 %v3090, 16
    %v3128 = vrot.slane %v3126, 5
    %v3129 = vor.u32 %v3125, %v3128
    %v3130 = vrot.slane %v3129, 4
    %v3132 = vshll.u32 %v3106, 16
    %v3134 = vrot.slane %v3132, 5
    %v3135 = vsel %vm427, %v3130, %v3134
    %v3137 = vshrl.u32 %v3091, 16
    %v3139 = vrot.slane %v3137, 4
    %v3140 = vshll.u32 %v3091, 16
    %v3142 = vrot.slane %v3140, 5
    %v3143 = vor.u32 %v3139, %v3142
    %v3144 = vrot.slane %v3143, 4
    %v3146 = vshll.u32 %v3107, 16
    %v3148 = vrot.slane %v3146, 5
    %v3149 = vsel %vm427, %v3144, %v3148
    %v3151 = vshrl.u32 %v3092, 16
    %v3153 = vrot.slane %v3151, 4
    %v3154 = vshll.u32 %v3092, 16
    %v3156 = vrot.slane %v3154, 5
    %v3157 = vor.u32 %v3153, %v3156
    %v3158 = vrot.slane %v3157, 4
    %v3160 = vshll.u32 %v3108, 16
    %v3162 = vrot.slane %v3160, 5
    %v3163 = vsel %vm427, %v3158, %v3162
    %v3165 = vshrl.u32 %v3093, 16
    %v3167 = vrot.slane %v3165, 4
    %v3168 = vshll.u32 %v3093, 16
    %v3170 = vrot.slane %v3168, 5
    %v3171 = vor.u32 %v3167, %v3170
    %v3172 = vrot.slane %v3171, 4
    %v3174 = vshll.u32 %v3109, 16
    %v3176 = vrot.slane %v3174, 5
    %v3177 = vsel %vm427, %v3172, %v3176
    %v3179 = vshrl.u32 %v3094, 16
    %v3181 = vrot.slane %v3179, 4
    %v3182 = vshll.u32 %v3094, 16
    %v3184 = vrot.slane %v3182, 5
    %v3185 = vor.u32 %v3181, %v3184
    %v3186 = vrot.slane %v3185, 4
    %v3188 = vshll.u32 %v3110, 16
    %v3190 = vrot.slane %v3188, 5
    %v3191 = vsel %vm427, %v3186, %v3190
    %v3193 = vshrl.u32 %v3095, 16
    %v3195 = vrot.slane %v3193, 4
    %v3196 = vshll.u32 %v3095, 16
    %v3198 = vrot.slane %v3196, 5
    %v3199 = vor.u32 %v3195, %v3198
    %v3200 = vrot.slane %v3199, 4
    %v3202 = vshll.u32 %v3111, 16
    %v3204 = vrot.slane %v3202, 5
    %v3205 = vsel %vm427, %v3200, %v3204
    %v3207 = vshrl.u32 %v3096, 16
    %v3209 = vrot.slane %v3207, 4
    %v3210 = vshll.u32 %v3096, 16
    %v3212 = vrot.slane %v3210, 5
    %v3213 = vor.u32 %v3209, %v3212
    %v3214 = vrot.slane %v3213, 4
    %v3216 = vshll.u32 %v3112, 16
    %v3218 = vrot.slane %v3216, 5
    %v3219 = vsel %vm427, %v3214, %v3218
    %v3221 = vshrl.u32 %v3097, 16
    %v3223 = vrot.slane %v3221, 4
    %v3224 = vshll.u32 %v3097, 16
    %v3226 = vrot.slane %v3224, 5
    %v3227 = vor.u32 %v3223, %v3226
    %v3228 = vrot.slane %v3227, 4
    %v3230 = vshll.u32 %v3113, 16
    %v3232 = vrot.slane %v3230, 5
    %v3233 = vsel %vm427, %v3228, %v3232
    %v3235 = vshrl.u32 %v3098, 16
    %v3237 = vrot.slane %v3235, 4
    %v3238 = vshll.u32 %v3098, 16
    %v3240 = vrot.slane %v3238, 5
    %v3241 = vor.u32 %v3237, %v3240
    %v3242 = vrot.slane %v3241, 4
    %v3244 = vshll.u32 %v3114, 16
    %v3246 = vrot.slane %v3244, 5
    %v3247 = vsel %vm427, %v3242, %v3246
    %v3249 = vshrl.u32 %v3099, 16
    %v3251 = vrot.slane %v3249, 4
    %v3252 = vshll.u32 %v3099, 16
    %v3254 = vrot.slane %v3252, 5
    %v3255 = vor.u32 %v3251, %v3254
    %v3256 = vrot.slane %v3255, 4
    %v3258 = vshll.u32 %v3115, 16
    %v3260 = vrot.slane %v3258, 5
    %v3261 = vsel %vm427, %v3256, %v3260
    %v3263 = vshrl.u32 %v3100, 16
    %v3265 = vrot.slane %v3263, 4
    %v3266 = vshll.u32 %v3100, 16
    %v3268 = vrot.slane %v3266, 5
    %v3269 = vor.u32 %v3265, %v3268
    %v3270 = vrot.slane %v3269, 4
    %v3272 = vshll.u32 %v3116, 16
    %v3274 = vrot.slane %v3272, 5
    %v3275 = vsel %vm427, %v3270, %v3274
    %v3277 = vshrl.u32 %v3101, 16
    %v3279 = vrot.slane %v3277, 4
    %v3280 = vshll.u32 %v3101, 16
    %v3282 = vrot.slane %v3280, 5
    %v3283 = vor.u32 %v3279, %v3282
    %v3284 = vrot.slane %v3283, 4
    %v3286 = vshll.u32 %v3117, 16
    %v3288 = vrot.slane %v3286, 5
    %v3289 = vsel %vm427, %v3284, %v3288
    %v3291 = vshrl.u32 %v3102, 16
    %v3293 = vrot.slane %v3291, 4
    %v3294 = vshll.u32 %v3102, 16
    %v3296 = vrot.slane %v3294, 5
    %v3297 = vor.u32 %v3293, %v3296
    %v3298 = vrot.slane %v3297, 4
    %v3300 = vshll.u32 %v3118, 16
    %v3302 = vrot.slane %v3300, 5
    %v3303 = vsel %vm427, %v3298, %v3302
    %v3305 = vshrl.u32 %v3103, 16
    %v3307 = vrot.slane %v3305, 4
    %v3308 = vshll.u32 %v3103, 16
    %v3310 = vrot.slane %v3308, 5
    %v3311 = vor.u32 %v3307, %v3310
    %v3312 = vrot.slane %v3311, 4
    %v3314 = vshll.u32 %v3119, 16
    %v3316 = vrot.slane %v3314, 5
    %v3317 = vsel %vm427, %v3312, %v3316
    %v3319 = vshrl.u32 %v3104, 16
    %v3321 = vrot.slane %v3319, 4
    %v3322 = vshll.u32 %v3104, 16
    %v3324 = vrot.slane %v3322, 5
    %v3325 = vor.u32 %v3321, %v3324
    %v3326 = vrot.slane %v3325, 4
    %v3328 = vshll.u32 %v3120, 16
    %v3330 = vrot.slane %v3328, 5
    %v3331 = vsel %vm427, %v3326, %v3330
    %v3333 = vshrl.u32 %v3105, 16
    %v3335 = vrot.slane %v3333, 4
    %v3336 = vshll.u32 %v3105, 16
    %v3338 = vrot.slane %v3336, 5
    %v3339 = vor.u32 %v3335, %v3338
    %v3340 = vrot.slane %v3339, 4
    %v3342 = vshll.u32 %v3121, 16
    %v3344 = vrot.slane %v3342, 5
    %v3345 = vsel %vm427, %v3340, %v3344
    %v3346 = vld [vmem:[%s290] sm:$0xe]
    %v3347 = vld [vmem:[%s290 + $0x8] sm:$0xe]
    %v3348 = vld [vmem:[%s290 + $0x10] sm:$0xe]
    %v3349 = vld [vmem:[%s290 + $0x18] sm:$0xe]
    %v3350 = vld [vmem:[%s290 + $0x20] sm:$0xe]
    %v3351 = vld [vmem:[%s290 + $0x28] sm:$0xe]
    %v3352 = vld [vmem:[%s290 + $0x30] sm:$0xe]
    %v3353 = vld [vmem:[%s290 + $0x38] sm:$0xe]
    %v3354 = vld [vmem:[%s290 + $0x50] sm:$0xe]
    %v3355 = vld [vmem:[%s290 + $0x58] sm:$0xe]
    %v3356 = vld [vmem:[%s290 + $0x60] sm:$0xe]
    %v3357 = vld [vmem:[%s290 + $0x68] sm:$0xe]
    %v3358 = vld [vmem:[%s290 + $0x70] sm:$0xe]
    %v3359 = vld [vmem:[%s290 + $0x78] sm:$0xe]
    %v3360 = vld [vmem:[%s290 + $0x80] sm:$0xe]
    %v3361 = vld [vmem:[%s290 + $0x88] sm:$0xe]
    %v3394 = vrot.slane %v3346, 5
    %v3395 = vrot.slane %v3394, 4
    %v3396 = vrot.slane %v3106, 5
    %v3397 = vsel %vm702, %v3395, %v3396
    %v3398 = vrot.slane %v3347, 5
    %v3399 = vrot.slane %v3398, 4
    %v3400 = vrot.slane %v3107, 5
    %v3401 = vsel %vm702, %v3399, %v3400
    %v3402 = vrot.slane %v3348, 5
    %v3403 = vrot.slane %v3402, 4
    %v3404 = vrot.slane %v3108, 5
    %v3405 = vsel %vm702, %v3403, %v3404
    %v3406 = vrot.slane %v3349, 5
    %v3407 = vrot.slane %v3406, 4
    %v3408 = vrot.slane %v3109, 5
    %v3409 = vsel %vm702, %v3407, %v3408
    %v3410 = vrot.slane %v3350, 5
    %v3411 = vrot.slane %v3410, 4
    %v3412 = vrot.slane %v3110, 5
    %v3413 = vsel %vm702, %v3411, %v3412
    %v3414 = vrot.slane %v3351, 5
    %v3415 = vrot.slane %v3414, 4
    %v3416 = vrot.slane %v3111, 5
    %v3417 = vsel %vm702, %v3415, %v3416
    %v3418 = vrot.slane %v3352, 5
    %v3419 = vrot.slane %v3418, 4
    %v3420 = vrot.slane %v3112, 5
    %v3421 = vsel %vm702, %v3419, %v3420
    %v3422 = vrot.slane %v3353, 5
    %v3423 = vrot.slane %v3422, 4
    %v3424 = vrot.slane %v3113, 5
    %v3425 = vsel %vm702, %v3423, %v3424
    %v3426 = vrot.slane %v3354, 5
    %v3427 = vrot.slane %v3426, 4
    %v3428 = vrot.slane %v3114, 5
    %v3429 = vsel %vm702, %v3427, %v3428
    %v3430 = vrot.slane %v3355, 5
    %v3431 = vrot.slane %v3430, 4
    %v3432 = vrot.slane %v3115, 5
    %v3433 = vsel %vm702, %v3431, %v3432
    %v3434 = vrot.slane %v3356, 5
    %v3435 = vrot.slane %v3434, 4
    %v3436 = vrot.slane %v3116, 5
    %v3437 = vsel %vm702, %v3435, %v3436
    %v3438 = vrot.slane %v3357, 5
    %v3439 = vrot.slane %v3438, 4
    %v3440 = vrot.slane %v3117, 5
    %v3441 = vsel %vm702, %v3439, %v3440
    %v3442 = vrot.slane %v3358, 5
    %v3443 = vrot.slane %v3442, 4
    %v3444 = vrot.slane %v3118, 5
    %v3445 = vsel %vm702, %v3443, %v3444
    %v3446 = vrot.slane %v3359, 5
    %v3447 = vrot.slane %v3446, 4
    %v3448 = vrot.slane %v3119, 5
    %v3449 = vsel %vm702, %v3447, %v3448
    %v3450 = vrot.slane %v3360, 5
    %v3451 = vrot.slane %v3450, 4
    %v3452 = vrot.slane %v3120, 5
    %v3453 = vsel %vm702, %v3451, %v3452
    %v3454 = vrot.slane %v3361, 5
    %v3455 = vrot.slane %v3454, 4
    %v3456 = vrot.slane %v3121, 5
    %v3457 = vsel %vm702, %v3455, %v3456
    %v3458 = vld [vmem:[%s1135] sm:$0xf]
    %v3459 = vld [vmem:[%s1135 + $0x8] sm:$0xf]
    %v3460 = vld [vmem:[%s1135 + $0x10] sm:$0xf]
    %v3461 = vld [vmem:[%s1135 + $0x18] sm:$0xf]
    %v3462 = vld [vmem:[%s1135 + $0x20] sm:$0xf]
    %v3463 = vld [vmem:[%s1135 + $0x28] sm:$0xf]
    %v3464 = vld [vmem:[%s1135 + $0x30] sm:$0xf]
    %v3465 = vld [vmem:[%s1135 + $0x38] sm:$0xf]
    %v3466 = vld [vmem:[%s1135 + $0x50] sm:$0xf]
    %v3467 = vld [vmem:[%s1135 + $0x58] sm:$0xf]
    %v3468 = vld [vmem:[%s1135 + $0x60] sm:$0xf]
    %v3469 = vld [vmem:[%s1135 + $0x68] sm:$0xf]
    %v3470 = vld [vmem:[%s1135 + $0x70] sm:$0xf]
    %v3471 = vld [vmem:[%s1135 + $0x78] sm:$0xf]
    %v3472 = vld [vmem:[%s1135 + $0x80] sm:$0xf]
    %v3473 = vld [vmem:[%s1135 + $0x88] sm:$0xf]
    %v3474 = vld [vmem:[%s1135 + $0x4] sm:$0x1]
    %v3475 = vld [vmem:[%s1135 + $0xc] sm:$0x1]
    %v3476 = vld [vmem:[%s1135 + $0x14] sm:$0x1]
    %v3477 = vld [vmem:[%s1135 + $0x1c] sm:$0x1]
    %v3478 = vld [vmem:[%s1135 + $0x24] sm:$0x1]
    %v3479 = vld [vmem:[%s1135 + $0x2c] sm:$0x1]
    %v3480 = vld [vmem:[%s1135 + $0x34] sm:$0x1]
    %v3481 = vld [vmem:[%s1135 + $0x3c] sm:$0x1]
    %v3482 = vld [vmem:[%s1135 + $0x54] sm:$0x1]
    %v3483 = vld [vmem:[%s1135 + $0x5c] sm:$0x1]
    %v3484 = vld [vmem:[%s1135 + $0x64] sm:$0x1]
    %v3485 = vld [vmem:[%s1135 + $0x6c] sm:$0x1]
    %v3486 = vld [vmem:[%s1135 + $0x74] sm:$0x1]
    %v3487 = vld [vmem:[%s1135 + $0x7c] sm:$0x1]
    %v3488 = vld [vmem:[%s1135 + $0x84] sm:$0x1]
    %v3489 = vld [vmem:[%s1135 + $0x8c] sm:$0x1]
    %v3491 = vshrl.u32 %v3458, 16
    %v3493 = vrot.slane %v3491, 4
    %v3494 = vshll.u32 %v3458, 16
    %v3496 = vrot.slane %v3494, 5
    %v3497 = vor.u32 %v3493, %v3496
    %v3498 = vrot.slane %v3497, 4
    %v3500 = vshll.u32 %v3474, 16
    %v3502 = vrot.slane %v3500, 5
    %v3503 = vsel %vm427, %v3498, %v3502
    %v3505 = vshrl.u32 %v3459, 16
    %v3507 = vrot.slane %v3505, 4
    %v3508 = vshll.u32 %v3459, 16
    %v3510 = vrot.slane %v3508, 5
    %v3511 = vor.u32 %v3507, %v3510
    %v3512 = vrot.slane %v3511, 4
    %v3514 = vshll.u32 %v3475, 16
    %v3516 = vrot.slane %v3514, 5
    %v3517 = vsel %vm427, %v3512, %v3516
    %v3519 = vshrl.u32 %v3460, 16
    %v3521 = vrot.slane %v3519, 4
    %v3522 = vshll.u32 %v3460, 16
    %v3524 = vrot.slane %v3522, 5
    %v3525 = vor.u32 %v3521, %v3524
    %v3526 = vrot.slane %v3525, 4
    %v3528 = vshll.u32 %v3476, 16
    %v3530 = vrot.slane %v3528, 5
    %v3531 = vsel %vm427, %v3526, %v3530
    %v3533 = vshrl.u32 %v3461, 16
    %v3535 = vrot.slane %v3533, 4
    %v3536 = vshll.u32 %v3461, 16
    %v3538 = vrot.slane %v3536, 5
    %v3539 = vor.u32 %v3535, %v3538
    %v3540 = vrot.slane %v3539, 4
    %v3542 = vshll.u32 %v3477, 16
    %v3544 = vrot.slane %v3542, 5
    %v3545 = vsel %vm427, %v3540, %v3544
    %v3547 = vshrl.u32 %v3462, 16
    %v3549 = vrot.slane %v3547, 4
    %v3550 = vshll.u32 %v3462, 16
    %v3552 = vrot.slane %v3550, 5
    %v3553 = vor.u32 %v3549, %v3552
    %v3554 = vrot.slane %v3553, 4
    %v3556 = vshll.u32 %v3478, 16
    %v3558 = vrot.slane %v3556, 5
    %v3559 = vsel %vm427, %v3554, %v3558
    %v3561 = vshrl.u32 %v3463, 16
    %v3563 = vrot.slane %v3561, 4
    %v3564 = vshll.u32 %v3463, 16
    %v3566 = vrot.slane %v3564, 5
    %v3567 = vor.u32 %v3563, %v3566
    %v3568 = vrot.slane %v3567, 4
    %v3570 = vshll.u32 %v3479, 16
    %v3572 = vrot.slane %v3570, 5
    %v3573 = vsel %vm427, %v3568, %v3572
    %v3575 = vshrl.u32 %v3464, 16
    %v3577 = vrot.slane %v3575, 4
    %v3578 = vshll.u32 %v3464, 16
    %v3580 = vrot.slane %v3578, 5
    %v3581 = vor.u32 %v3577, %v3580
    %v3582 = vrot.slane %v3581, 4
    %v3584 = vshll.u32 %v3480, 16
    %v3586 = vrot.slane %v3584, 5
    %v3587 = vsel %vm427, %v3582, %v3586
    %v3589 = vshrl.u32 %v3465, 16
    %v3591 = vrot.slane %v3589, 4
    %v3592 = vshll.u32 %v3465, 16
    %v3594 = vrot.slane %v3592, 5
    %v3595 = vor.u32 %v3591, %v3594
    %v3596 = vrot.slane %v3595, 4
    %v3598 = vshll.u32 %v3481, 16
    %v3600 = vrot.slane %v3598, 5
    %v3601 = vsel %vm427, %v3596, %v3600
    %v3603 = vshrl.u32 %v3466, 16
    %v3605 = vrot.slane %v3603, 4
    %v3606 = vshll.u32 %v3466, 16
    %v3608 = vrot.slane %v3606, 5
    %v3609 = vor.u32 %v3605, %v3608
    %v3610 = vrot.slane %v3609, 4
    %v3612 = vshll.u32 %v3482, 16
    %v3614 = vrot.slane %v3612, 5
    %v3615 = vsel %vm427, %v3610, %v3614
    %v3617 = vshrl.u32 %v3467, 16
    %v3619 = vrot.slane %v3617, 4
    %v3620 = vshll.u32 %v3467, 16
    %v3622 = vrot.slane %v3620, 5
    %v3623 = vor.u32 %v3619, %v3622
    %v3624 = vrot.slane %v3623, 4
    %v3626 = vshll.u32 %v3483, 16
    %v3628 = vrot.slane %v3626, 5
    %v3629 = vsel %vm427, %v3624, %v3628
    %v3631 = vshrl.u32 %v3468, 16
    %v3633 = vrot.slane %v3631, 4
    %v3634 = vshll.u32 %v3468, 16
    %v3636 = vrot.slane %v3634, 5
    %v3637 = vor.u32 %v3633, %v3636
    %v3638 = vrot.slane %v3637, 4
    %v3640 = vshll.u32 %v3484, 16
    %v3642 = vrot.slane %v3640, 5
    %v3643 = vsel %vm427, %v3638, %v3642
    %v3645 = vshrl.u32 %v3469, 16
    %v3647 = vrot.slane %v3645, 4
    %v3648 = vshll.u32 %v3469, 16
    %v3650 = vrot.slane %v3648, 5
    %v3651 = vor.u32 %v3647, %v3650
    %v3652 = vrot.slane %v3651, 4
    %v3654 = vshll.u32 %v3485, 16
    %v3656 = vrot.slane %v3654, 5
    %v3657 = vsel %vm427, %v3652, %v3656
    %v3659 = vshrl.u32 %v3470, 16
    %v3661 = vrot.slane %v3659, 4
    %v3662 = vshll.u32 %v3470, 16
    %v3664 = vrot.slane %v3662, 5
    %v3665 = vor.u32 %v3661, %v3664
    %v3666 = vrot.slane %v3665, 4
    %v3668 = vshll.u32 %v3486, 16
    %v3670 = vrot.slane %v3668, 5
    %v3671 = vsel %vm427, %v3666, %v3670
    %v3673 = vshrl.u32 %v3471, 16
    %v3675 = vrot.slane %v3673, 4
    %v3676 = vshll.u32 %v3471, 16
    %v3678 = vrot.slane %v3676, 5
    %v3679 = vor.u32 %v3675, %v3678
    %v3680 = vrot.slane %v3679, 4
    %v3682 = vshll.u32 %v3487, 16
    %v3684 = vrot.slane %v3682, 5
    %v3685 = vsel %vm427, %v3680, %v3684
    %v3687 = vshrl.u32 %v3472, 16
    %v3689 = vrot.slane %v3687, 4
    %v3690 = vshll.u32 %v3472, 16
    %v3692 = vrot.slane %v3690, 5
    %v3693 = vor.u32 %v3689, %v3692
    %v3694 = vrot.slane %v3693, 4
    %v3696 = vshll.u32 %v3488, 16
    %v3698 = vrot.slane %v3696, 5
    %v3699 = vsel %vm427, %v3694, %v3698
    %v3701 = vshrl.u32 %v3473, 16
    %v3703 = vrot.slane %v3701, 4
    %v3704 = vshll.u32 %v3473, 16
    %v3706 = vrot.slane %v3704, 5
    %v3707 = vor.u32 %v3703, %v3706
    %v3708 = vrot.slane %v3707, 4
    %v3710 = vshll.u32 %v3489, 16
    %v3712 = vrot.slane %v3710, 5
    %v3713 = vsel %vm427, %v3708, %v3712
    %v3714 = vld [vmem:[%s1135] sm:$0xe]
    %v3715 = vld [vmem:[%s1135 + $0x8] sm:$0xe]
    %v3716 = vld [vmem:[%s1135 + $0x10] sm:$0xe]
    %v3717 = vld [vmem:[%s1135 + $0x18] sm:$0xe]
    %v3718 = vld [vmem:[%s1135 + $0x20] sm:$0xe]
    %v3719 = vld [vmem:[%s1135 + $0x28] sm:$0xe]
    %v3720 = vld [vmem:[%s1135 + $0x30] sm:$0xe]
    %v3721 = vld [vmem:[%s1135 + $0x38] sm:$0xe]
    %v3722 = vld [vmem:[%s1135 + $0x50] sm:$0xe]
    %v3723 = vld [vmem:[%s1135 + $0x58] sm:$0xe]
    %v3724 = vld [vmem:[%s1135 + $0x60] sm:$0xe]
    %v3725 = vld [vmem:[%s1135 + $0x68] sm:$0xe]
    %v3726 = vld [vmem:[%s1135 + $0x70] sm:$0xe]
    %v3727 = vld [vmem:[%s1135 + $0x78] sm:$0xe]
    %v3728 = vld [vmem:[%s1135 + $0x80] sm:$0xe]
    %v3729 = vld [vmem:[%s1135 + $0x88] sm:$0xe]
    %v3762 = vrot.slane %v3714, 5
    %v3763 = vrot.slane %v3762, 4
    %v3764 = vrot.slane %v3474, 5
    %v3765 = vsel %vm702, %v3763, %v3764
    %v3766 = vrot.slane %v3715, 5
    %v3767 = vrot.slane %v3766, 4
    %v3768 = vrot.slane %v3475, 5
    %v3769 = vsel %vm702, %v3767, %v3768
    %v3770 = vrot.slane %v3716, 5
    %v3771 = vrot.slane %v3770, 4
    %v3772 = vrot.slane %v3476, 5
    %v3773 = vsel %vm702, %v3771, %v3772
    %v3774 = vrot.slane %v3717, 5
    %v3775 = vrot.slane %v3774, 4
    %v3776 = vrot.slane %v3477, 5
    %v3777 = vsel %vm702, %v3775, %v3776
    %v3778 = vrot.slane %v3718, 5
    %v3779 = vrot.slane %v3778, 4
    %v3780 = vrot.slane %v3478, 5
    %v3781 = vsel %vm702, %v3779, %v3780
    %v3782 = vrot.slane %v3719, 5
    %v3783 = vrot.slane %v3782, 4
    %v3784 = vrot.slane %v3479, 5
    %v3785 = vsel %vm702, %v3783, %v3784
    %v3786 = vrot.slane %v3720, 5
    %v3787 = vrot.slane %v3786, 4
    %v3788 = vrot.slane %v3480, 5
    %v3789 = vsel %vm702, %v3787, %v3788
    %v3790 = vrot.slane %v3721, 5
    %v3791 = vrot.slane %v3790, 4
    %v3792 = vrot.slane %v3481, 5
    %v3793 = vsel %vm702, %v3791, %v3792
    %v3794 = vrot.slane %v3722, 5
    %v3795 = vrot.slane %v3794, 4
    %v3796 = vrot.slane %v3482, 5
    %v3797 = vsel %vm702, %v3795, %v3796
    %v3798 = vrot.slane %v3723, 5
    %v3799 = vrot.slane %v3798, 4
    %v3800 = vrot.slane %v3483, 5
    %v3801 = vsel %vm702, %v3799, %v3800
    %v3802 = vrot.slane %v3724, 5
    %v3803 = vrot.slane %v3802, 4
    %v3804 = vrot.slane %v3484, 5
    %v3805 = vsel %vm702, %v3803, %v3804
    %v3806 = vrot.slane %v3725, 5
    %v3807 = vrot.slane %v3806, 4
    %v3808 = vrot.slane %v3485, 5
    %v3809 = vsel %vm702, %v3807, %v3808
    %v3810 = vrot.slane %v3726, 5
    %v3811 = vrot.slane %v3810, 4
    %v3812 = vrot.slane %v3486, 5
    %v3813 = vsel %vm702, %v3811, %v3812
    %v3814 = vrot.slane %v3727, 5
    %v3815 = vrot.slane %v3814, 4
    %v3816 = vrot.slane %v3487, 5
    %v3817 = vsel %vm702, %v3815, %v3816
    %v3818 = vrot.slane %v3728, 5
    %v3819 = vrot.slane %v3818, 4
    %v3820 = vrot.slane %v3488, 5
    %v3821 = vsel %vm702, %v3819, %v3820
    %v3822 = vrot.slane %v3729, 5
    %v3823 = vrot.slane %v3822, 4
    %v3824 = vrot.slane %v3489, 5
    %v3825 = vsel %vm702, %v3823, %v3824
    %v3842 = vunpack.c.l.b16 %v2722
    %v3843 = vunpack.c.l.b16 %v2723
    %v3844 = vunpack.c.l.b16 %v2724
    %v3845 = vunpack.c.l.b16 %v2725
    %v3846 = vunpack.c.l.b16 %v2726
    %v3847 = vunpack.c.l.b16 %v2727
    %v3848 = vunpack.c.l.b16 %v2728
    %v3849 = vunpack.c.l.b16 %v2729
    %v3850 = vunpack.c.l.b16 %v2730
    %v3851 = vunpack.c.l.b16 %v2731
    %v3852 = vunpack.c.l.b16 %v2732
    %v3853 = vunpack.c.l.b16 %v2733
    %v3854 = vunpack.c.l.b16 %v2734
    %v3855 = vunpack.c.l.b16 %v2735
    %v3856 = vunpack.c.l.b16 %v2736
    %v3857 = vunpack.c.l.b16 %v2737
    %v3858 = vpack.c.b16 %v3843, %v3842
    %v3859 = vpack.c.b16 %v3845, %v3844
    %v3860 = vpack.c.b16 %v3847, %v3846
    %v3861 = vpack.c.b16 %v3849, %v3848
    %v3862 = vpack.c.b16 %v3851, %v3850
    %v3863 = vpack.c.b16 %v3853, %v3852
    %v3864 = vpack.c.b16 %v3855, %v3854
    %v3865 = vpack.c.b16 %v3857, %v3856
    %v3866 = vunpack.c.l.b16 %v2767
    %v3867 = vunpack.c.l.b16 %v2781
    %v3868 = vunpack.c.l.b16 %v2795
    %v3869 = vunpack.c.l.b16 %v2809
    %v3870 = vunpack.c.l.b16 %v2823
    %v3871 = vunpack.c.l.b16 %v2837
    %v3872 = vunpack.c.l.b16 %v2851
    %v3873 = vunpack.c.l.b16 %v2865
    %v3874 = vunpack.c.l.b16 %v2879
    %v3875 = vunpack.c.l.b16 %v2893
    %v3876 = vunpack.c.l.b16 %v2907
    %v3877 = vunpack.c.l.b16 %v2921
    %v3878 = vunpack.c.l.b16 %v2935
    %v3879 = vunpack.c.l.b16 %v2949
    %v3880 = vunpack.c.l.b16 %v2963
    %v3881 = vunpack.c.l.b16 %v2977
    %v3882 = vpack.c.b16 %v3867, %v3866
    %v3883 = vpack.c.b16 %v3869, %v3868
    %v3884 = vpack.c.b16 %v3871, %v3870
    %v3885 = vpack.c.b16 %v3873, %v3872
    %v3886 = vpack.c.b16 %v3875, %v3874
    %v3887 = vpack.c.b16 %v3877, %v3876
    %v3888 = vpack.c.b16 %v3879, %v3878
    %v3889 = vpack.c.b16 %v3881, %v3880
    %3890 = vrot.lane.b32.xlu0 %v3882, 32
    %v3891 = vpop.permute.xlu0 %3890
    %3892 = vrot.lane.b32.xlu0 %v3883, 32
    %v3893 = vpop.permute.xlu0 %3892
    %3894 = vrot.lane.b32.xlu0 %v3884, 32
    %v3895 = vpop.permute.xlu0 %3894
    %3896 = vrot.lane.b32.xlu0 %v3885, 32
    %v3897 = vpop.permute.xlu0 %3896
    %3898 = vrot.lane.b32.xlu0 %v3886, 32
    %v3899 = vpop.permute.xlu0 %3898
    %3900 = vrot.lane.b32.xlu0 %v3887, 32
    %v3901 = vpop.permute.xlu0 %3900
    %3902 = vrot.lane.b32.xlu0 %v3888, 32
    %v3903 = vpop.permute.xlu0 %3902
    %3904 = vrot.lane.b32.xlu0 %v3889, 32
    %v3905 = vpop.permute.xlu0 %3904
    %v3906 = vunpack.c.l.b16 %v3029
    %v3907 = vunpack.c.l.b16 %v3033
    %v3908 = vunpack.c.l.b16 %v3037
    %v3909 = vunpack.c.l.b16 %v3041
    %v3910 = vunpack.c.l.b16 %v3045
    %v3911 = vunpack.c.l.b16 %v3049
    %v3912 = vunpack.c.l.b16 %v3053
    %v3913 = vunpack.c.l.b16 %v3057
    %v3914 = vunpack.c.l.b16 %v3061
    %v3915 = vunpack.c.l.b16 %v3065
    %v3916 = vunpack.c.l.b16 %v3069
    %v3917 = vunpack.c.l.b16 %v3073
    %v3918 = vunpack.c.l.b16 %v3077
    %v3919 = vunpack.c.l.b16 %v3081
    %v3920 = vunpack.c.l.b16 %v3085
    %v3921 = vunpack.c.l.b16 %v3089
    %v3922 = vpack.c.b16 %v3907, %v3906
    %v3923 = vpack.c.b16 %v3909, %v3908
    %v3924 = vpack.c.b16 %v3911, %v3910
    %v3925 = vpack.c.b16 %v3913, %v3912
    %v3926 = vpack.c.b16 %v3915, %v3914
    %v3927 = vpack.c.b16 %v3917, %v3916
    %v3928 = vpack.c.b16 %v3919, %v3918
    %v3929 = vpack.c.b16 %v3921, %v3920
    %3930 = vrot.lane.b32.xlu0 %v3922, 64
    %v3931 = vpop.permute.xlu0 %3930
    %3932 = vrot.lane.b32.xlu0 %v3923, 64
    %v3933 = vpop.permute.xlu0 %3932
    %3934 = vrot.lane.b32.xlu0 %v3924, 64
    %v3935 = vpop.permute.xlu0 %3934
    %3936 = vrot.lane.b32.xlu0 %v3925, 64
    %v3937 = vpop.permute.xlu0 %3936
    %3938 = vrot.lane.b32.xlu0 %v3926, 64
    %v3939 = vpop.permute.xlu0 %3938
    %3940 = vrot.lane.b32.xlu0 %v3927, 64
    %v3941 = vpop.permute.xlu0 %3940
    %3942 = vrot.lane.b32.xlu0 %v3928, 64
    %v3943 = vpop.permute.xlu0 %3942
    %3944 = vrot.lane.b32.xlu0 %v3929, 64
    %v3945 = vpop.permute.xlu0 %3944
    %v3962 = vunpack.c.l.b16 %v3090
    %v3963 = vunpack.c.l.b16 %v3091
    %v3964 = vunpack.c.l.b16 %v3092
    %v3965 = vunpack.c.l.b16 %v3093
    %v3966 = vunpack.c.l.b16 %v3094
    %v3967 = vunpack.c.l.b16 %v3095
    %v3968 = vunpack.c.l.b16 %v3096
    %v3969 = vunpack.c.l.b16 %v3097
    %v3970 = vunpack.c.l.b16 %v3098
    %v3971 = vunpack.c.l.b16 %v3099
    %v3972 = vunpack.c.l.b16 %v3100
    %v3973 = vunpack.c.l.b16 %v3101
    %v3974 = vunpack.c.l.b16 %v3102
    %v3975 = vunpack.c.l.b16 %v3103
    %v3976 = vunpack.c.l.b16 %v3104
    %v3977 = vunpack.c.l.b16 %v3105
    %v3978 = vpack.c.b16 %v3963, %v3962
    %v3979 = vpack.c.b16 %v3965, %v3964
    %v3980 = vpack.c.b16 %v3967, %v3966
    %v3981 = vpack.c.b16 %v3969, %v3968
    %v3982 = vpack.c.b16 %v3971, %v3970
    %v3983 = vpack.c.b16 %v3973, %v3972
    %v3984 = vpack.c.b16 %v3975, %v3974
    %v3985 = vpack.c.b16 %v3977, %v3976
    %3986 = vrot.lane.b32.xlu0 %v3978, 96
    %v3987 = vpop.permute.xlu0 %3986
    %3988 = vrot.lane.b32.xlu0 %v3979, 96
    %v3989 = vpop.permute.xlu0 %3988
    %3990 = vrot.lane.b32.xlu0 %v3980, 96
    %v3991 = vpop.permute.xlu0 %3990
    %3992 = vrot.lane.b32.xlu0 %v3981, 96
    %v3993 = vpop.permute.xlu0 %3992
    %3994 = vrot.lane.b32.xlu0 %v3982, 96
    %v3995 = vpop.permute.xlu0 %3994
    %3996 = vrot.lane.b32.xlu0 %v3983, 96
    %v3997 = vpop.permute.xlu0 %3996
    %3998 = vrot.lane.b32.xlu0 %v3984, 96
    %v3999 = vpop.permute.xlu0 %3998
    %4000 = vrot.lane.b32.xlu0 %v3985, 96
    %v4001 = vpop.permute.xlu0 %4000
    %v4002 = vunpack.c.l.b16 %v3135
    %v4003 = vunpack.c.l.b16 %v3149
    %v4004 = vunpack.c.l.b16 %v3163
    %v4005 = vunpack.c.l.b16 %v3177
    %v4006 = vunpack.c.l.b16 %v3191
    %v4007 = vunpack.c.l.b16 %v3205
    %v4008 = vunpack.c.l.b16 %v3219
    %v4009 = vunpack.c.l.b16 %v3233
    %v4010 = vunpack.c.l.b16 %v3247
    %v4011 = vunpack.c.l.b16 %v3261
    %v4012 = vunpack.c.l.b16 %v3275
    %v4013 = vunpack.c.l.b16 %v3289
    %v4014 = vunpack.c.l.b16 %v3303
    %v4015 = vunpack.c.l.b16 %v3317
    %v4016 = vunpack.c.l.b16 %v3331
    %v4017 = vunpack.c.l.b16 %v3345
    %v4018 = vpack.c.b16 %v4003, %v4002
    %v4019 = vpack.c.b16 %v4005, %v4004
    %v4020 = vpack.c.b16 %v4007, %v4006
    %v4021 = vpack.c.b16 %v4009, %v4008
    %v4022 = vpack.c.b16 %v4011, %v4010
    %v4023 = vpack.c.b16 %v4013, %v4012
    %v4024 = vpack.c.b16 %v4015, %v4014
    %v4025 = vpack.c.b16 %v4017, %v4016
    %v4026 = vunpack.c.l.b16 %v3397
    %v4027 = vunpack.c.l.b16 %v3401
    %v4028 = vunpack.c.l.b16 %v3405
    %v4029 = vunpack.c.l.b16 %v3409
    %v4030 = vunpack.c.l.b16 %v3413
    %v4031 = vunpack.c.l.b16 %v3417
    %v4032 = vunpack.c.l.b16 %v3421
    %v4033 = vunpack.c.l.b16 %v3425
    %v4034 = vunpack.c.l.b16 %v3429
    %v4035 = vunpack.c.l.b16 %v3433
    %v4036 = vunpack.c.l.b16 %v3437
    %v4037 = vunpack.c.l.b16 %v3441
    %v4038 = vunpack.c.l.b16 %v3445
    %v4039 = vunpack.c.l.b16 %v3449
    %v4040 = vunpack.c.l.b16 %v3453
    %v4041 = vunpack.c.l.b16 %v3457
    %v4042 = vpack.c.b16 %v4027, %v4026
    %v4043 = vpack.c.b16 %v4029, %v4028
    %v4044 = vpack.c.b16 %v4031, %v4030
    %v4045 = vpack.c.b16 %v4033, %v4032
    %v4046 = vpack.c.b16 %v4035, %v4034
    %v4047 = vpack.c.b16 %v4037, %v4036
    %v4048 = vpack.c.b16 %v4039, %v4038
    %v4049 = vpack.c.b16 %v4041, %v4040
    %4050 = vrot.lane.b32.xlu0 %v4042, 32
    %v4051 = vpop.permute.xlu0 %4050
    %4052 = vrot.lane.b32.xlu0 %v4043, 32
    %v4053 = vpop.permute.xlu0 %4052
    %4054 = vrot.lane.b32.xlu0 %v4044, 32
    %v4055 = vpop.permute.xlu0 %4054
    %4056 = vrot.lane.b32.xlu0 %v4045, 32
    %v4057 = vpop.permute.xlu0 %4056
    %4058 = vrot.lane.b32.xlu0 %v4046, 32
    %v4059 = vpop.permute.xlu0 %4058
    %4060 = vrot.lane.b32.xlu0 %v4047, 32
    %v4061 = vpop.permute.xlu0 %4060
    %4062 = vrot.lane.b32.xlu0 %v4048, 32
    %v4063 = vpop.permute.xlu0 %4062
    %4064 = vrot.lane.b32.xlu0 %v4049, 32
    %v4065 = vpop.permute.xlu0 %4064
    %v4082 = vunpack.c.l.b16 %v3458
    %v4083 = vunpack.c.l.b16 %v3459
    %v4084 = vunpack.c.l.b16 %v3460
    %v4085 = vunpack.c.l.b16 %v3461
    %v4086 = vunpack.c.l.b16 %v3462
    %v4087 = vunpack.c.l.b16 %v3463
    %v4088 = vunpack.c.l.b16 %v3464
    %v4089 = vunpack.c.l.b16 %v3465
    %v4090 = vunpack.c.l.b16 %v3466
    %v4091 = vunpack.c.l.b16 %v3467
    %v4092 = vunpack.c.l.b16 %v3468
    %v4093 = vunpack.c.l.b16 %v3469
    %v4094 = vunpack.c.l.b16 %v3470
    %v4095 = vunpack.c.l.b16 %v3471
    %v4096 = vunpack.c.l.b16 %v3472
    %v4097 = vunpack.c.l.b16 %v3473
    %v4098 = vpack.c.b16 %v4083, %v4082
    %v4099 = vpack.c.b16 %v4085, %v4084
    %v4100 = vpack.c.b16 %v4087, %v4086
    %v4101 = vpack.c.b16 %v4089, %v4088
    %v4102 = vpack.c.b16 %v4091, %v4090
    %v4103 = vpack.c.b16 %v4093, %v4092
    %v4104 = vpack.c.b16 %v4095, %v4094
    %v4105 = vpack.c.b16 %v4097, %v4096
    %4106 = vrot.lane.b32.xlu0 %v4098, 64
    %v4107 = vpop.permute.xlu0 %4106
    %4108 = vrot.lane.b32.xlu0 %v4099, 64
    %v4109 = vpop.permute.xlu0 %4108
    %4110 = vrot.lane.b32.xlu0 %v4100, 64
    %v4111 = vpop.permute.xlu0 %4110
    %4112 = vrot.lane.b32.xlu0 %v4101, 64
    %v4113 = vpop.permute.xlu0 %4112
    %4114 = vrot.lane.b32.xlu0 %v4102, 64
    %v4115 = vpop.permute.xlu0 %4114
    %4116 = vrot.lane.b32.xlu0 %v4103, 64
    %v4117 = vpop.permute.xlu0 %4116
    %4118 = vrot.lane.b32.xlu0 %v4104, 64
    %v4119 = vpop.permute.xlu0 %4118
    %4120 = vrot.lane.b32.xlu0 %v4105, 64
    %v4121 = vpop.permute.xlu0 %4120
    %v4122 = vunpack.c.l.b16 %v3503
    %v4123 = vunpack.c.l.b16 %v3517
    %v4124 = vunpack.c.l.b16 %v3531
    %v4125 = vunpack.c.l.b16 %v3545
    %v4126 = vunpack.c.l.b16 %v3559
    %v4127 = vunpack.c.l.b16 %v3573
    %v4128 = vunpack.c.l.b16 %v3587
    %v4129 = vunpack.c.l.b16 %v3601
    %v4130 = vunpack.c.l.b16 %v3615
    %v4131 = vunpack.c.l.b16 %v3629
    %v4132 = vunpack.c.l.b16 %v3643
    %v4133 = vunpack.c.l.b16 %v3657
    %v4134 = vunpack.c.l.b16 %v3671
    %v4135 = vunpack.c.l.b16 %v3685
    %v4136 = vunpack.c.l.b16 %v3699
    %v4137 = vunpack.c.l.b16 %v3713
    %v4138 = vpack.c.b16 %v4123, %v4122
    %v4139 = vpack.c.b16 %v4125, %v4124
    %v4140 = vpack.c.b16 %v4127, %v4126
    %v4141 = vpack.c.b16 %v4129, %v4128
    %v4142 = vpack.c.b16 %v4131, %v4130
    %v4143 = vpack.c.b16 %v4133, %v4132
    %v4144 = vpack.c.b16 %v4135, %v4134
    %v4145 = vpack.c.b16 %v4137, %v4136
    %4146 = vrot.lane.b32.xlu0 %v4138, 96
    %v4147 = vpop.permute.xlu0 %4146
    %4148 = vrot.lane.b32.xlu0 %v4139, 96
    %v4149 = vpop.permute.xlu0 %4148
    %4150 = vrot.lane.b32.xlu0 %v4140, 96
    %v4151 = vpop.permute.xlu0 %4150
    %4152 = vrot.lane.b32.xlu0 %v4141, 96
    %v4153 = vpop.permute.xlu0 %4152
    %4154 = vrot.lane.b32.xlu0 %v4142, 96
    %v4155 = vpop.permute.xlu0 %4154
    %4156 = vrot.lane.b32.xlu0 %v4143, 96
    %v4157 = vpop.permute.xlu0 %4156
    %4158 = vrot.lane.b32.xlu0 %v4144, 96
    %v4159 = vpop.permute.xlu0 %4158
    %4160 = vrot.lane.b32.xlu0 %v4145, 96
    %v4161 = vpop.permute.xlu0 %4160
    %v4162 = vunpack.c.l.b16 %v3765
    %v4163 = vunpack.c.l.b16 %v3769
    %v4164 = vunpack.c.l.b16 %v3773
    %v4165 = vunpack.c.l.b16 %v3777
    %v4166 = vunpack.c.l.b16 %v3781
    %v4167 = vunpack.c.l.b16 %v3785
    %v4168 = vunpack.c.l.b16 %v3789
    %v4169 = vunpack.c.l.b16 %v3793
    %v4170 = vunpack.c.l.b16 %v3797
    %v4171 = vunpack.c.l.b16 %v3801
    %v4172 = vunpack.c.l.b16 %v3805
    %v4173 = vunpack.c.l.b16 %v3809
    %v4174 = vunpack.c.l.b16 %v3813
    %v4175 = vunpack.c.l.b16 %v3817
    %v4176 = vunpack.c.l.b16 %v3821
    %v4177 = vunpack.c.l.b16 %v3825
    %v4178 = vpack.c.b16 %v4163, %v4162
    %v4179 = vpack.c.b16 %v4165, %v4164
    %v4180 = vpack.c.b16 %v4167, %v4166
    %v4181 = vpack.c.b16 %v4169, %v4168
    %v4182 = vpack.c.b16 %v4171, %v4170
    %v4183 = vpack.c.b16 %v4173, %v4172
    %v4184 = vpack.c.b16 %v4175, %v4174
    %v4185 = vpack.c.b16 %v4177, %v4176
    %v4188 = vsel %vm1864, %v3858, %v3891
    %v4191 = vsel %vm1864, %v3859, %v3893
    %v4194 = vsel %vm1864, %v3860, %v3895
    %v4197 = vsel %vm1864, %v3861, %v3897
    %v4200 = vsel %vm1864, %v3862, %v3899
    %v4203 = vsel %vm1864, %v3863, %v3901
    %v4206 = vsel %vm1864, %v3864, %v3903
    %v4209 = vsel %vm1864, %v3865, %v3905
    %v4211 = vsel %vm1889, %v4188, %v3931
    %v4213 = vsel %vm1889, %v4191, %v3933
    %v4215 = vsel %vm1889, %v4194, %v3935
    %v4217 = vsel %vm1889, %v4197, %v3937
    %v4219 = vsel %vm1889, %v4200, %v3939
    %v4221 = vsel %vm1889, %v4203, %v3941
    %v4223 = vsel %vm1889, %v4206, %v3943
    %v4225 = vsel %vm1889, %v4209, %v3945
    %v4227 = vsel %vm1906, %v4211, %v3987
    %v4230 = vsel %vm1906, %v4213, %v3989
    %v4233 = vsel %vm1906, %v4215, %v3991
    %v4236 = vsel %vm1906, %v4217, %v3993
    %v4239 = vsel %vm1906, %v4219, %v3995
    %v4242 = vsel %vm1906, %v4221, %v3997
    %v4245 = vsel %vm1906, %v4223, %v3999
    %v4248 = vsel %vm1906, %v4225, %v4001
    %v4252 = vsel %vm1864, %v4018, %v4051
    %v4255 = vsel %vm1864, %v4019, %v4053
    %v4258 = vsel %vm1864, %v4020, %v4055
    %v4261 = vsel %vm1864, %v4021, %v4057
    %v4264 = vsel %vm1864, %v4022, %v4059
    %v4267 = vsel %vm1864, %v4023, %v4061
    %v4270 = vsel %vm1864, %v4024, %v4063
    %v4273 = vsel %vm1864, %v4025, %v4065
    %v4275 = vsel %vm1889, %v4252, %v4107
    %v4277 = vsel %vm1889, %v4255, %v4109
    %v4279 = vsel %vm1889, %v4258, %v4111
    %v4281 = vsel %vm1889, %v4261, %v4113
    %v4283 = vsel %vm1889, %v4264, %v4115
    %v4285 = vsel %vm1889, %v4267, %v4117
    %v4287 = vsel %vm1889, %v4270, %v4119
    %v4289 = vsel %vm1889, %v4273, %v4121
    %v4291 = vsel %vm1906, %v4275, %v4147
    %v4294 = vsel %vm1906, %v4277, %v4149
    %v4297 = vsel %vm1906, %v4279, %v4151
    %v4300 = vsel %vm1906, %v4281, %v4153
    %v4303 = vsel %vm1906, %v4283, %v4155
    %v4306 = vsel %vm1906, %v4285, %v4157
    %v4309 = vsel %vm1906, %v4287, %v4159
    %v4312 = vsel %vm1906, %v4289, %v4161
    %s4314 = scalar_lea.vmem [#allocation4], 144
    %v4315 = vld [vmem:[%s4314] sm:$0xf]
    %v4316 = vld [vmem:[%s4314 + $0x4] sm:$0xf]
    %v4317 = vld [vmem:[%s4314 + $0x8] sm:$0xf]
    %v4318 = vld [vmem:[%s4314 + $0xc] sm:$0xf]
    %v4319 = vld [vmem:[%s4314 + $0x10] sm:$0xf]
    %v4320 = vld [vmem:[%s4314 + $0x14] sm:$0xf]
    %v4321 = vld [vmem:[%s4314 + $0x18] sm:$0xf]
    %v4322 = vld [vmem:[%s4314 + $0x1c] sm:$0xf]
    %v4323 = vld [vmem:[%s4314 + $0x20] sm:$0xf]
    %v4324 = vld [vmem:[%s4314 + $0x24] sm:$0xf]
    %v4325 = vld [vmem:[%s4314 + $0x28] sm:$0xf]
    %v4326 = vld [vmem:[%s4314 + $0x2c] sm:$0xf]
    %v4327 = vld [vmem:[%s4314 + $0x30] sm:$0xf]
    %v4328 = vld [vmem:[%s4314 + $0x34] sm:$0xf]
    %v4329 = vld [vmem:[%s4314 + $0x38] sm:$0xf]
    %v4330 = vld [vmem:[%s4314 + $0x3c] sm:$0xf]
    %v4331 = vld [vmem:[%s4314 + $0x40] sm:$0xf]
    %v4332 = vld [vmem:[%s4314 + $0x44] sm:$0xf]
    %v4333 = vld [vmem:[%s4314 + $0x48] sm:$0xf]
    %v4334 = vld [vmem:[%s4314 + $0x4c] sm:$0xf]
    %v4335 = vld [vmem:[%s4314 + $0x50] sm:$0xf]
    %v4336 = vld [vmem:[%s4314 + $0x54] sm:$0xf]
    %v4337 = vld [vmem:[%s4314 + $0x58] sm:$0xf]
    %v4338 = vld [vmem:[%s4314 + $0x5c] sm:$0xf]
    %v4339 = vld [vmem:[%s4314 + $0x60] sm:$0xf]
    %v4340 = vld [vmem:[%s4314 + $0x64] sm:$0xf]
    %v4341 = vld [vmem:[%s4314 + $0x68] sm:$0xf]
    %v4342 = vld [vmem:[%s4314 + $0x6c] sm:$0xf]
    %v4343 = vld [vmem:[%s4314 + $0x70] sm:$0xf]
    %v4344 = vld [vmem:[%s4314 + $0x74] sm:$0xf]
    %v4345 = vld [vmem:[%s4314 + $0x78] sm:$0xf]
    %v4346 = vld [vmem:[%s4314 + $0x7c] sm:$0xf]
    %v4347 = vld [vmem:[%s4314 + $0x80] sm:$0xf]
    %v4348 = vld [vmem:[%s4314 + $0x84] sm:$0xf]
    %v4349 = vld [vmem:[%s4314 + $0x88] sm:$0xf]
    %v4350 = vld [vmem:[%s4314 + $0x8c] sm:$0xf]
    %v4387 = vunpack.c.l.b16 %v4315
    %v4388 = vunpack.c.l.b16 %v4316
    %v4389 = vunpack.c.l.b16 %v4317
    %v4390 = vunpack.c.l.b16 %v4318
    %v4391 = vunpack.c.l.b16 %v4319
    %v4392 = vunpack.c.l.b16 %v4320
    %v4393 = vunpack.c.l.b16 %v4321
    %v4394 = vunpack.c.l.b16 %v4322
    %v4395 = vunpack.c.l.b16 %v4323
    %v4396 = vunpack.c.l.b16 %v4324
    %v4397 = vunpack.c.l.b16 %v4325
    %v4398 = vunpack.c.l.b16 %v4326
    %v4399 = vunpack.c.l.b16 %v4327
    %v4400 = vunpack.c.l.b16 %v4328
    %v4401 = vunpack.c.l.b16 %v4329
    %v4402 = vunpack.c.l.b16 %v4330
    %v4403 = vunpack.c.l.b16 %v4331
    %v4404 = vunpack.c.l.b16 %v4332
    %v4405 = vunpack.c.l.b16 %v4333
    %v4406 = vunpack.c.l.b16 %v4334
    %v4407 = vunpack.c.l.b16 %v4335
    %v4408 = vunpack.c.l.b16 %v4336
    %v4409 = vunpack.c.l.b16 %v4337
    %v4410 = vunpack.c.l.b16 %v4338
    %v4411 = vunpack.c.l.b16 %v4339
    %v4412 = vunpack.c.l.b16 %v4340
    %v4413 = vunpack.c.l.b16 %v4341
    %v4414 = vunpack.c.l.b16 %v4342
    %v4415 = vunpack.c.l.b16 %v4343
    %v4416 = vunpack.c.l.b16 %v4344
    %v4417 = vunpack.c.l.b16 %v4345
    %v4418 = vunpack.c.l.b16 %v4346
    %v4419 = vunpack.c.l.b16 %v4347
    %v4420 = vunpack.c.l.b16 %v4348
    %v4421 = vunpack.c.l.b16 %v4349
    %v4422 = vunpack.c.l.b16 %v4350
    %v4423 = vpack.c.b16 %v4388, %v4387
    %v4424 = vpack.c.b16 %v4390, %v4389
    %v4425 = vpack.c.b16 %v4392, %v4391
    %v4426 = vpack.c.b16 %v4394, %v4393
    %v4427 = vpack.c.b16 %v4396, %v4395
    %v4428 = vpack.c.b16 %v4398, %v4397
    %v4429 = vpack.c.b16 %v4400, %v4399
    %v4430 = vpack.c.b16 %v4402, %v4401
    %v4431 = vpack.c.b16 %v4404, %v4403
    %v4432 = vpack.c.b16 %v4406, %v4405
    %v4433 = vpack.c.b16 %v4408, %v4407
    %v4434 = vpack.c.b16 %v4410, %v4409
    %v4435 = vpack.c.b16 %v4412, %v4411
    %v4436 = vpack.c.b16 %v4414, %v4413
    %v4437 = vpack.c.b16 %v4416, %v4415
    %v4438 = vpack.c.b16 %v4418, %v4417
    %v4439 = vpack.c.b16 %v4420, %v4419
    %v4440 = vpack.c.b16 %v4422, %v4421
    %v4460 = vsel %vm1864, %v4178, 0
    %v4463 = vsel %vm1864, %v4179, 0
    %v4466 = vsel %vm1864, %v4180, 0
    %v4469 = vsel %vm1864, %v4181, 0
    %v4472 = vsel %vm1864, %v4182, 0
    %v4475 = vsel %vm1864, %v4183, 0
    %v4478 = vsel %vm1864, %v4184, 0
    %v4481 = vsel %vm1864, %v4185, 0
    %4483 = vmatprep.subr.bf16.mxu0 0
    %4484 = vmatpush1.bf16.msra.mxu0 %v4430
    %4485 = vmatprep.subr.bf16.mxu0 0
    %4486 = vmatpush1.bf16.msra.mxu0 %v4429
    %4487 = vmatprep.subr.bf16.mxu0 0
    %4488 = vmatpush1.bf16.msra.mxu0 %v4428
    %4489 = vmatprep.subr.bf16.mxu0 0
    %4490 = vmatpush1.bf16.msra.mxu0 %v4427
    %4491 = vmatprep.subr.bf16.mxu0 0
    %4492 = vmatpush1.bf16.msra.mxu0 %v4426
    %4493 = vmatprep.subr.bf16.mxu0 0
    %4494 = vmatpush1.bf16.msra.mxu0 %v4425
    %4495 = vmatprep.subr.bf16.mxu0 0
    %4496 = vmatpush1.bf16.msra.mxu0 %v4424
    %4497 = vmatprep.subr.bf16.mxu0 0
    %4498 = vmatpush1.bf16.msra.mxu0 %v4423
    %4499 = vmatprep.subr.bf16.mxu0 0
    %4500 = vmatpush2.bf16.msra.mxu0 %v4438
    %4501 = vmatprep.subr.bf16.mxu0 0
    %4502 = vmatpush2.bf16.msra.mxu0 %v4437
    %4503 = vmatprep.subr.bf16.mxu0 0
    %4504 = vmatpush2.bf16.msra.mxu0 %v4436
    %4505 = vmatprep.subr.bf16.mxu0 0
    %4506 = vmatpush2.bf16.msra.mxu0 %v4435
    %4507 = vmatprep.subr.bf16.mxu0 0
    %4508 = vmatpush2.bf16.msra.mxu0 %v4434
    %4509 = vmatprep.subr.bf16.mxu0 0
    %4510 = vmatpush2.bf16.msra.mxu0 %v4433
    %4511 = vmatprep.subr.bf16.mxu0 0
    %4512 = vmatpush2.bf16.msra.mxu0 %v4432
    %4513 = vmatprep.subr.bf16.mxu0 0
    %4514 = vmatpush2.bf16.msra.mxu0 %v4431
    %4515 = vmatprep.mubr.bf16.mxu0 %v4291
    %4516 = vmatmul.mubr.bf16.gmra.mxu0 %v4227
    %v4517 = vpop.f32.mrf.mxu0
    %v4518 = vadd.f32 0.0, %v4517
    %v4519 = vpop.f32.mrf.mxu0
    %v4520 = vpop.f32.mrf.mxu0
    %v4521 = vadd.f32 0.0, %v4520
    %v4522 = vpop.f32.mrf.mxu0
    %4523 = vmatprep.mubr.bf16.mxu0 %v4294
    %4524 = vmatmul.mubr.bf16.gmra.mxu0 %v4230
    %v4525 = vpop.f32.mrf.mxu0
    %v4526 = vadd.f32 0.0, %v4525
    %v4527 = vpop.f32.mrf.mxu0
    %v4528 = vpop.f32.mrf.mxu0
    %v4529 = vadd.f32 0.0, %v4528
    %v4530 = vpop.f32.mrf.mxu0
    %4531 = vmatprep.mubr.bf16.mxu0 %v4297
    %4532 = vmatmul.mubr.bf16.gmra.mxu0 %v4233
    %v4533 = vpop.f32.mrf.mxu0
    %v4534 = vadd.f32 0.0, %v4533
    %v4535 = vpop.f32.mrf.mxu0
    %v4536 = vpop.f32.mrf.mxu0
    %v4537 = vadd.f32 0.0, %v4536
    %v4538 = vpop.f32.mrf.mxu0
    %4539 = vmatprep.mubr.bf16.mxu0 %v4300
    %4540 = vmatmul.mubr.bf16.gmra.mxu0 %v4236
    %v4541 = vpop.f32.mrf.mxu0
    %v4542 = vadd.f32 0.0, %v4541
    %v4543 = vpop.f32.mrf.mxu0
    %v4544 = vpop.f32.mrf.mxu0
    %v4545 = vadd.f32 0.0, %v4544
    %v4546 = vpop.f32.mrf.mxu0
    %4547 = vmatprep.mubr.bf16.mxu0 %v4303
    %4548 = vmatmul.mubr.bf16.gmra.mxu0 %v4239
    %v4549 = vpop.f32.mrf.mxu0
    %v4550 = vadd.f32 0.0, %v4549
    %v4551 = vpop.f32.mrf.mxu0
    %v4552 = vpop.f32.mrf.mxu0
    %v4553 = vadd.f32 0.0, %v4552
    %v4554 = vpop.f32.mrf.mxu0
    %4555 = vmatprep.mubr.bf16.mxu0 %v4306
    %4556 = vmatmul.mubr.bf16.gmra.mxu0 %v4242
    %v4557 = vpop.f32.mrf.mxu0
    %v4558 = vadd.f32 0.0, %v4557
    %v4559 = vpop.f32.mrf.mxu0
    %v4560 = vpop.f32.mrf.mxu0
    %v4561 = vadd.f32 0.0, %v4560
    %v4562 = vpop.f32.mrf.mxu0
    %4563 = vmatprep.mubr.bf16.mxu0 %v4309
    %4564 = vmatmul.mubr.bf16.gmra.mxu0 %v4245
    %v4565 = vpop.f32.mrf.mxu0
    %v4566 = vadd.f32 0.0, %v4565
    %v4567 = vpop.f32.mrf.mxu0
    %v4568 = vpop.f32.mrf.mxu0
    %v4569 = vadd.f32 0.0, %v4568
    %v4570 = vpop.f32.mrf.mxu0
    %4571 = vmatprep.mubr.bf16.mxu0 %v4312
    %4572 = vmatmul.mubr.bf16.gmra.mxu0 %v4248
    %v4573 = vpop.f32.mrf.mxu0
    %v4574 = vadd.f32 0.0, %v4573
    %v4575 = vpop.f32.mrf.mxu0
    %v4576 = vpop.f32.mrf.mxu0
    %v4577 = vadd.f32 0.0, %v4576
    %v4578 = vpop.f32.mrf.mxu0
    %4579 = vdwg.mxu0
    %4580 = vmatprep.subr.bf16.mxu0 0
    %4581 = vmatpush1.bf16.msra.mxu0 0
    %4582 = vmatprep.subr.bf16.mxu0 0
    %4583 = vmatpush1.bf16.msra.mxu0 0
    %4584 = vmatprep.subr.bf16.mxu0 0
    %4585 = vmatpush1.bf16.msra.mxu0 0
    %4586 = vmatprep.subr.bf16.mxu0 0
    %4587 = vmatpush1.bf16.msra.mxu0 0
    %4588 = vmatprep.subr.bf16.mxu0 0
    %4589 = vmatpush1.bf16.msra.mxu0 0
    %4590 = vmatprep.subr.bf16.mxu0 0
    %4591 = vmatpush1.bf16.msra.mxu0 0
    %4592 = vmatprep.subr.bf16.mxu0 0
    %4593 = vmatpush1.bf16.msra.mxu0 %v4440
    %4594 = vmatprep.subr.bf16.mxu0 0
    %4595 = vmatpush1.bf16.msra.mxu0 %v4439
    %4596 = vmatprep.subr.bf16.mxu0 0
    %4597 = vmatpush2.bf16.msra.mxu0 0
    %4598 = vmatprep.subr.bf16.mxu0 0
    %4599 = vmatpush2.bf16.msra.mxu0 0
    %4600 = vmatprep.subr.bf16.mxu0 0
    %4601 = vmatpush2.bf16.msra.mxu0 0
    %4602 = vmatprep.subr.bf16.mxu0 0
    %4603 = vmatpush2.bf16.msra.mxu0 0
    %4604 = vmatprep.subr.bf16.mxu0 0
    %4605 = vmatpush2.bf16.msra.mxu0 0
    %4606 = vmatprep.subr.bf16.mxu0 0
    %4607 = vmatpush2.bf16.msra.mxu0 0
    %4608 = vmatprep.subr.bf16.mxu0 0
    %4609 = vmatpush2.bf16.msra.mxu0 0
    %4610 = vmatprep.subr.bf16.mxu0 0
    %4611 = vmatpush2.bf16.msra.mxu0 0
    %4612 = vmatprep.mubr.bf16.mxu0 0
    %4613 = vmatmul.mubr.bf16.gmra.mxu0 %v4460
    %v4614 = vpop.f32.mrf.mxu0
    %v4615 = vadd.f32 %v4518, %v4614
    %v4616 = vpop.f32.mrf.mxu0
    %v4617 = vpop.f32.mrf.mxu0
    %v4618 = vadd.f32 %v4521, %v4617
    %v4619 = vpop.f32.mrf.mxu0
    %4620 = vmatprep.mubr.bf16.mxu0 0
    %4621 = vmatmul.mubr.bf16.gmra.mxu0 %v4463
    %v4622 = vpop.f32.mrf.mxu0
    %v4623 = vadd.f32 %v4526, %v4622
    %v4624 = vpop.f32.mrf.mxu0
    %v4625 = vpop.f32.mrf.mxu0
    %v4626 = vadd.f32 %v4529, %v4625
    %v4627 = vpop.f32.mrf.mxu0
    %4628 = vmatprep.mubr.bf16.mxu0 0
    %4629 = vmatmul.mubr.bf16.gmra.mxu0 %v4466
    %v4630 = vpop.f32.mrf.mxu0
    %v4631 = vadd.f32 %v4534, %v4630
    %v4632 = vpop.f32.mrf.mxu0
    %v4633 = vpop.f32.mrf.mxu0
    %v4634 = vadd.f32 %v4537, %v4633
    %v4635 = vpop.f32.mrf.mxu0
    %4636 = vmatprep.mubr.bf16.mxu0 0
    %4637 = vmatmul.mubr.bf16.gmra.mxu0 %v4469
    %v4638 = vpop.f32.mrf.mxu0
    %v4639 = vadd.f32 %v4542, %v4638
    %v4640 = vpop.f32.mrf.mxu0
    %v4641 = vpop.f32.mrf.mxu0
    %v4642 = vadd.f32 %v4545, %v4641
    %v4643 = vpop.f32.mrf.mxu0
    %4644 = vmatprep.mubr.bf16.mxu0 0
    %4645 = vmatmul.mubr.bf16.gmra.mxu0 %v4472
    %v4646 = vpop.f32.mrf.mxu0
    %v4647 = vadd.f32 %v4550, %v4646
    %v4648 = vpop.f32.mrf.mxu0
    %v4649 = vpop.f32.mrf.mxu0
    %v4650 = vadd.f32 %v4553, %v4649
    %v4651 = vpop.f32.mrf.mxu0
    %4652 = vmatprep.mubr.bf16.mxu0 0
    %4653 = vmatmul.mubr.bf16.gmra.mxu0 %v4475
    %v4654 = vpop.f32.mrf.mxu0
    %v4655 = vadd.f32 %v4558, %v4654
    %v4656 = vpop.f32.mrf.mxu0
    %v4657 = vpop.f32.mrf.mxu0
    %v4658 = vadd.f32 %v4561, %v4657
    %v4659 = vpop.f32.mrf.mxu0
    %4660 = vmatprep.mubr.bf16.mxu0 0
    %4661 = vmatmul.mubr.bf16.gmra.mxu0 %v4478
    %v4662 = vpop.f32.mrf.mxu0
    %v4663 = vadd.f32 %v4566, %v4662
    %v4664 = vpop.f32.mrf.mxu0
    %v4665 = vpop.f32.mrf.mxu0
    %v4666 = vadd.f32 %v4569, %v4665
    %v4667 = vpop.f32.mrf.mxu0
    %4668 = vmatprep.mubr.bf16.mxu0 0
    %4669 = vmatmul.mubr.bf16.gmra.mxu0 %v4481
    %v4670 = vpop.f32.mrf.mxu0
    %v4671 = vadd.f32 %v4574, %v4670
    %v4672 = vpop.f32.mrf.mxu0
    %v4673 = vpop.f32.mrf.mxu0
    %v4674 = vadd.f32 %v4577, %v4673
    %v4675 = vpop.f32.mrf.mxu0
    %4676 = vdwg.mxu0
    %s4677 = scalar_lea.vmem %s2, 1
    %v4678 = vld [vmem:[%s4677] sm:$0x1]
    %v4680 = vlaneseq
    %v4681 = vshrl.u32 %v4680, 7
    %v4682 = vsub.s32 0, %v4681
    %v4683 = vrot.slane %v4678, %v4682
    %v4685 = vmul.f32 %v4615, %v4683
    %v4686 = vmul.f32 %v4618, %v4683
    %v4687 = vmul.f32 %v4623, %v4683
    %v4688 = vmul.f32 %v4626, %v4683
    %v4689 = vmul.f32 %v4631, %v4683
    %v4690 = vmul.f32 %v4634, %v4683
    %v4691 = vmul.f32 %v4639, %v4683
    %v4692 = vmul.f32 %v4642, %v4683
    %v4693 = vmul.f32 %v4647, %v4683
    %v4694 = vmul.f32 %v4650, %v4683
    %v4695 = vmul.f32 %v4655, %v4683
    %v4696 = vmul.f32 %v4658, %v4683
    %v4697 = vmul.f32 %v4663, %v4683
    %v4698 = vmul.f32 %v4666, %v4683
    %v4699 = vmul.f32 %v4671, %v4683
    %v4700 = vmul.f32 %v4674, %v4683
    %s4701 = scalar_lea.vmem %s3, 1
    %v4702 = vld [vmem:[%s4701] sm:$0x1]
    %v4704 = vlaneseq
    %v4705 = vshrl.u32 %v4704, 7
    %v4706 = vsub.s32 0, %v4705
    %v4707 = vrot.slane %v4702, %v4706
    %v4709 = vadd.f32 %v4685, %v4707
    %v4710 = vadd.f32 %v4686, %v4707
    %v4711 = vadd.f32 %v4687, %v4707
    %v4712 = vadd.f32 %v4688, %v4707
    %v4713 = vadd.f32 %v4689, %v4707
    %v4714 = vadd.f32 %v4690, %v4707
    %v4715 = vadd.f32 %v4691, %v4707
    %v4716 = vadd.f32 %v4692, %v4707
    %v4717 = vadd.f32 %v4693, %v4707
    %v4718 = vadd.f32 %v4694, %v4707
    %v4719 = vadd.f32 %v4695, %v4707
    %v4720 = vadd.f32 %v4696, %v4707
    %v4721 = vadd.f32 %v4697, %v4707
    %v4722 = vadd.f32 %v4698, %v4707
    %v4723 = vadd.f32 %v4699, %v4707
    %v4724 = vadd.f32 %v4700, %v4707
    %v4725 = vmax.f32 %v4709, 0.0
    %v4726 = vmax.f32 %v4710, 0.0
    %v4727 = vmax.f32 %v4711, 0.0
    %v4728 = vmax.f32 %v4712, 0.0
    %v4729 = vmax.f32 %v4713, 0.0
    %v4730 = vmax.f32 %v4714, 0.0
    %v4731 = vmax.f32 %v4715, 0.0
    %v4732 = vmax.f32 %v4716, 0.0
    %v4733 = vmax.f32 %v4717, 0.0
    %v4734 = vmax.f32 %v4718, 0.0
    %v4735 = vmax.f32 %v4719, 0.0
    %v4736 = vmax.f32 %v4720, 0.0
    %v4737 = vmax.f32 %v4721, 0.0
    %v4738 = vmax.f32 %v4722, 0.0
    %v4739 = vmax.f32 %v4723, 0.0
    %v4740 = vmax.f32 %v4724, 0.0
    %v4741 = vpack.c.bf16 %v4726, %v4725
    %v4742 = vpack.c.bf16 %v4728, %v4727
    %v4743 = vpack.c.bf16 %v4730, %v4729
    %v4744 = vpack.c.bf16 %v4732, %v4731
    %v4745 = vpack.c.bf16 %v4734, %v4733
    %v4746 = vpack.c.bf16 %v4736, %v4735
    %v4747 = vpack.c.bf16 %v4738, %v4737
    %v4748 = vpack.c.bf16 %v4740, %v4739
    %v4757 = vunpack.c.l.b16 %v4741
    %v4758 = vunpack.c.h.b16 %v4741
    %v4759 = vunpack.c.l.b16 %v4742
    %v4760 = vunpack.c.h.b16 %v4742
    %v4761 = vunpack.c.l.b16 %v4743
    %v4762 = vunpack.c.h.b16 %v4743
    %v4763 = vunpack.c.l.b16 %v4744
    %v4764 = vunpack.c.h.b16 %v4744
    %v4765 = vunpack.c.l.b16 %v4745
    %v4766 = vunpack.c.h.b16 %v4745
    %v4767 = vunpack.c.l.b16 %v4746
    %v4768 = vunpack.c.h.b16 %v4746
    %v4769 = vunpack.c.l.b16 %v4747
    %v4770 = vunpack.c.h.b16 %v4747
    %v4771 = vunpack.c.l.b16 %v4748
    %v4772 = vunpack.c.h.b16 %v4748
    %v4773 = vpack.c.b16 %v4757, %v4757
    %v4774 = vpack.c.b16 %v4758, %v4758
    %v4775 = vpack.c.b16 %v4759, %v4759
    %v4776 = vpack.c.b16 %v4760, %v4760
    %v4777 = vpack.c.b16 %v4761, %v4761
    %v4778 = vpack.c.b16 %v4762, %v4762
    %v4779 = vpack.c.b16 %v4763, %v4763
    %v4780 = vpack.c.b16 %v4764, %v4764
    %v4781 = vpack.c.b16 %v4765, %v4765
    %v4782 = vpack.c.b16 %v4766, %v4766
    %v4783 = vpack.c.b16 %v4767, %v4767
    %v4784 = vpack.c.b16 %v4768, %v4768
    %v4785 = vpack.c.b16 %v4769, %v4769
    %v4786 = vpack.c.b16 %v4770, %v4770
    %v4787 = vpack.c.b16 %v4771, %v4771
    %v4788 = vpack.c.b16 %v4772, %v4772
    %v4790 = vshrl.u32 %v4773, 16
    %v4792 = vrot.slane %v4790, 7
    %v4793 = vshll.u32 %v4773, 16
    %v4795 = vor.u32 %v4792, %v4793
    %v4796 = vrot.slane %v4792, 4
    %v4798 = vshrl.u32 %v4774, 16
    %v4800 = vrot.slane %v4798, 7
    %v4801 = vshll.u32 %v4774, 16
    %v4803 = vor.u32 %v4800, %v4801
    %v4804 = vrot.slane %v4800, 4
    %v4806 = vshrl.u32 %v4775, 16
    %v4808 = vrot.slane %v4806, 7
    %v4809 = vshll.u32 %v4775, 16
    %v4811 = vor.u32 %v4808, %v4809
    %v4812 = vrot.slane %v4808, 4
    %v4814 = vshrl.u32 %v4776, 16
    %v4816 = vrot.slane %v4814, 7
    %v4817 = vshll.u32 %v4776, 16
    %v4819 = vor.u32 %v4816, %v4817
    %v4820 = vrot.slane %v4816, 4
    %v4822 = vshrl.u32 %v4777, 16
    %v4824 = vrot.slane %v4822, 7
    %v4825 = vshll.u32 %v4777, 16
    %v4827 = vor.u32 %v4824, %v4825
    %v4828 = vrot.slane %v4824, 4
    %v4830 = vshrl.u32 %v4778, 16
    %v4832 = vrot.slane %v4830, 7
    %v4833 = vshll.u32 %v4778, 16
    %v4835 = vor.u32 %v4832, %v4833
    %v4836 = vrot.slane %v4832, 4
    %v4838 = vshrl.u32 %v4779, 16
    %v4840 = vrot.slane %v4838, 7
    %v4841 = vshll.u32 %v4779, 16
    %v4843 = vor.u32 %v4840, %v4841
    %v4844 = vrot.slane %v4840, 4
    %v4846 = vshrl.u32 %v4780, 16
    %v4848 = vrot.slane %v4846, 7
    %v4849 = vshll.u32 %v4780, 16
    %v4851 = vor.u32 %v4848, %v4849
    %v4852 = vrot.slane %v4848, 4
    %v4854 = vshrl.u32 %v4781, 16
    %v4856 = vrot.slane %v4854, 7
    %v4857 = vshll.u32 %v4781, 16
    %v4859 = vor.u32 %v4856, %v4857
    %v4860 = vrot.slane %v4856, 4
    %v4862 = vshrl.u32 %v4782, 16
    %v4864 = vrot.slane %v4862, 7
    %v4865 = vshll.u32 %v4782, 16
    %v4867 = vor.u32 %v4864, %v4865
    %v4868 = vrot.slane %v4864, 4
    %v4870 = vshrl.u32 %v4783, 16
    %v4872 = vrot.slane %v4870, 7
    %v4873 = vshll.u32 %v4783, 16
    %v4875 = vor.u32 %v4872, %v4873
    %v4876 = vrot.slane %v4872, 4
    %v4878 = vshrl.u32 %v4784, 16
    %v4880 = vrot.slane %v4878, 7
    %v4881 = vshll.u32 %v4784, 16
    %v4883 = vor.u32 %v4880, %v4881
    %v4884 = vrot.slane %v4880, 4
    %v4886 = vshrl.u32 %v4785, 16
    %v4888 = vrot.slane %v4886, 7
    %v4889 = vshll.u32 %v4785, 16
    %v4891 = vor.u32 %v4888, %v4889
    %v4892 = vrot.slane %v4888, 4
    %v4894 = vshrl.u32 %v4786, 16
    %v4896 = vrot.slane %v4894, 7
    %v4897 = vshll.u32 %v4786, 16
    %v4899 = vor.u32 %v4896, %v4897
    %v4900 = vrot.slane %v4896, 4
    %v4902 = vshrl.u32 %v4787, 16
    %v4904 = vrot.slane %v4902, 7
    %v4905 = vshll.u32 %v4787, 16
    %v4907 = vor.u32 %v4904, %v4905
    %v4908 = vrot.slane %v4904, 4
    %v4910 = vshrl.u32 %v4788, 16
    %v4912 = vrot.slane %v4910, 7
    %v4913 = vshll.u32 %v4788, 16
    %v4915 = vor.u32 %v4912, %v4913
    %v4916 = vrot.slane %v4912, 4
    %s4949 = scalar_lea.vmem [#allocation3], 8
    %v4950 = vld [vmem:[%s4949] sm:$0xf]
    %v4951 = vsel %vm293, %v4795, %v4950
    %4952 = vst [vmem:[%s4949] sm:$0xf] %v4951
    %v4953 = vld [vmem:[%s4949 + $0x4] sm:$0x1]
    %v4954 = vsel %vm299, %v4796, %v4953
    %4955 = vst [vmem:[%s4949 + $0x4] sm:$0x1] %v4954
    %v4956 = vld [vmem:[%s4949 + $0x8] sm:$0xf]
    %v4957 = vsel %vm293, %v4803, %v4956
    %4958 = vst [vmem:[%s4949 + $0x8] sm:$0xf] %v4957
    %v4959 = vld [vmem:[%s4949 + $0xc] sm:$0x1]
    %v4960 = vsel %vm299, %v4804, %v4959
    %4961 = vst [vmem:[%s4949 + $0xc] sm:$0x1] %v4960
    %v4962 = vld [vmem:[%s4949 + $0x10] sm:$0xf]
    %v4963 = vsel %vm293, %v4811, %v4962
    %4964 = vst [vmem:[%s4949 + $0x10] sm:$0xf] %v4963
    %v4965 = vld [vmem:[%s4949 + $0x14] sm:$0x1]
    %v4966 = vsel %vm299, %v4812, %v4965
    %4967 = vst [vmem:[%s4949 + $0x14] sm:$0x1] %v4966
    %v4968 = vld [vmem:[%s4949 + $0x18] sm:$0xf]
    %v4969 = vsel %vm293, %v4819, %v4968
    %4970 = vst [vmem:[%s4949 + $0x18] sm:$0xf] %v4969
    %v4971 = vld [vmem:[%s4949 + $0x1c] sm:$0x1]
    %v4972 = vsel %vm299, %v4820, %v4971
    %4973 = vst [vmem:[%s4949 + $0x1c] sm:$0x1] %v4972
    %v4974 = vld [vmem:[%s4949 + $0x20] sm:$0xf]
    %v4975 = vsel %vm293, %v4827, %v4974
    %4976 = vst [vmem:[%s4949 + $0x20] sm:$0xf] %v4975
    %v4977 = vld [vmem:[%s4949 + $0x24] sm:$0x1]
    %v4978 = vsel %vm299, %v4828, %v4977
    %4979 = vst [vmem:[%s4949 + $0x24] sm:$0x1] %v4978
    %v4980 = vld [vmem:[%s4949 + $0x28] sm:$0xf]
    %v4981 = vsel %vm293, %v4835, %v4980
    %4982 = vst [vmem:[%s4949 + $0x28] sm:$0xf] %v4981
    %v4983 = vld [vmem:[%s4949 + $0x2c] sm:$0x1]
    %v4984 = vsel %vm299, %v4836, %v4983
    %4985 = vst [vmem:[%s4949 + $0x2c] sm:$0x1] %v4984
    %v4986 = vld [vmem:[%s4949 + $0x30] sm:$0xf]
    %v4987 = vsel %vm293, %v4843, %v4986
    %4988 = vst [vmem:[%s4949 + $0x30] sm:$0xf] %v4987
    %v4989 = vld [vmem:[%s4949 + $0x34] sm:$0x1]
    %v4990 = vsel %vm299, %v4844, %v4989
    %4991 = vst [vmem:[%s4949 + $0x34] sm:$0x1] %v4990
    %v4992 = vld [vmem:[%s4949 + $0x38] sm:$0xf]
    %v4993 = vsel %vm293, %v4851, %v4992
    %4994 = vst [vmem:[%s4949 + $0x38] sm:$0xf] %v4993
    %v4995 = vld [vmem:[%s4949 + $0x3c] sm:$0x1]
    %v4996 = vsel %vm299, %v4852, %v4995
    %4997 = vst [vmem:[%s4949 + $0x3c] sm:$0x1] %v4996
    %v4998 = vld [vmem:[%s4949 + $0x50] sm:$0xf]
    %v4999 = vsel %vm293, %v4859, %v4998
    %5000 = vst [vmem:[%s4949 + $0x50] sm:$0xf] %v4999
    %v5001 = vld [vmem:[%s4949 + $0x54] sm:$0x1]
    %v5002 = vsel %vm299, %v4860, %v5001
    %5003 = vst [vmem:[%s4949 + $0x54] sm:$0x1] %v5002
    %v5004 = vld [vmem:[%s4949 + $0x58] sm:$0xf]
    %v5005 = vsel %vm293, %v4867, %v5004
    %5006 = vst [vmem:[%s4949 + $0x58] sm:$0xf] %v5005
    %v5007 = vld [vmem:[%s4949 + $0x5c] sm:$0x1]
    %v5008 = vsel %vm299, %v4868, %v5007
    %5009 = vst [vmem:[%s4949 + $0x5c] sm:$0x1] %v5008
    %v5010 = vld [vmem:[%s4949 + $0x60] sm:$0xf]
    %v5011 = vsel %vm293, %v4875, %v5010
    %5012 = vst [vmem:[%s4949 + $0x60] sm:$0xf] %v5011
    %v5013 = vld [vmem:[%s4949 + $0x64] sm:$0x1]
    %v5014 = vsel %vm299, %v4876, %v5013
    %5015 = vst [vmem:[%s4949 + $0x64] sm:$0x1] %v5014
    %v5016 = vld [vmem:[%s4949 + $0x68] sm:$0xf]
    %v5017 = vsel %vm293, %v4883, %v5016
    %5018 = vst [vmem:[%s4949 + $0x68] sm:$0xf] %v5017
    %v5019 = vld [vmem:[%s4949 + $0x6c] sm:$0x1]
    %v5020 = vsel %vm299, %v4884, %v5019
    %5021 = vst [vmem:[%s4949 + $0x6c] sm:$0x1] %v5020
    %v5022 = vld [vmem:[%s4949 + $0x70] sm:$0xf]
    %v5023 = vsel %vm293, %v4891, %v5022
    %5024 = vst [vmem:[%s4949 + $0x70] sm:$0xf] %v5023
    %v5025 = vld [vmem:[%s4949 + $0x74] sm:$0x1]
    %v5026 = vsel %vm299, %v4892, %v5025
    %5027 = vst [vmem:[%s4949 + $0x74] sm:$0x1] %v5026
    %v5028 = vld [vmem:[%s4949 + $0x78] sm:$0xf]
    %v5029 = vsel %vm293, %v4899, %v5028
    %5030 = vst [vmem:[%s4949 + $0x78] sm:$0xf] %v5029
    %v5031 = vld [vmem:[%s4949 + $0x7c] sm:$0x1]
    %v5032 = vsel %vm299, %v4900, %v5031
    %5033 = vst [vmem:[%s4949 + $0x7c] sm:$0x1] %v5032
    %v5034 = vld [vmem:[%s4949 + $0x80] sm:$0xf]
    %v5035 = vsel %vm293, %v4907, %v5034
    %5036 = vst [vmem:[%s4949 + $0x80] sm:$0xf] %v5035
    %v5037 = vld [vmem:[%s4949 + $0x84] sm:$0x1]
    %v5038 = vsel %vm299, %v4908, %v5037
    %5039 = vst [vmem:[%s4949 + $0x84] sm:$0x1] %v5038
    %v5040 = vld [vmem:[%s4949 + $0x88] sm:$0xf]
    %v5041 = vsel %vm293, %v4915, %v5040
    %5042 = vst [vmem:[%s4949 + $0x88] sm:$0xf] %v5041
    %v5043 = vld [vmem:[%s4949 + $0x8c] sm:$0x1]
    %v5044 = vsel %vm299, %v4916, %v5043
    %5045 = vst [vmem:[%s4949 + $0x8c] sm:$0x1] %v5044
    %v5046 = vld [vmem:[#allocation3] sm:$0xf]
    %v5047 = vld [vmem:[#allocation3 + $0x8] sm:$0xf]
    %v5048 = vld [vmem:[#allocation3 + $0x10] sm:$0xf]
    %v5049 = vld [vmem:[#allocation3 + $0x18] sm:$0xf]
    %v5050 = vld [vmem:[#allocation3 + $0x20] sm:$0xf]
    %v5051 = vld [vmem:[#allocation3 + $0x28] sm:$0xf]
    %v5052 = vld [vmem:[#allocation3 + $0x30] sm:$0xf]
    %v5053 = vld [vmem:[#allocation3 + $0x38] sm:$0xf]
    %v5054 = vld [vmem:[#allocation3 + $0x50] sm:$0xf]
    %v5055 = vld [vmem:[#allocation3 + $0x58] sm:$0xf]
    %v5056 = vld [vmem:[#allocation3 + $0x60] sm:$0xf]
    %v5057 = vld [vmem:[#allocation3 + $0x68] sm:$0xf]
    %v5058 = vld [vmem:[#allocation3 + $0x70] sm:$0xf]
    %v5059 = vld [vmem:[#allocation3 + $0x78] sm:$0xf]
    %v5060 = vld [vmem:[#allocation3 + $0x80] sm:$0xf]
    %v5061 = vld [vmem:[#allocation3 + $0x88] sm:$0xf]
    %v5062 = vld [vmem:[#allocation3 + $0x4] sm:$0x1]
    %v5063 = vld [vmem:[#allocation3 + $0xc] sm:$0x1]
    %v5064 = vld [vmem:[#allocation3 + $0x14] sm:$0x1]
    %v5065 = vld [vmem:[#allocation3 + $0x1c] sm:$0x1]
    %v5066 = vld [vmem:[#allocation3 + $0x24] sm:$0x1]
    %v5067 = vld [vmem:[#allocation3 + $0x2c] sm:$0x1]
    %v5068 = vld [vmem:[#allocation3 + $0x34] sm:$0x1]
    %v5069 = vld [vmem:[#allocation3 + $0x3c] sm:$0x1]
    %v5070 = vld [vmem:[#allocation3 + $0x54] sm:$0x1]
    %v5071 = vld [vmem:[#allocation3 + $0x5c] sm:$0x1]
    %v5072 = vld [vmem:[#allocation3 + $0x64] sm:$0x1]
    %v5073 = vld [vmem:[#allocation3 + $0x6c] sm:$0x1]
    %v5074 = vld [vmem:[#allocation3 + $0x74] sm:$0x1]
    %v5075 = vld [vmem:[#allocation3 + $0x7c] sm:$0x1]
    %v5076 = vld [vmem:[#allocation3 + $0x84] sm:$0x1]
    %v5077 = vld [vmem:[#allocation3 + $0x8c] sm:$0x1]
    %v5079 = vshrl.u32 %v5046, 16
    %v5081 = vrot.slane %v5079, 4
    %v5082 = vshll.u32 %v5046, 16
    %v5084 = vrot.slane %v5082, 5
    %v5085 = vor.u32 %v5081, %v5084
    %v5086 = vrot.slane %v5085, 4
    %v5088 = vshll.u32 %v5062, 16
    %v5090 = vrot.slane %v5088, 5
    %v5091 = vsel %vm427, %v5086, %v5090
    %v5093 = vshrl.u32 %v5047, 16
    %v5095 = vrot.slane %v5093, 4
    %v5096 = vshll.u32 %v5047, 16
    %v5098 = vrot.slane %v5096, 5
    %v5099 = vor.u32 %v5095, %v5098
    %v5100 = vrot.slane %v5099, 4
    %v5102 = vshll.u32 %v5063, 16
    %v5104 = vrot.slane %v5102, 5
    %v5105 = vsel %vm427, %v5100, %v5104
    %v5107 = vshrl.u32 %v5048, 16
    %v5109 = vrot.slane %v5107, 4
    %v5110 = vshll.u32 %v5048, 16
    %v5112 = vrot.slane %v5110, 5
    %v5113 = vor.u32 %v5109, %v5112
    %v5114 = vrot.slane %v5113, 4
    %v5116 = vshll.u32 %v5064, 16
    %v5118 = vrot.slane %v5116, 5
    %v5119 = vsel %vm427, %v5114, %v5118
    %v5121 = vshrl.u32 %v5049, 16
    %v5123 = vrot.slane %v5121, 4
    %v5124 = vshll.u32 %v5049, 16
    %v5126 = vrot.slane %v5124, 5
    %v5127 = vor.u32 %v5123, %v5126
    %v5128 = vrot.slane %v5127, 4
    %v5130 = vshll.u32 %v5065, 16
    %v5132 = vrot.slane %v5130, 5
    %v5133 = vsel %vm427, %v5128, %v5132
    %v5135 = vshrl.u32 %v5050, 16
    %v5137 = vrot.slane %v5135, 4
    %v5138 = vshll.u32 %v5050, 16
    %v5140 = vrot.slane %v5138, 5
    %v5141 = vor.u32 %v5137, %v5140
    %v5142 = vrot.slane %v5141, 4
    %v5144 = vshll.u32 %v5066, 16
    %v5146 = vrot.slane %v5144, 5
    %v5147 = vsel %vm427, %v5142, %v5146
    %v5149 = vshrl.u32 %v5051, 16
    %v5151 = vrot.slane %v5149, 4
    %v5152 = vshll.u32 %v5051, 16
    %v5154 = vrot.slane %v5152, 5
    %v5155 = vor.u32 %v5151, %v5154
    %v5156 = vrot.slane %v5155, 4
    %v5158 = vshll.u32 %v5067, 16
    %v5160 = vrot.slane %v5158, 5
    %v5161 = vsel %vm427, %v5156, %v5160
    %v5163 = vshrl.u32 %v5052, 16
    %v5165 = vrot.slane %v5163, 4
    %v5166 = vshll.u32 %v5052, 16
    %v5168 = vrot.slane %v5166, 5
    %v5169 = vor.u32 %v5165, %v5168
    %v5170 = vrot.slane %v5169, 4
    %v5172 = vshll.u32 %v5068, 16
    %v5174 = vrot.slane %v5172, 5
    %v5175 = vsel %vm427, %v5170, %v5174
    %v5177 = vshrl.u32 %v5053, 16
    %v5179 = vrot.slane %v5177, 4
    %v5180 = vshll.u32 %v5053, 16
    %v5182 = vrot.slane %v5180, 5
    %v5183 = vor.u32 %v5179, %v5182
    %v5184 = vrot.slane %v5183, 4
    %v5186 = vshll.u32 %v5069, 16
    %v5188 = vrot.slane %v5186, 5
    %v5189 = vsel %vm427, %v5184, %v5188
    %v5191 = vshrl.u32 %v5054, 16
    %v5193 = vrot.slane %v5191, 4
    %v5194 = vshll.u32 %v5054, 16
    %v5196 = vrot.slane %v5194, 5
    %v5197 = vor.u32 %v5193, %v5196
    %v5198 = vrot.slane %v5197, 4
    %v5200 = vshll.u32 %v5070, 16
    %v5202 = vrot.slane %v5200, 5
    %v5203 = vsel %vm427, %v5198, %v5202
    %v5205 = vshrl.u32 %v5055, 16
    %v5207 = vrot.slane %v5205, 4
    %v5208 = vshll.u32 %v5055, 16
    %v5210 = vrot.slane %v5208, 5
    %v5211 = vor.u32 %v5207, %v5210
    %v5212 = vrot.slane %v5211, 4
    %v5214 = vshll.u32 %v5071, 16
    %v5216 = vrot.slane %v5214, 5
    %v5217 = vsel %vm427, %v5212, %v5216
    %v5219 = vshrl.u32 %v5056, 16
    %v5221 = vrot.slane %v5219, 4
    %v5222 = vshll.u32 %v5056, 16
    %v5224 = vrot.slane %v5222, 5
    %v5225 = vor.u32 %v5221, %v5224
    %v5226 = vrot.slane %v5225, 4
    %v5228 = vshll.u32 %v5072, 16
    %v5230 = vrot.slane %v5228, 5
    %v5231 = vsel %vm427, %v5226, %v5230
    %v5233 = vshrl.u32 %v5057, 16
    %v5235 = vrot.slane %v5233, 4
    %v5236 = vshll.u32 %v5057, 16
    %v5238 = vrot.slane %v5236, 5
    %v5239 = vor.u32 %v5235, %v5238
    %v5240 = vrot.slane %v5239, 4
    %v5242 = vshll.u32 %v5073, 16
    %v5244 = vrot.slane %v5242, 5
    %v5245 = vsel %vm427, %v5240, %v5244
    %v5247 = vshrl.u32 %v5058, 16
    %v5249 = vrot.slane %v5247, 4
    %v5250 = vshll.u32 %v5058, 16
    %v5252 = vrot.slane %v5250, 5
    %v5253 = vor.u32 %v5249, %v5252
    %v5254 = vrot.slane %v5253, 4
    %v5256 = vshll.u32 %v5074, 16
    %v5258 = vrot.slane %v5256, 5
    %v5259 = vsel %vm427, %v5254, %v5258
    %v5261 = vshrl.u32 %v5059, 16
    %v5263 = vrot.slane %v5261, 4
    %v5264 = vshll.u32 %v5059, 16
    %v5266 = vrot.slane %v5264, 5
    %v5267 = vor.u32 %v5263, %v5266
    %v5268 = vrot.slane %v5267, 4
    %v5270 = vshll.u32 %v5075, 16
    %v5272 = vrot.slane %v5270, 5
    %v5273 = vsel %vm427, %v5268, %v5272
    %v5275 = vshrl.u32 %v5060, 16
    %v5277 = vrot.slane %v5275, 4
    %v5278 = vshll.u32 %v5060, 16
    %v5280 = vrot.slane %v5278, 5
    %v5281 = vor.u32 %v5277, %v5280
    %v5282 = vrot.slane %v5281, 4
    %v5284 = vshll.u32 %v5076, 16
    %v5286 = vrot.slane %v5284, 5
    %v5287 = vsel %vm427, %v5282, %v5286
    %v5289 = vshrl.u32 %v5061, 16
    %v5291 = vrot.slane %v5289, 4
    %v5292 = vshll.u32 %v5061, 16
    %v5294 = vrot.slane %v5292, 5
    %v5295 = vor.u32 %v5291, %v5294
    %v5296 = vrot.slane %v5295, 4
    %v5298 = vshll.u32 %v5077, 16
    %v5300 = vrot.slane %v5298, 5
    %v5301 = vsel %vm427, %v5296, %v5300
    %v5302 = vld [vmem:[#allocation3] sm:$0xe]
    %v5303 = vld [vmem:[#allocation3 + $0x8] sm:$0xe]
    %v5304 = vld [vmem:[#allocation3 + $0x10] sm:$0xe]
    %v5305 = vld [vmem:[#allocation3 + $0x18] sm:$0xe]
    %v5306 = vld [vmem:[#allocation3 + $0x20] sm:$0xe]
    %v5307 = vld [vmem:[#allocation3 + $0x28] sm:$0xe]
    %v5308 = vld [vmem:[#allocation3 + $0x30] sm:$0xe]
    %v5309 = vld [vmem:[#allocation3 + $0x38] sm:$0xe]
    %v5310 = vld [vmem:[#allocation3 + $0x50] sm:$0xe]
    %v5311 = vld [vmem:[#allocation3 + $0x58] sm:$0xe]
    %v5312 = vld [vmem:[#allocation3 + $0x60] sm:$0xe]
    %v5313 = vld [vmem:[#allocation3 + $0x68] sm:$0xe]
    %v5314 = vld [vmem:[#allocation3 + $0x70] sm:$0xe]
    %v5315 = vld [vmem:[#allocation3 + $0x78] sm:$0xe]
    %v5316 = vld [vmem:[#allocation3 + $0x80] sm:$0xe]
    %v5317 = vld [vmem:[#allocation3 + $0x88] sm:$0xe]
    %v5350 = vrot.slane %v5302, 5
    %v5351 = vrot.slane %v5350, 4
    %v5352 = vrot.slane %v5062, 5
    %v5353 = vsel %vm702, %v5351, %v5352
    %v5354 = vrot.slane %v5303, 5
    %v5355 = vrot.slane %v5354, 4
    %v5356 = vrot.slane %v5063, 5
    %v5357 = vsel %vm702, %v5355, %v5356
    %v5358 = vrot.slane %v5304, 5
    %v5359 = vrot.slane %v5358, 4
    %v5360 = vrot.slane %v5064, 5
    %v5361 = vsel %vm702, %v5359, %v5360
    %v5362 = vrot.slane %v5305, 5
    %v5363 = vrot.slane %v5362, 4
    %v5364 = vrot.slane %v5065, 5
    %v5365 = vsel %vm702, %v5363, %v5364
    %v5366 = vrot.slane %v5306, 5
    %v5367 = vrot.slane %v5366, 4
    %v5368 = vrot.slane %v5066, 5
    %v5369 = vsel %vm702, %v5367, %v5368
    %v5370 = vrot.slane %v5307, 5
    %v5371 = vrot.slane %v5370, 4
    %v5372 = vrot.slane %v5067, 5
    %v5373 = vsel %vm702, %v5371, %v5372
    %v5374 = vrot.slane %v5308, 5
    %v5375 = vrot.slane %v5374, 4
    %v5376 = vrot.slane %v5068, 5
    %v5377 = vsel %vm702, %v5375, %v5376
    %v5378 = vrot.slane %v5309, 5
    %v5379 = vrot.slane %v5378, 4
    %v5380 = vrot.slane %v5069, 5
    %v5381 = vsel %vm702, %v5379, %v5380
    %v5382 = vrot.slane %v5310, 5
    %v5383 = vrot.slane %v5382, 4
    %v5384 = vrot.slane %v5070, 5
    %v5385 = vsel %vm702, %v5383, %v5384
    %v5386 = vrot.slane %v5311, 5
    %v5387 = vrot.slane %v5386, 4
    %v5388 = vrot.slane %v5071, 5
    %v5389 = vsel %vm702, %v5387, %v5388
    %v5390 = vrot.slane %v5312, 5
    %v5391 = vrot.slane %v5390, 4
    %v5392 = vrot.slane %v5072, 5
    %v5393 = vsel %vm702, %v5391, %v5392
    %v5394 = vrot.slane %v5313, 5
    %v5395 = vrot.slane %v5394, 4
    %v5396 = vrot.slane %v5073, 5
    %v5397 = vsel %vm702, %v5395, %v5396
    %v5398 = vrot.slane %v5314, 5
    %v5399 = vrot.slane %v5398, 4
    %v5400 = vrot.slane %v5074, 5
    %v5401 = vsel %vm702, %v5399, %v5400
    %v5402 = vrot.slane %v5315, 5
    %v5403 = vrot.slane %v5402, 4
    %v5404 = vrot.slane %v5075, 5
    %v5405 = vsel %vm702, %v5403, %v5404
    %v5406 = vrot.slane %v5316, 5
    %v5407 = vrot.slane %v5406, 4
    %v5408 = vrot.slane %v5076, 5
    %v5409 = vsel %vm702, %v5407, %v5408
    %v5410 = vrot.slane %v5317, 5
    %v5411 = vrot.slane %v5410, 4
    %v5412 = vrot.slane %v5077, 5
    %v5413 = vsel %vm702, %v5411, %v5412
    %v5414 = vld [vmem:[%s4949] sm:$0xf]
    %v5415 = vld [vmem:[%s4949 + $0x8] sm:$0xf]
    %v5416 = vld [vmem:[%s4949 + $0x10] sm:$0xf]
    %v5417 = vld [vmem:[%s4949 + $0x18] sm:$0xf]
    %v5418 = vld [vmem:[%s4949 + $0x20] sm:$0xf]
    %v5419 = vld [vmem:[%s4949 + $0x28] sm:$0xf]
    %v5420 = vld [vmem:[%s4949 + $0x30] sm:$0xf]
    %v5421 = vld [vmem:[%s4949 + $0x38] sm:$0xf]
    %v5422 = vld [vmem:[%s4949 + $0x50] sm:$0xf]
    %v5423 = vld [vmem:[%s4949 + $0x58] sm:$0xf]
    %v5424 = vld [vmem:[%s4949 + $0x60] sm:$0xf]
    %v5425 = vld [vmem:[%s4949 + $0x68] sm:$0xf]
    %v5426 = vld [vmem:[%s4949 + $0x70] sm:$0xf]
    %v5427 = vld [vmem:[%s4949 + $0x78] sm:$0xf]
    %v5428 = vld [vmem:[%s4949 + $0x80] sm:$0xf]
    %v5429 = vld [vmem:[%s4949 + $0x88] sm:$0xf]
    %v5430 = vld [vmem:[%s4949 + $0x4] sm:$0x1]
    %v5431 = vld [vmem:[%s4949 + $0xc] sm:$0x1]
    %v5432 = vld [vmem:[%s4949 + $0x14] sm:$0x1]
    %v5433 = vld [vmem:[%s4949 + $0x1c] sm:$0x1]
    %v5434 = vld [vmem:[%s4949 + $0x24] sm:$0x1]
    %v5435 = vld [vmem:[%s4949 + $0x2c] sm:$0x1]
    %v5436 = vld [vmem:[%s4949 + $0x34] sm:$0x1]
    %v5437 = vld [vmem:[%s4949 + $0x3c] sm:$0x1]
    %v5438 = vld [vmem:[%s4949 + $0x54] sm:$0x1]
    %v5439 = vld [vmem:[%s4949 + $0x5c] sm:$0x1]
    %v5440 = vld [vmem:[%s4949 + $0x64] sm:$0x1]
    %v5441 = vld [vmem:[%s4949 + $0x6c] sm:$0x1]
    %v5442 = vld [vmem:[%s4949 + $0x74] sm:$0x1]
    %v5443 = vld [vmem:[%s4949 + $0x7c] sm:$0x1]
    %v5444 = vld [vmem:[%s4949 + $0x84] sm:$0x1]
    %v5445 = vld [vmem:[%s4949 + $0x8c] sm:$0x1]
    %v5447 = vshrl.u32 %v5414, 16
    %v5449 = vrot.slane %v5447, 4
    %v5450 = vshll.u32 %v5414, 16
    %v5452 = vrot.slane %v5450, 5
    %v5453 = vor.u32 %v5449, %v5452
    %v5454 = vrot.slane %v5453, 4
    %v5456 = vshll.u32 %v5430, 16
    %v5458 = vrot.slane %v5456, 5
    %v5459 = vsel %vm427, %v5454, %v5458
    %v5461 = vshrl.u32 %v5415, 16
    %v5463 = vrot.slane %v5461, 4
    %v5464 = vshll.u32 %v5415, 16
    %v5466 = vrot.slane %v5464, 5
    %v5467 = vor.u32 %v5463, %v5466
    %v5468 = vrot.slane %v5467, 4
    %v5470 = vshll.u32 %v5431, 16
    %v5472 = vrot.slane %v5470, 5
    %v5473 = vsel %vm427, %v5468, %v5472
    %v5475 = vshrl.u32 %v5416, 16
    %v5477 = vrot.slane %v5475, 4
    %v5478 = vshll.u32 %v5416, 16
    %v5480 = vrot.slane %v5478, 5
    %v5481 = vor.u32 %v5477, %v5480
    %v5482 = vrot.slane %v5481, 4
    %v5484 = vshll.u32 %v5432, 16
    %v5486 = vrot.slane %v5484, 5
    %v5487 = vsel %vm427, %v5482, %v5486
    %v5489 = vshrl.u32 %v5417, 16
    %v5491 = vrot.slane %v5489, 4
    %v5492 = vshll.u32 %v5417, 16
    %v5494 = vrot.slane %v5492, 5
    %v5495 = vor.u32 %v5491, %v5494
    %v5496 = vrot.slane %v5495, 4
    %v5498 = vshll.u32 %v5433, 16
    %v5500 = vrot.slane %v5498, 5
    %v5501 = vsel %vm427, %v5496, %v5500
    %v5503 = vshrl.u32 %v5418, 16
    %v5505 = vrot.slane %v5503, 4
    %v5506 = vshll.u32 %v5418, 16
    %v5508 = vrot.slane %v5506, 5
    %v5509 = vor.u32 %v5505, %v5508
    %v5510 = vrot.slane %v5509, 4
    %v5512 = vshll.u32 %v5434, 16
    %v5514 = vrot.slane %v5512, 5
    %v5515 = vsel %vm427, %v5510, %v5514
    %v5517 = vshrl.u32 %v5419, 16
    %v5519 = vrot.slane %v5517, 4
    %v5520 = vshll.u32 %v5419, 16
    %v5522 = vrot.slane %v5520, 5
    %v5523 = vor.u32 %v5519, %v5522
    %v5524 = vrot.slane %v5523, 4
    %v5526 = vshll.u32 %v5435, 16
    %v5528 = vrot.slane %v5526, 5
    %v5529 = vsel %vm427, %v5524, %v5528
    %v5531 = vshrl.u32 %v5420, 16
    %v5533 = vrot.slane %v5531, 4
    %v5534 = vshll.u32 %v5420, 16
    %v5536 = vrot.slane %v5534, 5
    %v5537 = vor.u32 %v5533, %v5536
    %v5538 = vrot.slane %v5537, 4
    %v5540 = vshll.u32 %v5436, 16
    %v5542 = vrot.slane %v5540, 5
    %v5543 = vsel %vm427, %v5538, %v5542
    %v5545 = vshrl.u32 %v5421, 16
    %v5547 = vrot.slane %v5545, 4
    %v5548 = vshll.u32 %v5421, 16
    %v5550 = vrot.slane %v5548, 5
    %v5551 = vor.u32 %v5547, %v5550
    %v5552 = vrot.slane %v5551, 4
    %v5554 = vshll.u32 %v5437, 16
    %v5556 = vrot.slane %v5554, 5
    %v5557 = vsel %vm427, %v5552, %v5556
    %v5559 = vshrl.u32 %v5422, 16
    %v5561 = vrot.slane %v5559, 4
    %v5562 = vshll.u32 %v5422, 16
    %v5564 = vrot.slane %v5562, 5
    %v5565 = vor.u32 %v5561, %v5564
    %v5566 = vrot.slane %v5565, 4
    %v5568 = vshll.u32 %v5438, 16
    %v5570 = vrot.slane %v5568, 5
    %v5571 = vsel %vm427, %v5566, %v5570
    %v5573 = vshrl.u32 %v5423, 16
    %v5575 = vrot.slane %v5573, 4
    %v5576 = vshll.u32 %v5423, 16
    %v5578 = vrot.slane %v5576, 5
    %v5579 = vor.u32 %v5575, %v5578
    %v5580 = vrot.slane %v5579, 4
    %v5582 = vshll.u32 %v5439, 16
    %v5584 = vrot.slane %v5582, 5
    %v5585 = vsel %vm427, %v5580, %v5584
    %v5587 = vshrl.u32 %v5424, 16
    %v5589 = vrot.slane %v5587, 4
    %v5590 = vshll.u32 %v5424, 16
    %v5592 = vrot.slane %v5590, 5
    %v5593 = vor.u32 %v5589, %v5592
    %v5594 = vrot.slane %v5593, 4
    %v5596 = vshll.u32 %v5440, 16
    %v5598 = vrot.slane %v5596, 5
    %v5599 = vsel %vm427, %v5594, %v5598
    %v5601 = vshrl.u32 %v5425, 16
    %v5603 = vrot.slane %v5601, 4
    %v5604 = vshll.u32 %v5425, 16
    %v5606 = vrot.slane %v5604, 5
    %v5607 = vor.u32 %v5603, %v5606
    %v5608 = vrot.slane %v5607, 4
    %v5610 = vshll.u32 %v5441, 16
    %v5612 = vrot.slane %v5610, 5
    %v5613 = vsel %vm427, %v5608, %v5612
    %v5615 = vshrl.u32 %v5426, 16
    %v5617 = vrot.slane %v5615, 4
    %v5618 = vshll.u32 %v5426, 16
    %v5620 = vrot.slane %v5618, 5
    %v5621 = vor.u32 %v5617, %v5620
    %v5622 = vrot.slane %v5621, 4
    %v5624 = vshll.u32 %v5442, 16
    %v5626 = vrot.slane %v5624, 5
    %v5627 = vsel %vm427, %v5622, %v5626
    %v5629 = vshrl.u32 %v5427, 16
    %v5631 = vrot.slane %v5629, 4
    %v5632 = vshll.u32 %v5427, 16
    %v5634 = vrot.slane %v5632, 5
    %v5635 = vor.u32 %v5631, %v5634
    %v5636 = vrot.slane %v5635, 4
    %v5638 = vshll.u32 %v5443, 16
    %v5640 = vrot.slane %v5638, 5
    %v5641 = vsel %vm427, %v5636, %v5640
    %v5643 = vshrl.u32 %v5428, 16
    %v5645 = vrot.slane %v5643, 4
    %v5646 = vshll.u32 %v5428, 16
    %v5648 = vrot.slane %v5646, 5
    %v5649 = vor.u32 %v5645, %v5648
    %v5650 = vrot.slane %v5649, 4
    %v5652 = vshll.u32 %v5444, 16
    %v5654 = vrot.slane %v5652, 5
    %v5655 = vsel %vm427, %v5650, %v5654
    %v5657 = vshrl.u32 %v5429, 16
    %v5659 = vrot.slane %v5657, 4
    %v5660 = vshll.u32 %v5429, 16
    %v5662 = vrot.slane %v5660, 5
    %v5663 = vor.u32 %v5659, %v5662
    %v5664 = vrot.slane %v5663, 4
    %v5666 = vshll.u32 %v5445, 16
    %v5668 = vrot.slane %v5666, 5
    %v5669 = vsel %vm427, %v5664, %v5668
    %v5670 = vld [vmem:[%s4949] sm:$0xe]
    %v5671 = vld [vmem:[%s4949 + $0x8] sm:$0xe]
    %v5672 = vld [vmem:[%s4949 + $0x10] sm:$0xe]
    %v5673 = vld [vmem:[%s4949 + $0x18] sm:$0xe]
    %v5674 = vld [vmem:[%s4949 + $0x20] sm:$0xe]
    %v5675 = vld [vmem:[%s4949 + $0x28] sm:$0xe]
    %v5676 = vld [vmem:[%s4949 + $0x30] sm:$0xe]
    %v5677 = vld [vmem:[%s4949 + $0x38] sm:$0xe]
    %v5678 = vld [vmem:[%s4949 + $0x50] sm:$0xe]
    %v5679 = vld [vmem:[%s4949 + $0x58] sm:$0xe]
    %v5680 = vld [vmem:[%s4949 + $0x60] sm:$0xe]
    %v5681 = vld [vmem:[%s4949 + $0x68] sm:$0xe]
    %v5682 = vld [vmem:[%s4949 + $0x70] sm:$0xe]
    %v5683 = vld [vmem:[%s4949 + $0x78] sm:$0xe]
    %v5684 = vld [vmem:[%s4949 + $0x80] sm:$0xe]
    %v5685 = vld [vmem:[%s4949 + $0x88] sm:$0xe]
    %v5718 = vrot.slane %v5670, 5
    %v5719 = vrot.slane %v5718, 4
    %v5720 = vrot.slane %v5430, 5
    %v5721 = vsel %vm702, %v5719, %v5720
    %v5722 = vrot.slane %v5671, 5
    %v5723 = vrot.slane %v5722, 4
    %v5724 = vrot.slane %v5431, 5
    %v5725 = vsel %vm702, %v5723, %v5724
    %v5726 = vrot.slane %v5672, 5
    %v5727 = vrot.slane %v5726, 4
    %v5728 = vrot.slane %v5432, 5
    %v5729 = vsel %vm702, %v5727, %v5728
    %v5730 = vrot.slane %v5673, 5
    %v5731 = vrot.slane %v5730, 4
    %v5732 = vrot.slane %v5433, 5
    %v5733 = vsel %vm702, %v5731, %v5732
    %v5734 = vrot.slane %v5674, 5
    %v5735 = vrot.slane %v5734, 4
    %v5736 = vrot.slane %v5434, 5
    %v5737 = vsel %vm702, %v5735, %v5736
    %v5738 = vrot.slane %v5675, 5
    %v5739 = vrot.slane %v5738, 4
    %v5740 = vrot.slane %v5435, 5
    %v5741 = vsel %vm702, %v5739, %v5740
    %v5742 = vrot.slane %v5676, 5
    %v5743 = vrot.slane %v5742, 4
    %v5744 = vrot.slane %v5436, 5
    %v5745 = vsel %vm702, %v5743, %v5744
    %v5746 = vrot.slane %v5677, 5
    %v5747 = vrot.slane %v5746, 4
    %v5748 = vrot.slane %v5437, 5
    %v5749 = vsel %vm702, %v5747, %v5748
    %v5750 = vrot.slane %v5678, 5
    %v5751 = vrot.slane %v5750, 4
    %v5752 = vrot.slane %v5438, 5
    %v5753 = vsel %vm702, %v5751, %v5752
    %v5754 = vrot.slane %v5679, 5
    %v5755 = vrot.slane %v5754, 4
    %v5756 = vrot.slane %v5439, 5
    %v5757 = vsel %vm702, %v5755, %v5756
    %v5758 = vrot.slane %v5680, 5
    %v5759 = vrot.slane %v5758, 4
    %v5760 = vrot.slane %v5440, 5
    %v5761 = vsel %vm702, %v5759, %v5760
    %v5762 = vrot.slane %v5681, 5
    %v5763 = vrot.slane %v5762, 4
    %v5764 = vrot.slane %v5441, 5
    %v5765 = vsel %vm702, %v5763, %v5764
    %v5766 = vrot.slane %v5682, 5
    %v5767 = vrot.slane %v5766, 4
    %v5768 = vrot.slane %v5442, 5
    %v5769 = vsel %vm702, %v5767, %v5768
    %v5770 = vrot.slane %v5683, 5
    %v5771 = vrot.slane %v5770, 4
    %v5772 = vrot.slane %v5443, 5
    %v5773 = vsel %vm702, %v5771, %v5772
    %v5774 = vrot.slane %v5684, 5
    %v5775 = vrot.slane %v5774, 4
    %v5776 = vrot.slane %v5444, 5
    %v5777 = vsel %vm702, %v5775, %v5776
    %v5778 = vrot.slane %v5685, 5
    %v5779 = vrot.slane %v5778, 4
    %v5780 = vrot.slane %v5445, 5
    %v5781 = vsel %vm702, %v5779, %v5780
    %s5782 = scalar_lea.vmem [#allocation3], 16
    %v5783 = vld [vmem:[%s5782] sm:$0xf]
    %v5784 = vld [vmem:[%s5782 + $0x8] sm:$0xf]
    %v5785 = vld [vmem:[%s5782 + $0x10] sm:$0xf]
    %v5786 = vld [vmem:[%s5782 + $0x18] sm:$0xf]
    %v5787 = vld [vmem:[%s5782 + $0x20] sm:$0xf]
    %v5788 = vld [vmem:[%s5782 + $0x28] sm:$0xf]
    %v5789 = vld [vmem:[%s5782 + $0x30] sm:$0xf]
    %v5790 = vld [vmem:[%s5782 + $0x38] sm:$0xf]
    %v5791 = vld [vmem:[%s5782 + $0x50] sm:$0xf]
    %v5792 = vld [vmem:[%s5782 + $0x58] sm:$0xf]
    %v5793 = vld [vmem:[%s5782 + $0x60] sm:$0xf]
    %v5794 = vld [vmem:[%s5782 + $0x68] sm:$0xf]
    %v5795 = vld [vmem:[%s5782 + $0x70] sm:$0xf]
    %v5796 = vld [vmem:[%s5782 + $0x78] sm:$0xf]
    %v5797 = vld [vmem:[%s5782 + $0x80] sm:$0xf]
    %v5798 = vld [vmem:[%s5782 + $0x88] sm:$0xf]
    %v5799 = vld [vmem:[%s5782 + $0x4] sm:$0x1]
    %v5800 = vld [vmem:[%s5782 + $0xc] sm:$0x1]
    %v5801 = vld [vmem:[%s5782 + $0x14] sm:$0x1]
    %v5802 = vld [vmem:[%s5782 + $0x1c] sm:$0x1]
    %v5803 = vld [vmem:[%s5782 + $0x24] sm:$0x1]
    %v5804 = vld [vmem:[%s5782 + $0x2c] sm:$0x1]
    %v5805 = vld [vmem:[%s5782 + $0x34] sm:$0x1]
    %v5806 = vld [vmem:[%s5782 + $0x3c] sm:$0x1]
    %v5807 = vld [vmem:[%s5782 + $0x54] sm:$0x1]
    %v5808 = vld [vmem:[%s5782 + $0x5c] sm:$0x1]
    %v5809 = vld [vmem:[%s5782 + $0x64] sm:$0x1]
    %v5810 = vld [vmem:[%s5782 + $0x6c] sm:$0x1]
    %v5811 = vld [vmem:[%s5782 + $0x74] sm:$0x1]
    %v5812 = vld [vmem:[%s5782 + $0x7c] sm:$0x1]
    %v5813 = vld [vmem:[%s5782 + $0x84] sm:$0x1]
    %v5814 = vld [vmem:[%s5782 + $0x8c] sm:$0x1]
    %v5816 = vshrl.u32 %v5783, 16
    %v5818 = vrot.slane %v5816, 4
    %v5819 = vshll.u32 %v5783, 16
    %v5821 = vrot.slane %v5819, 5
    %v5822 = vor.u32 %v5818, %v5821
    %v5823 = vrot.slane %v5822, 4
    %v5825 = vshll.u32 %v5799, 16
    %v5827 = vrot.slane %v5825, 5
    %v5828 = vsel %vm427, %v5823, %v5827
    %v5830 = vshrl.u32 %v5784, 16
    %v5832 = vrot.slane %v5830, 4
    %v5833 = vshll.u32 %v5784, 16
    %v5835 = vrot.slane %v5833, 5
    %v5836 = vor.u32 %v5832, %v5835
    %v5837 = vrot.slane %v5836, 4
    %v5839 = vshll.u32 %v5800, 16
    %v5841 = vrot.slane %v5839, 5
    %v5842 = vsel %vm427, %v5837, %v5841
    %v5844 = vshrl.u32 %v5785, 16
    %v5846 = vrot.slane %v5844, 4
    %v5847 = vshll.u32 %v5785, 16
    %v5849 = vrot.slane %v5847, 5
    %v5850 = vor.u32 %v5846, %v5849
    %v5851 = vrot.slane %v5850, 4
    %v5853 = vshll.u32 %v5801, 16
    %v5855 = vrot.slane %v5853, 5
    %v5856 = vsel %vm427, %v5851, %v5855
    %v5858 = vshrl.u32 %v5786, 16
    %v5860 = vrot.slane %v5858, 4
    %v5861 = vshll.u32 %v5786, 16
    %v5863 = vrot.slane %v5861, 5
    %v5864 = vor.u32 %v5860, %v5863
    %v5865 = vrot.slane %v5864, 4
    %v5867 = vshll.u32 %v5802, 16
    %v5869 = vrot.slane %v5867, 5
    %v5870 = vsel %vm427, %v5865, %v5869
    %v5872 = vshrl.u32 %v5787, 16
    %v5874 = vrot.slane %v5872, 4
    %v5875 = vshll.u32 %v5787, 16
    %v5877 = vrot.slane %v5875, 5
    %v5878 = vor.u32 %v5874, %v5877
    %v5879 = vrot.slane %v5878, 4
    %v5881 = vshll.u32 %v5803, 16
    %v5883 = vrot.slane %v5881, 5
    %v5884 = vsel %vm427, %v5879, %v5883
    %v5886 = vshrl.u32 %v5788, 16
    %v5888 = vrot.slane %v5886, 4
    %v5889 = vshll.u32 %v5788, 16
    %v5891 = vrot.slane %v5889, 5
    %v5892 = vor.u32 %v5888, %v5891
    %v5893 = vrot.slane %v5892, 4
    %v5895 = vshll.u32 %v5804, 16
    %v5897 = vrot.slane %v5895, 5
    %v5898 = vsel %vm427, %v5893, %v5897
    %v5900 = vshrl.u32 %v5789, 16
    %v5902 = vrot.slane %v5900, 4
    %v5903 = vshll.u32 %v5789, 16
    %v5905 = vrot.slane %v5903, 5
    %v5906 = vor.u32 %v5902, %v5905
    %v5907 = vrot.slane %v5906, 4
    %v5909 = vshll.u32 %v5805, 16
    %v5911 = vrot.slane %v5909, 5
    %v5912 = vsel %vm427, %v5907, %v5911
    %v5914 = vshrl.u32 %v5790, 16
    %v5916 = vrot.slane %v5914, 4
    %v5917 = vshll.u32 %v5790, 16
    %v5919 = vrot.slane %v5917, 5
    %v5920 = vor.u32 %v5916, %v5919
    %v5921 = vrot.slane %v5920, 4
    %v5923 = vshll.u32 %v5806, 16
    %v5925 = vrot.slane %v5923, 5
    %v5926 = vsel %vm427, %v5921, %v5925
    %v5928 = vshrl.u32 %v5791, 16
    %v5930 = vrot.slane %v5928, 4
    %v5931 = vshll.u32 %v5791, 16
    %v5933 = vrot.slane %v5931, 5
    %v5934 = vor.u32 %v5930, %v5933
    %v5935 = vrot.slane %v5934, 4
    %v5937 = vshll.u32 %v5807, 16
    %v5939 = vrot.slane %v5937, 5
    %v5940 = vsel %vm427, %v5935, %v5939
    %v5942 = vshrl.u32 %v5792, 16
    %v5944 = vrot.slane %v5942, 4
    %v5945 = vshll.u32 %v5792, 16
    %v5947 = vrot.slane %v5945, 5
    %v5948 = vor.u32 %v5944, %v5947
    %v5949 = vrot.slane %v5948, 4
    %v5951 = vshll.u32 %v5808, 16
    %v5953 = vrot.slane %v5951, 5
    %v5954 = vsel %vm427, %v5949, %v5953
    %v5956 = vshrl.u32 %v5793, 16
    %v5958 = vrot.slane %v5956, 4
    %v5959 = vshll.u32 %v5793, 16
    %v5961 = vrot.slane %v5959, 5
    %v5962 = vor.u32 %v5958, %v5961
    %v5963 = vrot.slane %v5962, 4
    %v5965 = vshll.u32 %v5809, 16
    %v5967 = vrot.slane %v5965, 5
    %v5968 = vsel %vm427, %v5963, %v5967
    %v5970 = vshrl.u32 %v5794, 16
    %v5972 = vrot.slane %v5970, 4
    %v5973 = vshll.u32 %v5794, 16
    %v5975 = vrot.slane %v5973, 5
    %v5976 = vor.u32 %v5972, %v5975
    %v5977 = vrot.slane %v5976, 4
    %v5979 = vshll.u32 %v5810, 16
    %v5981 = vrot.slane %v5979, 5
    %v5982 = vsel %vm427, %v5977, %v5981
    %v5984 = vshrl.u32 %v5795, 16
    %v5986 = vrot.slane %v5984, 4
    %v5987 = vshll.u32 %v5795, 16
    %v5989 = vrot.slane %v5987, 5
    %v5990 = vor.u32 %v5986, %v5989
    %v5991 = vrot.slane %v5990, 4
    %v5993 = vshll.u32 %v5811, 16
    %v5995 = vrot.slane %v5993, 5
    %v5996 = vsel %vm427, %v5991, %v5995
    %v5998 = vshrl.u32 %v5796, 16
    %v6000 = vrot.slane %v5998, 4
    %v6001 = vshll.u32 %v5796, 16
    %v6003 = vrot.slane %v6001, 5
    %v6004 = vor.u32 %v6000, %v6003
    %v6005 = vrot.slane %v6004, 4
    %v6007 = vshll.u32 %v5812, 16
    %v6009 = vrot.slane %v6007, 5
    %v6010 = vsel %vm427, %v6005, %v6009
    %v6012 = vshrl.u32 %v5797, 16
    %v6014 = vrot.slane %v6012, 4
    %v6015 = vshll.u32 %v5797, 16
    %v6017 = vrot.slane %v6015, 5
    %v6018 = vor.u32 %v6014, %v6017
    %v6019 = vrot.slane %v6018, 4
    %v6021 = vshll.u32 %v5813, 16
    %v6023 = vrot.slane %v6021, 5
    %v6024 = vsel %vm427, %v6019, %v6023
    %v6026 = vshrl.u32 %v5798, 16
    %v6028 = vrot.slane %v6026, 4
    %v6029 = vshll.u32 %v5798, 16
    %v6031 = vrot.slane %v6029, 5
    %v6032 = vor.u32 %v6028, %v6031
    %v6033 = vrot.slane %v6032, 4
    %v6035 = vshll.u32 %v5814, 16
    %v6037 = vrot.slane %v6035, 5
    %v6038 = vsel %vm427, %v6033, %v6037
    %v6039 = vld [vmem:[%s5782] sm:$0xe]
    %v6040 = vld [vmem:[%s5782 + $0x8] sm:$0xe]
    %v6041 = vld [vmem:[%s5782 + $0x10] sm:$0xe]
    %v6042 = vld [vmem:[%s5782 + $0x18] sm:$0xe]
    %v6043 = vld [vmem:[%s5782 + $0x20] sm:$0xe]
    %v6044 = vld [vmem:[%s5782 + $0x28] sm:$0xe]
    %v6045 = vld [vmem:[%s5782 + $0x30] sm:$0xe]
    %v6046 = vld [vmem:[%s5782 + $0x38] sm:$0xe]
    %v6047 = vld [vmem:[%s5782 + $0x50] sm:$0xe]
    %v6048 = vld [vmem:[%s5782 + $0x58] sm:$0xe]
    %v6049 = vld [vmem:[%s5782 + $0x60] sm:$0xe]
    %v6050 = vld [vmem:[%s5782 + $0x68] sm:$0xe]
    %v6051 = vld [vmem:[%s5782 + $0x70] sm:$0xe]
    %v6052 = vld [vmem:[%s5782 + $0x78] sm:$0xe]
    %v6053 = vld [vmem:[%s5782 + $0x80] sm:$0xe]
    %v6054 = vld [vmem:[%s5782 + $0x88] sm:$0xe]
    %v6087 = vrot.slane %v6039, 5
    %v6088 = vrot.slane %v6087, 4
    %v6089 = vrot.slane %v5799, 5
    %v6090 = vsel %vm702, %v6088, %v6089
    %v6091 = vrot.slane %v6040, 5
    %v6092 = vrot.slane %v6091, 4
    %v6093 = vrot.slane %v5800, 5
    %v6094 = vsel %vm702, %v6092, %v6093
    %v6095 = vrot.slane %v6041, 5
    %v6096 = vrot.slane %v6095, 4
    %v6097 = vrot.slane %v5801, 5
    %v6098 = vsel %vm702, %v6096, %v6097
    %v6099 = vrot.slane %v6042, 5
    %v6100 = vrot.slane %v6099, 4
    %v6101 = vrot.slane %v5802, 5
    %v6102 = vsel %vm702, %v6100, %v6101
    %v6103 = vrot.slane %v6043, 5
    %v6104 = vrot.slane %v6103, 4
    %v6105 = vrot.slane %v5803, 5
    %v6106 = vsel %vm702, %v6104, %v6105
    %v6107 = vrot.slane %v6044, 5
    %v6108 = vrot.slane %v6107, 4
    %v6109 = vrot.slane %v5804, 5
    %v6110 = vsel %vm702, %v6108, %v6109
    %v6111 = vrot.slane %v6045, 5
    %v6112 = vrot.slane %v6111, 4
    %v6113 = vrot.slane %v5805, 5
    %v6114 = vsel %vm702, %v6112, %v6113
    %v6115 = vrot.slane %v6046, 5
    %v6116 = vrot.slane %v6115, 4
    %v6117 = vrot.slane %v5806, 5
    %v6118 = vsel %vm702, %v6116, %v6117
    %v6119 = vrot.slane %v6047, 5
    %v6120 = vrot.slane %v6119, 4
    %v6121 = vrot.slane %v5807, 5
    %v6122 = vsel %vm702, %v6120, %v6121
    %v6123 = vrot.slane %v6048, 5
    %v6124 = vrot.slane %v6123, 4
    %v6125 = vrot.slane %v5808, 5
    %v6126 = vsel %vm702, %v6124, %v6125
    %v6127 = vrot.slane %v6049, 5
    %v6128 = vrot.slane %v6127, 4
    %v6129 = vrot.slane %v5809, 5
    %v6130 = vsel %vm702, %v6128, %v6129
    %v6131 = vrot.slane %v6050, 5
    %v6132 = vrot.slane %v6131, 4
    %v6133 = vrot.slane %v5810, 5
    %v6134 = vsel %vm702, %v6132, %v6133
    %v6135 = vrot.slane %v6051, 5
    %v6136 = vrot.slane %v6135, 4
    %v6137 = vrot.slane %v5811, 5
    %v6138 = vsel %vm702, %v6136, %v6137
    %v6139 = vrot.slane %v6052, 5
    %v6140 = vrot.slane %v6139, 4
    %v6141 = vrot.slane %v5812, 5
    %v6142 = vsel %vm702, %v6140, %v6141
    %v6143 = vrot.slane %v6053, 5
    %v6144 = vrot.slane %v6143, 4
    %v6145 = vrot.slane %v5813, 5
    %v6146 = vsel %vm702, %v6144, %v6145
    %v6147 = vrot.slane %v6054, 5
    %v6148 = vrot.slane %v6147, 4
    %v6149 = vrot.slane %v5814, 5
    %v6150 = vsel %vm702, %v6148, %v6149
    %v6167 = vunpack.c.l.b16 %v5046
    %v6168 = vunpack.c.l.b16 %v5047
    %v6169 = vunpack.c.l.b16 %v5048
    %v6170 = vunpack.c.l.b16 %v5049
    %v6171 = vunpack.c.l.b16 %v5050
    %v6172 = vunpack.c.l.b16 %v5051
    %v6173 = vunpack.c.l.b16 %v5052
    %v6174 = vunpack.c.l.b16 %v5053
    %v6175 = vunpack.c.l.b16 %v5054
    %v6176 = vunpack.c.l.b16 %v5055
    %v6177 = vunpack.c.l.b16 %v5056
    %v6178 = vunpack.c.l.b16 %v5057
    %v6179 = vunpack.c.l.b16 %v5058
    %v6180 = vunpack.c.l.b16 %v5059
    %v6181 = vunpack.c.l.b16 %v5060
    %v6182 = vunpack.c.l.b16 %v5061
    %v6183 = vpack.c.b16 %v6168, %v6167
    %v6184 = vpack.c.b16 %v6170, %v6169
    %v6185 = vpack.c.b16 %v6172, %v6171
    %v6186 = vpack.c.b16 %v6174, %v6173
    %v6187 = vpack.c.b16 %v6176, %v6175
    %v6188 = vpack.c.b16 %v6178, %v6177
    %v6189 = vpack.c.b16 %v6180, %v6179
    %v6190 = vpack.c.b16 %v6182, %v6181
    %v6191 = vunpack.c.l.b16 %v5091
    %v6192 = vunpack.c.l.b16 %v5105
    %v6193 = vunpack.c.l.b16 %v5119
    %v6194 = vunpack.c.l.b16 %v5133
    %v6195 = vunpack.c.l.b16 %v5147
    %v6196 = vunpack.c.l.b16 %v5161
    %v6197 = vunpack.c.l.b16 %v5175
    %v6198 = vunpack.c.l.b16 %v5189
    %v6199 = vunpack.c.l.b16 %v5203
    %v6200 = vunpack.c.l.b16 %v5217
    %v6201 = vunpack.c.l.b16 %v5231
    %v6202 = vunpack.c.l.b16 %v5245
    %v6203 = vunpack.c.l.b16 %v5259
    %v6204 = vunpack.c.l.b16 %v5273
    %v6205 = vunpack.c.l.b16 %v5287
    %v6206 = vunpack.c.l.b16 %v5301
    %v6207 = vpack.c.b16 %v6192, %v6191
    %v6208 = vpack.c.b16 %v6194, %v6193
    %v6209 = vpack.c.b16 %v6196, %v6195
    %v6210 = vpack.c.b16 %v6198, %v6197
    %v6211 = vpack.c.b16 %v6200, %v6199
    %v6212 = vpack.c.b16 %v6202, %v6201
    %v6213 = vpack.c.b16 %v6204, %v6203
    %v6214 = vpack.c.b16 %v6206, %v6205
    %6215 = vrot.lane.b32.xlu0 %v6207, 32
    %v6216 = vpop.permute.xlu0 %6215
    %6217 = vrot.lane.b32.xlu0 %v6208, 32
    %v6218 = vpop.permute.xlu0 %6217
    %6219 = vrot.lane.b32.xlu0 %v6209, 32
    %v6220 = vpop.permute.xlu0 %6219
    %6221 = vrot.lane.b32.xlu0 %v6210, 32
    %v6222 = vpop.permute.xlu0 %6221
    %6223 = vrot.lane.b32.xlu0 %v6211, 32
    %v6224 = vpop.permute.xlu0 %6223
    %6225 = vrot.lane.b32.xlu0 %v6212, 32
    %v6226 = vpop.permute.xlu0 %6225
    %6227 = vrot.lane.b32.xlu0 %v6213, 32
    %v6228 = vpop.permute.xlu0 %6227
    %6229 = vrot.lane.b32.xlu0 %v6214, 32
    %v6230 = vpop.permute.xlu0 %6229
    %v6231 = vunpack.c.l.b16 %v5353
    %v6232 = vunpack.c.l.b16 %v5357
    %v6233 = vunpack.c.l.b16 %v5361
    %v6234 = vunpack.c.l.b16 %v5365
    %v6235 = vunpack.c.l.b16 %v5369
    %v6236 = vunpack.c.l.b16 %v5373
    %v6237 = vunpack.c.l.b16 %v5377
    %v6238 = vunpack.c.l.b16 %v5381
    %v6239 = vunpack.c.l.b16 %v5385
    %v6240 = vunpack.c.l.b16 %v5389
    %v6241 = vunpack.c.l.b16 %v5393
    %v6242 = vunpack.c.l.b16 %v5397
    %v6243 = vunpack.c.l.b16 %v5401
    %v6244 = vunpack.c.l.b16 %v5405
    %v6245 = vunpack.c.l.b16 %v5409
    %v6246 = vunpack.c.l.b16 %v5413
    %v6247 = vpack.c.b16 %v6232, %v6231
    %v6248 = vpack.c.b16 %v6234, %v6233
    %v6249 = vpack.c.b16 %v6236, %v6235
    %v6250 = vpack.c.b16 %v6238, %v6237
    %v6251 = vpack.c.b16 %v6240, %v6239
    %v6252 = vpack.c.b16 %v6242, %v6241
    %v6253 = vpack.c.b16 %v6244, %v6243
    %v6254 = vpack.c.b16 %v6246, %v6245
    %6255 = vrot.lane.b32.xlu0 %v6247, 64
    %v6256 = vpop.permute.xlu0 %6255
    %6257 = vrot.lane.b32.xlu0 %v6248, 64
    %v6258 = vpop.permute.xlu0 %6257
    %6259 = vrot.lane.b32.xlu0 %v6249, 64
    %v6260 = vpop.permute.xlu0 %6259
    %6261 = vrot.lane.b32.xlu0 %v6250, 64
    %v6262 = vpop.permute.xlu0 %6261
    %6263 = vrot.lane.b32.xlu0 %v6251, 64
    %v6264 = vpop.permute.xlu0 %6263
    %6265 = vrot.lane.b32.xlu0 %v6252, 64
    %v6266 = vpop.permute.xlu0 %6265
    %6267 = vrot.lane.b32.xlu0 %v6253, 64
    %v6268 = vpop.permute.xlu0 %6267
    %6269 = vrot.lane.b32.xlu0 %v6254, 64
    %v6270 = vpop.permute.xlu0 %6269
    %v6287 = vunpack.c.l.b16 %v5414
    %v6288 = vunpack.c.l.b16 %v5415
    %v6289 = vunpack.c.l.b16 %v5416
    %v6290 = vunpack.c.l.b16 %v5417
    %v6291 = vunpack.c.l.b16 %v5418
    %v6292 = vunpack.c.l.b16 %v5419
    %v6293 = vunpack.c.l.b16 %v5420
    %v6294 = vunpack.c.l.b16 %v5421
    %v6295 = vunpack.c.l.b16 %v5422
    %v6296 = vunpack.c.l.b16 %v5423
    %v6297 = vunpack.c.l.b16 %v5424
    %v6298 = vunpack.c.l.b16 %v5425
    %v6299 = vunpack.c.l.b16 %v5426
    %v6300 = vunpack.c.l.b16 %v5427
    %v6301 = vunpack.c.l.b16 %v5428
    %v6302 = vunpack.c.l.b16 %v5429
    %v6303 = vpack.c.b16 %v6288, %v6287
    %v6304 = vpack.c.b16 %v6290, %v6289
    %v6305 = vpack.c.b16 %v6292, %v6291
    %v6306 = vpack.c.b16 %v6294, %v6293
    %v6307 = vpack.c.b16 %v6296, %v6295
    %v6308 = vpack.c.b16 %v6298, %v6297
    %v6309 = vpack.c.b16 %v6300, %v6299
    %v6310 = vpack.c.b16 %v6302, %v6301
    %6311 = vrot.lane.b32.xlu0 %v6303, 96
    %v6312 = vpop.permute.xlu0 %6311
    %6313 = vrot.lane.b32.xlu0 %v6304, 96
    %v6314 = vpop.permute.xlu0 %6313
    %6315 = vrot.lane.b32.xlu0 %v6305, 96
    %v6316 = vpop.permute.xlu0 %6315
    %6317 = vrot.lane.b32.xlu0 %v6306, 96
    %v6318 = vpop.permute.xlu0 %6317
    %6319 = vrot.lane.b32.xlu0 %v6307, 96
    %v6320 = vpop.permute.xlu0 %6319
    %6321 = vrot.lane.b32.xlu0 %v6308, 96
    %v6322 = vpop.permute.xlu0 %6321
    %6323 = vrot.lane.b32.xlu0 %v6309, 96
    %v6324 = vpop.permute.xlu0 %6323
    %6325 = vrot.lane.b32.xlu0 %v6310, 96
    %v6326 = vpop.permute.xlu0 %6325
    %v6327 = vunpack.c.l.b16 %v5459
    %v6328 = vunpack.c.l.b16 %v5473
    %v6329 = vunpack.c.l.b16 %v5487
    %v6330 = vunpack.c.l.b16 %v5501
    %v6331 = vunpack.c.l.b16 %v5515
    %v6332 = vunpack.c.l.b16 %v5529
    %v6333 = vunpack.c.l.b16 %v5543
    %v6334 = vunpack.c.l.b16 %v5557
    %v6335 = vunpack.c.l.b16 %v5571
    %v6336 = vunpack.c.l.b16 %v5585
    %v6337 = vunpack.c.l.b16 %v5599
    %v6338 = vunpack.c.l.b16 %v5613
    %v6339 = vunpack.c.l.b16 %v5627
    %v6340 = vunpack.c.l.b16 %v5641
    %v6341 = vunpack.c.l.b16 %v5655
    %v6342 = vunpack.c.l.b16 %v5669
    %v6343 = vpack.c.b16 %v6328, %v6327
    %v6344 = vpack.c.b16 %v6330, %v6329
    %v6345 = vpack.c.b16 %v6332, %v6331
    %v6346 = vpack.c.b16 %v6334, %v6333
    %v6347 = vpack.c.b16 %v6336, %v6335
    %v6348 = vpack.c.b16 %v6338, %v6337
    %v6349 = vpack.c.b16 %v6340, %v6339
    %v6350 = vpack.c.b16 %v6342, %v6341
    %v6351 = vunpack.c.l.b16 %v5721
    %v6352 = vunpack.c.l.b16 %v5725
    %v6353 = vunpack.c.l.b16 %v5729
    %v6354 = vunpack.c.l.b16 %v5733
    %v6355 = vunpack.c.l.b16 %v5737
    %v6356 = vunpack.c.l.b16 %v5741
    %v6357 = vunpack.c.l.b16 %v5745
    %v6358 = vunpack.c.l.b16 %v5749
    %v6359 = vunpack.c.l.b16 %v5753
    %v6360 = vunpack.c.l.b16 %v5757
    %v6361 = vunpack.c.l.b16 %v5761
    %v6362 = vunpack.c.l.b16 %v5765
    %v6363 = vunpack.c.l.b16 %v5769
    %v6364 = vunpack.c.l.b16 %v5773
    %v6365 = vunpack.c.l.b16 %v5777
    %v6366 = vunpack.c.l.b16 %v5781
    %v6367 = vpack.c.b16 %v6352, %v6351
    %v6368 = vpack.c.b16 %v6354, %v6353
    %v6369 = vpack.c.b16 %v6356, %v6355
    %v6370 = vpack.c.b16 %v6358, %v6357
    %v6371 = vpack.c.b16 %v6360, %v6359
    %v6372 = vpack.c.b16 %v6362, %v6361
    %v6373 = vpack.c.b16 %v6364, %v6363
    %v6374 = vpack.c.b16 %v6366, %v6365
    %6375 = vrot.lane.b32.xlu0 %v6367, 32
    %v6376 = vpop.permute.xlu0 %6375
    %6377 = vrot.lane.b32.xlu0 %v6368, 32
    %v6378 = vpop.permute.xlu0 %6377
    %6379 = vrot.lane.b32.xlu0 %v6369, 32
    %v6380 = vpop.permute.xlu0 %6379
    %6381 = vrot.lane.b32.xlu0 %v6370, 32
    %v6382 = vpop.permute.xlu0 %6381
    %6383 = vrot.lane.b32.xlu0 %v6371, 32
    %v6384 = vpop.permute.xlu0 %6383
    %6385 = vrot.lane.b32.xlu0 %v6372, 32
    %v6386 = vpop.permute.xlu0 %6385
    %6387 = vrot.lane.b32.xlu0 %v6373, 32
    %v6388 = vpop.permute.xlu0 %6387
    %6389 = vrot.lane.b32.xlu0 %v6374, 32
    %v6390 = vpop.permute.xlu0 %6389
    %v6407 = vunpack.c.l.b16 %v5783
    %v6408 = vunpack.c.l.b16 %v5784
    %v6409 = vunpack.c.l.b16 %v5785
    %v6410 = vunpack.c.l.b16 %v5786
    %v6411 = vunpack.c.l.b16 %v5787
    %v6412 = vunpack.c.l.b16 %v5788
    %v6413 = vunpack.c.l.b16 %v5789
    %v6414 = vunpack.c.l.b16 %v5790
    %v6415 = vunpack.c.l.b16 %v5791
    %v6416 = vunpack.c.l.b16 %v5792
    %v6417 = vunpack.c.l.b16 %v5793
    %v6418 = vunpack.c.l.b16 %v5794
    %v6419 = vunpack.c.l.b16 %v5795
    %v6420 = vunpack.c.l.b16 %v5796
    %v6421 = vunpack.c.l.b16 %v5797
    %v6422 = vunpack.c.l.b16 %v5798
    %v6423 = vpack.c.b16 %v6408, %v6407
    %v6424 = vpack.c.b16 %v6410, %v6409
    %v6425 = vpack.c.b16 %v6412, %v6411
    %v6426 = vpack.c.b16 %v6414, %v6413
    %v6427 = vpack.c.b16 %v6416, %v6415
    %v6428 = vpack.c.b16 %v6418, %v6417
    %v6429 = vpack.c.b16 %v6420, %v6419
    %v6430 = vpack.c.b16 %v6422, %v6421
    %6431 = vrot.lane.b32.xlu0 %v6423, 64
    %v6432 = vpop.permute.xlu0 %6431
    %6433 = vrot.lane.b32.xlu0 %v6424, 64
    %v6434 = vpop.permute.xlu0 %6433
    %6435 = vrot.lane.b32.xlu0 %v6425, 64
    %v6436 = vpop.permute.xlu0 %6435
    %6437 = vrot.lane.b32.xlu0 %v6426, 64
    %v6438 = vpop.permute.xlu0 %6437
    %6439 = vrot.lane.b32.xlu0 %v6427, 64
    %v6440 = vpop.permute.xlu0 %6439
    %6441 = vrot.lane.b32.xlu0 %v6428, 64
    %v6442 = vpop.permute.xlu0 %6441
    %6443 = vrot.lane.b32.xlu0 %v6429, 64
    %v6444 = vpop.permute.xlu0 %6443
    %6445 = vrot.lane.b32.xlu0 %v6430, 64
    %v6446 = vpop.permute.xlu0 %6445
    %v6447 = vunpack.c.l.b16 %v5828
    %v6448 = vunpack.c.l.b16 %v5842
    %v6449 = vunpack.c.l.b16 %v5856
    %v6450 = vunpack.c.l.b16 %v5870
    %v6451 = vunpack.c.l.b16 %v5884
    %v6452 = vunpack.c.l.b16 %v5898
    %v6453 = vunpack.c.l.b16 %v5912
    %v6454 = vunpack.c.l.b16 %v5926
    %v6455 = vunpack.c.l.b16 %v5940
    %v6456 = vunpack.c.l.b16 %v5954
    %v6457 = vunpack.c.l.b16 %v5968
    %v6458 = vunpack.c.l.b16 %v5982
    %v6459 = vunpack.c.l.b16 %v5996
    %v6460 = vunpack.c.l.b16 %v6010
    %v6461 = vunpack.c.l.b16 %v6024
    %v6462 = vunpack.c.l.b16 %v6038
    %v6463 = vpack.c.b16 %v6448, %v6447
    %v6464 = vpack.c.b16 %v6450, %v6449
    %v6465 = vpack.c.b16 %v6452, %v6451
    %v6466 = vpack.c.b16 %v6454, %v6453
    %v6467 = vpack.c.b16 %v6456, %v6455
    %v6468 = vpack.c.b16 %v6458, %v6457
    %v6469 = vpack.c.b16 %v6460, %v6459
    %v6470 = vpack.c.b16 %v6462, %v6461
    %6471 = vrot.lane.b32.xlu0 %v6463, 96
    %v6472 = vpop.permute.xlu0 %6471
    %6473 = vrot.lane.b32.xlu0 %v6464, 96
    %v6474 = vpop.permute.xlu0 %6473
    %6475 = vrot.lane.b32.xlu0 %v6465, 96
    %v6476 = vpop.permute.xlu0 %6475
    %6477 = vrot.lane.b32.xlu0 %v6466, 96
    %v6478 = vpop.permute.xlu0 %6477
    %6479 = vrot.lane.b32.xlu0 %v6467, 96
    %v6480 = vpop.permute.xlu0 %6479
    %6481 = vrot.lane.b32.xlu0 %v6468, 96
    %v6482 = vpop.permute.xlu0 %6481
    %6483 = vrot.lane.b32.xlu0 %v6469, 96
    %v6484 = vpop.permute.xlu0 %6483
    %6485 = vrot.lane.b32.xlu0 %v6470, 96
    %v6486 = vpop.permute.xlu0 %6485
    %v6487 = vunpack.c.l.b16 %v6090
    %v6488 = vunpack.c.l.b16 %v6094
    %v6489 = vunpack.c.l.b16 %v6098
    %v6490 = vunpack.c.l.b16 %v6102
    %v6491 = vunpack.c.l.b16 %v6106
    %v6492 = vunpack.c.l.b16 %v6110
    %v6493 = vunpack.c.l.b16 %v6114
    %v6494 = vunpack.c.l.b16 %v6118
    %v6495 = vunpack.c.l.b16 %v6122
    %v6496 = vunpack.c.l.b16 %v6126
    %v6497 = vunpack.c.l.b16 %v6130
    %v6498 = vunpack.c.l.b16 %v6134
    %v6499 = vunpack.c.l.b16 %v6138
    %v6500 = vunpack.c.l.b16 %v6142
    %v6501 = vunpack.c.l.b16 %v6146
    %v6502 = vunpack.c.l.b16 %v6150
    %v6503 = vpack.c.b16 %v6488, %v6487
    %v6504 = vpack.c.b16 %v6490, %v6489
    %v6505 = vpack.c.b16 %v6492, %v6491
    %v6506 = vpack.c.b16 %v6494, %v6493
    %v6507 = vpack.c.b16 %v6496, %v6495
    %v6508 = vpack.c.b16 %v6498, %v6497
    %v6509 = vpack.c.b16 %v6500, %v6499
    %v6510 = vpack.c.b16 %v6502, %v6501
    %v6513 = vsel %vm1864, %v6183, %v6216
    %v6516 = vsel %vm1864, %v6184, %v6218
    %v6519 = vsel %vm1864, %v6185, %v6220
    %v6522 = vsel %vm1864, %v6186, %v6222
    %v6525 = vsel %vm1864, %v6187, %v6224
    %v6528 = vsel %vm1864, %v6188, %v6226
    %v6531 = vsel %vm1864, %v6189, %v6228
    %v6534 = vsel %vm1864, %v6190, %v6230
    %v6536 = vsel %vm1889, %v6513, %v6256
    %v6538 = vsel %vm1889, %v6516, %v6258
    %v6540 = vsel %vm1889, %v6519, %v6260
    %v6542 = vsel %vm1889, %v6522, %v6262
    %v6544 = vsel %vm1889, %v6525, %v6264
    %v6546 = vsel %vm1889, %v6528, %v6266
    %v6548 = vsel %vm1889, %v6531, %v6268
    %v6550 = vsel %vm1889, %v6534, %v6270
    %v6552 = vsel %vm1906, %v6536, %v6312
    %v6555 = vsel %vm1906, %v6538, %v6314
    %v6558 = vsel %vm1906, %v6540, %v6316
    %v6561 = vsel %vm1906, %v6542, %v6318
    %v6564 = vsel %vm1906, %v6544, %v6320
    %v6567 = vsel %vm1906, %v6546, %v6322
    %v6570 = vsel %vm1906, %v6548, %v6324
    %v6573 = vsel %vm1906, %v6550, %v6326
    %v6577 = vsel %vm1864, %v6343, %v6376
    %v6580 = vsel %vm1864, %v6344, %v6378
    %v6583 = vsel %vm1864, %v6345, %v6380
    %v6586 = vsel %vm1864, %v6346, %v6382
    %v6589 = vsel %vm1864, %v6347, %v6384
    %v6592 = vsel %vm1864, %v6348, %v6386
    %v6595 = vsel %vm1864, %v6349, %v6388
    %v6598 = vsel %vm1864, %v6350, %v6390
    %v6600 = vsel %vm1889, %v6577, %v6432
    %v6602 = vsel %vm1889, %v6580, %v6434
    %v6604 = vsel %vm1889, %v6583, %v6436
    %v6606 = vsel %vm1889, %v6586, %v6438
    %v6608 = vsel %vm1889, %v6589, %v6440
    %v6610 = vsel %vm1889, %v6592, %v6442
    %v6612 = vsel %vm1889, %v6595, %v6444
    %v6614 = vsel %vm1889, %v6598, %v6446
    %v6616 = vsel %vm1906, %v6600, %v6472
    %v6619 = vsel %vm1906, %v6602, %v6474
    %v6622 = vsel %vm1906, %v6604, %v6476
    %v6625 = vsel %vm1906, %v6606, %v6478
    %v6628 = vsel %vm1906, %v6608, %v6480
    %v6631 = vsel %vm1906, %v6610, %v6482
    %v6634 = vsel %vm1906, %v6612, %v6484
    %v6637 = vsel %vm1906, %v6614, %v6486
    %s6639 = scalar_lea.vmem [#allocation4], 288
    %v6640 = vld [vmem:[%s6639] sm:$0xf]
    %v6641 = vld [vmem:[%s6639 + $0x4] sm:$0xf]
    %v6642 = vld [vmem:[%s6639 + $0x8] sm:$0xf]
    %v6643 = vld [vmem:[%s6639 + $0xc] sm:$0xf]
    %v6644 = vld [vmem:[%s6639 + $0x10] sm:$0xf]
    %v6645 = vld [vmem:[%s6639 + $0x14] sm:$0xf]
    %v6646 = vld [vmem:[%s6639 + $0x18] sm:$0xf]
    %v6647 = vld [vmem:[%s6639 + $0x1c] sm:$0xf]
    %v6648 = vld [vmem:[%s6639 + $0x20] sm:$0xf]
    %v6649 = vld [vmem:[%s6639 + $0x24] sm:$0xf]
    %v6650 = vld [vmem:[%s6639 + $0x28] sm:$0xf]
    %v6651 = vld [vmem:[%s6639 + $0x2c] sm:$0xf]
    %v6652 = vld [vmem:[%s6639 + $0x30] sm:$0xf]
    %v6653 = vld [vmem:[%s6639 + $0x34] sm:$0xf]
    %v6654 = vld [vmem:[%s6639 + $0x38] sm:$0xf]
    %v6655 = vld [vmem:[%s6639 + $0x3c] sm:$0xf]
    %v6656 = vld [vmem:[%s6639 + $0x40] sm:$0xf]
    %v6657 = vld [vmem:[%s6639 + $0x44] sm:$0xf]
    %v6658 = vld [vmem:[%s6639 + $0x48] sm:$0xf]
    %v6659 = vld [vmem:[%s6639 + $0x4c] sm:$0xf]
    %v6660 = vld [vmem:[%s6639 + $0x50] sm:$0xf]
    %v6661 = vld [vmem:[%s6639 + $0x54] sm:$0xf]
    %v6662 = vld [vmem:[%s6639 + $0x58] sm:$0xf]
    %v6663 = vld [vmem:[%s6639 + $0x5c] sm:$0xf]
    %v6664 = vld [vmem:[%s6639 + $0x60] sm:$0xf]
    %v6665 = vld [vmem:[%s6639 + $0x64] sm:$0xf]
    %v6666 = vld [vmem:[%s6639 + $0x68] sm:$0xf]
    %v6667 = vld [vmem:[%s6639 + $0x6c] sm:$0xf]
    %v6668 = vld [vmem:[%s6639 + $0x70] sm:$0xf]
    %v6669 = vld [vmem:[%s6639 + $0x74] sm:$0xf]
    %v6670 = vld [vmem:[%s6639 + $0x78] sm:$0xf]
    %v6671 = vld [vmem:[%s6639 + $0x7c] sm:$0xf]
    %v6672 = vld [vmem:[%s6639 + $0x80] sm:$0xf]
    %v6673 = vld [vmem:[%s6639 + $0x84] sm:$0xf]
    %v6674 = vld [vmem:[%s6639 + $0x88] sm:$0xf]
    %v6675 = vld [vmem:[%s6639 + $0x8c] sm:$0xf]
    %v6712 = vunpack.c.l.b16 %v6640
    %v6713 = vunpack.c.l.b16 %v6641
    %v6714 = vunpack.c.l.b16 %v6642
    %v6715 = vunpack.c.l.b16 %v6643
    %v6716 = vunpack.c.l.b16 %v6644
    %v6717 = vunpack.c.l.b16 %v6645
    %v6718 = vunpack.c.l.b16 %v6646
    %v6719 = vunpack.c.l.b16 %v6647
    %v6720 = vunpack.c.l.b16 %v6648
    %v6721 = vunpack.c.l.b16 %v6649
    %v6722 = vunpack.c.l.b16 %v6650
    %v6723 = vunpack.c.l.b16 %v6651
    %v6724 = vunpack.c.l.b16 %v6652
    %v6725 = vunpack.c.l.b16 %v6653
    %v6726 = vunpack.c.l.b16 %v6654
    %v6727 = vunpack.c.l.b16 %v6655
    %v6728 = vunpack.c.l.b16 %v6656
    %v6729 = vunpack.c.l.b16 %v6657
    %v6730 = vunpack.c.l.b16 %v6658
    %v6731 = vunpack.c.l.b16 %v6659
    %v6732 = vunpack.c.l.b16 %v6660
    %v6733 = vunpack.c.l.b16 %v6661
    %v6734 = vunpack.c.l.b16 %v6662
    %v6735 = vunpack.c.l.b16 %v6663
    %v6736 = vunpack.c.l.b16 %v6664
    %v6737 = vunpack.c.l.b16 %v6665
    %v6738 = vunpack.c.l.b16 %v6666
    %v6739 = vunpack.c.l.b16 %v6667
    %v6740 = vunpack.c.l.b16 %v6668
    %v6741 = vunpack.c.l.b16 %v6669
    %v6742 = vunpack.c.l.b16 %v6670
    %v6743 = vunpack.c.l.b16 %v6671
    %v6744 = vunpack.c.l.b16 %v6672
    %v6745 = vunpack.c.l.b16 %v6673
    %v6746 = vunpack.c.l.b16 %v6674
    %v6747 = vunpack.c.l.b16 %v6675
    %v6748 = vpack.c.b16 %v6713, %v6712
    %v6749 = vpack.c.b16 %v6715, %v6714
    %v6750 = vpack.c.b16 %v6717, %v6716
    %v6751 = vpack.c.b16 %v6719, %v6718
    %v6752 = vpack.c.b16 %v6721, %v6720
    %v6753 = vpack.c.b16 %v6723, %v6722
    %v6754 = vpack.c.b16 %v6725, %v6724
    %v6755 = vpack.c.b16 %v6727, %v6726
    %v6756 = vpack.c.b16 %v6729, %v6728
    %v6757 = vpack.c.b16 %v6731, %v6730
    %v6758 = vpack.c.b16 %v6733, %v6732
    %v6759 = vpack.c.b16 %v6735, %v6734
    %v6760 = vpack.c.b16 %v6737, %v6736
    %v6761 = vpack.c.b16 %v6739, %v6738
    %v6762 = vpack.c.b16 %v6741, %v6740
    %v6763 = vpack.c.b16 %v6743, %v6742
    %v6764 = vpack.c.b16 %v6745, %v6744
    %v6765 = vpack.c.b16 %v6747, %v6746
    %v6785 = vsel %vm1864, %v6503, 0
    %v6788 = vsel %vm1864, %v6504, 0
    %v6791 = vsel %vm1864, %v6505, 0
    %v6794 = vsel %vm1864, %v6506, 0
    %v6797 = vsel %vm1864, %v6507, 0
    %v6800 = vsel %vm1864, %v6508, 0
    %v6803 = vsel %vm1864, %v6509, 0
    %v6806 = vsel %vm1864, %v6510, 0
    %6808 = vmatprep.subr.bf16.mxu0 0
    %6809 = vmatpush1.bf16.msra.mxu0 %v6755
    %6810 = vmatprep.subr.bf16.mxu0 0
    %6811 = vmatpush1.bf16.msra.mxu0 %v6754
    %6812 = vmatprep.subr.bf16.mxu0 0
    %6813 = vmatpush1.bf16.msra.mxu0 %v6753
    %6814 = vmatprep.subr.bf16.mxu0 0
    %6815 = vmatpush1.bf16.msra.mxu0 %v6752
    %6816 = vmatprep.subr.bf16.mxu0 0
    %6817 = vmatpush1.bf16.msra.mxu0 %v6751
    %6818 = vmatprep.subr.bf16.mxu0 0
    %6819 = vmatpush1.bf16.msra.mxu0 %v6750
    %6820 = vmatprep.subr.bf16.mxu0 0
    %6821 = vmatpush1.bf16.msra.mxu0 %v6749
    %6822 = vmatprep.subr.bf16.mxu0 0
    %6823 = vmatpush1.bf16.msra.mxu0 %v6748
    %6824 = vmatprep.subr.bf16.mxu0 0
    %6825 = vmatpush2.bf16.msra.mxu0 %v6763
    %6826 = vmatprep.subr.bf16.mxu0 0
    %6827 = vmatpush2.bf16.msra.mxu0 %v6762
    %6828 = vmatprep.subr.bf16.mxu0 0
    %6829 = vmatpush2.bf16.msra.mxu0 %v6761
    %6830 = vmatprep.subr.bf16.mxu0 0
    %6831 = vmatpush2.bf16.msra.mxu0 %v6760
    %6832 = vmatprep.subr.bf16.mxu0 0
    %6833 = vmatpush2.bf16.msra.mxu0 %v6759
    %6834 = vmatprep.subr.bf16.mxu0 0
    %6835 = vmatpush2.bf16.msra.mxu0 %v6758
    %6836 = vmatprep.subr.bf16.mxu0 0
    %6837 = vmatpush2.bf16.msra.mxu0 %v6757
    %6838 = vmatprep.subr.bf16.mxu0 0
    %6839 = vmatpush2.bf16.msra.mxu0 %v6756
    %6840 = vmatprep.mubr.bf16.mxu0 %v6616
    %6841 = vmatmul.mubr.bf16.gmra.mxu0 %v6552
    %v6842 = vpop.f32.mrf.mxu0
    %v6843 = vadd.f32 0.0, %v6842
    %v6844 = vpop.f32.mrf.mxu0
    %v6845 = vpop.f32.mrf.mxu0
    %v6846 = vadd.f32 0.0, %v6845
    %v6847 = vpop.f32.mrf.mxu0
    %6848 = vmatprep.mubr.bf16.mxu0 %v6619
    %6849 = vmatmul.mubr.bf16.gmra.mxu0 %v6555
    %v6850 = vpop.f32.mrf.mxu0
    %v6851 = vadd.f32 0.0, %v6850
    %v6852 = vpop.f32.mrf.mxu0
    %v6853 = vpop.f32.mrf.mxu0
    %v6854 = vadd.f32 0.0, %v6853
    %v6855 = vpop.f32.mrf.mxu0
    %6856 = vmatprep.mubr.bf16.mxu0 %v6622
    %6857 = vmatmul.mubr.bf16.gmra.mxu0 %v6558
    %v6858 = vpop.f32.mrf.mxu0
    %v6859 = vadd.f32 0.0, %v6858
    %v6860 = vpop.f32.mrf.mxu0
    %v6861 = vpop.f32.mrf.mxu0
    %v6862 = vadd.f32 0.0, %v6861
    %v6863 = vpop.f32.mrf.mxu0
    %6864 = vmatprep.mubr.bf16.mxu0 %v6625
    %6865 = vmatmul.mubr.bf16.gmra.mxu0 %v6561
    %v6866 = vpop.f32.mrf.mxu0
    %v6867 = vadd.f32 0.0, %v6866
    %v6868 = vpop.f32.mrf.mxu0
    %v6869 = vpop.f32.mrf.mxu0
    %v6870 = vadd.f32 0.0, %v6869
    %v6871 = vpop.f32.mrf.mxu0
    %6872 = vmatprep.mubr.bf16.mxu0 %v6628
    %6873 = vmatmul.mubr.bf16.gmra.mxu0 %v6564
    %v6874 = vpop.f32.mrf.mxu0
    %v6875 = vadd.f32 0.0, %v6874
    %v6876 = vpop.f32.mrf.mxu0
    %v6877 = vpop.f32.mrf.mxu0
    %v6878 = vadd.f32 0.0, %v6877
    %v6879 = vpop.f32.mrf.mxu0
    %6880 = vmatprep.mubr.bf16.mxu0 %v6631
    %6881 = vmatmul.mubr.bf16.gmra.mxu0 %v6567
    %v6882 = vpop.f32.mrf.mxu0
    %v6883 = vadd.f32 0.0, %v6882
    %v6884 = vpop.f32.mrf.mxu0
    %v6885 = vpop.f32.mrf.mxu0
    %v6886 = vadd.f32 0.0, %v6885
    %v6887 = vpop.f32.mrf.mxu0
    %6888 = vmatprep.mubr.bf16.mxu0 %v6634
    %6889 = vmatmul.mubr.bf16.gmra.mxu0 %v6570
    %v6890 = vpop.f32.mrf.mxu0
    %v6891 = vadd.f32 0.0, %v6890
    %v6892 = vpop.f32.mrf.mxu0
    %v6893 = vpop.f32.mrf.mxu0
    %v6894 = vadd.f32 0.0, %v6893
    %v6895 = vpop.f32.mrf.mxu0
    %6896 = vmatprep.mubr.bf16.mxu0 %v6637
    %6897 = vmatmul.mubr.bf16.gmra.mxu0 %v6573
    %v6898 = vpop.f32.mrf.mxu0
    %v6899 = vadd.f32 0.0, %v6898
    %v6900 = vpop.f32.mrf.mxu0
    %v6901 = vpop.f32.mrf.mxu0
    %v6902 = vadd.f32 0.0, %v6901
    %v6903 = vpop.f32.mrf.mxu0
    %6904 = vdwg.mxu0
    %6905 = vmatprep.subr.bf16.mxu0 0
    %6906 = vmatpush1.bf16.msra.mxu0 0
    %6907 = vmatprep.subr.bf16.mxu0 0
    %6908 = vmatpush1.bf16.msra.mxu0 0
    %6909 = vmatprep.subr.bf16.mxu0 0
    %6910 = vmatpush1.bf16.msra.mxu0 0
    %6911 = vmatprep.subr.bf16.mxu0 0
    %6912 = vmatpush1.bf16.msra.mxu0 0
    %6913 = vmatprep.subr.bf16.mxu0 0
    %6914 = vmatpush1.bf16.msra.mxu0 0
    %6915 = vmatprep.subr.bf16.mxu0 0
    %6916 = vmatpush1.bf16.msra.mxu0 0
    %6917 = vmatprep.subr.bf16.mxu0 0
    %6918 = vmatpush1.bf16.msra.mxu0 %v6765
    %6919 = vmatprep.subr.bf16.mxu0 0
    %6920 = vmatpush1.bf16.msra.mxu0 %v6764
    %6921 = vmatprep.subr.bf16.mxu0 0
    %6922 = vmatpush2.bf16.msra.mxu0 0
    %6923 = vmatprep.subr.bf16.mxu0 0
    %6924 = vmatpush2.bf16.msra.mxu0 0
    %6925 = vmatprep.subr.bf16.mxu0 0
    %6926 = vmatpush2.bf16.msra.mxu0 0
    %6927 = vmatprep.subr.bf16.mxu0 0
    %6928 = vmatpush2.bf16.msra.mxu0 0
    %6929 = vmatprep.subr.bf16.mxu0 0
    %6930 = vmatpush2.bf16.msra.mxu0 0
    %6931 = vmatprep.subr.bf16.mxu0 0
    %6932 = vmatpush2.bf16.msra.mxu0 0
    %6933 = vmatprep.subr.bf16.mxu0 0
    %6934 = vmatpush2.bf16.msra.mxu0 0
    %6935 = vmatprep.subr.bf16.mxu0 0
    %6936 = vmatpush2.bf16.msra.mxu0 0
    %6937 = vmatprep.mubr.bf16.mxu0 0
    %6938 = vmatmul.mubr.bf16.gmra.mxu0 %v6785
    %v6939 = vpop.f32.mrf.mxu0
    %v6940 = vadd.f32 %v6843, %v6939
    %v6941 = vpop.f32.mrf.mxu0
    %v6942 = vpop.f32.mrf.mxu0
    %v6943 = vadd.f32 %v6846, %v6942
    %v6944 = vpop.f32.mrf.mxu0
    %6945 = vmatprep.mubr.bf16.mxu0 0
    %6946 = vmatmul.mubr.bf16.gmra.mxu0 %v6788
    %v6947 = vpop.f32.mrf.mxu0
    %v6948 = vadd.f32 %v6851, %v6947
    %v6949 = vpop.f32.mrf.mxu0
    %v6950 = vpop.f32.mrf.mxu0
    %v6951 = vadd.f32 %v6854, %v6950
    %v6952 = vpop.f32.mrf.mxu0
    %6953 = vmatprep.mubr.bf16.mxu0 0
    %6954 = vmatmul.mubr.bf16.gmra.mxu0 %v6791
    %v6955 = vpop.f32.mrf.mxu0
    %v6956 = vadd.f32 %v6859, %v6955
    %v6957 = vpop.f32.mrf.mxu0
    %v6958 = vpop.f32.mrf.mxu0
    %v6959 = vadd.f32 %v6862, %v6958
    %v6960 = vpop.f32.mrf.mxu0
    %6961 = vmatprep.mubr.bf16.mxu0 0
    %6962 = vmatmul.mubr.bf16.gmra.mxu0 %v6794
    %v6963 = vpop.f32.mrf.mxu0
    %v6964 = vadd.f32 %v6867, %v6963
    %v6965 = vpop.f32.mrf.mxu0
    %v6966 = vpop.f32.mrf.mxu0
    %v6967 = vadd.f32 %v6870, %v6966
    %v6968 = vpop.f32.mrf.mxu0
    %6969 = vmatprep.mubr.bf16.mxu0 0
    %6970 = vmatmul.mubr.bf16.gmra.mxu0 %v6797
    %v6971 = vpop.f32.mrf.mxu0
    %v6972 = vadd.f32 %v6875, %v6971
    %v6973 = vpop.f32.mrf.mxu0
    %v6974 = vpop.f32.mrf.mxu0
    %v6975 = vadd.f32 %v6878, %v6974
    %v6976 = vpop.f32.mrf.mxu0
    %6977 = vmatprep.mubr.bf16.mxu0 0
    %6978 = vmatmul.mubr.bf16.gmra.mxu0 %v6800
    %v6979 = vpop.f32.mrf.mxu0
    %v6980 = vadd.f32 %v6883, %v6979
    %v6981 = vpop.f32.mrf.mxu0
    %v6982 = vpop.f32.mrf.mxu0
    %v6983 = vadd.f32 %v6886, %v6982
    %v6984 = vpop.f32.mrf.mxu0
    %6985 = vmatprep.mubr.bf16.mxu0 0
    %6986 = vmatmul.mubr.bf16.gmra.mxu0 %v6803
    %v6987 = vpop.f32.mrf.mxu0
    %v6988 = vadd.f32 %v6891, %v6987
    %v6989 = vpop.f32.mrf.mxu0
    %v6990 = vpop.f32.mrf.mxu0
    %v6991 = vadd.f32 %v6894, %v6990
    %v6992 = vpop.f32.mrf.mxu0
    %6993 = vmatprep.mubr.bf16.mxu0 0
    %6994 = vmatmul.mubr.bf16.gmra.mxu0 %v6806
    %v6995 = vpop.f32.mrf.mxu0
    %v6996 = vadd.f32 %v6899, %v6995
    %v6997 = vpop.f32.mrf.mxu0
    %v6998 = vpop.f32.mrf.mxu0
    %v6999 = vadd.f32 %v6902, %v6998
    %v7000 = vpop.f32.mrf.mxu0
    %7001 = vdwg.mxu0
    %s7002 = scalar_lea.vmem %s2, 2
    %v7003 = vld [vmem:[%s7002] sm:$0x1]
    %v7005 = vlaneseq
    %v7006 = vshrl.u32 %v7005, 7
    %v7007 = vsub.s32 0, %v7006
    %v7008 = vrot.slane %v7003, %v7007
    %v7010 = vmul.f32 %v6940, %v7008
    %v7011 = vmul.f32 %v6943, %v7008
    %v7012 = vmul.f32 %v6948, %v7008
    %v7013 = vmul.f32 %v6951, %v7008
    %v7014 = vmul.f32 %v6956, %v7008
    %v7015 = vmul.f32 %v6959, %v7008
    %v7016 = vmul.f32 %v6964, %v7008
    %v7017 = vmul.f32 %v6967, %v7008
    %v7018 = vmul.f32 %v6972, %v7008
    %v7019 = vmul.f32 %v6975, %v7008
    %v7020 = vmul.f32 %v6980, %v7008
    %v7021 = vmul.f32 %v6983, %v7008
    %v7022 = vmul.f32 %v6988, %v7008
    %v7023 = vmul.f32 %v6991, %v7008
    %v7024 = vmul.f32 %v6996, %v7008
    %v7025 = vmul.f32 %v6999, %v7008
    %s7026 = scalar_lea.vmem %s3, 2
    %v7027 = vld [vmem:[%s7026] sm:$0x1]
    %v7029 = vlaneseq
    %v7030 = vshrl.u32 %v7029, 7
    %v7031 = vsub.s32 0, %v7030
    %v7032 = vrot.slane %v7027, %v7031
    %v7034 = vadd.f32 %v7010, %v7032
    %v7035 = vadd.f32 %v7011, %v7032
    %v7036 = vadd.f32 %v7012, %v7032
    %v7037 = vadd.f32 %v7013, %v7032
    %v7038 = vadd.f32 %v7014, %v7032
    %v7039 = vadd.f32 %v7015, %v7032
    %v7040 = vadd.f32 %v7016, %v7032
    %v7041 = vadd.f32 %v7017, %v7032
    %v7042 = vadd.f32 %v7018, %v7032
    %v7043 = vadd.f32 %v7019, %v7032
    %v7044 = vadd.f32 %v7020, %v7032
    %v7045 = vadd.f32 %v7021, %v7032
    %v7046 = vadd.f32 %v7022, %v7032
    %v7047 = vadd.f32 %v7023, %v7032
    %v7048 = vadd.f32 %v7024, %v7032
    %v7049 = vadd.f32 %v7025, %v7032
    %v7050 = vadd.f32 %v7034, %v2403
    %v7051 = vadd.f32 %v7035, %v2404
    %v7052 = vadd.f32 %v7036, %v2405
    %v7053 = vadd.f32 %v7037, %v2406
    %v7054 = vadd.f32 %v7038, %v2407
    %v7055 = vadd.f32 %v7039, %v2408
    %v7056 = vadd.f32 %v7040, %v2409
    %v7057 = vadd.f32 %v7041, %v2410
    %v7058 = vadd.f32 %v7042, %v2411
    %v7059 = vadd.f32 %v7043, %v2412
    %v7060 = vadd.f32 %v7044, %v2413
    %v7061 = vadd.f32 %v7045, %v2414
    %v7062 = vadd.f32 %v7046, %v2415
    %v7063 = vadd.f32 %v7047, %v2416
    %v7064 = vadd.f32 %v7048, %v2417
    %v7065 = vadd.f32 %v7049, %v2418
    %v7066 = vmax.f32 %v7050, 0.0
    %v7067 = vmax.f32 %v7051, 0.0
    %v7068 = vmax.f32 %v7052, 0.0
    %v7069 = vmax.f32 %v7053, 0.0
    %v7070 = vmax.f32 %v7054, 0.0
    %v7071 = vmax.f32 %v7055, 0.0
    %v7072 = vmax.f32 %v7056, 0.0
    %v7073 = vmax.f32 %v7057, 0.0
    %v7074 = vmax.f32 %v7058, 0.0
    %v7075 = vmax.f32 %v7059, 0.0
    %v7076 = vmax.f32 %v7060, 0.0
    %v7077 = vmax.f32 %v7061, 0.0
    %v7078 = vmax.f32 %v7062, 0.0
    %v7079 = vmax.f32 %v7063, 0.0
    %v7080 = vmax.f32 %v7064, 0.0
    %v7081 = vmax.f32 %v7065, 0.0
    %v7082 = vpack.c.bf16 %v7067, %v7066
    %v7083 = vpack.c.bf16 %v7069, %v7068
    %v7084 = vpack.c.bf16 %v7071, %v7070
    %v7085 = vpack.c.bf16 %v7073, %v7072
    %v7086 = vpack.c.bf16 %v7075, %v7074
    %v7087 = vpack.c.bf16 %v7077, %v7076
    %v7088 = vpack.c.bf16 %v7079, %v7078
    %v7089 = vpack.c.bf16 %v7081, %v7080
    %v7098 = vunpack.c.l.b16 %v7082
    %v7099 = vunpack.c.h.b16 %v7082
    %v7100 = vunpack.c.l.b16 %v7083
    %v7101 = vunpack.c.h.b16 %v7083
    %v7102 = vunpack.c.l.b16 %v7084
    %v7103 = vunpack.c.h.b16 %v7084
    %v7104 = vunpack.c.l.b16 %v7085
    %v7105 = vunpack.c.h.b16 %v7085
    %v7106 = vunpack.c.l.b16 %v7086
    %v7107 = vunpack.c.h.b16 %v7086
    %v7108 = vunpack.c.l.b16 %v7087
    %v7109 = vunpack.c.h.b16 %v7087
    %v7110 = vunpack.c.l.b16 %v7088
    %v7111 = vunpack.c.h.b16 %v7088
    %v7112 = vunpack.c.l.b16 %v7089
    %v7113 = vunpack.c.h.b16 %v7089
    %v7114 = vpack.c.b16 %v7098, %v7098
    %v7115 = vpack.c.b16 %v7099, %v7099
    %v7116 = vpack.c.b16 %v7100, %v7100
    %v7117 = vpack.c.b16 %v7101, %v7101
    %v7118 = vpack.c.b16 %v7102, %v7102
    %v7119 = vpack.c.b16 %v7103, %v7103
    %v7120 = vpack.c.b16 %v7104, %v7104
    %v7121 = vpack.c.b16 %v7105, %v7105
    %v7122 = vpack.c.b16 %v7106, %v7106
    %v7123 = vpack.c.b16 %v7107, %v7107
    %v7124 = vpack.c.b16 %v7108, %v7108
    %v7125 = vpack.c.b16 %v7109, %v7109
    %v7126 = vpack.c.b16 %v7110, %v7110
    %v7127 = vpack.c.b16 %v7111, %v7111
    %v7128 = vpack.c.b16 %v7112, %v7112
    %v7129 = vpack.c.b16 %v7113, %v7113
    %v7131 = vshrl.u32 %v7114, 16
    %v7133 = vrot.slane %v7131, 7
    %v7134 = vshll.u32 %v7114, 16
    %v7136 = vor.u32 %v7133, %v7134
    %v7137 = vrot.slane %v7133, 4
    %v7139 = vshrl.u32 %v7115, 16
    %v7141 = vrot.slane %v7139, 7
    %v7142 = vshll.u32 %v7115, 16
    %v7144 = vor.u32 %v7141, %v7142
    %v7145 = vrot.slane %v7141, 4
    %v7147 = vshrl.u32 %v7116, 16
    %v7149 = vrot.slane %v7147, 7
    %v7150 = vshll.u32 %v7116, 16
    %v7152 = vor.u32 %v7149, %v7150
    %v7153 = vrot.slane %v7149, 4
    %v7155 = vshrl.u32 %v7117, 16
    %v7157 = vrot.slane %v7155, 7
    %v7158 = vshll.u32 %v7117, 16
    %v7160 = vor.u32 %v7157, %v7158
    %v7161 = vrot.slane %v7157, 4
    %v7163 = vshrl.u32 %v7118, 16
    %v7165 = vrot.slane %v7163, 7
    %v7166 = vshll.u32 %v7118, 16
    %v7168 = vor.u32 %v7165, %v7166
    %v7169 = vrot.slane %v7165, 4
    %v7171 = vshrl.u32 %v7119, 16
    %v7173 = vrot.slane %v7171, 7
    %v7174 = vshll.u32 %v7119, 16
    %v7176 = vor.u32 %v7173, %v7174
    %v7177 = vrot.slane %v7173, 4
    %v7179 = vshrl.u32 %v7120, 16
    %v7181 = vrot.slane %v7179, 7
    %v7182 = vshll.u32 %v7120, 16
    %v7184 = vor.u32 %v7181, %v7182
    %v7185 = vrot.slane %v7181, 4
    %v7187 = vshrl.u32 %v7121, 16
    %v7189 = vrot.slane %v7187, 7
    %v7190 = vshll.u32 %v7121, 16
    %v7192 = vor.u32 %v7189, %v7190
    %v7193 = vrot.slane %v7189, 4
    %v7195 = vshrl.u32 %v7122, 16
    %v7197 = vrot.slane %v7195, 7
    %v7198 = vshll.u32 %v7122, 16
    %v7200 = vor.u32 %v7197, %v7198
    %v7201 = vrot.slane %v7197, 4
    %v7203 = vshrl.u32 %v7123, 16
    %v7205 = vrot.slane %v7203, 7
    %v7206 = vshll.u32 %v7123, 16
    %v7208 = vor.u32 %v7205, %v7206
    %v7209 = vrot.slane %v7205, 4
    %v7211 = vshrl.u32 %v7124, 16
    %v7213 = vrot.slane %v7211, 7
    %v7214 = vshll.u32 %v7124, 16
    %v7216 = vor.u32 %v7213, %v7214
    %v7217 = vrot.slane %v7213, 4
    %v7219 = vshrl.u32 %v7125, 16
    %v7221 = vrot.slane %v7219, 7
    %v7222 = vshll.u32 %v7125, 16
    %v7224 = vor.u32 %v7221, %v7222
    %v7225 = vrot.slane %v7221, 4
    %v7227 = vshrl.u32 %v7126, 16
    %v7229 = vrot.slane %v7227, 7
    %v7230 = vshll.u32 %v7126, 16
    %v7232 = vor.u32 %v7229, %v7230
    %v7233 = vrot.slane %v7229, 4
    %v7235 = vshrl.u32 %v7127, 16
    %v7237 = vrot.slane %v7235, 7
    %v7238 = vshll.u32 %v7127, 16
    %v7240 = vor.u32 %v7237, %v7238
    %v7241 = vrot.slane %v7237, 4
    %v7243 = vshrl.u32 %v7128, 16
    %v7245 = vrot.slane %v7243, 7
    %v7246 = vshll.u32 %v7128, 16
    %v7248 = vor.u32 %v7245, %v7246
    %v7249 = vrot.slane %v7245, 4
    %v7251 = vshrl.u32 %v7129, 16
    %v7253 = vrot.slane %v7251, 7
    %v7254 = vshll.u32 %v7129, 16
    %v7256 = vor.u32 %v7253, %v7254
    %v7257 = vrot.slane %v7253, 4
    %v7290 = vld [vmem:[%s290] sm:$0xf]
    %v7291 = vsel %vm293, %v7136, %v7290
    %7292 = vst [vmem:[%s290] sm:$0xf] %v7291
    %v7293 = vld [vmem:[%s290 + $0x4] sm:$0x1]
    %v7294 = vsel %vm299, %v7137, %v7293
    %7295 = vst [vmem:[%s290 + $0x4] sm:$0x1] %v7294
    %v7296 = vld [vmem:[%s290 + $0x8] sm:$0xf]
    %v7297 = vsel %vm293, %v7144, %v7296
    %7298 = vst [vmem:[%s290 + $0x8] sm:$0xf] %v7297
    %v7299 = vld [vmem:[%s290 + $0xc] sm:$0x1]
    %v7300 = vsel %vm299, %v7145, %v7299
    %7301 = vst [vmem:[%s290 + $0xc] sm:$0x1] %v7300
    %v7302 = vld [vmem:[%s290 + $0x10] sm:$0xf]
    %v7303 = vsel %vm293, %v7152, %v7302
    %7304 = vst [vmem:[%s290 + $0x10] sm:$0xf] %v7303
    %v7305 = vld [vmem:[%s290 + $0x14] sm:$0x1]
    %v7306 = vsel %vm299, %v7153, %v7305
    %7307 = vst [vmem:[%s290 + $0x14] sm:$0x1] %v7306
    %v7308 = vld [vmem:[%s290 + $0x18] sm:$0xf]
    %v7309 = vsel %vm293, %v7160, %v7308
    %7310 = vst [vmem:[%s290 + $0x18] sm:$0xf] %v7309
    %v7311 = vld [vmem:[%s290 + $0x1c] sm:$0x1]
    %v7312 = vsel %vm299, %v7161, %v7311
    %7313 = vst [vmem:[%s290 + $0x1c] sm:$0x1] %v7312
    %v7314 = vld [vmem:[%s290 + $0x20] sm:$0xf]
    %v7315 = vsel %vm293, %v7168, %v7314
    %7316 = vst [vmem:[%s290 + $0x20] sm:$0xf] %v7315
    %v7317 = vld [vmem:[%s290 + $0x24] sm:$0x1]
    %v7318 = vsel %vm299, %v7169, %v7317
    %7319 = vst [vmem:[%s290 + $0x24] sm:$0x1] %v7318
    %v7320 = vld [vmem:[%s290 + $0x28] sm:$0xf]
    %v7321 = vsel %vm293, %v7176, %v7320
    %7322 = vst [vmem:[%s290 + $0x28] sm:$0xf] %v7321
    %v7323 = vld [vmem:[%s290 + $0x2c] sm:$0x1]
    %v7324 = vsel %vm299, %v7177, %v7323
    %7325 = vst [vmem:[%s290 + $0x2c] sm:$0x1] %v7324
    %v7326 = vld [vmem:[%s290 + $0x30] sm:$0xf]
    %v7327 = vsel %vm293, %v7184, %v7326
    %7328 = vst [vmem:[%s290 + $0x30] sm:$0xf] %v7327
    %v7329 = vld [vmem:[%s290 + $0x34] sm:$0x1]
    %v7330 = vsel %vm299, %v7185, %v7329
    %7331 = vst [vmem:[%s290 + $0x34] sm:$0x1] %v7330
    %v7332 = vld [vmem:[%s290 + $0x38] sm:$0xf]
    %v7333 = vsel %vm293, %v7192, %v7332
    %7334 = vst [vmem:[%s290 + $0x38] sm:$0xf] %v7333
    %v7335 = vld [vmem:[%s290 + $0x3c] sm:$0x1]
    %v7336 = vsel %vm299, %v7193, %v7335
    %7337 = vst [vmem:[%s290 + $0x3c] sm:$0x1] %v7336
    %v7338 = vld [vmem:[%s290 + $0x50] sm:$0xf]
    %v7339 = vsel %vm293, %v7200, %v7338
    %7340 = vst [vmem:[%s290 + $0x50] sm:$0xf] %v7339
    %v7341 = vld [vmem:[%s290 + $0x54] sm:$0x1]
    %v7342 = vsel %vm299, %v7201, %v7341
    %7343 = vst [vmem:[%s290 + $0x54] sm:$0x1] %v7342
    %v7344 = vld [vmem:[%s290 + $0x58] sm:$0xf]
    %v7345 = vsel %vm293, %v7208, %v7344
    %7346 = vst [vmem:[%s290 + $0x58] sm:$0xf] %v7345
    %v7347 = vld [vmem:[%s290 + $0x5c] sm:$0x1]
    %v7348 = vsel %vm299, %v7209, %v7347
    %7349 = vst [vmem:[%s290 + $0x5c] sm:$0x1] %v7348
    %v7350 = vld [vmem:[%s290 + $0x60] sm:$0xf]
    %v7351 = vsel %vm293, %v7216, %v7350
    %7352 = vst [vmem:[%s290 + $0x60] sm:$0xf] %v7351
    %v7353 = vld [vmem:[%s290 + $0x64] sm:$0x1]
    %v7354 = vsel %vm299, %v7217, %v7353
    %7355 = vst [vmem:[%s290 + $0x64] sm:$0x1] %v7354
    %v7356 = vld [vmem:[%s290 + $0x68] sm:$0xf]
    %v7357 = vsel %vm293, %v7224, %v7356
    %7358 = vst [vmem:[%s290 + $0x68] sm:$0xf] %v7357
    %v7359 = vld [vmem:[%s290 + $0x6c] sm:$0x1]
    %v7360 = vsel %vm299, %v7225, %v7359
    %7361 = vst [vmem:[%s290 + $0x6c] sm:$0x1] %v7360
    %v7362 = vld [vmem:[%s290 + $0x70] sm:$0xf]
    %v7363 = vsel %vm293, %v7232, %v7362
    %7364 = vst [vmem:[%s290 + $0x70] sm:$0xf] %v7363
    %v7365 = vld [vmem:[%s290 + $0x74] sm:$0x1]
    %v7366 = vsel %vm299, %v7233, %v7365
    %7367 = vst [vmem:[%s290 + $0x74] sm:$0x1] %v7366
    %v7368 = vld [vmem:[%s290 + $0x78] sm:$0xf]
    %v7369 = vsel %vm293, %v7240, %v7368
    %7370 = vst [vmem:[%s290 + $0x78] sm:$0xf] %v7369
    %v7371 = vld [vmem:[%s290 + $0x7c] sm:$0x1]
    %v7372 = vsel %vm299, %v7241, %v7371
    %7373 = vst [vmem:[%s290 + $0x7c] sm:$0x1] %v7372
    %v7374 = vld [vmem:[%s290 + $0x80] sm:$0xf]
    %v7375 = vsel %vm293, %v7248, %v7374
    %7376 = vst [vmem:[%s290 + $0x80] sm:$0xf] %v7375
    %v7377 = vld [vmem:[%s290 + $0x84] sm:$0x1]
    %v7378 = vsel %vm299, %v7249, %v7377
    %7379 = vst [vmem:[%s290 + $0x84] sm:$0x1] %v7378
    %v7380 = vld [vmem:[%s290 + $0x88] sm:$0xf]
    %v7381 = vsel %vm293, %v7256, %v7380
    %7382 = vst [vmem:[%s290 + $0x88] sm:$0xf] %v7381
    %v7383 = vld [vmem:[%s290 + $0x8c] sm:$0x1]
    %v7384 = vsel %vm299, %v7257, %v7383
    %7385 = vst [vmem:[%s290 + $0x8c] sm:$0x1] %v7384
    %v7386 = vld [vmem:[#allocation2] sm:$0xf]
    %v7387 = vld [vmem:[#allocation2 + $0x8] sm:$0xf]
    %v7388 = vld [vmem:[#allocation2 + $0x10] sm:$0xf]
    %v7389 = vld [vmem:[#allocation2 + $0x18] sm:$0xf]
    %v7390 = vld [vmem:[#allocation2 + $0x20] sm:$0xf]
    %v7391 = vld [vmem:[#allocation2 + $0x28] sm:$0xf]
    %v7392 = vld [vmem:[#allocation2 + $0x30] sm:$0xf]
    %v7393 = vld [vmem:[#allocation2 + $0x38] sm:$0xf]
    %v7394 = vld [vmem:[#allocation2 + $0x50] sm:$0xf]
    %v7395 = vld [vmem:[#allocation2 + $0x58] sm:$0xf]
    %v7396 = vld [vmem:[#allocation2 + $0x60] sm:$0xf]
    %v7397 = vld [vmem:[#allocation2 + $0x68] sm:$0xf]
    %v7398 = vld [vmem:[#allocation2 + $0x70] sm:$0xf]
    %v7399 = vld [vmem:[#allocation2 + $0x78] sm:$0xf]
    %v7400 = vld [vmem:[#allocation2 + $0x80] sm:$0xf]
    %v7401 = vld [vmem:[#allocation2 + $0x88] sm:$0xf]
    %v7402 = vld [vmem:[#allocation2 + $0x4] sm:$0x1]
    %v7403 = vld [vmem:[#allocation2 + $0xc] sm:$0x1]
    %v7404 = vld [vmem:[#allocation2 + $0x14] sm:$0x1]
    %v7405 = vld [vmem:[#allocation2 + $0x1c] sm:$0x1]
    %v7406 = vld [vmem:[#allocation2 + $0x24] sm:$0x1]
    %v7407 = vld [vmem:[#allocation2 + $0x2c] sm:$0x1]
    %v7408 = vld [vmem:[#allocation2 + $0x34] sm:$0x1]
    %v7409 = vld [vmem:[#allocation2 + $0x3c] sm:$0x1]
    %v7410 = vld [vmem:[#allocation2 + $0x54] sm:$0x1]
    %v7411 = vld [vmem:[#allocation2 + $0x5c] sm:$0x1]
    %v7412 = vld [vmem:[#allocation2 + $0x64] sm:$0x1]
    %v7413 = vld [vmem:[#allocation2 + $0x6c] sm:$0x1]
    %v7414 = vld [vmem:[#allocation2 + $0x74] sm:$0x1]
    %v7415 = vld [vmem:[#allocation2 + $0x7c] sm:$0x1]
    %v7416 = vld [vmem:[#allocation2 + $0x84] sm:$0x1]
    %v7417 = vld [vmem:[#allocation2 + $0x8c] sm:$0x1]
    %v7419 = vshrl.u32 %v7386, 16
    %v7421 = vrot.slane %v7419, 4
    %v7422 = vshll.u32 %v7386, 16
    %v7424 = vrot.slane %v7422, 5
    %v7425 = vor.u32 %v7421, %v7424
    %v7426 = vrot.slane %v7425, 4
    %v7428 = vshll.u32 %v7402, 16
    %v7430 = vrot.slane %v7428, 5
    %v7431 = vsel %vm427, %v7426, %v7430
    %v7433 = vshrl.u32 %v7387, 16
    %v7435 = vrot.slane %v7433, 4
    %v7436 = vshll.u32 %v7387, 16
    %v7438 = vrot.slane %v7436, 5
    %v7439 = vor.u32 %v7435, %v7438
    %v7440 = vrot.slane %v7439, 4
    %v7442 = vshll.u32 %v7403, 16
    %v7444 = vrot.slane %v7442, 5
    %v7445 = vsel %vm427, %v7440, %v7444
    %v7447 = vshrl.u32 %v7388, 16
    %v7449 = vrot.slane %v7447, 4
    %v7450 = vshll.u32 %v7388, 16
    %v7452 = vrot.slane %v7450, 5
    %v7453 = vor.u32 %v7449, %v7452
    %v7454 = vrot.slane %v7453, 4
    %v7456 = vshll.u32 %v7404, 16
    %v7458 = vrot.slane %v7456, 5
    %v7459 = vsel %vm427, %v7454, %v7458
    %v7461 = vshrl.u32 %v7389, 16
    %v7463 = vrot.slane %v7461, 4
    %v7464 = vshll.u32 %v7389, 16
    %v7466 = vrot.slane %v7464, 5
    %v7467 = vor.u32 %v7463, %v7466
    %v7468 = vrot.slane %v7467, 4
    %v7470 = vshll.u32 %v7405, 16
    %v7472 = vrot.slane %v7470, 5
    %v7473 = vsel %vm427, %v7468, %v7472
    %v7475 = vshrl.u32 %v7390, 16
    %v7477 = vrot.slane %v7475, 4
    %v7478 = vshll.u32 %v7390, 16
    %v7480 = vrot.slane %v7478, 5
    %v7481 = vor.u32 %v7477, %v7480
    %v7482 = vrot.slane %v7481, 4
    %v7484 = vshll.u32 %v7406, 16
    %v7486 = vrot.slane %v7484, 5
    %v7487 = vsel %vm427, %v7482, %v7486
    %v7489 = vshrl.u32 %v7391, 16
    %v7491 = vrot.slane %v7489, 4
    %v7492 = vshll.u32 %v7391, 16
    %v7494 = vrot.slane %v7492, 5
    %v7495 = vor.u32 %v7491, %v7494
    %v7496 = vrot.slane %v7495, 4
    %v7498 = vshll.u32 %v7407, 16
    %v7500 = vrot.slane %v7498, 5
    %v7501 = vsel %vm427, %v7496, %v7500
    %v7503 = vshrl.u32 %v7392, 16
    %v7505 = vrot.slane %v7503, 4
    %v7506 = vshll.u32 %v7392, 16
    %v7508 = vrot.slane %v7506, 5
    %v7509 = vor.u32 %v7505, %v7508
    %v7510 = vrot.slane %v7509, 4
    %v7512 = vshll.u32 %v7408, 16
    %v7514 = vrot.slane %v7512, 5
    %v7515 = vsel %vm427, %v7510, %v7514
    %v7517 = vshrl.u32 %v7393, 16
    %v7519 = vrot.slane %v7517, 4
    %v7520 = vshll.u32 %v7393, 16
    %v7522 = vrot.slane %v7520, 5
    %v7523 = vor.u32 %v7519, %v7522
    %v7524 = vrot.slane %v7523, 4
    %v7526 = vshll.u32 %v7409, 16
    %v7528 = vrot.slane %v7526, 5
    %v7529 = vsel %vm427, %v7524, %v7528
    %v7531 = vshrl.u32 %v7394, 16
    %v7533 = vrot.slane %v7531, 4
    %v7534 = vshll.u32 %v7394, 16
    %v7536 = vrot.slane %v7534, 5
    %v7537 = vor.u32 %v7533, %v7536
    %v7538 = vrot.slane %v7537, 4
    %v7540 = vshll.u32 %v7410, 16
    %v7542 = vrot.slane %v7540, 5
    %v7543 = vsel %vm427, %v7538, %v7542
    %v7545 = vshrl.u32 %v7395, 16
    %v7547 = vrot.slane %v7545, 4
    %v7548 = vshll.u32 %v7395, 16
    %v7550 = vrot.slane %v7548, 5
    %v7551 = vor.u32 %v7547, %v7550
    %v7552 = vrot.slane %v7551, 4
    %v7554 = vshll.u32 %v7411, 16
    %v7556 = vrot.slane %v7554, 5
    %v7557 = vsel %vm427, %v7552, %v7556
    %v7559 = vshrl.u32 %v7396, 16
    %v7561 = vrot.slane %v7559, 4
    %v7562 = vshll.u32 %v7396, 16
    %v7564 = vrot.slane %v7562, 5
    %v7565 = vor.u32 %v7561, %v7564
    %v7566 = vrot.slane %v7565, 4
    %v7568 = vshll.u32 %v7412, 16
    %v7570 = vrot.slane %v7568, 5
    %v7571 = vsel %vm427, %v7566, %v7570
    %v7573 = vshrl.u32 %v7397, 16
    %v7575 = vrot.slane %v7573, 4
    %v7576 = vshll.u32 %v7397, 16
    %v7578 = vrot.slane %v7576, 5
    %v7579 = vor.u32 %v7575, %v7578
    %v7580 = vrot.slane %v7579, 4
    %v7582 = vshll.u32 %v7413, 16
    %v7584 = vrot.slane %v7582, 5
    %v7585 = vsel %vm427, %v7580, %v7584
    %v7587 = vshrl.u32 %v7398, 16
    %v7589 = vrot.slane %v7587, 4
    %v7590 = vshll.u32 %v7398, 16
    %v7592 = vrot.slane %v7590, 5
    %v7593 = vor.u32 %v7589, %v7592
    %v7594 = vrot.slane %v7593, 4
    %v7596 = vshll.u32 %v7414, 16
    %v7598 = vrot.slane %v7596, 5
    %v7599 = vsel %vm427, %v7594, %v7598
    %v7601 = vshrl.u32 %v7399, 16
    %v7603 = vrot.slane %v7601, 4
    %v7604 = vshll.u32 %v7399, 16
    %v7606 = vrot.slane %v7604, 5
    %v7607 = vor.u32 %v7603, %v7606
    %v7608 = vrot.slane %v7607, 4
    %v7610 = vshll.u32 %v7415, 16
    %v7612 = vrot.slane %v7610, 5
    %v7613 = vsel %vm427, %v7608, %v7612
    %v7615 = vshrl.u32 %v7400, 16
    %v7617 = vrot.slane %v7615, 4
    %v7618 = vshll.u32 %v7400, 16
    %v7620 = vrot.slane %v7618, 5
    %v7621 = vor.u32 %v7617, %v7620
    %v7622 = vrot.slane %v7621, 4
    %v7624 = vshll.u32 %v7416, 16
    %v7626 = vrot.slane %v7624, 5
    %v7627 = vsel %vm427, %v7622, %v7626
    %v7629 = vshrl.u32 %v7401, 16
    %v7631 = vrot.slane %v7629, 4
    %v7632 = vshll.u32 %v7401, 16
    %v7634 = vrot.slane %v7632, 5
    %v7635 = vor.u32 %v7631, %v7634
    %v7636 = vrot.slane %v7635, 4
    %v7638 = vshll.u32 %v7417, 16
    %v7640 = vrot.slane %v7638, 5
    %v7641 = vsel %vm427, %v7636, %v7640
    %v7642 = vld [vmem:[#allocation2] sm:$0xe]
    %v7643 = vld [vmem:[#allocation2 + $0x8] sm:$0xe]
    %v7644 = vld [vmem:[#allocation2 + $0x10] sm:$0xe]
    %v7645 = vld [vmem:[#allocation2 + $0x18] sm:$0xe]
    %v7646 = vld [vmem:[#allocation2 + $0x20] sm:$0xe]
    %v7647 = vld [vmem:[#allocation2 + $0x28] sm:$0xe]
    %v7648 = vld [vmem:[#allocation2 + $0x30] sm:$0xe]
    %v7649 = vld [vmem:[#allocation2 + $0x38] sm:$0xe]
    %v7650 = vld [vmem:[#allocation2 + $0x50] sm:$0xe]
    %v7651 = vld [vmem:[#allocation2 + $0x58] sm:$0xe]
    %v7652 = vld [vmem:[#allocation2 + $0x60] sm:$0xe]
    %v7653 = vld [vmem:[#allocation2 + $0x68] sm:$0xe]
    %v7654 = vld [vmem:[#allocation2 + $0x70] sm:$0xe]
    %v7655 = vld [vmem:[#allocation2 + $0x78] sm:$0xe]
    %v7656 = vld [vmem:[#allocation2 + $0x80] sm:$0xe]
    %v7657 = vld [vmem:[#allocation2 + $0x88] sm:$0xe]
    %v7690 = vrot.slane %v7642, 5
    %v7691 = vrot.slane %v7690, 4
    %v7692 = vrot.slane %v7402, 5
    %v7693 = vsel %vm702, %v7691, %v7692
    %v7694 = vrot.slane %v7643, 5
    %v7695 = vrot.slane %v7694, 4
    %v7696 = vrot.slane %v7403, 5
    %v7697 = vsel %vm702, %v7695, %v7696
    %v7698 = vrot.slane %v7644, 5
    %v7699 = vrot.slane %v7698, 4
    %v7700 = vrot.slane %v7404, 5
    %v7701 = vsel %vm702, %v7699, %v7700
    %v7702 = vrot.slane %v7645, 5
    %v7703 = vrot.slane %v7702, 4
    %v7704 = vrot.slane %v7405, 5
    %v7705 = vsel %vm702, %v7703, %v7704
    %v7706 = vrot.slane %v7646, 5
    %v7707 = vrot.slane %v7706, 4
    %v7708 = vrot.slane %v7406, 5
    %v7709 = vsel %vm702, %v7707, %v7708
    %v7710 = vrot.slane %v7647, 5
    %v7711 = vrot.slane %v7710, 4
    %v7712 = vrot.slane %v7407, 5
    %v7713 = vsel %vm702, %v7711, %v7712
    %v7714 = vrot.slane %v7648, 5
    %v7715 = vrot.slane %v7714, 4
    %v7716 = vrot.slane %v7408, 5
    %v7717 = vsel %vm702, %v7715, %v7716
    %v7718 = vrot.slane %v7649, 5
    %v7719 = vrot.slane %v7718, 4
    %v7720 = vrot.slane %v7409, 5
    %v7721 = vsel %vm702, %v7719, %v7720
    %v7722 = vrot.slane %v7650, 5
    %v7723 = vrot.slane %v7722, 4
    %v7724 = vrot.slane %v7410, 5
    %v7725 = vsel %vm702, %v7723, %v7724
    %v7726 = vrot.slane %v7651, 5
    %v7727 = vrot.slane %v7726, 4
    %v7728 = vrot.slane %v7411, 5
    %v7729 = vsel %vm702, %v7727, %v7728
    %v7730 = vrot.slane %v7652, 5
    %v7731 = vrot.slane %v7730, 4
    %v7732 = vrot.slane %v7412, 5
    %v7733 = vsel %vm702, %v7731, %v7732
    %v7734 = vrot.slane %v7653, 5
    %v7735 = vrot.slane %v7734, 4
    %v7736 = vrot.slane %v7413, 5
    %v7737 = vsel %vm702, %v7735, %v7736
    %v7738 = vrot.slane %v7654, 5
    %v7739 = vrot.slane %v7738, 4
    %v7740 = vrot.slane %v7414, 5
    %v7741 = vsel %vm702, %v7739, %v7740
    %v7742 = vrot.slane %v7655, 5
    %v7743 = vrot.slane %v7742, 4
    %v7744 = vrot.slane %v7415, 5
    %v7745 = vsel %vm702, %v7743, %v7744
    %v7746 = vrot.slane %v7656, 5
    %v7747 = vrot.slane %v7746, 4
    %v7748 = vrot.slane %v7416, 5
    %v7749 = vsel %vm702, %v7747, %v7748
    %v7750 = vrot.slane %v7657, 5
    %v7751 = vrot.slane %v7750, 4
    %v7752 = vrot.slane %v7417, 5
    %v7753 = vsel %vm702, %v7751, %v7752
    %v7754 = vld [vmem:[%s290] sm:$0xf]
    %v7755 = vld [vmem:[%s290 + $0x8] sm:$0xf]
    %v7756 = vld [vmem:[%s290 + $0x10] sm:$0xf]
    %v7757 = vld [vmem:[%s290 + $0x18] sm:$0xf]
    %v7758 = vld [vmem:[%s290 + $0x20] sm:$0xf]
    %v7759 = vld [vmem:[%s290 + $0x28] sm:$0xf]
    %v7760 = vld [vmem:[%s290 + $0x30] sm:$0xf]
    %v7761 = vld [vmem:[%s290 + $0x38] sm:$0xf]
    %v7762 = vld [vmem:[%s290 + $0x50] sm:$0xf]
    %v7763 = vld [vmem:[%s290 + $0x58] sm:$0xf]
    %v7764 = vld [vmem:[%s290 + $0x60] sm:$0xf]
    %v7765 = vld [vmem:[%s290 + $0x68] sm:$0xf]
    %v7766 = vld [vmem:[%s290 + $0x70] sm:$0xf]
    %v7767 = vld [vmem:[%s290 + $0x78] sm:$0xf]
    %v7768 = vld [vmem:[%s290 + $0x80] sm:$0xf]
    %v7769 = vld [vmem:[%s290 + $0x88] sm:$0xf]
    %v7770 = vld [vmem:[%s290 + $0x4] sm:$0x1]
    %v7771 = vld [vmem:[%s290 + $0xc] sm:$0x1]
    %v7772 = vld [vmem:[%s290 + $0x14] sm:$0x1]
    %v7773 = vld [vmem:[%s290 + $0x1c] sm:$0x1]
    %v7774 = vld [vmem:[%s290 + $0x24] sm:$0x1]
    %v7775 = vld [vmem:[%s290 + $0x2c] sm:$0x1]
    %v7776 = vld [vmem:[%s290 + $0x34] sm:$0x1]
    %v7777 = vld [vmem:[%s290 + $0x3c] sm:$0x1]
    %v7778 = vld [vmem:[%s290 + $0x54] sm:$0x1]
    %v7779 = vld [vmem:[%s290 + $0x5c] sm:$0x1]
    %v7780 = vld [vmem:[%s290 + $0x64] sm:$0x1]
    %v7781 = vld [vmem:[%s290 + $0x6c] sm:$0x1]
    %v7782 = vld [vmem:[%s290 + $0x74] sm:$0x1]
    %v7783 = vld [vmem:[%s290 + $0x7c] sm:$0x1]
    %v7784 = vld [vmem:[%s290 + $0x84] sm:$0x1]
    %v7785 = vld [vmem:[%s290 + $0x8c] sm:$0x1]
    %v7787 = vshrl.u32 %v7754, 16
    %v7789 = vrot.slane %v7787, 4
    %v7790 = vshll.u32 %v7754, 16
    %v7792 = vrot.slane %v7790, 5
    %v7793 = vor.u32 %v7789, %v7792
    %v7794 = vrot.slane %v7793, 4
    %v7796 = vshll.u32 %v7770, 16
    %v7798 = vrot.slane %v7796, 5
    %v7799 = vsel %vm427, %v7794, %v7798
    %v7801 = vshrl.u32 %v7755, 16
    %v7803 = vrot.slane %v7801, 4
    %v7804 = vshll.u32 %v7755, 16
    %v7806 = vrot.slane %v7804, 5
    %v7807 = vor.u32 %v7803, %v7806
    %v7808 = vrot.slane %v7807, 4
    %v7810 = vshll.u32 %v7771, 16
    %v7812 = vrot.slane %v7810, 5
    %v7813 = vsel %vm427, %v7808, %v7812
    %v7815 = vshrl.u32 %v7756, 16
    %v7817 = vrot.slane %v7815, 4
    %v7818 = vshll.u32 %v7756, 16
    %v7820 = vrot.slane %v7818, 5
    %v7821 = vor.u32 %v7817, %v7820
    %v7822 = vrot.slane %v7821, 4
    %v7824 = vshll.u32 %v7772, 16
    %v7826 = vrot.slane %v7824, 5
    %v7827 = vsel %vm427, %v7822, %v7826
    %v7829 = vshrl.u32 %v7757, 16
    %v7831 = vrot.slane %v7829, 4
    %v7832 = vshll.u32 %v7757, 16
    %v7834 = vrot.slane %v7832, 5
    %v7835 = vor.u32 %v7831, %v7834
    %v7836 = vrot.slane %v7835, 4
    %v7838 = vshll.u32 %v7773, 16
    %v7840 = vrot.slane %v7838, 5
    %v7841 = vsel %vm427, %v7836, %v7840
    %v7843 = vshrl.u32 %v7758, 16
    %v7845 = vrot.slane %v7843, 4
    %v7846 = vshll.u32 %v7758, 16
    %v7848 = vrot.slane %v7846, 5
    %v7849 = vor.u32 %v7845, %v7848
    %v7850 = vrot.slane %v7849, 4
    %v7852 = vshll.u32 %v7774, 16
    %v7854 = vrot.slane %v7852, 5
    %v7855 = vsel %vm427, %v7850, %v7854
    %v7857 = vshrl.u32 %v7759, 16
    %v7859 = vrot.slane %v7857, 4
    %v7860 = vshll.u32 %v7759, 16
    %v7862 = vrot.slane %v7860, 5
    %v7863 = vor.u32 %v7859, %v7862
    %v7864 = vrot.slane %v7863, 4
    %v7866 = vshll.u32 %v7775, 16
    %v7868 = vrot.slane %v7866, 5
    %v7869 = vsel %vm427, %v7864, %v7868
    %v7871 = vshrl.u32 %v7760, 16
    %v7873 = vrot.slane %v7871, 4
    %v7874 = vshll.u32 %v7760, 16
    %v7876 = vrot.slane %v7874, 5
    %v7877 = vor.u32 %v7873, %v7876
    %v7878 = vrot.slane %v7877, 4
    %v7880 = vshll.u32 %v7776, 16
    %v7882 = vrot.slane %v7880, 5
    %v7883 = vsel %vm427, %v7878, %v7882
    %v7885 = vshrl.u32 %v7761, 16
    %v7887 = vrot.slane %v7885, 4
    %v7888 = vshll.u32 %v7761, 16
    %v7890 = vrot.slane %v7888, 5
    %v7891 = vor.u32 %v7887, %v7890
    %v7892 = vrot.slane %v7891, 4
    %v7894 = vshll.u32 %v7777, 16
    %v7896 = vrot.slane %v7894, 5
    %v7897 = vsel %vm427, %v7892, %v7896
    %v7899 = vshrl.u32 %v7762, 16
    %v7901 = vrot.slane %v7899, 4
    %v7902 = vshll.u32 %v7762, 16
    %v7904 = vrot.slane %v7902, 5
    %v7905 = vor.u32 %v7901, %v7904
    %v7906 = vrot.slane %v7905, 4
    %v7908 = vshll.u32 %v7778, 16
    %v7910 = vrot.slane %v7908, 5
    %v7911 = vsel %vm427, %v7906, %v7910
    %v7913 = vshrl.u32 %v7763, 16
    %v7915 = vrot.slane %v7913, 4
    %v7916 = vshll.u32 %v7763, 16
    %v7918 = vrot.slane %v7916, 5
    %v7919 = vor.u32 %v7915, %v7918
    %v7920 = vrot.slane %v7919, 4
    %v7922 = vshll.u32 %v7779, 16
    %v7924 = vrot.slane %v7922, 5
    %v7925 = vsel %vm427, %v7920, %v7924
    %v7927 = vshrl.u32 %v7764, 16
    %v7929 = vrot.slane %v7927, 4
    %v7930 = vshll.u32 %v7764, 16
    %v7932 = vrot.slane %v7930, 5
    %v7933 = vor.u32 %v7929, %v7932
    %v7934 = vrot.slane %v7933, 4
    %v7936 = vshll.u32 %v7780, 16
    %v7938 = vrot.slane %v7936, 5
    %v7939 = vsel %vm427, %v7934, %v7938
    %v7941 = vshrl.u32 %v7765, 16
    %v7943 = vrot.slane %v7941, 4
    %v7944 = vshll.u32 %v7765, 16
    %v7946 = vrot.slane %v7944, 5
    %v7947 = vor.u32 %v7943, %v7946
    %v7948 = vrot.slane %v7947, 4
    %v7950 = vshll.u32 %v7781, 16
    %v7952 = vrot.slane %v7950, 5
    %v7953 = vsel %vm427, %v7948, %v7952
    %v7955 = vshrl.u32 %v7766, 16
    %v7957 = vrot.slane %v7955, 4
    %v7958 = vshll.u32 %v7766, 16
    %v7960 = vrot.slane %v7958, 5
    %v7961 = vor.u32 %v7957, %v7960
    %v7962 = vrot.slane %v7961, 4
    %v7964 = vshll.u32 %v7782, 16
    %v7966 = vrot.slane %v7964, 5
    %v7967 = vsel %vm427, %v7962, %v7966
    %v7969 = vshrl.u32 %v7767, 16
    %v7971 = vrot.slane %v7969, 4
    %v7972 = vshll.u32 %v7767, 16
    %v7974 = vrot.slane %v7972, 5
    %v7975 = vor.u32 %v7971, %v7974
    %v7976 = vrot.slane %v7975, 4
    %v7978 = vshll.u32 %v7783, 16
    %v7980 = vrot.slane %v7978, 5
    %v7981 = vsel %vm427, %v7976, %v7980
    %v7983 = vshrl.u32 %v7768, 16
    %v7985 = vrot.slane %v7983, 4
    %v7986 = vshll.u32 %v7768, 16
    %v7988 = vrot.slane %v7986, 5
    %v7989 = vor.u32 %v7985, %v7988
    %v7990 = vrot.slane %v7989, 4
    %v7992 = vshll.u32 %v7784, 16
    %v7994 = vrot.slane %v7992, 5
    %v7995 = vsel %vm427, %v7990, %v7994
    %v7997 = vshrl.u32 %v7769, 16
    %v7999 = vrot.slane %v7997, 4
    %v8000 = vshll.u32 %v7769, 16
    %v8002 = vrot.slane %v8000, 5
    %v8003 = vor.u32 %v7999, %v8002
    %v8004 = vrot.slane %v8003, 4
    %v8006 = vshll.u32 %v7785, 16
    %v8008 = vrot.slane %v8006, 5
    %v8009 = vsel %vm427, %v8004, %v8008
    %v8010 = vld [vmem:[%s290] sm:$0xe]
    %v8011 = vld [vmem:[%s290 + $0x8] sm:$0xe]
    %v8012 = vld [vmem:[%s290 + $0x10] sm:$0xe]
    %v8013 = vld [vmem:[%s290 + $0x18] sm:$0xe]
    %v8014 = vld [vmem:[%s290 + $0x20] sm:$0xe]
    %v8015 = vld [vmem:[%s290 + $0x28] sm:$0xe]
    %v8016 = vld [vmem:[%s290 + $0x30] sm:$0xe]
    %v8017 = vld [vmem:[%s290 + $0x38] sm:$0xe]
    %v8018 = vld [vmem:[%s290 + $0x50] sm:$0xe]
    %v8019 = vld [vmem:[%s290 + $0x58] sm:$0xe]
    %v8020 = vld [vmem:[%s290 + $0x60] sm:$0xe]
    %v8021 = vld [vmem:[%s290 + $0x68] sm:$0xe]
    %v8022 = vld [vmem:[%s290 + $0x70] sm:$0xe]
    %v8023 = vld [vmem:[%s290 + $0x78] sm:$0xe]
    %v8024 = vld [vmem:[%s290 + $0x80] sm:$0xe]
    %v8025 = vld [vmem:[%s290 + $0x88] sm:$0xe]
    %v8058 = vrot.slane %v8010, 5
    %v8059 = vrot.slane %v8058, 4
    %v8060 = vrot.slane %v7770, 5
    %v8061 = vsel %vm702, %v8059, %v8060
    %v8062 = vrot.slane %v8011, 5
    %v8063 = vrot.slane %v8062, 4
    %v8064 = vrot.slane %v7771, 5
    %v8065 = vsel %vm702, %v8063, %v8064
    %v8066 = vrot.slane %v8012, 5
    %v8067 = vrot.slane %v8066, 4
    %v8068 = vrot.slane %v7772, 5
    %v8069 = vsel %vm702, %v8067, %v8068
    %v8070 = vrot.slane %v8013, 5
    %v8071 = vrot.slane %v8070, 4
    %v8072 = vrot.slane %v7773, 5
    %v8073 = vsel %vm702, %v8071, %v8072
    %v8074 = vrot.slane %v8014, 5
    %v8075 = vrot.slane %v8074, 4
    %v8076 = vrot.slane %v7774, 5
    %v8077 = vsel %vm702, %v8075, %v8076
    %v8078 = vrot.slane %v8015, 5
    %v8079 = vrot.slane %v8078, 4
    %v8080 = vrot.slane %v7775, 5
    %v8081 = vsel %vm702, %v8079, %v8080
    %v8082 = vrot.slane %v8016, 5
    %v8083 = vrot.slane %v8082, 4
    %v8084 = vrot.slane %v7776, 5
    %v8085 = vsel %vm702, %v8083, %v8084
    %v8086 = vrot.slane %v8017, 5
    %v8087 = vrot.slane %v8086, 4
    %v8088 = vrot.slane %v7777, 5
    %v8089 = vsel %vm702, %v8087, %v8088
    %v8090 = vrot.slane %v8018, 5
    %v8091 = vrot.slane %v8090, 4
    %v8092 = vrot.slane %v7778, 5
    %v8093 = vsel %vm702, %v8091, %v8092
    %v8094 = vrot.slane %v8019, 5
    %v8095 = vrot.slane %v8094, 4
    %v8096 = vrot.slane %v7779, 5
    %v8097 = vsel %vm702, %v8095, %v8096
    %v8098 = vrot.slane %v8020, 5
    %v8099 = vrot.slane %v8098, 4
    %v8100 = vrot.slane %v7780, 5
    %v8101 = vsel %vm702, %v8099, %v8100
    %v8102 = vrot.slane %v8021, 5
    %v8103 = vrot.slane %v8102, 4
    %v8104 = vrot.slane %v7781, 5
    %v8105 = vsel %vm702, %v8103, %v8104
    %v8106 = vrot.slane %v8022, 5
    %v8107 = vrot.slane %v8106, 4
    %v8108 = vrot.slane %v7782, 5
    %v8109 = vsel %vm702, %v8107, %v8108
    %v8110 = vrot.slane %v8023, 5
    %v8111 = vrot.slane %v8110, 4
    %v8112 = vrot.slane %v7783, 5
    %v8113 = vsel %vm702, %v8111, %v8112
    %v8114 = vrot.slane %v8024, 5
    %v8115 = vrot.slane %v8114, 4
    %v8116 = vrot.slane %v7784, 5
    %v8117 = vsel %vm702, %v8115, %v8116
    %v8118 = vrot.slane %v8025, 5
    %v8119 = vrot.slane %v8118, 4
    %v8120 = vrot.slane %v7785, 5
    %v8121 = vsel %vm702, %v8119, %v8120
    %v8122 = vld [vmem:[%s1135] sm:$0xf]
    %v8123 = vld [vmem:[%s1135 + $0x8] sm:$0xf]
    %v8124 = vld [vmem:[%s1135 + $0x10] sm:$0xf]
    %v8125 = vld [vmem:[%s1135 + $0x18] sm:$0xf]
    %v8126 = vld [vmem:[%s1135 + $0x20] sm:$0xf]
    %v8127 = vld [vmem:[%s1135 + $0x28] sm:$0xf]
    %v8128 = vld [vmem:[%s1135 + $0x30] sm:$0xf]
    %v8129 = vld [vmem:[%s1135 + $0x38] sm:$0xf]
    %v8130 = vld [vmem:[%s1135 + $0x50] sm:$0xf]
    %v8131 = vld [vmem:[%s1135 + $0x58] sm:$0xf]
    %v8132 = vld [vmem:[%s1135 + $0x60] sm:$0xf]
    %v8133 = vld [vmem:[%s1135 + $0x68] sm:$0xf]
    %v8134 = vld [vmem:[%s1135 + $0x70] sm:$0xf]
    %v8135 = vld [vmem:[%s1135 + $0x78] sm:$0xf]
    %v8136 = vld [vmem:[%s1135 + $0x80] sm:$0xf]
    %v8137 = vld [vmem:[%s1135 + $0x88] sm:$0xf]
    %v8138 = vld [vmem:[%s1135 + $0x4] sm:$0x1]
    %v8139 = vld [vmem:[%s1135 + $0xc] sm:$0x1]
    %v8140 = vld [vmem:[%s1135 + $0x14] sm:$0x1]
    %v8141 = vld [vmem:[%s1135 + $0x1c] sm:$0x1]
    %v8142 = vld [vmem:[%s1135 + $0x24] sm:$0x1]
    %v8143 = vld [vmem:[%s1135 + $0x2c] sm:$0x1]
    %v8144 = vld [vmem:[%s1135 + $0x34] sm:$0x1]
    %v8145 = vld [vmem:[%s1135 + $0x3c] sm:$0x1]
    %v8146 = vld [vmem:[%s1135 + $0x54] sm:$0x1]
    %v8147 = vld [vmem:[%s1135 + $0x5c] sm:$0x1]
    %v8148 = vld [vmem:[%s1135 + $0x64] sm:$0x1]
    %v8149 = vld [vmem:[%s1135 + $0x6c] sm:$0x1]
    %v8150 = vld [vmem:[%s1135 + $0x74] sm:$0x1]
    %v8151 = vld [vmem:[%s1135 + $0x7c] sm:$0x1]
    %v8152 = vld [vmem:[%s1135 + $0x84] sm:$0x1]
    %v8153 = vld [vmem:[%s1135 + $0x8c] sm:$0x1]
    %v8155 = vshrl.u32 %v8122, 16
    %v8157 = vrot.slane %v8155, 4
    %v8158 = vshll.u32 %v8122, 16
    %v8160 = vrot.slane %v8158, 5
    %v8161 = vor.u32 %v8157, %v8160
    %v8162 = vrot.slane %v8161, 4
    %v8164 = vshll.u32 %v8138, 16
    %v8166 = vrot.slane %v8164, 5
    %v8167 = vsel %vm427, %v8162, %v8166
    %v8169 = vshrl.u32 %v8123, 16
    %v8171 = vrot.slane %v8169, 4
    %v8172 = vshll.u32 %v8123, 16
    %v8174 = vrot.slane %v8172, 5
    %v8175 = vor.u32 %v8171, %v8174
    %v8176 = vrot.slane %v8175, 4
    %v8178 = vshll.u32 %v8139, 16
    %v8180 = vrot.slane %v8178, 5
    %v8181 = vsel %vm427, %v8176, %v8180
    %v8183 = vshrl.u32 %v8124, 16
    %v8185 = vrot.slane %v8183, 4
    %v8186 = vshll.u32 %v8124, 16
    %v8188 = vrot.slane %v8186, 5
    %v8189 = vor.u32 %v8185, %v8188
    %v8190 = vrot.slane %v8189, 4
    %v8192 = vshll.u32 %v8140, 16
    %v8194 = vrot.slane %v8192, 5
    %v8195 = vsel %vm427, %v8190, %v8194
    %v8197 = vshrl.u32 %v8125, 16
    %v8199 = vrot.slane %v8197, 4
    %v8200 = vshll.u32 %v8125, 16
    %v8202 = vrot.slane %v8200, 5
    %v8203 = vor.u32 %v8199, %v8202
    %v8204 = vrot.slane %v8203, 4
    %v8206 = vshll.u32 %v8141, 16
    %v8208 = vrot.slane %v8206, 5
    %v8209 = vsel %vm427, %v8204, %v8208
    %v8211 = vshrl.u32 %v8126, 16
    %v8213 = vrot.slane %v8211, 4
    %v8214 = vshll.u32 %v8126, 16
    %v8216 = vrot.slane %v8214, 5
    %v8217 = vor.u32 %v8213, %v8216
    %v8218 = vrot.slane %v8217, 4
    %v8220 = vshll.u32 %v8142, 16
    %v8222 = vrot.slane %v8220, 5
    %v8223 = vsel %vm427, %v8218, %v8222
    %v8225 = vshrl.u32 %v8127, 16
    %v8227 = vrot.slane %v8225, 4
    %v8228 = vshll.u32 %v8127, 16
    %v8230 = vrot.slane %v8228, 5
    %v8231 = vor.u32 %v8227, %v8230
    %v8232 = vrot.slane %v8231, 4
    %v8234 = vshll.u32 %v8143, 16
    %v8236 = vrot.slane %v8234, 5
    %v8237 = vsel %vm427, %v8232, %v8236
    %v8239 = vshrl.u32 %v8128, 16
    %v8241 = vrot.slane %v8239, 4
    %v8242 = vshll.u32 %v8128, 16
    %v8244 = vrot.slane %v8242, 5
    %v8245 = vor.u32 %v8241, %v8244
    %v8246 = vrot.slane %v8245, 4
    %v8248 = vshll.u32 %v8144, 16
    %v8250 = vrot.slane %v8248, 5
    %v8251 = vsel %vm427, %v8246, %v8250
    %v8253 = vshrl.u32 %v8129, 16
    %v8255 = vrot.slane %v8253, 4
    %v8256 = vshll.u32 %v8129, 16
    %v8258 = vrot.slane %v8256, 5
    %v8259 = vor.u32 %v8255, %v8258
    %v8260 = vrot.slane %v8259, 4
    %v8262 = vshll.u32 %v8145, 16
    %v8264 = vrot.slane %v8262, 5
    %v8265 = vsel %vm427, %v8260, %v8264
    %v8267 = vshrl.u32 %v8130, 16
    %v8269 = vrot.slane %v8267, 4
    %v8270 = vshll.u32 %v8130, 16
    %v8272 = vrot.slane %v8270, 5
    %v8273 = vor.u32 %v8269, %v8272
    %v8274 = vrot.slane %v8273, 4
    %v8276 = vshll.u32 %v8146, 16
    %v8278 = vrot.slane %v8276, 5
    %v8279 = vsel %vm427, %v8274, %v8278
    %v8281 = vshrl.u32 %v8131, 16
    %v8283 = vrot.slane %v8281, 4
    %v8284 = vshll.u32 %v8131, 16
    %v8286 = vrot.slane %v8284, 5
    %v8287 = vor.u32 %v8283, %v8286
    %v8288 = vrot.slane %v8287, 4
    %v8290 = vshll.u32 %v8147, 16
    %v8292 = vrot.slane %v8290, 5
    %v8293 = vsel %vm427, %v8288, %v8292
    %v8295 = vshrl.u32 %v8132, 16
    %v8297 = vrot.slane %v8295, 4
    %v8298 = vshll.u32 %v8132, 16
    %v8300 = vrot.slane %v8298, 5
    %v8301 = vor.u32 %v8297, %v8300
    %v8302 = vrot.slane %v8301, 4
    %v8304 = vshll.u32 %v8148, 16
    %v8306 = vrot.slane %v8304, 5
    %v8307 = vsel %vm427, %v8302, %v8306
    %v8309 = vshrl.u32 %v8133, 16
    %v8311 = vrot.slane %v8309, 4
    %v8312 = vshll.u32 %v8133, 16
    %v8314 = vrot.slane %v8312, 5
    %v8315 = vor.u32 %v8311, %v8314
    %v8316 = vrot.slane %v8315, 4
    %v8318 = vshll.u32 %v8149, 16
    %v8320 = vrot.slane %v8318, 5
    %v8321 = vsel %vm427, %v8316, %v8320
    %v8323 = vshrl.u32 %v8134, 16
    %v8325 = vrot.slane %v8323, 4
    %v8326 = vshll.u32 %v8134, 16
    %v8328 = vrot.slane %v8326, 5
    %v8329 = vor.u32 %v8325, %v8328
    %v8330 = vrot.slane %v8329, 4
    %v8332 = vshll.u32 %v8150, 16
    %v8334 = vrot.slane %v8332, 5
    %v8335 = vsel %vm427, %v8330, %v8334
    %v8337 = vshrl.u32 %v8135, 16
    %v8339 = vrot.slane %v8337, 4
    %v8340 = vshll.u32 %v8135, 16
    %v8342 = vrot.slane %v8340, 5
    %v8343 = vor.u32 %v8339, %v8342
    %v8344 = vrot.slane %v8343, 4
    %v8346 = vshll.u32 %v8151, 16
    %v8348 = vrot.slane %v8346, 5
    %v8349 = vsel %vm427, %v8344, %v8348
    %v8351 = vshrl.u32 %v8136, 16
    %v8353 = vrot.slane %v8351, 4
    %v8354 = vshll.u32 %v8136, 16
    %v8356 = vrot.slane %v8354, 5
    %v8357 = vor.u32 %v8353, %v8356
    %v8358 = vrot.slane %v8357, 4
    %v8360 = vshll.u32 %v8152, 16
    %v8362 = vrot.slane %v8360, 5
    %v8363 = vsel %vm427, %v8358, %v8362
    %v8365 = vshrl.u32 %v8137, 16
    %v8367 = vrot.slane %v8365, 4
    %v8368 = vshll.u32 %v8137, 16
    %v8370 = vrot.slane %v8368, 5
    %v8371 = vor.u32 %v8367, %v8370
    %v8372 = vrot.slane %v8371, 4
    %v8374 = vshll.u32 %v8153, 16
    %v8376 = vrot.slane %v8374, 5
    %v8377 = vsel %vm427, %v8372, %v8376
    %v8378 = vld [vmem:[%s1135] sm:$0xe]
    %v8379 = vld [vmem:[%s1135 + $0x8] sm:$0xe]
    %v8380 = vld [vmem:[%s1135 + $0x10] sm:$0xe]
    %v8381 = vld [vmem:[%s1135 + $0x18] sm:$0xe]
    %v8382 = vld [vmem:[%s1135 + $0x20] sm:$0xe]
    %v8383 = vld [vmem:[%s1135 + $0x28] sm:$0xe]
    %v8384 = vld [vmem:[%s1135 + $0x30] sm:$0xe]
    %v8385 = vld [vmem:[%s1135 + $0x38] sm:$0xe]
    %v8386 = vld [vmem:[%s1135 + $0x50] sm:$0xe]
    %v8387 = vld [vmem:[%s1135 + $0x58] sm:$0xe]
    %v8388 = vld [vmem:[%s1135 + $0x60] sm:$0xe]
    %v8389 = vld [vmem:[%s1135 + $0x68] sm:$0xe]
    %v8390 = vld [vmem:[%s1135 + $0x70] sm:$0xe]
    %v8391 = vld [vmem:[%s1135 + $0x78] sm:$0xe]
    %v8392 = vld [vmem:[%s1135 + $0x80] sm:$0xe]
    %v8393 = vld [vmem:[%s1135 + $0x88] sm:$0xe]
    %v8426 = vrot.slane %v8378, 5
    %v8427 = vrot.slane %v8426, 4
    %v8428 = vrot.slane %v8138, 5
    %v8429 = vsel %vm702, %v8427, %v8428
    %v8430 = vrot.slane %v8379, 5
    %v8431 = vrot.slane %v8430, 4
    %v8432 = vrot.slane %v8139, 5
    %v8433 = vsel %vm702, %v8431, %v8432
    %v8434 = vrot.slane %v8380, 5
    %v8435 = vrot.slane %v8434, 4
    %v8436 = vrot.slane %v8140, 5
    %v8437 = vsel %vm702, %v8435, %v8436
    %v8438 = vrot.slane %v8381, 5
    %v8439 = vrot.slane %v8438, 4
    %v8440 = vrot.slane %v8141, 5
    %v8441 = vsel %vm702, %v8439, %v8440
    %v8442 = vrot.slane %v8382, 5
    %v8443 = vrot.slane %v8442, 4
    %v8444 = vrot.slane %v8142, 5
    %v8445 = vsel %vm702, %v8443, %v8444
    %v8446 = vrot.slane %v8383, 5
    %v8447 = vrot.slane %v8446, 4
    %v8448 = vrot.slane %v8143, 5
    %v8449 = vsel %vm702, %v8447, %v8448
    %v8450 = vrot.slane %v8384, 5
    %v8451 = vrot.slane %v8450, 4
    %v8452 = vrot.slane %v8144, 5
    %v8453 = vsel %vm702, %v8451, %v8452
    %v8454 = vrot.slane %v8385, 5
    %v8455 = vrot.slane %v8454, 4
    %v8456 = vrot.slane %v8145, 5
    %v8457 = vsel %vm702, %v8455, %v8456
    %v8458 = vrot.slane %v8386, 5
    %v8459 = vrot.slane %v8458, 4
    %v8460 = vrot.slane %v8146, 5
    %v8461 = vsel %vm702, %v8459, %v8460
    %v8462 = vrot.slane %v8387, 5
    %v8463 = vrot.slane %v8462, 4
    %v8464 = vrot.slane %v8147, 5
    %v8465 = vsel %vm702, %v8463, %v8464
    %v8466 = vrot.slane %v8388, 5
    %v8467 = vrot.slane %v8466, 4
    %v8468 = vrot.slane %v8148, 5
    %v8469 = vsel %vm702, %v8467, %v8468
    %v8470 = vrot.slane %v8389, 5
    %v8471 = vrot.slane %v8470, 4
    %v8472 = vrot.slane %v8149, 5
    %v8473 = vsel %vm702, %v8471, %v8472
    %v8474 = vrot.slane %v8390, 5
    %v8475 = vrot.slane %v8474, 4
    %v8476 = vrot.slane %v8150, 5
    %v8477 = vsel %vm702, %v8475, %v8476
    %v8478 = vrot.slane %v8391, 5
    %v8479 = vrot.slane %v8478, 4
    %v8480 = vrot.slane %v8151, 5
    %v8481 = vsel %vm702, %v8479, %v8480
    %v8482 = vrot.slane %v8392, 5
    %v8483 = vrot.slane %v8482, 4
    %v8484 = vrot.slane %v8152, 5
    %v8485 = vsel %vm702, %v8483, %v8484
    %v8486 = vrot.slane %v8393, 5
    %v8487 = vrot.slane %v8486, 4
    %v8488 = vrot.slane %v8153, 5
    %v8489 = vsel %vm702, %v8487, %v8488
    %v8506 = vunpack.c.l.b16 %v7386
    %v8507 = vunpack.c.l.b16 %v7387
    %v8508 = vunpack.c.l.b16 %v7388
    %v8509 = vunpack.c.l.b16 %v7389
    %v8510 = vunpack.c.l.b16 %v7390
    %v8511 = vunpack.c.l.b16 %v7391
    %v8512 = vunpack.c.l.b16 %v7392
    %v8513 = vunpack.c.l.b16 %v7393
    %v8514 = vunpack.c.l.b16 %v7394
    %v8515 = vunpack.c.l.b16 %v7395
    %v8516 = vunpack.c.l.b16 %v7396
    %v8517 = vunpack.c.l.b16 %v7397
    %v8518 = vunpack.c.l.b16 %v7398
    %v8519 = vunpack.c.l.b16 %v7399
    %v8520 = vunpack.c.l.b16 %v7400
    %v8521 = vunpack.c.l.b16 %v7401
    %v8522 = vpack.c.b16 %v8507, %v8506
    %v8523 = vpack.c.b16 %v8509, %v8508
    %v8524 = vpack.c.b16 %v8511, %v8510
    %v8525 = vpack.c.b16 %v8513, %v8512
    %v8526 = vpack.c.b16 %v8515, %v8514
    %v8527 = vpack.c.b16 %v8517, %v8516
    %v8528 = vpack.c.b16 %v8519, %v8518
    %v8529 = vpack.c.b16 %v8521, %v8520
    %v8530 = vunpack.c.l.b16 %v7431
    %v8531 = vunpack.c.l.b16 %v7445
    %v8532 = vunpack.c.l.b16 %v7459
    %v8533 = vunpack.c.l.b16 %v7473
    %v8534 = vunpack.c.l.b16 %v7487
    %v8535 = vunpack.c.l.b16 %v7501
    %v8536 = vunpack.c.l.b16 %v7515
    %v8537 = vunpack.c.l.b16 %v7529
    %v8538 = vunpack.c.l.b16 %v7543
    %v8539 = vunpack.c.l.b16 %v7557
    %v8540 = vunpack.c.l.b16 %v7571
    %v8541 = vunpack.c.l.b16 %v7585
    %v8542 = vunpack.c.l.b16 %v7599
    %v8543 = vunpack.c.l.b16 %v7613
    %v8544 = vunpack.c.l.b16 %v7627
    %v8545 = vunpack.c.l.b16 %v7641
    %v8546 = vpack.c.b16 %v8531, %v8530
    %v8547 = vpack.c.b16 %v8533, %v8532
    %v8548 = vpack.c.b16 %v8535, %v8534
    %v8549 = vpack.c.b16 %v8537, %v8536
    %v8550 = vpack.c.b16 %v8539, %v8538
    %v8551 = vpack.c.b16 %v8541, %v8540
    %v8552 = vpack.c.b16 %v8543, %v8542
    %v8553 = vpack.c.b16 %v8545, %v8544
    %8554 = vrot.lane.b32.xlu0 %v8546, 32
    %v8555 = vpop.permute.xlu0 %8554
    %8556 = vrot.lane.b32.xlu0 %v8547, 32
    %v8557 = vpop.permute.xlu0 %8556
    %8558 = vrot.lane.b32.xlu0 %v8548, 32
    %v8559 = vpop.permute.xlu0 %8558
    %8560 = vrot.lane.b32.xlu0 %v8549, 32
    %v8561 = vpop.permute.xlu0 %8560
    %8562 = vrot.lane.b32.xlu0 %v8550, 32
    %v8563 = vpop.permute.xlu0 %8562
    %8564 = vrot.lane.b32.xlu0 %v8551, 32
    %v8565 = vpop.permute.xlu0 %8564
    %8566 = vrot.lane.b32.xlu0 %v8552, 32
    %v8567 = vpop.permute.xlu0 %8566
    %8568 = vrot.lane.b32.xlu0 %v8553, 32
    %v8569 = vpop.permute.xlu0 %8568
    %v8570 = vunpack.c.l.b16 %v7693
    %v8571 = vunpack.c.l.b16 %v7697
    %v8572 = vunpack.c.l.b16 %v7701
    %v8573 = vunpack.c.l.b16 %v7705
    %v8574 = vunpack.c.l.b16 %v7709
    %v8575 = vunpack.c.l.b16 %v7713
    %v8576 = vunpack.c.l.b16 %v7717
    %v8577 = vunpack.c.l.b16 %v7721
    %v8578 = vunpack.c.l.b16 %v7725
    %v8579 = vunpack.c.l.b16 %v7729
    %v8580 = vunpack.c.l.b16 %v7733
    %v8581 = vunpack.c.l.b16 %v7737
    %v8582 = vunpack.c.l.b16 %v7741
    %v8583 = vunpack.c.l.b16 %v7745
    %v8584 = vunpack.c.l.b16 %v7749
    %v8585 = vunpack.c.l.b16 %v7753
    %v8586 = vpack.c.b16 %v8571, %v8570
    %v8587 = vpack.c.b16 %v8573, %v8572
    %v8588 = vpack.c.b16 %v8575, %v8574
    %v8589 = vpack.c.b16 %v8577, %v8576
    %v8590 = vpack.c.b16 %v8579, %v8578
    %v8591 = vpack.c.b16 %v8581, %v8580
    %v8592 = vpack.c.b16 %v8583, %v8582
    %v8593 = vpack.c.b16 %v8585, %v8584
    %8594 = vrot.lane.b32.xlu0 %v8586, 64
    %v8595 = vpop.permute.xlu0 %8594
    %8596 = vrot.lane.b32.xlu0 %v8587, 64
    %v8597 = vpop.permute.xlu0 %8596
    %8598 = vrot.lane.b32.xlu0 %v8588, 64
    %v8599 = vpop.permute.xlu0 %8598
    %8600 = vrot.lane.b32.xlu0 %v8589, 64
    %v8601 = vpop.permute.xlu0 %8600
    %8602 = vrot.lane.b32.xlu0 %v8590, 64
    %v8603 = vpop.permute.xlu0 %8602
    %8604 = vrot.lane.b32.xlu0 %v8591, 64
    %v8605 = vpop.permute.xlu0 %8604
    %8606 = vrot.lane.b32.xlu0 %v8592, 64
    %v8607 = vpop.permute.xlu0 %8606
    %8608 = vrot.lane.b32.xlu0 %v8593, 64
    %v8609 = vpop.permute.xlu0 %8608
    %v8626 = vunpack.c.l.b16 %v7754
    %v8627 = vunpack.c.l.b16 %v7755
    %v8628 = vunpack.c.l.b16 %v7756
    %v8629 = vunpack.c.l.b16 %v7757
    %v8630 = vunpack.c.l.b16 %v7758
    %v8631 = vunpack.c.l.b16 %v7759
    %v8632 = vunpack.c.l.b16 %v7760
    %v8633 = vunpack.c.l.b16 %v7761
    %v8634 = vunpack.c.l.b16 %v7762
    %v8635 = vunpack.c.l.b16 %v7763
    %v8636 = vunpack.c.l.b16 %v7764
    %v8637 = vunpack.c.l.b16 %v7765
    %v8638 = vunpack.c.l.b16 %v7766
    %v8639 = vunpack.c.l.b16 %v7767
    %v8640 = vunpack.c.l.b16 %v7768
    %v8641 = vunpack.c.l.b16 %v7769
    %v8642 = vpack.c.b16 %v8627, %v8626
    %v8643 = vpack.c.b16 %v8629, %v8628
    %v8644 = vpack.c.b16 %v8631, %v8630
    %v8645 = vpack.c.b16 %v8633, %v8632
    %v8646 = vpack.c.b16 %v8635, %v8634
    %v8647 = vpack.c.b16 %v8637, %v8636
    %v8648 = vpack.c.b16 %v8639, %v8638
    %v8649 = vpack.c.b16 %v8641, %v8640
    %8650 = vrot.lane.b32.xlu0 %v8642, 96
    %v8651 = vpop.permute.xlu0 %8650
    %8652 = vrot.lane.b32.xlu0 %v8643, 96
    %v8653 = vpop.permute.xlu0 %8652
    %8654 = vrot.lane.b32.xlu0 %v8644, 96
    %v8655 = vpop.permute.xlu0 %8654
    %8656 = vrot.lane.b32.xlu0 %v8645, 96
    %v8657 = vpop.permute.xlu0 %8656
    %8658 = vrot.lane.b32.xlu0 %v8646, 96
    %v8659 = vpop.permute.xlu0 %8658
    %8660 = vrot.lane.b32.xlu0 %v8647, 96
    %v8661 = vpop.permute.xlu0 %8660
    %8662 = vrot.lane.b32.xlu0 %v8648, 96
    %v8663 = vpop.permute.xlu0 %8662
    %8664 = vrot.lane.b32.xlu0 %v8649, 96
    %v8665 = vpop.permute.xlu0 %8664
    %v8666 = vunpack.c.l.b16 %v7799
    %v8667 = vunpack.c.l.b16 %v7813
    %v8668 = vunpack.c.l.b16 %v7827
    %v8669 = vunpack.c.l.b16 %v7841
    %v8670 = vunpack.c.l.b16 %v7855
    %v8671 = vunpack.c.l.b16 %v7869
    %v8672 = vunpack.c.l.b16 %v7883
    %v8673 = vunpack.c.l.b16 %v7897
    %v8674 = vunpack.c.l.b16 %v7911
    %v8675 = vunpack.c.l.b16 %v7925
    %v8676 = vunpack.c.l.b16 %v7939
    %v8677 = vunpack.c.l.b16 %v7953
    %v8678 = vunpack.c.l.b16 %v7967
    %v8679 = vunpack.c.l.b16 %v7981
    %v8680 = vunpack.c.l.b16 %v7995
    %v8681 = vunpack.c.l.b16 %v8009
    %v8682 = vpack.c.b16 %v8667, %v8666
    %v8683 = vpack.c.b16 %v8669, %v8668
    %v8684 = vpack.c.b16 %v8671, %v8670
    %v8685 = vpack.c.b16 %v8673, %v8672
    %v8686 = vpack.c.b16 %v8675, %v8674
    %v8687 = vpack.c.b16 %v8677, %v8676
    %v8688 = vpack.c.b16 %v8679, %v8678
    %v8689 = vpack.c.b16 %v8681, %v8680
    %v8690 = vunpack.c.l.b16 %v8061
    %v8691 = vunpack.c.l.b16 %v8065
    %v8692 = vunpack.c.l.b16 %v8069
    %v8693 = vunpack.c.l.b16 %v8073
    %v8694 = vunpack.c.l.b16 %v8077
    %v8695 = vunpack.c.l.b16 %v8081
    %v8696 = vunpack.c.l.b16 %v8085
    %v8697 = vunpack.c.l.b16 %v8089
    %v8698 = vunpack.c.l.b16 %v8093
    %v8699 = vunpack.c.l.b16 %v8097
    %v8700 = vunpack.c.l.b16 %v8101
    %v8701 = vunpack.c.l.b16 %v8105
    %v8702 = vunpack.c.l.b16 %v8109
    %v8703 = vunpack.c.l.b16 %v8113
    %v8704 = vunpack.c.l.b16 %v8117
    %v8705 = vunpack.c.l.b16 %v8121
    %v8706 = vpack.c.b16 %v8691, %v8690
    %v8707 = vpack.c.b16 %v8693, %v8692
    %v8708 = vpack.c.b16 %v8695, %v8694
    %v8709 = vpack.c.b16 %v8697, %v8696
    %v8710 = vpack.c.b16 %v8699, %v8698
    %v8711 = vpack.c.b16 %v8701, %v8700
    %v8712 = vpack.c.b16 %v8703, %v8702
    %v8713 = vpack.c.b16 %v8705, %v8704
    %8714 = vrot.lane.b32.xlu0 %v8706, 32
    %v8715 = vpop.permute.xlu0 %8714
    %8716 = vrot.lane.b32.xlu0 %v8707, 32
    %v8717 = vpop.permute.xlu0 %8716
    %8718 = vrot.lane.b32.xlu0 %v8708, 32
    %v8719 = vpop.permute.xlu0 %8718
    %8720 = vrot.lane.b32.xlu0 %v8709, 32
    %v8721 = vpop.permute.xlu0 %8720
    %8722 = vrot.lane.b32.xlu0 %v8710, 32
    %v8723 = vpop.permute.xlu0 %8722
    %8724 = vrot.lane.b32.xlu0 %v8711, 32
    %v8725 = vpop.permute.xlu0 %8724
    %8726 = vrot.lane.b32.xlu0 %v8712, 32
    %v8727 = vpop.permute.xlu0 %8726
    %8728 = vrot.lane.b32.xlu0 %v8713, 32
    %v8729 = vpop.permute.xlu0 %8728
    %v8746 = vunpack.c.l.b16 %v8122
    %v8747 = vunpack.c.l.b16 %v8123
    %v8748 = vunpack.c.l.b16 %v8124
    %v8749 = vunpack.c.l.b16 %v8125
    %v8750 = vunpack.c.l.b16 %v8126
    %v8751 = vunpack.c.l.b16 %v8127
    %v8752 = vunpack.c.l.b16 %v8128
    %v8753 = vunpack.c.l.b16 %v8129
    %v8754 = vunpack.c.l.b16 %v8130
    %v8755 = vunpack.c.l.b16 %v8131
    %v8756 = vunpack.c.l.b16 %v8132
    %v8757 = vunpack.c.l.b16 %v8133
    %v8758 = vunpack.c.l.b16 %v8134
    %v8759 = vunpack.c.l.b16 %v8135
    %v8760 = vunpack.c.l.b16 %v8136
    %v8761 = vunpack.c.l.b16 %v8137
    %v8762 = vpack.c.b16 %v8747, %v8746
    %v8763 = vpack.c.b16 %v8749, %v8748
    %v8764 = vpack.c.b16 %v8751, %v8750
    %v8765 = vpack.c.b16 %v8753, %v8752
    %v8766 = vpack.c.b16 %v8755, %v8754
    %v8767 = vpack.c.b16 %v8757, %v8756
    %v8768 = vpack.c.b16 %v8759, %v8758
    %v8769 = vpack.c.b16 %v8761, %v8760
    %8770 = vrot.lane.b32.xlu0 %v8762, 64
    %v8771 = vpop.permute.xlu0 %8770
    %8772 = vrot.lane.b32.xlu0 %v8763, 64
    %v8773 = vpop.permute.xlu0 %8772
    %8774 = vrot.lane.b32.xlu0 %v8764, 64
    %v8775 = vpop.permute.xlu0 %8774
    %8776 = vrot.lane.b32.xlu0 %v8765, 64
    %v8777 = vpop.permute.xlu0 %8776
    %8778 = vrot.lane.b32.xlu0 %v8766, 64
    %v8779 = vpop.permute.xlu0 %8778
    %8780 = vrot.lane.b32.xlu0 %v8767, 64
    %v8781 = vpop.permute.xlu0 %8780
    %8782 = vrot.lane.b32.xlu0 %v8768, 64
    %v8783 = vpop.permute.xlu0 %8782
    %8784 = vrot.lane.b32.xlu0 %v8769, 64
    %v8785 = vpop.permute.xlu0 %8784
    %v8786 = vunpack.c.l.b16 %v8167
    %v8787 = vunpack.c.l.b16 %v8181
    %v8788 = vunpack.c.l.b16 %v8195
    %v8789 = vunpack.c.l.b16 %v8209
    %v8790 = vunpack.c.l.b16 %v8223
    %v8791 = vunpack.c.l.b16 %v8237
    %v8792 = vunpack.c.l.b16 %v8251
    %v8793 = vunpack.c.l.b16 %v8265
    %v8794 = vunpack.c.l.b16 %v8279
    %v8795 = vunpack.c.l.b16 %v8293
    %v8796 = vunpack.c.l.b16 %v8307
    %v8797 = vunpack.c.l.b16 %v8321
    %v8798 = vunpack.c.l.b16 %v8335
    %v8799 = vunpack.c.l.b16 %v8349
    %v8800 = vunpack.c.l.b16 %v8363
    %v8801 = vunpack.c.l.b16 %v8377
    %v8802 = vpack.c.b16 %v8787, %v8786
    %v8803 = vpack.c.b16 %v8789, %v8788
    %v8804 = vpack.c.b16 %v8791, %v8790
    %v8805 = vpack.c.b16 %v8793, %v8792
    %v8806 = vpack.c.b16 %v8795, %v8794
    %v8807 = vpack.c.b16 %v8797, %v8796
    %v8808 = vpack.c.b16 %v8799, %v8798
    %v8809 = vpack.c.b16 %v8801, %v8800
    %8810 = vrot.lane.b32.xlu0 %v8802, 96
    %v8811 = vpop.permute.xlu0 %8810
    %8812 = vrot.lane.b32.xlu0 %v8803, 96
    %v8813 = vpop.permute.xlu0 %8812
    %8814 = vrot.lane.b32.xlu0 %v8804, 96
    %v8815 = vpop.permute.xlu0 %8814
    %8816 = vrot.lane.b32.xlu0 %v8805, 96
    %v8817 = vpop.permute.xlu0 %8816
    %8818 = vrot.lane.b32.xlu0 %v8806, 96
    %v8819 = vpop.permute.xlu0 %8818
    %8820 = vrot.lane.b32.xlu0 %v8807, 96
    %v8821 = vpop.permute.xlu0 %8820
    %8822 = vrot.lane.b32.xlu0 %v8808, 96
    %v8823 = vpop.permute.xlu0 %8822
    %8824 = vrot.lane.b32.xlu0 %v8809, 96
    %v8825 = vpop.permute.xlu0 %8824
    %v8826 = vunpack.c.l.b16 %v8429
    %v8827 = vunpack.c.l.b16 %v8433
    %v8828 = vunpack.c.l.b16 %v8437
    %v8829 = vunpack.c.l.b16 %v8441
    %v8830 = vunpack.c.l.b16 %v8445
    %v8831 = vunpack.c.l.b16 %v8449
    %v8832 = vunpack.c.l.b16 %v8453
    %v8833 = vunpack.c.l.b16 %v8457
    %v8834 = vunpack.c.l.b16 %v8461
    %v8835 = vunpack.c.l.b16 %v8465
    %v8836 = vunpack.c.l.b16 %v8469
    %v8837 = vunpack.c.l.b16 %v8473
    %v8838 = vunpack.c.l.b16 %v8477
    %v8839 = vunpack.c.l.b16 %v8481
    %v8840 = vunpack.c.l.b16 %v8485
    %v8841 = vunpack.c.l.b16 %v8489
    %v8842 = vpack.c.b16 %v8827, %v8826
    %v8843 = vpack.c.b16 %v8829, %v8828
    %v8844 = vpack.c.b16 %v8831, %v8830
    %v8845 = vpack.c.b16 %v8833, %v8832
    %v8846 = vpack.c.b16 %v8835, %v8834
    %v8847 = vpack.c.b16 %v8837, %v8836
    %v8848 = vpack.c.b16 %v8839, %v8838
    %v8849 = vpack.c.b16 %v8841, %v8840
    %v8852 = vsel %vm1864, %v8522, %v8555
    %v8855 = vsel %vm1864, %v8523, %v8557
    %v8858 = vsel %vm1864, %v8524, %v8559
    %v8861 = vsel %vm1864, %v8525, %v8561
    %v8864 = vsel %vm1864, %v8526, %v8563
    %v8867 = vsel %vm1864, %v8527, %v8565
    %v8870 = vsel %vm1864, %v8528, %v8567
    %v8873 = vsel %vm1864, %v8529, %v8569
    %v8875 = vsel %vm1889, %v8852, %v8595
    %v8877 = vsel %vm1889, %v8855, %v8597
    %v8879 = vsel %vm1889, %v8858, %v8599
    %v8881 = vsel %vm1889, %v8861, %v8601
    %v8883 = vsel %vm1889, %v8864, %v8603
    %v8885 = vsel %vm1889, %v8867, %v8605
    %v8887 = vsel %vm1889, %v8870, %v8607
    %v8889 = vsel %vm1889, %v8873, %v8609
    %v8891 = vsel %vm1906, %v8875, %v8651
    %v8894 = vsel %vm1906, %v8877, %v8653
    %v8897 = vsel %vm1906, %v8879, %v8655
    %v8900 = vsel %vm1906, %v8881, %v8657
    %v8903 = vsel %vm1906, %v8883, %v8659
    %v8906 = vsel %vm1906, %v8885, %v8661
    %v8909 = vsel %vm1906, %v8887, %v8663
    %v8912 = vsel %vm1906, %v8889, %v8665
    %v8916 = vsel %vm1864, %v8682, %v8715
    %v8919 = vsel %vm1864, %v8683, %v8717
    %v8922 = vsel %vm1864, %v8684, %v8719
    %v8925 = vsel %vm1864, %v8685, %v8721
    %v8928 = vsel %vm1864, %v8686, %v8723
    %v8931 = vsel %vm1864, %v8687, %v8725
    %v8934 = vsel %vm1864, %v8688, %v8727
    %v8937 = vsel %vm1864, %v8689, %v8729
    %v8939 = vsel %vm1889, %v8916, %v8771
    %v8941 = vsel %vm1889, %v8919, %v8773
    %v8943 = vsel %vm1889, %v8922, %v8775
    %v8945 = vsel %vm1889, %v8925, %v8777
    %v8947 = vsel %vm1889, %v8928, %v8779
    %v8949 = vsel %vm1889, %v8931, %v8781
    %v8951 = vsel %vm1889, %v8934, %v8783
    %v8953 = vsel %vm1889, %v8937, %v8785
    %v8955 = vsel %vm1906, %v8939, %v8811
    %v8958 = vsel %vm1906, %v8941, %v8813
    %v8961 = vsel %vm1906, %v8943, %v8815
    %v8964 = vsel %vm1906, %v8945, %v8817
    %v8967 = vsel %vm1906, %v8947, %v8819
    %v8970 = vsel %vm1906, %v8949, %v8821
    %v8973 = vsel %vm1906, %v8951, %v8823
    %v8976 = vsel %vm1906, %v8953, %v8825
    %s8978 = scalar_lea.vmem [#allocation4], 432
    %v8979 = vld [vmem:[%s8978] sm:$0xf]
    %v8980 = vld [vmem:[%s8978 + $0x4] sm:$0xf]
    %v8981 = vld [vmem:[%s8978 + $0x8] sm:$0xf]
    %v8982 = vld [vmem:[%s8978 + $0xc] sm:$0xf]
    %v8983 = vld [vmem:[%s8978 + $0x10] sm:$0xf]
    %v8984 = vld [vmem:[%s8978 + $0x14] sm:$0xf]
    %v8985 = vld [vmem:[%s8978 + $0x18] sm:$0xf]
    %v8986 = vld [vmem:[%s8978 + $0x1c] sm:$0xf]
    %v8987 = vld [vmem:[%s8978 + $0x20] sm:$0xf]
    %v8988 = vld [vmem:[%s8978 + $0x24] sm:$0xf]
    %v8989 = vld [vmem:[%s8978 + $0x28] sm:$0xf]
    %v8990 = vld [vmem:[%s8978 + $0x2c] sm:$0xf]
    %v8991 = vld [vmem:[%s8978 + $0x30] sm:$0xf]
    %v8992 = vld [vmem:[%s8978 + $0x34] sm:$0xf]
    %v8993 = vld [vmem:[%s8978 + $0x38] sm:$0xf]
    %v8994 = vld [vmem:[%s8978 + $0x3c] sm:$0xf]
    %v8995 = vld [vmem:[%s8978 + $0x40] sm:$0xf]
    %v8996 = vld [vmem:[%s8978 + $0x44] sm:$0xf]
    %v8997 = vld [vmem:[%s8978 + $0x48] sm:$0xf]
    %v8998 = vld [vmem:[%s8978 + $0x4c] sm:$0xf]
    %v8999 = vld [vmem:[%s8978 + $0x50] sm:$0xf]
    %v9000 = vld [vmem:[%s8978 + $0x54] sm:$0xf]
    %v9001 = vld [vmem:[%s8978 + $0x58] sm:$0xf]
    %v9002 = vld [vmem:[%s8978 + $0x5c] sm:$0xf]
    %v9003 = vld [vmem:[%s8978 + $0x60] sm:$0xf]
    %v9004 = vld [vmem:[%s8978 + $0x64] sm:$0xf]
    %v9005 = vld [vmem:[%s8978 + $0x68] sm:$0xf]
    %v9006 = vld [vmem:[%s8978 + $0x6c] sm:$0xf]
    %v9007 = vld [vmem:[%s8978 + $0x70] sm:$0xf]
    %v9008 = vld [vmem:[%s8978 + $0x74] sm:$0xf]
    %v9009 = vld [vmem:[%s8978 + $0x78] sm:$0xf]
    %v9010 = vld [vmem:[%s8978 + $0x7c] sm:$0xf]
    %v9011 = vld [vmem:[%s8978 + $0x80] sm:$0xf]
    %v9012 = vld [vmem:[%s8978 + $0x84] sm:$0xf]
    %v9013 = vld [vmem:[%s8978 + $0x88] sm:$0xf]
    %v9014 = vld [vmem:[%s8978 + $0x8c] sm:$0xf]
    %v9051 = vunpack.c.l.b16 %v8979
    %v9052 = vunpack.c.l.b16 %v8980
    %v9053 = vunpack.c.l.b16 %v8981
    %v9054 = vunpack.c.l.b16 %v8982
    %v9055 = vunpack.c.l.b16 %v8983
    %v9056 = vunpack.c.l.b16 %v8984
    %v9057 = vunpack.c.l.b16 %v8985
    %v9058 = vunpack.c.l.b16 %v8986
    %v9059 = vunpack.c.l.b16 %v8987
    %v9060 = vunpack.c.l.b16 %v8988
    %v9061 = vunpack.c.l.b16 %v8989
    %v9062 = vunpack.c.l.b16 %v8990
    %v9063 = vunpack.c.l.b16 %v8991
    %v9064 = vunpack.c.l.b16 %v8992
    %v9065 = vunpack.c.l.b16 %v8993
    %v9066 = vunpack.c.l.b16 %v8994
    %v9067 = vunpack.c.l.b16 %v8995
    %v9068 = vunpack.c.l.b16 %v8996
    %v9069 = vunpack.c.l.b16 %v8997
    %v9070 = vunpack.c.l.b16 %v8998
    %v9071 = vunpack.c.l.b16 %v8999
    %v9072 = vunpack.c.l.b16 %v9000
    %v9073 = vunpack.c.l.b16 %v9001
    %v9074 = vunpack.c.l.b16 %v9002
    %v9075 = vunpack.c.l.b16 %v9003
    %v9076 = vunpack.c.l.b16 %v9004
    %v9077 = vunpack.c.l.b16 %v9005
    %v9078 = vunpack.c.l.b16 %v9006
    %v9079 = vunpack.c.l.b16 %v9007
    %v9080 = vunpack.c.l.b16 %v9008
    %v9081 = vunpack.c.l.b16 %v9009
    %v9082 = vunpack.c.l.b16 %v9010
    %v9083 = vunpack.c.l.b16 %v9011
    %v9084 = vunpack.c.l.b16 %v9012
    %v9085 = vunpack.c.l.b16 %v9013
    %v9086 = vunpack.c.l.b16 %v9014
    %v9087 = vpack.c.b16 %v9052, %v9051
    %v9088 = vpack.c.b16 %v9054, %v9053
    %v9089 = vpack.c.b16 %v9056, %v9055
    %v9090 = vpack.c.b16 %v9058, %v9057
    %v9091 = vpack.c.b16 %v9060, %v9059
    %v9092 = vpack.c.b16 %v9062, %v9061
    %v9093 = vpack.c.b16 %v9064, %v9063
    %v9094 = vpack.c.b16 %v9066, %v9065
    %v9095 = vpack.c.b16 %v9068, %v9067
    %v9096 = vpack.c.b16 %v9070, %v9069
    %v9097 = vpack.c.b16 %v9072, %v9071
    %v9098 = vpack.c.b16 %v9074, %v9073
    %v9099 = vpack.c.b16 %v9076, %v9075
    %v9100 = vpack.c.b16 %v9078, %v9077
    %v9101 = vpack.c.b16 %v9080, %v9079
    %v9102 = vpack.c.b16 %v9082, %v9081
    %v9103 = vpack.c.b16 %v9084, %v9083
    %v9104 = vpack.c.b16 %v9086, %v9085
    %v9124 = vsel %vm1864, %v8842, 0
    %v9127 = vsel %vm1864, %v8843, 0
    %v9130 = vsel %vm1864, %v8844, 0
    %v9133 = vsel %vm1864, %v8845, 0
    %v9136 = vsel %vm1864, %v8846, 0
    %v9139 = vsel %vm1864, %v8847, 0
    %v9142 = vsel %vm1864, %v8848, 0
    %v9145 = vsel %vm1864, %v8849, 0
    %9147 = vmatprep.subr.bf16.mxu0 0
    %9148 = vmatpush1.bf16.msra.mxu0 %v9094
    %9149 = vmatprep.subr.bf16.mxu0 0
    %9150 = vmatpush1.bf16.msra.mxu0 %v9093
    %9151 = vmatprep.subr.bf16.mxu0 0
    %9152 = vmatpush1.bf16.msra.mxu0 %v9092
    %9153 = vmatprep.subr.bf16.mxu0 0
    %9154 = vmatpush1.bf16.msra.mxu0 %v9091
    %9155 = vmatprep.subr.bf16.mxu0 0
    %9156 = vmatpush1.bf16.msra.mxu0 %v9090
    %9157 = vmatprep.subr.bf16.mxu0 0
    %9158 = vmatpush1.bf16.msra.mxu0 %v9089
    %9159 = vmatprep.subr.bf16.mxu0 0
    %9160 = vmatpush1.bf16.msra.mxu0 %v9088
    %9161 = vmatprep.subr.bf16.mxu0 0
    %9162 = vmatpush1.bf16.msra.mxu0 %v9087
    %9163 = vmatprep.subr.bf16.mxu0 0
    %9164 = vmatpush2.bf16.msra.mxu0 %v9102
    %9165 = vmatprep.subr.bf16.mxu0 0
    %9166 = vmatpush2.bf16.msra.mxu0 %v9101
    %9167 = vmatprep.subr.bf16.mxu0 0
    %9168 = vmatpush2.bf16.msra.mxu0 %v9100
    %9169 = vmatprep.subr.bf16.mxu0 0
    %9170 = vmatpush2.bf16.msra.mxu0 %v9099
    %9171 = vmatprep.subr.bf16.mxu0 0
    %9172 = vmatpush2.bf16.msra.mxu0 %v9098
    %9173 = vmatprep.subr.bf16.mxu0 0
    %9174 = vmatpush2.bf16.msra.mxu0 %v9097
    %9175 = vmatprep.subr.bf16.mxu0 0
    %9176 = vmatpush2.bf16.msra.mxu0 %v9096
    %9177 = vmatprep.subr.bf16.mxu0 0
    %9178 = vmatpush2.bf16.msra.mxu0 %v9095
    %9179 = vmatprep.mubr.bf16.mxu0 %v8955
    %9180 = vmatmul.mubr.bf16.gmra.mxu0 %v8891
    %v9181 = vpop.f32.mrf.mxu0
    %v9182 = vadd.f32 0.0, %v9181
    %v9183 = vpop.f32.mrf.mxu0
    %v9184 = vpop.f32.mrf.mxu0
    %v9185 = vadd.f32 0.0, %v9184
    %v9186 = vpop.f32.mrf.mxu0
    %9187 = vmatprep.mubr.bf16.mxu0 %v8958
    %9188 = vmatmul.mubr.bf16.gmra.mxu0 %v8894
    %v9189 = vpop.f32.mrf.mxu0
    %v9190 = vadd.f32 0.0, %v9189
    %v9191 = vpop.f32.mrf.mxu0
    %v9192 = vpop.f32.mrf.mxu0
    %v9193 = vadd.f32 0.0, %v9192
    %v9194 = vpop.f32.mrf.mxu0
    %9195 = vmatprep.mubr.bf16.mxu0 %v8961
    %9196 = vmatmul.mubr.bf16.gmra.mxu0 %v8897
    %v9197 = vpop.f32.mrf.mxu0
    %v9198 = vadd.f32 0.0, %v9197
    %v9199 = vpop.f32.mrf.mxu0
    %v9200 = vpop.f32.mrf.mxu0
    %v9201 = vadd.f32 0.0, %v9200
    %v9202 = vpop.f32.mrf.mxu0
    %9203 = vmatprep.mubr.bf16.mxu0 %v8964
    %9204 = vmatmul.mubr.bf16.gmra.mxu0 %v8900
    %v9205 = vpop.f32.mrf.mxu0
    %v9206 = vadd.f32 0.0, %v9205
    %v9207 = vpop.f32.mrf.mxu0
    %v9208 = vpop.f32.mrf.mxu0
    %v9209 = vadd.f32 0.0, %v9208
    %v9210 = vpop.f32.mrf.mxu0
    %9211 = vmatprep.mubr.bf16.mxu0 %v8967
    %9212 = vmatmul.mubr.bf16.gmra.mxu0 %v8903
    %v9213 = vpop.f32.mrf.mxu0
    %v9214 = vadd.f32 0.0, %v9213
    %v9215 = vpop.f32.mrf.mxu0
    %v9216 = vpop.f32.mrf.mxu0
    %v9217 = vadd.f32 0.0, %v9216
    %v9218 = vpop.f32.mrf.mxu0
    %9219 = vmatprep.mubr.bf16.mxu0 %v8970
    %9220 = vmatmul.mubr.bf16.gmra.mxu0 %v8906
    %v9221 = vpop.f32.mrf.mxu0
    %v9222 = vadd.f32 0.0, %v9221
    %v9223 = vpop.f32.mrf.mxu0
    %v9224 = vpop.f32.mrf.mxu0
    %v9225 = vadd.f32 0.0, %v9224
    %v9226 = vpop.f32.mrf.mxu0
    %9227 = vmatprep.mubr.bf16.mxu0 %v8973
    %9228 = vmatmul.mubr.bf16.gmra.mxu0 %v8909
    %v9229 = vpop.f32.mrf.mxu0
    %v9230 = vadd.f32 0.0, %v9229
    %v9231 = vpop.f32.mrf.mxu0
    %v9232 = vpop.f32.mrf.mxu0
    %v9233 = vadd.f32 0.0, %v9232
    %v9234 = vpop.f32.mrf.mxu0
    %9235 = vmatprep.mubr.bf16.mxu0 %v8976
    %9236 = vmatmul.mubr.bf16.gmra.mxu0 %v8912
    %v9237 = vpop.f32.mrf.mxu0
    %v9238 = vadd.f32 0.0, %v9237
    %v9239 = vpop.f32.mrf.mxu0
    %v9240 = vpop.f32.mrf.mxu0
    %v9241 = vadd.f32 0.0, %v9240
    %v9242 = vpop.f32.mrf.mxu0
    %9243 = vdwg.mxu0
    %9244 = vmatprep.subr.bf16.mxu0 0
    %9245 = vmatpush1.bf16.msra.mxu0 0
    %9246 = vmatprep.subr.bf16.mxu0 0
    %9247 = vmatpush1.bf16.msra.mxu0 0
    %9248 = vmatprep.subr.bf16.mxu0 0
    %9249 = vmatpush1.bf16.msra.mxu0 0
    %9250 = vmatprep.subr.bf16.mxu0 0
    %9251 = vmatpush1.bf16.msra.mxu0 0
    %9252 = vmatprep.subr.bf16.mxu0 0
    %9253 = vmatpush1.bf16.msra.mxu0 0
    %9254 = vmatprep.subr.bf16.mxu0 0
    %9255 = vmatpush1.bf16.msra.mxu0 0
    %9256 = vmatprep.subr.bf16.mxu0 0
    %9257 = vmatpush1.bf16.msra.mxu0 %v9104
    %9258 = vmatprep.subr.bf16.mxu0 0
    %9259 = vmatpush1.bf16.msra.mxu0 %v9103
    %9260 = vmatprep.subr.bf16.mxu0 0
    %9261 = vmatpush2.bf16.msra.mxu0 0
    %9262 = vmatprep.subr.bf16.mxu0 0
    %9263 = vmatpush2.bf16.msra.mxu0 0
    %9264 = vmatprep.subr.bf16.mxu0 0
    %9265 = vmatpush2.bf16.msra.mxu0 0
    %9266 = vmatprep.subr.bf16.mxu0 0
    %9267 = vmatpush2.bf16.msra.mxu0 0
    %9268 = vmatprep.subr.bf16.mxu0 0
    %9269 = vmatpush2.bf16.msra.mxu0 0
    %9270 = vmatprep.subr.bf16.mxu0 0
    %9271 = vmatpush2.bf16.msra.mxu0 0
    %9272 = vmatprep.subr.bf16.mxu0 0
    %9273 = vmatpush2.bf16.msra.mxu0 0
    %9274 = vmatprep.subr.bf16.mxu0 0
    %9275 = vmatpush2.bf16.msra.mxu0 0
    %9276 = vmatprep.mubr.bf16.mxu0 0
    %9277 = vmatmul.mubr.bf16.gmra.mxu0 %v9124
    %v9278 = vpop.f32.mrf.mxu0
    %v9279 = vadd.f32 %v9182, %v9278
    %v9280 = vpop.f32.mrf.mxu0
    %v9281 = vpop.f32.mrf.mxu0
    %v9282 = vadd.f32 %v9185, %v9281
    %v9283 = vpop.f32.mrf.mxu0
    %9284 = vmatprep.mubr.bf16.mxu0 0
    %9285 = vmatmul.mubr.bf16.gmra.mxu0 %v9127
    %v9286 = vpop.f32.mrf.mxu0
    %v9287 = vadd.f32 %v9190, %v9286
    %v9288 = vpop.f32.mrf.mxu0
    %v9289 = vpop.f32.mrf.mxu0
    %v9290 = vadd.f32 %v9193, %v9289
    %v9291 = vpop.f32.mrf.mxu0
    %9292 = vmatprep.mubr.bf16.mxu0 0
    %9293 = vmatmul.mubr.bf16.gmra.mxu0 %v9130
    %v9294 = vpop.f32.mrf.mxu0
    %v9295 = vadd.f32 %v9198, %v9294
    %v9296 = vpop.f32.mrf.mxu0
    %v9297 = vpop.f32.mrf.mxu0
    %v9298 = vadd.f32 %v9201, %v9297
    %v9299 = vpop.f32.mrf.mxu0
    %9300 = vmatprep.mubr.bf16.mxu0 0
    %9301 = vmatmul.mubr.bf16.gmra.mxu0 %v9133
    %v9302 = vpop.f32.mrf.mxu0
    %v9303 = vadd.f32 %v9206, %v9302
    %v9304 = vpop.f32.mrf.mxu0
    %v9305 = vpop.f32.mrf.mxu0
    %v9306 = vadd.f32 %v9209, %v9305
    %v9307 = vpop.f32.mrf.mxu0
    %9308 = vmatprep.mubr.bf16.mxu0 0
    %9309 = vmatmul.mubr.bf16.gmra.mxu0 %v9136
    %v9310 = vpop.f32.mrf.mxu0
    %v9311 = vadd.f32 %v9214, %v9310
    %v9312 = vpop.f32.mrf.mxu0
    %v9313 = vpop.f32.mrf.mxu0
    %v9314 = vadd.f32 %v9217, %v9313
    %v9315 = vpop.f32.mrf.mxu0
    %9316 = vmatprep.mubr.bf16.mxu0 0
    %9317 = vmatmul.mubr.bf16.gmra.mxu0 %v9139
    %v9318 = vpop.f32.mrf.mxu0
    %v9319 = vadd.f32 %v9222, %v9318
    %v9320 = vpop.f32.mrf.mxu0
    %v9321 = vpop.f32.mrf.mxu0
    %v9322 = vadd.f32 %v9225, %v9321
    %v9323 = vpop.f32.mrf.mxu0
    %9324 = vmatprep.mubr.bf16.mxu0 0
    %9325 = vmatmul.mubr.bf16.gmra.mxu0 %v9142
    %v9326 = vpop.f32.mrf.mxu0
    %v9327 = vadd.f32 %v9230, %v9326
    %v9328 = vpop.f32.mrf.mxu0
    %v9329 = vpop.f32.mrf.mxu0
    %v9330 = vadd.f32 %v9233, %v9329
    %v9331 = vpop.f32.mrf.mxu0
    %9332 = vmatprep.mubr.bf16.mxu0 0
    %9333 = vmatmul.mubr.bf16.gmra.mxu0 %v9145
    %v9334 = vpop.f32.mrf.mxu0
    %v9335 = vadd.f32 %v9238, %v9334
    %v9336 = vpop.f32.mrf.mxu0
    %v9337 = vpop.f32.mrf.mxu0
    %v9338 = vadd.f32 %v9241, %v9337
    %v9339 = vpop.f32.mrf.mxu0
    %9340 = vdwg.mxu0
    %s9341 = scalar_lea.vmem %s2, 3
    %v9342 = vld [vmem:[%s9341] sm:$0x1]
    %v9344 = vlaneseq
    %v9345 = vshrl.u32 %v9344, 7
    %v9346 = vsub.s32 0, %v9345
    %v9347 = vrot.slane %v9342, %v9346
    %v9349 = vmul.f32 %v9279, %v9347
    %v9350 = vmul.f32 %v9282, %v9347
    %v9351 = vmul.f32 %v9287, %v9347
    %v9352 = vmul.f32 %v9290, %v9347
    %v9353 = vmul.f32 %v9295, %v9347
    %v9354 = vmul.f32 %v9298, %v9347
    %v9355 = vmul.f32 %v9303, %v9347
    %v9356 = vmul.f32 %v9306, %v9347
    %v9357 = vmul.f32 %v9311, %v9347
    %v9358 = vmul.f32 %v9314, %v9347
    %v9359 = vmul.f32 %v9319, %v9347
    %v9360 = vmul.f32 %v9322, %v9347
    %v9361 = vmul.f32 %v9327, %v9347
    %v9362 = vmul.f32 %v9330, %v9347
    %v9363 = vmul.f32 %v9335, %v9347
    %v9364 = vmul.f32 %v9338, %v9347
    %s9365 = scalar_lea.vmem %s3, 3
    %v9366 = vld [vmem:[%s9365] sm:$0x1]
    %v9368 = vlaneseq
    %v9369 = vshrl.u32 %v9368, 7
    %v9370 = vsub.s32 0, %v9369
    %v9371 = vrot.slane %v9366, %v9370
    %v9373 = vadd.f32 %v9349, %v9371
    %v9374 = vadd.f32 %v9350, %v9371
    %v9375 = vadd.f32 %v9351, %v9371
    %v9376 = vadd.f32 %v9352, %v9371
    %v9377 = vadd.f32 %v9353, %v9371
    %v9378 = vadd.f32 %v9354, %v9371
    %v9379 = vadd.f32 %v9355, %v9371
    %v9380 = vadd.f32 %v9356, %v9371
    %v9381 = vadd.f32 %v9357, %v9371
    %v9382 = vadd.f32 %v9358, %v9371
    %v9383 = vadd.f32 %v9359, %v9371
    %v9384 = vadd.f32 %v9360, %v9371
    %v9385 = vadd.f32 %v9361, %v9371
    %v9386 = vadd.f32 %v9362, %v9371
    %v9387 = vadd.f32 %v9363, %v9371
    %v9388 = vadd.f32 %v9364, %v9371
    %v9389 = vmax.f32 %v9373, 0.0
    %v9390 = vmax.f32 %v9374, 0.0
    %v9391 = vmax.f32 %v9375, 0.0
    %v9392 = vmax.f32 %v9376, 0.0
    %v9393 = vmax.f32 %v9377, 0.0
    %v9394 = vmax.f32 %v9378, 0.0
    %v9395 = vmax.f32 %v9379, 0.0
    %v9396 = vmax.f32 %v9380, 0.0
    %v9397 = vmax.f32 %v9381, 0.0
    %v9398 = vmax.f32 %v9382, 0.0
    %v9399 = vmax.f32 %v9383, 0.0
    %v9400 = vmax.f32 %v9384, 0.0
    %v9401 = vmax.f32 %v9385, 0.0
    %v9402 = vmax.f32 %v9386, 0.0
    %v9403 = vmax.f32 %v9387, 0.0
    %v9404 = vmax.f32 %v9388, 0.0
    %v9405 = vpack.c.bf16 %v9390, %v9389
    %v9406 = vpack.c.bf16 %v9392, %v9391
    %v9407 = vpack.c.bf16 %v9394, %v9393
    %v9408 = vpack.c.bf16 %v9396, %v9395
    %v9409 = vpack.c.bf16 %v9398, %v9397
    %v9410 = vpack.c.bf16 %v9400, %v9399
    %v9411 = vpack.c.bf16 %v9402, %v9401
    %v9412 = vpack.c.bf16 %v9404, %v9403
    %v9421 = vunpack.c.l.b16 %v9405
    %v9422 = vunpack.c.h.b16 %v9405
    %v9423 = vunpack.c.l.b16 %v9406
    %v9424 = vunpack.c.h.b16 %v9406
    %v9425 = vunpack.c.l.b16 %v9407
    %v9426 = vunpack.c.h.b16 %v9407
    %v9427 = vunpack.c.l.b16 %v9408
    %v9428 = vunpack.c.h.b16 %v9408
    %v9429 = vunpack.c.l.b16 %v9409
    %v9430 = vunpack.c.h.b16 %v9409
    %v9431 = vunpack.c.l.b16 %v9410
    %v9432 = vunpack.c.h.b16 %v9410
    %v9433 = vunpack.c.l.b16 %v9411
    %v9434 = vunpack.c.h.b16 %v9411
    %v9435 = vunpack.c.l.b16 %v9412
    %v9436 = vunpack.c.h.b16 %v9412
    %v9437 = vpack.c.b16 %v9421, %v9421
    %v9438 = vpack.c.b16 %v9422, %v9422
    %v9439 = vpack.c.b16 %v9423, %v9423
    %v9440 = vpack.c.b16 %v9424, %v9424
    %v9441 = vpack.c.b16 %v9425, %v9425
    %v9442 = vpack.c.b16 %v9426, %v9426
    %v9443 = vpack.c.b16 %v9427, %v9427
    %v9444 = vpack.c.b16 %v9428, %v9428
    %v9445 = vpack.c.b16 %v9429, %v9429
    %v9446 = vpack.c.b16 %v9430, %v9430
    %v9447 = vpack.c.b16 %v9431, %v9431
    %v9448 = vpack.c.b16 %v9432, %v9432
    %v9449 = vpack.c.b16 %v9433, %v9433
    %v9450 = vpack.c.b16 %v9434, %v9434
    %v9451 = vpack.c.b16 %v9435, %v9435
    %v9452 = vpack.c.b16 %v9436, %v9436
    %v9454 = vshrl.u32 %v9437, 16
    %v9456 = vrot.slane %v9454, 7
    %v9457 = vshll.u32 %v9437, 16
    %v9459 = vor.u32 %v9456, %v9457
    %v9460 = vrot.slane %v9456, 4
    %v9462 = vshrl.u32 %v9438, 16
    %v9464 = vrot.slane %v9462, 7
    %v9465 = vshll.u32 %v9438, 16
    %v9467 = vor.u32 %v9464, %v9465
    %v9468 = vrot.slane %v9464, 4
    %v9470 = vshrl.u32 %v9439, 16
    %v9472 = vrot.slane %v9470, 7
    %v9473 = vshll.u32 %v9439, 16
    %v9475 = vor.u32 %v9472, %v9473
    %v9476 = vrot.slane %v9472, 4
    %v9478 = vshrl.u32 %v9440, 16
    %v9480 = vrot.slane %v9478, 7
    %v9481 = vshll.u32 %v9440, 16
    %v9483 = vor.u32 %v9480, %v9481
    %v9484 = vrot.slane %v9480, 4
    %v9486 = vshrl.u32 %v9441, 16
    %v9488 = vrot.slane %v9486, 7
    %v9489 = vshll.u32 %v9441, 16
    %v9491 = vor.u32 %v9488, %v9489
    %v9492 = vrot.slane %v9488, 4
    %v9494 = vshrl.u32 %v9442, 16
    %v9496 = vrot.slane %v9494, 7
    %v9497 = vshll.u32 %v9442, 16
    %v9499 = vor.u32 %v9496, %v9497
    %v9500 = vrot.slane %v9496, 4
    %v9502 = vshrl.u32 %v9443, 16
    %v9504 = vrot.slane %v9502, 7
    %v9505 = vshll.u32 %v9443, 16
    %v9507 = vor.u32 %v9504, %v9505
    %v9508 = vrot.slane %v9504, 4
    %v9510 = vshrl.u32 %v9444, 16
    %v9512 = vrot.slane %v9510, 7
    %v9513 = vshll.u32 %v9444, 16
    %v9515 = vor.u32 %v9512, %v9513
    %v9516 = vrot.slane %v9512, 4
    %v9518 = vshrl.u32 %v9445, 16
    %v9520 = vrot.slane %v9518, 7
    %v9521 = vshll.u32 %v9445, 16
    %v9523 = vor.u32 %v9520, %v9521
    %v9524 = vrot.slane %v9520, 4
    %v9526 = vshrl.u32 %v9446, 16
    %v9528 = vrot.slane %v9526, 7
    %v9529 = vshll.u32 %v9446, 16
    %v9531 = vor.u32 %v9528, %v9529
    %v9532 = vrot.slane %v9528, 4
    %v9534 = vshrl.u32 %v9447, 16
    %v9536 = vrot.slane %v9534, 7
    %v9537 = vshll.u32 %v9447, 16
    %v9539 = vor.u32 %v9536, %v9537
    %v9540 = vrot.slane %v9536, 4
    %v9542 = vshrl.u32 %v9448, 16
    %v9544 = vrot.slane %v9542, 7
    %v9545 = vshll.u32 %v9448, 16
    %v9547 = vor.u32 %v9544, %v9545
    %v9548 = vrot.slane %v9544, 4
    %v9550 = vshrl.u32 %v9449, 16
    %v9552 = vrot.slane %v9550, 7
    %v9553 = vshll.u32 %v9449, 16
    %v9555 = vor.u32 %v9552, %v9553
    %v9556 = vrot.slane %v9552, 4
    %v9558 = vshrl.u32 %v9450, 16
    %v9560 = vrot.slane %v9558, 7
    %v9561 = vshll.u32 %v9450, 16
    %v9563 = vor.u32 %v9560, %v9561
    %v9564 = vrot.slane %v9560, 4
    %v9566 = vshrl.u32 %v9451, 16
    %v9568 = vrot.slane %v9566, 7
    %v9569 = vshll.u32 %v9451, 16
    %v9571 = vor.u32 %v9568, %v9569
    %v9572 = vrot.slane %v9568, 4
    %v9574 = vshrl.u32 %v9452, 16
    %v9576 = vrot.slane %v9574, 7
    %v9577 = vshll.u32 %v9452, 16
    %v9579 = vor.u32 %v9576, %v9577
    %v9580 = vrot.slane %v9576, 4
    %v9613 = vld [vmem:[%s4949] sm:$0xf]
    %v9614 = vsel %vm293, %v9459, %v9613
    %9615 = vst [vmem:[%s4949] sm:$0xf] %v9614
    %v9616 = vld [vmem:[%s4949 + $0x4] sm:$0x1]
    %v9617 = vsel %vm299, %v9460, %v9616
    %9618 = vst [vmem:[%s4949 + $0x4] sm:$0x1] %v9617
    %v9619 = vld [vmem:[%s4949 + $0x8] sm:$0xf]
    %v9620 = vsel %vm293, %v9467, %v9619
    %9621 = vst [vmem:[%s4949 + $0x8] sm:$0xf] %v9620
    %v9622 = vld [vmem:[%s4949 + $0xc] sm:$0x1]
    %v9623 = vsel %vm299, %v9468, %v9622
    %9624 = vst [vmem:[%s4949 + $0xc] sm:$0x1] %v9623
    %v9625 = vld [vmem:[%s4949 + $0x10] sm:$0xf]
    %v9626 = vsel %vm293, %v9475, %v9625
    %9627 = vst [vmem:[%s4949 + $0x10] sm:$0xf] %v9626
    %v9628 = vld [vmem:[%s4949 + $0x14] sm:$0x1]
    %v9629 = vsel %vm299, %v9476, %v9628
    %9630 = vst [vmem:[%s4949 + $0x14] sm:$0x1] %v9629
    %v9631 = vld [vmem:[%s4949 + $0x18] sm:$0xf]
    %v9632 = vsel %vm293, %v9483, %v9631
    %9633 = vst [vmem:[%s4949 + $0x18] sm:$0xf] %v9632
    %v9634 = vld [vmem:[%s4949 + $0x1c] sm:$0x1]
    %v9635 = vsel %vm299, %v9484, %v9634
    %9636 = vst [vmem:[%s4949 + $0x1c] sm:$0x1] %v9635
    %v9637 = vld [vmem:[%s4949 + $0x20] sm:$0xf]
    %v9638 = vsel %vm293, %v9491, %v9637
    %9639 = vst [vmem:[%s4949 + $0x20] sm:$0xf] %v9638
    %v9640 = vld [vmem:[%s4949 + $0x24] sm:$0x1]
    %v9641 = vsel %vm299, %v9492, %v9640
    %9642 = vst [vmem:[%s4949 + $0x24] sm:$0x1] %v9641
    %v9643 = vld [vmem:[%s4949 + $0x28] sm:$0xf]
    %v9644 = vsel %vm293, %v9499, %v9643
    %9645 = vst [vmem:[%s4949 + $0x28] sm:$0xf] %v9644
    %v9646 = vld [vmem:[%s4949 + $0x2c] sm:$0x1]
    %v9647 = vsel %vm299, %v9500, %v9646
    %9648 = vst [vmem:[%s4949 + $0x2c] sm:$0x1] %v9647
    %v9649 = vld [vmem:[%s4949 + $0x30] sm:$0xf]
    %v9650 = vsel %vm293, %v9507, %v9649
    %9651 = vst [vmem:[%s4949 + $0x30] sm:$0xf] %v9650
    %v9652 = vld [vmem:[%s4949 + $0x34] sm:$0x1]
    %v9653 = vsel %vm299, %v9508, %v9652
    %9654 = vst [vmem:[%s4949 + $0x34] sm:$0x1] %v9653
    %v9655 = vld [vmem:[%s4949 + $0x38] sm:$0xf]
    %v9656 = vsel %vm293, %v9515, %v9655
    %9657 = vst [vmem:[%s4949 + $0x38] sm:$0xf] %v9656
    %v9658 = vld [vmem:[%s4949 + $0x3c] sm:$0x1]
    %v9659 = vsel %vm299, %v9516, %v9658
    %9660 = vst [vmem:[%s4949 + $0x3c] sm:$0x1] %v9659
    %v9661 = vld [vmem:[%s4949 + $0x50] sm:$0xf]
    %v9662 = vsel %vm293, %v9523, %v9661
    %9663 = vst [vmem:[%s4949 + $0x50] sm:$0xf] %v9662
    %v9664 = vld [vmem:[%s4949 + $0x54] sm:$0x1]
    %v9665 = vsel %vm299, %v9524, %v9664
    %9666 = vst [vmem:[%s4949 + $0x54] sm:$0x1] %v9665
    %v9667 = vld [vmem:[%s4949 + $0x58] sm:$0xf]
    %v9668 = vsel %vm293, %v9531, %v9667
    %9669 = vst [vmem:[%s4949 + $0x58] sm:$0xf] %v9668
    %v9670 = vld [vmem:[%s4949 + $0x5c] sm:$0x1]
    %v9671 = vsel %vm299, %v9532, %v9670
    %9672 = vst [vmem:[%s4949 + $0x5c] sm:$0x1] %v9671
    %v9673 = vld [vmem:[%s4949 + $0x60] sm:$0xf]
    %v9674 = vsel %vm293, %v9539, %v9673
    %9675 = vst [vmem:[%s4949 + $0x60] sm:$0xf] %v9674
    %v9676 = vld [vmem:[%s4949 + $0x64] sm:$0x1]
    %v9677 = vsel %vm299, %v9540, %v9676
    %9678 = vst [vmem:[%s4949 + $0x64] sm:$0x1] %v9677
    %v9679 = vld [vmem:[%s4949 + $0x68] sm:$0xf]
    %v9680 = vsel %vm293, %v9547, %v9679
    %9681 = vst [vmem:[%s4949 + $0x68] sm:$0xf] %v9680
    %v9682 = vld [vmem:[%s4949 + $0x6c] sm:$0x1]
    %v9683 = vsel %vm299, %v9548, %v9682
    %9684 = vst [vmem:[%s4949 + $0x6c] sm:$0x1] %v9683
    %v9685 = vld [vmem:[%s4949 + $0x70] sm:$0xf]
    %v9686 = vsel %vm293, %v9555, %v9685
    %9687 = vst [vmem:[%s4949 + $0x70] sm:$0xf] %v9686
    %v9688 = vld [vmem:[%s4949 + $0x74] sm:$0x1]
    %v9689 = vsel %vm299, %v9556, %v9688
    %9690 = vst [vmem:[%s4949 + $0x74] sm:$0x1] %v9689
    %v9691 = vld [vmem:[%s4949 + $0x78] sm:$0xf]
    %v9692 = vsel %vm293, %v9563, %v9691
    %9693 = vst [vmem:[%s4949 + $0x78] sm:$0xf] %v9692
    %v9694 = vld [vmem:[%s4949 + $0x7c] sm:$0x1]
    %v9695 = vsel %vm299, %v9564, %v9694
    %9696 = vst [vmem:[%s4949 + $0x7c] sm:$0x1] %v9695
    %v9697 = vld [vmem:[%s4949 + $0x80] sm:$0xf]
    %v9698 = vsel %vm293, %v9571, %v9697
    %9699 = vst [vmem:[%s4949 + $0x80] sm:$0xf] %v9698
    %v9700 = vld [vmem:[%s4949 + $0x84] sm:$0x1]
    %v9701 = vsel %vm299, %v9572, %v9700
    %9702 = vst [vmem:[%s4949 + $0x84] sm:$0x1] %v9701
    %v9703 = vld [vmem:[%s4949 + $0x88] sm:$0xf]
    %v9704 = vsel %vm293, %v9579, %v9703
    %9705 = vst [vmem:[%s4949 + $0x88] sm:$0xf] %v9704
    %v9706 = vld [vmem:[%s4949 + $0x8c] sm:$0x1]
    %v9707 = vsel %vm299, %v9580, %v9706
    %9708 = vst [vmem:[%s4949 + $0x8c] sm:$0x1] %v9707
    %v9709 = vld [vmem:[#allocation3] sm:$0xf]
    %v9710 = vld [vmem:[#allocation3 + $0x8] sm:$0xf]
    %v9711 = vld [vmem:[#allocation3 + $0x10] sm:$0xf]
    %v9712 = vld [vmem:[#allocation3 + $0x18] sm:$0xf]
    %v9713 = vld [vmem:[#allocation3 + $0x20] sm:$0xf]
    %v9714 = vld [vmem:[#allocation3 + $0x28] sm:$0xf]
    %v9715 = vld [vmem:[#allocation3 + $0x30] sm:$0xf]
    %v9716 = vld [vmem:[#allocation3 + $0x38] sm:$0xf]
    %v9717 = vld [vmem:[#allocation3 + $0x50] sm:$0xf]
    %v9718 = vld [vmem:[#allocation3 + $0x58] sm:$0xf]
    %v9719 = vld [vmem:[#allocation3 + $0x60] sm:$0xf]
    %v9720 = vld [vmem:[#allocation3 + $0x68] sm:$0xf]
    %v9721 = vld [vmem:[#allocation3 + $0x70] sm:$0xf]
    %v9722 = vld [vmem:[#allocation3 + $0x78] sm:$0xf]
    %v9723 = vld [vmem:[#allocation3 + $0x80] sm:$0xf]
    %v9724 = vld [vmem:[#allocation3 + $0x88] sm:$0xf]
    %v9725 = vld [vmem:[#allocation3 + $0x4] sm:$0x1]
    %v9726 = vld [vmem:[#allocation3 + $0xc] sm:$0x1]
    %v9727 = vld [vmem:[#allocation3 + $0x14] sm:$0x1]
    %v9728 = vld [vmem:[#allocation3 + $0x1c] sm:$0x1]
    %v9729 = vld [vmem:[#allocation3 + $0x24] sm:$0x1]
    %v9730 = vld [vmem:[#allocation3 + $0x2c] sm:$0x1]
    %v9731 = vld [vmem:[#allocation3 + $0x34] sm:$0x1]
    %v9732 = vld [vmem:[#allocation3 + $0x3c] sm:$0x1]
    %v9733 = vld [vmem:[#allocation3 + $0x54] sm:$0x1]
    %v9734 = vld [vmem:[#allocation3 + $0x5c] sm:$0x1]
    %v9735 = vld [vmem:[#allocation3 + $0x64] sm:$0x1]
    %v9736 = vld [vmem:[#allocation3 + $0x6c] sm:$0x1]
    %v9737 = vld [vmem:[#allocation3 + $0x74] sm:$0x1]
    %v9738 = vld [vmem:[#allocation3 + $0x7c] sm:$0x1]
    %v9739 = vld [vmem:[#allocation3 + $0x84] sm:$0x1]
    %v9740 = vld [vmem:[#allocation3 + $0x8c] sm:$0x1]
    %v9742 = vshrl.u32 %v9709, 16
    %v9744 = vrot.slane %v9742, 4
    %v9745 = vshll.u32 %v9709, 16
    %v9747 = vrot.slane %v9745, 5
    %v9748 = vor.u32 %v9744, %v9747
    %v9749 = vrot.slane %v9748, 4
    %v9751 = vshll.u32 %v9725, 16
    %v9753 = vrot.slane %v9751, 5
    %v9754 = vsel %vm427, %v9749, %v9753
    %v9756 = vshrl.u32 %v9710, 16
    %v9758 = vrot.slane %v9756, 4
    %v9759 = vshll.u32 %v9710, 16
    %v9761 = vrot.slane %v9759, 5
    %v9762 = vor.u32 %v9758, %v9761
    %v9763 = vrot.slane %v9762, 4
    %v9765 = vshll.u32 %v9726, 16
    %v9767 = vrot.slane %v9765, 5
    %v9768 = vsel %vm427, %v9763, %v9767
    %v9770 = vshrl.u32 %v9711, 16
    %v9772 = vrot.slane %v9770, 4
    %v9773 = vshll.u32 %v9711, 16
    %v9775 = vrot.slane %v9773, 5
    %v9776 = vor.u32 %v9772, %v9775
    %v9777 = vrot.slane %v9776, 4
    %v9779 = vshll.u32 %v9727, 16
    %v9781 = vrot.slane %v9779, 5
    %v9782 = vsel %vm427, %v9777, %v9781
    %v9784 = vshrl.u32 %v9712, 16
    %v9786 = vrot.slane %v9784, 4
    %v9787 = vshll.u32 %v9712, 16
    %v9789 = vrot.slane %v9787, 5
    %v9790 = vor.u32 %v9786, %v9789
    %v9791 = vrot.slane %v9790, 4
    %v9793 = vshll.u32 %v9728, 16
    %v9795 = vrot.slane %v9793, 5
    %v9796 = vsel %vm427, %v9791, %v9795
    %v9798 = vshrl.u32 %v9713, 16
    %v9800 = vrot.slane %v9798, 4
    %v9801 = vshll.u32 %v9713, 16
    %v9803 = vrot.slane %v9801, 5
    %v9804 = vor.u32 %v9800, %v9803
    %v9805 = vrot.slane %v9804, 4
    %v9807 = vshll.u32 %v9729, 16
    %v9809 = vrot.slane %v9807, 5
    %v9810 = vsel %vm427, %v9805, %v9809
    %v9812 = vshrl.u32 %v9714, 16
    %v9814 = vrot.slane %v9812, 4
    %v9815 = vshll.u32 %v9714, 16
    %v9817 = vrot.slane %v9815, 5
    %v9818 = vor.u32 %v9814, %v9817
    %v9819 = vrot.slane %v9818, 4
    %v9821 = vshll.u32 %v9730, 16
    %v9823 = vrot.slane %v9821, 5
    %v9824 = vsel %vm427, %v9819, %v9823
    %v9826 = vshrl.u32 %v9715, 16
    %v9828 = vrot.slane %v9826, 4
    %v9829 = vshll.u32 %v9715, 16
    %v9831 = vrot.slane %v9829, 5
    %v9832 = vor.u32 %v9828, %v9831
    %v9833 = vrot.slane %v9832, 4
    %v9835 = vshll.u32 %v9731, 16
    %v9837 = vrot.slane %v9835, 5
    %v9838 = vsel %vm427, %v9833, %v9837
    %v9840 = vshrl.u32 %v9716, 16
    %v9842 = vrot.slane %v9840, 4
    %v9843 = vshll.u32 %v9716, 16
    %v9845 = vrot.slane %v9843, 5
    %v9846 = vor.u32 %v9842, %v9845
    %v9847 = vrot.slane %v9846, 4
    %v9849 = vshll.u32 %v9732, 16
    %v9851 = vrot.slane %v9849, 5
    %v9852 = vsel %vm427, %v9847, %v9851
    %v9854 = vshrl.u32 %v9717, 16
    %v9856 = vrot.slane %v9854, 4
    %v9857 = vshll.u32 %v9717, 16
    %v9859 = vrot.slane %v9857, 5
    %v9860 = vor.u32 %v9856, %v9859
    %v9861 = vrot.slane %v9860, 4
    %v9863 = vshll.u32 %v9733, 16
    %v9865 = vrot.slane %v9863, 5
    %v9866 = vsel %vm427, %v9861, %v9865
    %v9868 = vshrl.u32 %v9718, 16
    %v9870 = vrot.slane %v9868, 4
    %v9871 = vshll.u32 %v9718, 16
    %v9873 = vrot.slane %v9871, 5
    %v9874 = vor.u32 %v9870, %v9873
    %v9875 = vrot.slane %v9874, 4
    %v9877 = vshll.u32 %v9734, 16
    %v9879 = vrot.slane %v9877, 5
    %v9880 = vsel %vm427, %v9875, %v9879
    %v9882 = vshrl.u32 %v9719, 16
    %v9884 = vrot.slane %v9882, 4
    %v9885 = vshll.u32 %v9719, 16
    %v9887 = vrot.slane %v9885, 5
    %v9888 = vor.u32 %v9884, %v9887
    %v9889 = vrot.slane %v9888, 4
    %v9891 = vshll.u32 %v9735, 16
    %v9893 = vrot.slane %v9891, 5
    %v9894 = vsel %vm427, %v9889, %v9893
    %v9896 = vshrl.u32 %v9720, 16
    %v9898 = vrot.slane %v9896, 4
    %v9899 = vshll.u32 %v9720, 16
    %v9901 = vrot.slane %v9899, 5
    %v9902 = vor.u32 %v9898, %v9901
    %v9903 = vrot.slane %v9902, 4
    %v9905 = vshll.u32 %v9736, 16
    %v9907 = vrot.slane %v9905, 5
    %v9908 = vsel %vm427, %v9903, %v9907
    %v9910 = vshrl.u32 %v9721, 16
    %v9912 = vrot.slane %v9910, 4
    %v9913 = vshll.u32 %v9721, 16
    %v9915 = vrot.slane %v9913, 5
    %v9916 = vor.u32 %v9912, %v9915
    %v9917 = vrot.slane %v9916, 4
    %v9919 = vshll.u32 %v9737, 16
    %v9921 = vrot.slane %v9919, 5
    %v9922 = vsel %vm427, %v9917, %v9921
    %v9924 = vshrl.u32 %v9722, 16
    %v9926 = vrot.slane %v9924, 4
    %v9927 = vshll.u32 %v9722, 16
    %v9929 = vrot.slane %v9927, 5
    %v9930 = vor.u32 %v9926, %v9929
    %v9931 = vrot.slane %v9930, 4
    %v9933 = vshll.u32 %v9738, 16
    %v9935 = vrot.slane %v9933, 5
    %v9936 = vsel %vm427, %v9931, %v9935
    %v9938 = vshrl.u32 %v9723, 16
    %v9940 = vrot.slane %v9938, 4
    %v9941 = vshll.u32 %v9723, 16
    %v9943 = vrot.slane %v9941, 5
    %v9944 = vor.u32 %v9940, %v9943
    %v9945 = vrot.slane %v9944, 4
    %v9947 = vshll.u32 %v9739, 16
    %v9949 = vrot.slane %v9947, 5
    %v9950 = vsel %vm427, %v9945, %v9949
    %v9952 = vshrl.u32 %v9724, 16
    %v9954 = vrot.slane %v9952, 4
    %v9955 = vshll.u32 %v9724, 16
    %v9957 = vrot.slane %v9955, 5
    %v9958 = vor.u32 %v9954, %v9957
    %v9959 = vrot.slane %v9958, 4
    %v9961 = vshll.u32 %v9740, 16
    %v9963 = vrot.slane %v9961, 5
    %v9964 = vsel %vm427, %v9959, %v9963
    %v9965 = vld [vmem:[#allocation3] sm:$0xe]
    %v9966 = vld [vmem:[#allocation3 + $0x8] sm:$0xe]
    %v9967 = vld [vmem:[#allocation3 + $0x10] sm:$0xe]
    %v9968 = vld [vmem:[#allocation3 + $0x18] sm:$0xe]
    %v9969 = vld [vmem:[#allocation3 + $0x20] sm:$0xe]
    %v9970 = vld [vmem:[#allocation3 + $0x28] sm:$0xe]
    %v9971 = vld [vmem:[#allocation3 + $0x30] sm:$0xe]
    %v9972 = vld [vmem:[#allocation3 + $0x38] sm:$0xe]
    %v9973 = vld [vmem:[#allocation3 + $0x50] sm:$0xe]
    %v9974 = vld [vmem:[#allocation3 + $0x58] sm:$0xe]
    %v9975 = vld [vmem:[#allocation3 + $0x60] sm:$0xe]
    %v9976 = vld [vmem:[#allocation3 + $0x68] sm:$0xe]
    %v9977 = vld [vmem:[#allocation3 + $0x70] sm:$0xe]
    %v9978 = vld [vmem:[#allocation3 + $0x78] sm:$0xe]
    %v9979 = vld [vmem:[#allocation3 + $0x80] sm:$0xe]
    %v9980 = vld [vmem:[#allocation3 + $0x88] sm:$0xe]
    %v10013 = vrot.slane %v9965, 5
    %v10014 = vrot.slane %v10013, 4
    %v10015 = vrot.slane %v9725, 5
    %v10016 = vsel %vm702, %v10014, %v10015
    %v10017 = vrot.slane %v9966, 5
    %v10018 = vrot.slane %v10017, 4
    %v10019 = vrot.slane %v9726, 5
    %v10020 = vsel %vm702, %v10018, %v10019
    %v10021 = vrot.slane %v9967, 5
    %v10022 = vrot.slane %v10021, 4
    %v10023 = vrot.slane %v9727, 5
    %v10024 = vsel %vm702, %v10022, %v10023
    %v10025 = vrot.slane %v9968, 5
    %v10026 = vrot.slane %v10025, 4
    %v10027 = vrot.slane %v9728, 5
    %v10028 = vsel %vm702, %v10026, %v10027
    %v10029 = vrot.slane %v9969, 5
    %v10030 = vrot.slane %v10029, 4
    %v10031 = vrot.slane %v9729, 5
    %v10032 = vsel %vm702, %v10030, %v10031
    %v10033 = vrot.slane %v9970, 5
    %v10034 = vrot.slane %v10033, 4
    %v10035 = vrot.slane %v9730, 5
    %v10036 = vsel %vm702, %v10034, %v10035
    %v10037 = vrot.slane %v9971, 5
    %v10038 = vrot.slane %v10037, 4
    %v10039 = vrot.slane %v9731, 5
    %v10040 = vsel %vm702, %v10038, %v10039
    %v10041 = vrot.slane %v9972, 5
    %v10042 = vrot.slane %v10041, 4
    %v10043 = vrot.slane %v9732, 5
    %v10044 = vsel %vm702, %v10042, %v10043
    %v10045 = vrot.slane %v9973, 5
    %v10046 = vrot.slane %v10045, 4
    %v10047 = vrot.slane %v9733, 5
    %v10048 = vsel %vm702, %v10046, %v10047
    %v10049 = vrot.slane %v9974, 5
    %v10050 = vrot.slane %v10049, 4
    %v10051 = vrot.slane %v9734, 5
    %v10052 = vsel %vm702, %v10050, %v10051
    %v10053 = vrot.slane %v9975, 5
    %v10054 = vrot.slane %v10053, 4
    %v10055 = vrot.slane %v9735, 5
    %v10056 = vsel %vm702, %v10054, %v10055
    %v10057 = vrot.slane %v9976, 5
    %v10058 = vrot.slane %v10057, 4
    %v10059 = vrot.slane %v9736, 5
    %v10060 = vsel %vm702, %v10058, %v10059
    %v10061 = vrot.slane %v9977, 5
    %v10062 = vrot.slane %v10061, 4
    %v10063 = vrot.slane %v9737, 5
    %v10064 = vsel %vm702, %v10062, %v10063
    %v10065 = vrot.slane %v9978, 5
    %v10066 = vrot.slane %v10065, 4
    %v10067 = vrot.slane %v9738, 5
    %v10068 = vsel %vm702, %v10066, %v10067
    %v10069 = vrot.slane %v9979, 5
    %v10070 = vrot.slane %v10069, 4
    %v10071 = vrot.slane %v9739, 5
    %v10072 = vsel %vm702, %v10070, %v10071
    %v10073 = vrot.slane %v9980, 5
    %v10074 = vrot.slane %v10073, 4
    %v10075 = vrot.slane %v9740, 5
    %v10076 = vsel %vm702, %v10074, %v10075
    %v10077 = vld [vmem:[%s4949] sm:$0xf]
    %v10078 = vld [vmem:[%s4949 + $0x8] sm:$0xf]
    %v10079 = vld [vmem:[%s4949 + $0x10] sm:$0xf]
    %v10080 = vld [vmem:[%s4949 + $0x18] sm:$0xf]
    %v10081 = vld [vmem:[%s4949 + $0x20] sm:$0xf]
    %v10082 = vld [vmem:[%s4949 + $0x28] sm:$0xf]
    %v10083 = vld [vmem:[%s4949 + $0x30] sm:$0xf]
    %v10084 = vld [vmem:[%s4949 + $0x38] sm:$0xf]
    %v10085 = vld [vmem:[%s4949 + $0x50] sm:$0xf]
    %v10086 = vld [vmem:[%s4949 + $0x58] sm:$0xf]
    %v10087 = vld [vmem:[%s4949 + $0x60] sm:$0xf]
    %v10088 = vld [vmem:[%s4949 + $0x68] sm:$0xf]
    %v10089 = vld [vmem:[%s4949 + $0x70] sm:$0xf]
    %v10090 = vld [vmem:[%s4949 + $0x78] sm:$0xf]
    %v10091 = vld [vmem:[%s4949 + $0x80] sm:$0xf]
    %v10092 = vld [vmem:[%s4949 + $0x88] sm:$0xf]
    %v10093 = vld [vmem:[%s4949 + $0x4] sm:$0x1]
    %v10094 = vld [vmem:[%s4949 + $0xc] sm:$0x1]
    %v10095 = vld [vmem:[%s4949 + $0x14] sm:$0x1]
    %v10096 = vld [vmem:[%s4949 + $0x1c] sm:$0x1]
    %v10097 = vld [vmem:[%s4949 + $0x24] sm:$0x1]
    %v10098 = vld [vmem:[%s4949 + $0x2c] sm:$0x1]
    %v10099 = vld [vmem:[%s4949 + $0x34] sm:$0x1]
    %v10100 = vld [vmem:[%s4949 + $0x3c] sm:$0x1]
    %v10101 = vld [vmem:[%s4949 + $0x54] sm:$0x1]
    %v10102 = vld [vmem:[%s4949 + $0x5c] sm:$0x1]
    %v10103 = vld [vmem:[%s4949 + $0x64] sm:$0x1]
    %v10104 = vld [vmem:[%s4949 + $0x6c] sm:$0x1]
    %v10105 = vld [vmem:[%s4949 + $0x74] sm:$0x1]
    %v10106 = vld [vmem:[%s4949 + $0x7c] sm:$0x1]
    %v10107 = vld [vmem:[%s4949 + $0x84] sm:$0x1]
    %v10108 = vld [vmem:[%s4949 + $0x8c] sm:$0x1]
    %v10110 = vshrl.u32 %v10077, 16
    %v10112 = vrot.slane %v10110, 4
    %v10113 = vshll.u32 %v10077, 16
    %v10115 = vrot.slane %v10113, 5
    %v10116 = vor.u32 %v10112, %v10115
    %v10117 = vrot.slane %v10116, 4
    %v10119 = vshll.u32 %v10093, 16
    %v10121 = vrot.slane %v10119, 5
    %v10122 = vsel %vm427, %v10117, %v10121
    %v10124 = vshrl.u32 %v10078, 16
    %v10126 = vrot.slane %v10124, 4
    %v10127 = vshll.u32 %v10078, 16
    %v10129 = vrot.slane %v10127, 5
    %v10130 = vor.u32 %v10126, %v10129
    %v10131 = vrot.slane %v10130, 4
    %v10133 = vshll.u32 %v10094, 16
    %v10135 = vrot.slane %v10133, 5
    %v10136 = vsel %vm427, %v10131, %v10135
    %v10138 = vshrl.u32 %v10079, 16
    %v10140 = vrot.slane %v10138, 4
    %v10141 = vshll.u32 %v10079, 16
    %v10143 = vrot.slane %v10141, 5
    %v10144 = vor.u32 %v10140, %v10143
    %v10145 = vrot.slane %v10144, 4
    %v10147 = vshll.u32 %v10095, 16
    %v10149 = vrot.slane %v10147, 5
    %v10150 = vsel %vm427, %v10145, %v10149
    %v10152 = vshrl.u32 %v10080, 16
    %v10154 = vrot.slane %v10152, 4
    %v10155 = vshll.u32 %v10080, 16
    %v10157 = vrot.slane %v10155, 5
    %v10158 = vor.u32 %v10154, %v10157
    %v10159 = vrot.slane %v10158, 4
    %v10161 = vshll.u32 %v10096, 16
    %v10163 = vrot.slane %v10161, 5
    %v10164 = vsel %vm427, %v10159, %v10163
    %v10166 = vshrl.u32 %v10081, 16
    %v10168 = vrot.slane %v10166, 4
    %v10169 = vshll.u32 %v10081, 16
    %v10171 = vrot.slane %v10169, 5
    %v10172 = vor.u32 %v10168, %v10171
    %v10173 = vrot.slane %v10172, 4
    %v10175 = vshll.u32 %v10097, 16
    %v10177 = vrot.slane %v10175, 5
    %v10178 = vsel %vm427, %v10173, %v10177
    %v10180 = vshrl.u32 %v10082, 16
    %v10182 = vrot.slane %v10180, 4
    %v10183 = vshll.u32 %v10082, 16
    %v10185 = vrot.slane %v10183, 5
    %v10186 = vor.u32 %v10182, %v10185
    %v10187 = vrot.slane %v10186, 4
    %v10189 = vshll.u32 %v10098, 16
    %v10191 = vrot.slane %v10189, 5
    %v10192 = vsel %vm427, %v10187, %v10191
    %v10194 = vshrl.u32 %v10083, 16
    %v10196 = vrot.slane %v10194, 4
    %v10197 = vshll.u32 %v10083, 16
    %v10199 = vrot.slane %v10197, 5
    %v10200 = vor.u32 %v10196, %v10199
    %v10201 = vrot.slane %v10200, 4
    %v10203 = vshll.u32 %v10099, 16
    %v10205 = vrot.slane %v10203, 5
    %v10206 = vsel %vm427, %v10201, %v10205
    %v10208 = vshrl.u32 %v10084, 16
    %v10210 = vrot.slane %v10208, 4
    %v10211 = vshll.u32 %v10084, 16
    %v10213 = vrot.slane %v10211, 5
    %v10214 = vor.u32 %v10210, %v10213
    %v10215 = vrot.slane %v10214, 4
    %v10217 = vshll.u32 %v10100, 16
    %v10219 = vrot.slane %v10217, 5
    %v10220 = vsel %vm427, %v10215, %v10219
    %v10222 = vshrl.u32 %v10085, 16
    %v10224 = vrot.slane %v10222, 4
    %v10225 = vshll.u32 %v10085, 16
    %v10227 = vrot.slane %v10225, 5
    %v10228 = vor.u32 %v10224, %v10227
    %v10229 = vrot.slane %v10228, 4
    %v10231 = vshll.u32 %v10101, 16
    %v10233 = vrot.slane %v10231, 5
    %v10234 = vsel %vm427, %v10229, %v10233
    %v10236 = vshrl.u32 %v10086, 16
    %v10238 = vrot.slane %v10236, 4
    %v10239 = vshll.u32 %v10086, 16
    %v10241 = vrot.slane %v10239, 5
    %v10242 = vor.u32 %v10238, %v10241
    %v10243 = vrot.slane %v10242, 4
    %v10245 = vshll.u32 %v10102, 16
    %v10247 = vrot.slane %v10245, 5
    %v10248 = vsel %vm427, %v10243, %v10247
    %v10250 = vshrl.u32 %v10087, 16
    %v10252 = vrot.slane %v10250, 4
    %v10253 = vshll.u32 %v10087, 16
    %v10255 = vrot.slane %v10253, 5
    %v10256 = vor.u32 %v10252, %v10255
    %v10257 = vrot.slane %v10256, 4
    %v10259 = vshll.u32 %v10103, 16
    %v10261 = vrot.slane %v10259, 5
    %v10262 = vsel %vm427, %v10257, %v10261
    %v10264 = vshrl.u32 %v10088, 16
    %v10266 = vrot.slane %v10264, 4
    %v10267 = vshll.u32 %v10088, 16
    %v10269 = vrot.slane %v10267, 5
    %v10270 = vor.u32 %v10266, %v10269
    %v10271 = vrot.slane %v10270, 4
    %v10273 = vshll.u32 %v10104, 16
    %v10275 = vrot.slane %v10273, 5
    %v10276 = vsel %vm427, %v10271, %v10275
    %v10278 = vshrl.u32 %v10089, 16
    %v10280 = vrot.slane %v10278, 4
    %v10281 = vshll.u32 %v10089, 16
    %v10283 = vrot.slane %v10281, 5
    %v10284 = vor.u32 %v10280, %v10283
    %v10285 = vrot.slane %v10284, 4
    %v10287 = vshll.u32 %v10105, 16
    %v10289 = vrot.slane %v10287, 5
    %v10290 = vsel %vm427, %v10285, %v10289
    %v10292 = vshrl.u32 %v10090, 16
    %v10294 = vrot.slane %v10292, 4
    %v10295 = vshll.u32 %v10090, 16
    %v10297 = vrot.slane %v10295, 5
    %v10298 = vor.u32 %v10294, %v10297
    %v10299 = vrot.slane %v10298, 4
    %v10301 = vshll.u32 %v10106, 16
    %v10303 = vrot.slane %v10301, 5
    %v10304 = vsel %vm427, %v10299, %v10303
    %v10306 = vshrl.u32 %v10091, 16
    %v10308 = vrot.slane %v10306, 4
    %v10309 = vshll.u32 %v10091, 16
    %v10311 = vrot.slane %v10309, 5
    %v10312 = vor.u32 %v10308, %v10311
    %v10313 = vrot.slane %v10312, 4
    %v10315 = vshll.u32 %v10107, 16
    %v10317 = vrot.slane %v10315, 5
    %v10318 = vsel %vm427, %v10313, %v10317
    %v10320 = vshrl.u32 %v10092, 16
    %v10322 = vrot.slane %v10320, 4
    %v10323 = vshll.u32 %v10092, 16
    %v10325 = vrot.slane %v10323, 5
    %v10326 = vor.u32 %v10322, %v10325
    %v10327 = vrot.slane %v10326, 4
    %v10329 = vshll.u32 %v10108, 16
    %v10331 = vrot.slane %v10329, 5
    %v10332 = vsel %vm427, %v10327, %v10331
    %v10333 = vld [vmem:[%s4949] sm:$0xe]
    %v10334 = vld [vmem:[%s4949 + $0x8] sm:$0xe]
    %v10335 = vld [vmem:[%s4949 + $0x10] sm:$0xe]
    %v10336 = vld [vmem:[%s4949 + $0x18] sm:$0xe]
    %v10337 = vld [vmem:[%s4949 + $0x20] sm:$0xe]
    %v10338 = vld [vmem:[%s4949 + $0x28] sm:$0xe]
    %v10339 = vld [vmem:[%s4949 + $0x30] sm:$0xe]
    %v10340 = vld [vmem:[%s4949 + $0x38] sm:$0xe]
    %v10341 = vld [vmem:[%s4949 + $0x50] sm:$0xe]
    %v10342 = vld [vmem:[%s4949 + $0x58] sm:$0xe]
    %v10343 = vld [vmem:[%s4949 + $0x60] sm:$0xe]
    %v10344 = vld [vmem:[%s4949 + $0x68] sm:$0xe]
    %v10345 = vld [vmem:[%s4949 + $0x70] sm:$0xe]
    %v10346 = vld [vmem:[%s4949 + $0x78] sm:$0xe]
    %v10347 = vld [vmem:[%s4949 + $0x80] sm:$0xe]
    %v10348 = vld [vmem:[%s4949 + $0x88] sm:$0xe]
    %v10381 = vrot.slane %v10333, 5
    %v10382 = vrot.slane %v10381, 4
    %v10383 = vrot.slane %v10093, 5
    %v10384 = vsel %vm702, %v10382, %v10383
    %v10385 = vrot.slane %v10334, 5
    %v10386 = vrot.slane %v10385, 4
    %v10387 = vrot.slane %v10094, 5
    %v10388 = vsel %vm702, %v10386, %v10387
    %v10389 = vrot.slane %v10335, 5
    %v10390 = vrot.slane %v10389, 4
    %v10391 = vrot.slane %v10095, 5
    %v10392 = vsel %vm702, %v10390, %v10391
    %v10393 = vrot.slane %v10336, 5
    %v10394 = vrot.slane %v10393, 4
    %v10395 = vrot.slane %v10096, 5
    %v10396 = vsel %vm702, %v10394, %v10395
    %v10397 = vrot.slane %v10337, 5
    %v10398 = vrot.slane %v10397, 4
    %v10399 = vrot.slane %v10097, 5
    %v10400 = vsel %vm702, %v10398, %v10399
    %v10401 = vrot.slane %v10338, 5
    %v10402 = vrot.slane %v10401, 4
    %v10403 = vrot.slane %v10098, 5
    %v10404 = vsel %vm702, %v10402, %v10403
    %v10405 = vrot.slane %v10339, 5
    %v10406 = vrot.slane %v10405, 4
    %v10407 = vrot.slane %v10099, 5
    %v10408 = vsel %vm702, %v10406, %v10407
    %v10409 = vrot.slane %v10340, 5
    %v10410 = vrot.slane %v10409, 4
    %v10411 = vrot.slane %v10100, 5
    %v10412 = vsel %vm702, %v10410, %v10411
    %v10413 = vrot.slane %v10341, 5
    %v10414 = vrot.slane %v10413, 4
    %v10415 = vrot.slane %v10101, 5
    %v10416 = vsel %vm702, %v10414, %v10415
    %v10417 = vrot.slane %v10342, 5
    %v10418 = vrot.slane %v10417, 4
    %v10419 = vrot.slane %v10102, 5
    %v10420 = vsel %vm702, %v10418, %v10419
    %v10421 = vrot.slane %v10343, 5
    %v10422 = vrot.slane %v10421, 4
    %v10423 = vrot.slane %v10103, 5
    %v10424 = vsel %vm702, %v10422, %v10423
    %v10425 = vrot.slane %v10344, 5
    %v10426 = vrot.slane %v10425, 4
    %v10427 = vrot.slane %v10104, 5
    %v10428 = vsel %vm702, %v10426, %v10427
    %v10429 = vrot.slane %v10345, 5
    %v10430 = vrot.slane %v10429, 4
    %v10431 = vrot.slane %v10105, 5
    %v10432 = vsel %vm702, %v10430, %v10431
    %v10433 = vrot.slane %v10346, 5
    %v10434 = vrot.slane %v10433, 4
    %v10435 = vrot.slane %v10106, 5
    %v10436 = vsel %vm702, %v10434, %v10435
    %v10437 = vrot.slane %v10347, 5
    %v10438 = vrot.slane %v10437, 4
    %v10439 = vrot.slane %v10107, 5
    %v10440 = vsel %vm702, %v10438, %v10439
    %v10441 = vrot.slane %v10348, 5
    %v10442 = vrot.slane %v10441, 4
    %v10443 = vrot.slane %v10108, 5
    %v10444 = vsel %vm702, %v10442, %v10443
    %v10445 = vld [vmem:[%s5782] sm:$0xf]
    %v10446 = vld [vmem:[%s5782 + $0x8] sm:$0xf]
    %v10447 = vld [vmem:[%s5782 + $0x10] sm:$0xf]
    %v10448 = vld [vmem:[%s5782 + $0x18] sm:$0xf]
    %v10449 = vld [vmem:[%s5782 + $0x20] sm:$0xf]
    %v10450 = vld [vmem:[%s5782 + $0x28] sm:$0xf]
    %v10451 = vld [vmem:[%s5782 + $0x30] sm:$0xf]
    %v10452 = vld [vmem:[%s5782 + $0x38] sm:$0xf]
    %v10453 = vld [vmem:[%s5782 + $0x50] sm:$0xf]
    %v10454 = vld [vmem:[%s5782 + $0x58] sm:$0xf]
    %v10455 = vld [vmem:[%s5782 + $0x60] sm:$0xf]
    %v10456 = vld [vmem:[%s5782 + $0x68] sm:$0xf]
    %v10457 = vld [vmem:[%s5782 + $0x70] sm:$0xf]
    %v10458 = vld [vmem:[%s5782 + $0x78] sm:$0xf]
    %v10459 = vld [vmem:[%s5782 + $0x80] sm:$0xf]
    %v10460 = vld [vmem:[%s5782 + $0x88] sm:$0xf]
    %v10461 = vld [vmem:[%s5782 + $0x4] sm:$0x1]
    %v10462 = vld [vmem:[%s5782 + $0xc] sm:$0x1]
    %v10463 = vld [vmem:[%s5782 + $0x14] sm:$0x1]
    %v10464 = vld [vmem:[%s5782 + $0x1c] sm:$0x1]
    %v10465 = vld [vmem:[%s5782 + $0x24] sm:$0x1]
    %v10466 = vld [vmem:[%s5782 + $0x2c] sm:$0x1]
    %v10467 = vld [vmem:[%s5782 + $0x34] sm:$0x1]
    %v10468 = vld [vmem:[%s5782 + $0x3c] sm:$0x1]
    %v10469 = vld [vmem:[%s5782 + $0x54] sm:$0x1]
    %v10470 = vld [vmem:[%s5782 + $0x5c] sm:$0x1]
    %v10471 = vld [vmem:[%s5782 + $0x64] sm:$0x1]
    %v10472 = vld [vmem:[%s5782 + $0x6c] sm:$0x1]
    %v10473 = vld [vmem:[%s5782 + $0x74] sm:$0x1]
    %v10474 = vld [vmem:[%s5782 + $0x7c] sm:$0x1]
    %v10475 = vld [vmem:[%s5782 + $0x84] sm:$0x1]
    %v10476 = vld [vmem:[%s5782 + $0x8c] sm:$0x1]
    %v10478 = vshrl.u32 %v10445, 16
    %v10480 = vrot.slane %v10478, 4
    %v10481 = vshll.u32 %v10445, 16
    %v10483 = vrot.slane %v10481, 5
    %v10484 = vor.u32 %v10480, %v10483
    %v10485 = vrot.slane %v10484, 4
    %v10487 = vshll.u32 %v10461, 16
    %v10489 = vrot.slane %v10487, 5
    %v10490 = vsel %vm427, %v10485, %v10489
    %v10492 = vshrl.u32 %v10446, 16
    %v10494 = vrot.slane %v10492, 4
    %v10495 = vshll.u32 %v10446, 16
    %v10497 = vrot.slane %v10495, 5
    %v10498 = vor.u32 %v10494, %v10497
    %v10499 = vrot.slane %v10498, 4
    %v10501 = vshll.u32 %v10462, 16
    %v10503 = vrot.slane %v10501, 5
    %v10504 = vsel %vm427, %v10499, %v10503
    %v10506 = vshrl.u32 %v10447, 16
    %v10508 = vrot.slane %v10506, 4
    %v10509 = vshll.u32 %v10447, 16
    %v10511 = vrot.slane %v10509, 5
    %v10512 = vor.u32 %v10508, %v10511
    %v10513 = vrot.slane %v10512, 4
    %v10515 = vshll.u32 %v10463, 16
    %v10517 = vrot.slane %v10515, 5
    %v10518 = vsel %vm427, %v10513, %v10517
    %v10520 = vshrl.u32 %v10448, 16
    %v10522 = vrot.slane %v10520, 4
    %v10523 = vshll.u32 %v10448, 16
    %v10525 = vrot.slane %v10523, 5
    %v10526 = vor.u32 %v10522, %v10525
    %v10527 = vrot.slane %v10526, 4
    %v10529 = vshll.u32 %v10464, 16
    %v10531 = vrot.slane %v10529, 5
    %v10532 = vsel %vm427, %v10527, %v10531
    %v10534 = vshrl.u32 %v10449, 16
    %v10536 = vrot.slane %v10534, 4
    %v10537 = vshll.u32 %v10449, 16
    %v10539 = vrot.slane %v10537, 5
    %v10540 = vor.u32 %v10536, %v10539
    %v10541 = vrot.slane %v10540, 4
    %v10543 = vshll.u32 %v10465, 16
    %v10545 = vrot.slane %v10543, 5
    %v10546 = vsel %vm427, %v10541, %v10545
    %v10548 = vshrl.u32 %v10450, 16
    %v10550 = vrot.slane %v10548, 4
    %v10551 = vshll.u32 %v10450, 16
    %v10553 = vrot.slane %v10551, 5
    %v10554 = vor.u32 %v10550, %v10553
    %v10555 = vrot.slane %v10554, 4
    %v10557 = vshll.u32 %v10466, 16
    %v10559 = vrot.slane %v10557, 5
    %v10560 = vsel %vm427, %v10555, %v10559
    %v10562 = vshrl.u32 %v10451, 16
    %v10564 = vrot.slane %v10562, 4
    %v10565 = vshll.u32 %v10451, 16
    %v10567 = vrot.slane %v10565, 5
    %v10568 = vor.u32 %v10564, %v10567
    %v10569 = vrot.slane %v10568, 4
    %v10571 = vshll.u32 %v10467, 16
    %v10573 = vrot.slane %v10571, 5
    %v10574 = vsel %vm427, %v10569, %v10573
    %v10576 = vshrl.u32 %v10452, 16
    %v10578 = vrot.slane %v10576, 4
    %v10579 = vshll.u32 %v10452, 16
    %v10581 = vrot.slane %v10579, 5
    %v10582 = vor.u32 %v10578, %v10581
    %v10583 = vrot.slane %v10582, 4
    %v10585 = vshll.u32 %v10468, 16
    %v10587 = vrot.slane %v10585, 5
    %v10588 = vsel %vm427, %v10583, %v10587
    %v10590 = vshrl.u32 %v10453, 16
    %v10592 = vrot.slane %v10590, 4
    %v10593 = vshll.u32 %v10453, 16
    %v10595 = vrot.slane %v10593, 5
    %v10596 = vor.u32 %v10592, %v10595
    %v10597 = vrot.slane %v10596, 4
    %v10599 = vshll.u32 %v10469, 16
    %v10601 = vrot.slane %v10599, 5
    %v10602 = vsel %vm427, %v10597, %v10601
    %v10604 = vshrl.u32 %v10454, 16
    %v10606 = vrot.slane %v10604, 4
    %v10607 = vshll.u32 %v10454, 16
    %v10609 = vrot.slane %v10607, 5
    %v10610 = vor.u32 %v10606, %v10609
    %v10611 = vrot.slane %v10610, 4
    %v10613 = vshll.u32 %v10470, 16
    %v10615 = vrot.slane %v10613, 5
    %v10616 = vsel %vm427, %v10611, %v10615
    %v10618 = vshrl.u32 %v10455, 16
    %v10620 = vrot.slane %v10618, 4
    %v10621 = vshll.u32 %v10455, 16
    %v10623 = vrot.slane %v10621, 5
    %v10624 = vor.u32 %v10620, %v10623
    %v10625 = vrot.slane %v10624, 4
    %v10627 = vshll.u32 %v10471, 16
    %v10629 = vrot.slane %v10627, 5
    %v10630 = vsel %vm427, %v10625, %v10629
    %v10632 = vshrl.u32 %v10456, 16
    %v10634 = vrot.slane %v10632, 4
    %v10635 = vshll.u32 %v10456, 16
    %v10637 = vrot.slane %v10635, 5
    %v10638 = vor.u32 %v10634, %v10637
    %v10639 = vrot.slane %v10638, 4
    %v10641 = vshll.u32 %v10472, 16
    %v10643 = vrot.slane %v10641, 5
    %v10644 = vsel %vm427, %v10639, %v10643
    %v10646 = vshrl.u32 %v10457, 16
    %v10648 = vrot.slane %v10646, 4
    %v10649 = vshll.u32 %v10457, 16
    %v10651 = vrot.slane %v10649, 5
    %v10652 = vor.u32 %v10648, %v10651
    %v10653 = vrot.slane %v10652, 4
    %v10655 = vshll.u32 %v10473, 16
    %v10657 = vrot.slane %v10655, 5
    %v10658 = vsel %vm427, %v10653, %v10657
    %v10660 = vshrl.u32 %v10458, 16
    %v10662 = vrot.slane %v10660, 4
    %v10663 = vshll.u32 %v10458, 16
    %v10665 = vrot.slane %v10663, 5
    %v10666 = vor.u32 %v10662, %v10665
    %v10667 = vrot.slane %v10666, 4
    %v10669 = vshll.u32 %v10474, 16
    %v10671 = vrot.slane %v10669, 5
    %v10672 = vsel %vm427, %v10667, %v10671
    %v10674 = vshrl.u32 %v10459, 16
    %v10676 = vrot.slane %v10674, 4
    %v10677 = vshll.u32 %v10459, 16
    %v10679 = vrot.slane %v10677, 5
    %v10680 = vor.u32 %v10676, %v10679
    %v10681 = vrot.slane %v10680, 4
    %v10683 = vshll.u32 %v10475, 16
    %v10685 = vrot.slane %v10683, 5
    %v10686 = vsel %vm427, %v10681, %v10685
    %v10688 = vshrl.u32 %v10460, 16
    %v10690 = vrot.slane %v10688, 4
    %v10691 = vshll.u32 %v10460, 16
    %v10693 = vrot.slane %v10691, 5
    %v10694 = vor.u32 %v10690, %v10693
    %v10695 = vrot.slane %v10694, 4
    %v10697 = vshll.u32 %v10476, 16
    %v10699 = vrot.slane %v10697, 5
    %v10700 = vsel %vm427, %v10695, %v10699
    %v10701 = vld [vmem:[%s5782] sm:$0xe]
    %v10702 = vld [vmem:[%s5782 + $0x8] sm:$0xe]
    %v10703 = vld [vmem:[%s5782 + $0x10] sm:$0xe]
    %v10704 = vld [vmem:[%s5782 + $0x18] sm:$0xe]
    %v10705 = vld [vmem:[%s5782 + $0x20] sm:$0xe]
    %v10706 = vld [vmem:[%s5782 + $0x28] sm:$0xe]
    %v10707 = vld [vmem:[%s5782 + $0x30] sm:$0xe]
    %v10708 = vld [vmem:[%s5782 + $0x38] sm:$0xe]
    %v10709 = vld [vmem:[%s5782 + $0x50] sm:$0xe]
    %v10710 = vld [vmem:[%s5782 + $0x58] sm:$0xe]
    %v10711 = vld [vmem:[%s5782 + $0x60] sm:$0xe]
    %v10712 = vld [vmem:[%s5782 + $0x68] sm:$0xe]
    %v10713 = vld [vmem:[%s5782 + $0x70] sm:$0xe]
    %v10714 = vld [vmem:[%s5782 + $0x78] sm:$0xe]
    %v10715 = vld [vmem:[%s5782 + $0x80] sm:$0xe]
    %v10716 = vld [vmem:[%s5782 + $0x88] sm:$0xe]
    %v10749 = vrot.slane %v10701, 5
    %v10750 = vrot.slane %v10749, 4
    %v10751 = vrot.slane %v10461, 5
    %v10752 = vsel %vm702, %v10750, %v10751
    %v10753 = vrot.slane %v10702, 5
    %v10754 = vrot.slane %v10753, 4
    %v10755 = vrot.slane %v10462, 5
    %v10756 = vsel %vm702, %v10754, %v10755
    %v10757 = vrot.slane %v10703, 5
    %v10758 = vrot.slane %v10757, 4
    %v10759 = vrot.slane %v10463, 5
    %v10760 = vsel %vm702, %v10758, %v10759
    %v10761 = vrot.slane %v10704, 5
    %v10762 = vrot.slane %v10761, 4
    %v10763 = vrot.slane %v10464, 5
    %v10764 = vsel %vm702, %v10762, %v10763
    %v10765 = vrot.slane %v10705, 5
    %v10766 = vrot.slane %v10765, 4
    %v10767 = vrot.slane %v10465, 5
    %v10768 = vsel %vm702, %v10766, %v10767
    %v10769 = vrot.slane %v10706, 5
    %v10770 = vrot.slane %v10769, 4
    %v10771 = vrot.slane %v10466, 5
    %v10772 = vsel %vm702, %v10770, %v10771
    %v10773 = vrot.slane %v10707, 5
    %v10774 = vrot.slane %v10773, 4
    %v10775 = vrot.slane %v10467, 5
    %v10776 = vsel %vm702, %v10774, %v10775
    %v10777 = vrot.slane %v10708, 5
    %v10778 = vrot.slane %v10777, 4
    %v10779 = vrot.slane %v10468, 5
    %v10780 = vsel %vm702, %v10778, %v10779
    %v10781 = vrot.slane %v10709, 5
    %v10782 = vrot.slane %v10781, 4
    %v10783 = vrot.slane %v10469, 5
    %v10784 = vsel %vm702, %v10782, %v10783
    %v10785 = vrot.slane %v10710, 5
    %v10786 = vrot.slane %v10785, 4
    %v10787 = vrot.slane %v10470, 5
    %v10788 = vsel %vm702, %v10786, %v10787
    %v10789 = vrot.slane %v10711, 5
    %v10790 = vrot.slane %v10789, 4
    %v10791 = vrot.slane %v10471, 5
    %v10792 = vsel %vm702, %v10790, %v10791
    %v10793 = vrot.slane %v10712, 5
    %v10794 = vrot.slane %v10793, 4
    %v10795 = vrot.slane %v10472, 5
    %v10796 = vsel %vm702, %v10794, %v10795
    %v10797 = vrot.slane %v10713, 5
    %v10798 = vrot.slane %v10797, 4
    %v10799 = vrot.slane %v10473, 5
    %v10800 = vsel %vm702, %v10798, %v10799
    %v10801 = vrot.slane %v10714, 5
    %v10802 = vrot.slane %v10801, 4
    %v10803 = vrot.slane %v10474, 5
    %v10804 = vsel %vm702, %v10802, %v10803
    %v10805 = vrot.slane %v10715, 5
    %v10806 = vrot.slane %v10805, 4
    %v10807 = vrot.slane %v10475, 5
    %v10808 = vsel %vm702, %v10806, %v10807
    %v10809 = vrot.slane %v10716, 5
    %v10810 = vrot.slane %v10809, 4
    %v10811 = vrot.slane %v10476, 5
    %v10812 = vsel %vm702, %v10810, %v10811
    %v10829 = vunpack.c.l.b16 %v9709
    %v10830 = vunpack.c.l.b16 %v9710
    %v10831 = vunpack.c.l.b16 %v9711
    %v10832 = vunpack.c.l.b16 %v9712
    %v10833 = vunpack.c.l.b16 %v9713
    %v10834 = vunpack.c.l.b16 %v9714
    %v10835 = vunpack.c.l.b16 %v9715
    %v10836 = vunpack.c.l.b16 %v9716
    %v10837 = vunpack.c.l.b16 %v9717
    %v10838 = vunpack.c.l.b16 %v9718
    %v10839 = vunpack.c.l.b16 %v9719
    %v10840 = vunpack.c.l.b16 %v9720
    %v10841 = vunpack.c.l.b16 %v9721
    %v10842 = vunpack.c.l.b16 %v9722
    %v10843 = vunpack.c.l.b16 %v9723
    %v10844 = vunpack.c.l.b16 %v9724
    %v10845 = vpack.c.b16 %v10830, %v10829
    %v10846 = vpack.c.b16 %v10832, %v10831
    %v10847 = vpack.c.b16 %v10834, %v10833
    %v10848 = vpack.c.b16 %v10836, %v10835
    %v10849 = vpack.c.b16 %v10838, %v10837
    %v10850 = vpack.c.b16 %v10840, %v10839
    %v10851 = vpack.c.b16 %v10842, %v10841
    %v10852 = vpack.c.b16 %v10844, %v10843
    %v10853 = vunpack.c.l.b16 %v9754
    %v10854 = vunpack.c.l.b16 %v9768
    %v10855 = vunpack.c.l.b16 %v9782
    %v10856 = vunpack.c.l.b16 %v9796
    %v10857 = vunpack.c.l.b16 %v9810
    %v10858 = vunpack.c.l.b16 %v9824
    %v10859 = vunpack.c.l.b16 %v9838
    %v10860 = vunpack.c.l.b16 %v9852
    %v10861 = vunpack.c.l.b16 %v9866
    %v10862 = vunpack.c.l.b16 %v9880
    %v10863 = vunpack.c.l.b16 %v9894
    %v10864 = vunpack.c.l.b16 %v9908
    %v10865 = vunpack.c.l.b16 %v9922
    %v10866 = vunpack.c.l.b16 %v9936
    %v10867 = vunpack.c.l.b16 %v9950
    %v10868 = vunpack.c.l.b16 %v9964
    %v10869 = vpack.c.b16 %v10854, %v10853
    %v10870 = vpack.c.b16 %v10856, %v10855
    %v10871 = vpack.c.b16 %v10858, %v10857
    %v10872 = vpack.c.b16 %v10860, %v10859
    %v10873 = vpack.c.b16 %v10862, %v10861
    %v10874 = vpack.c.b16 %v10864, %v10863
    %v10875 = vpack.c.b16 %v10866, %v10865
    %v10876 = vpack.c.b16 %v10868, %v10867
    %10877 = vrot.lane.b32.xlu0 %v10869, 32
    %v10878 = vpop.permute.xlu0 %10877
    %10879 = vrot.lane.b32.xlu0 %v10870, 32
    %v10880 = vpop.permute.xlu0 %10879
    %10881 = vrot.lane.b32.xlu0 %v10871, 32
    %v10882 = vpop.permute.xlu0 %10881
    %10883 = vrot.lane.b32.xlu0 %v10872, 32
    %v10884 = vpop.permute.xlu0 %10883
    %10885 = vrot.lane.b32.xlu0 %v10873, 32
    %v10886 = vpop.permute.xlu0 %10885
    %10887 = vrot.lane.b32.xlu0 %v10874, 32
    %v10888 = vpop.permute.xlu0 %10887
    %10889 = vrot.lane.b32.xlu0 %v10875, 32
    %v10890 = vpop.permute.xlu0 %10889
    %10891 = vrot.lane.b32.xlu0 %v10876, 32
    %v10892 = vpop.permute.xlu0 %10891
    %v10893 = vunpack.c.l.b16 %v10016
    %v10894 = vunpack.c.l.b16 %v10020
    %v10895 = vunpack.c.l.b16 %v10024
    %v10896 = vunpack.c.l.b16 %v10028
    %v10897 = vunpack.c.l.b16 %v10032
    %v10898 = vunpack.c.l.b16 %v10036
    %v10899 = vunpack.c.l.b16 %v10040
    %v10900 = vunpack.c.l.b16 %v10044
    %v10901 = vunpack.c.l.b16 %v10048
    %v10902 = vunpack.c.l.b16 %v10052
    %v10903 = vunpack.c.l.b16 %v10056
    %v10904 = vunpack.c.l.b16 %v10060
    %v10905 = vunpack.c.l.b16 %v10064
    %v10906 = vunpack.c.l.b16 %v10068
    %v10907 = vunpack.c.l.b16 %v10072
    %v10908 = vunpack.c.l.b16 %v10076
    %v10909 = vpack.c.b16 %v10894, %v10893
    %v10910 = vpack.c.b16 %v10896, %v10895
    %v10911 = vpack.c.b16 %v10898, %v10897
    %v10912 = vpack.c.b16 %v10900, %v10899
    %v10913 = vpack.c.b16 %v10902, %v10901
    %v10914 = vpack.c.b16 %v10904, %v10903
    %v10915 = vpack.c.b16 %v10906, %v10905
    %v10916 = vpack.c.b16 %v10908, %v10907
    %10917 = vrot.lane.b32.xlu0 %v10909, 64
    %v10918 = vpop.permute.xlu0 %10917
    %10919 = vrot.lane.b32.xlu0 %v10910, 64
    %v10920 = vpop.permute.xlu0 %10919
    %10921 = vrot.lane.b32.xlu0 %v10911, 64
    %v10922 = vpop.permute.xlu0 %10921
    %10923 = vrot.lane.b32.xlu0 %v10912, 64
    %v10924 = vpop.permute.xlu0 %10923
    %10925 = vrot.lane.b32.xlu0 %v10913, 64
    %v10926 = vpop.permute.xlu0 %10925
    %10927 = vrot.lane.b32.xlu0 %v10914, 64
    %v10928 = vpop.permute.xlu0 %10927
    %10929 = vrot.lane.b32.xlu0 %v10915, 64
    %v10930 = vpop.permute.xlu0 %10929
    %10931 = vrot.lane.b32.xlu0 %v10916, 64
    %v10932 = vpop.permute.xlu0 %10931
    %v10949 = vunpack.c.l.b16 %v10077
    %v10950 = vunpack.c.l.b16 %v10078
    %v10951 = vunpack.c.l.b16 %v10079
    %v10952 = vunpack.c.l.b16 %v10080
    %v10953 = vunpack.c.l.b16 %v10081
    %v10954 = vunpack.c.l.b16 %v10082
    %v10955 = vunpack.c.l.b16 %v10083
    %v10956 = vunpack.c.l.b16 %v10084
    %v10957 = vunpack.c.l.b16 %v10085
    %v10958 = vunpack.c.l.b16 %v10086
    %v10959 = vunpack.c.l.b16 %v10087
    %v10960 = vunpack.c.l.b16 %v10088
    %v10961 = vunpack.c.l.b16 %v10089
    %v10962 = vunpack.c.l.b16 %v10090
    %v10963 = vunpack.c.l.b16 %v10091
    %v10964 = vunpack.c.l.b16 %v10092
    %v10965 = vpack.c.b16 %v10950, %v10949
    %v10966 = vpack.c.b16 %v10952, %v10951
    %v10967 = vpack.c.b16 %v10954, %v10953
    %v10968 = vpack.c.b16 %v10956, %v10955
    %v10969 = vpack.c.b16 %v10958, %v10957
    %v10970 = vpack.c.b16 %v10960, %v10959
    %v10971 = vpack.c.b16 %v10962, %v10961
    %v10972 = vpack.c.b16 %v10964, %v10963
    %10973 = vrot.lane.b32.xlu0 %v10965, 96
    %v10974 = vpop.permute.xlu0 %10973
    %10975 = vrot.lane.b32.xlu0 %v10966, 96
    %v10976 = vpop.permute.xlu0 %10975
    %10977 = vrot.lane.b32.xlu0 %v10967, 96
    %v10978 = vpop.permute.xlu0 %10977
    %10979 = vrot.lane.b32.xlu0 %v10968, 96
    %v10980 = vpop.permute.xlu0 %10979
    %10981 = vrot.lane.b32.xlu0 %v10969, 96
    %v10982 = vpop.permute.xlu0 %10981
    %10983 = vrot.lane.b32.xlu0 %v10970, 96
    %v10984 = vpop.permute.xlu0 %10983
    %10985 = vrot.lane.b32.xlu0 %v10971, 96
    %v10986 = vpop.permute.xlu0 %10985
    %10987 = vrot.lane.b32.xlu0 %v10972, 96
    %v10988 = vpop.permute.xlu0 %10987
    %v10989 = vunpack.c.l.b16 %v10122
    %v10990 = vunpack.c.l.b16 %v10136
    %v10991 = vunpack.c.l.b16 %v10150
    %v10992 = vunpack.c.l.b16 %v10164
    %v10993 = vunpack.c.l.b16 %v10178
    %v10994 = vunpack.c.l.b16 %v10192
    %v10995 = vunpack.c.l.b16 %v10206
    %v10996 = vunpack.c.l.b16 %v10220
    %v10997 = vunpack.c.l.b16 %v10234
    %v10998 = vunpack.c.l.b16 %v10248
    %v10999 = vunpack.c.l.b16 %v10262
    %v11000 = vunpack.c.l.b16 %v10276
    %v11001 = vunpack.c.l.b16 %v10290
    %v11002 = vunpack.c.l.b16 %v10304
    %v11003 = vunpack.c.l.b16 %v10318
    %v11004 = vunpack.c.l.b16 %v10332
    %v11005 = vpack.c.b16 %v10990, %v10989
    %v11006 = vpack.c.b16 %v10992, %v10991
    %v11007 = vpack.c.b16 %v10994, %v10993
    %v11008 = vpack.c.b16 %v10996, %v10995
    %v11009 = vpack.c.b16 %v10998, %v10997
    %v11010 = vpack.c.b16 %v11000, %v10999
    %v11011 = vpack.c.b16 %v11002, %v11001
    %v11012 = vpack.c.b16 %v11004, %v11003
    %v11013 = vunpack.c.l.b16 %v10384
    %v11014 = vunpack.c.l.b16 %v10388
    %v11015 = vunpack.c.l.b16 %v10392
    %v11016 = vunpack.c.l.b16 %v10396
    %v11017 = vunpack.c.l.b16 %v10400
    %v11018 = vunpack.c.l.b16 %v10404
    %v11019 = vunpack.c.l.b16 %v10408
    %v11020 = vunpack.c.l.b16 %v10412
    %v11021 = vunpack.c.l.b16 %v10416
    %v11022 = vunpack.c.l.b16 %v10420
    %v11023 = vunpack.c.l.b16 %v10424
    %v11024 = vunpack.c.l.b16 %v10428
    %v11025 = vunpack.c.l.b16 %v10432
    %v11026 = vunpack.c.l.b16 %v10436
    %v11027 = vunpack.c.l.b16 %v10440
    %v11028 = vunpack.c.l.b16 %v10444
    %v11029 = vpack.c.b16 %v11014, %v11013
    %v11030 = vpack.c.b16 %v11016, %v11015
    %v11031 = vpack.c.b16 %v11018, %v11017
    %v11032 = vpack.c.b16 %v11020, %v11019
    %v11033 = vpack.c.b16 %v11022, %v11021
    %v11034 = vpack.c.b16 %v11024, %v11023
    %v11035 = vpack.c.b16 %v11026, %v11025
    %v11036 = vpack.c.b16 %v11028, %v11027
    %11037 = vrot.lane.b32.xlu0 %v11029, 32
    %v11038 = vpop.permute.xlu0 %11037
    %11039 = vrot.lane.b32.xlu0 %v11030, 32
    %v11040 = vpop.permute.xlu0 %11039
    %11041 = vrot.lane.b32.xlu0 %v11031, 32
    %v11042 = vpop.permute.xlu0 %11041
    %11043 = vrot.lane.b32.xlu0 %v11032, 32
    %v11044 = vpop.permute.xlu0 %11043
    %11045 = vrot.lane.b32.xlu0 %v11033, 32
    %v11046 = vpop.permute.xlu0 %11045
    %11047 = vrot.lane.b32.xlu0 %v11034, 32
    %v11048 = vpop.permute.xlu0 %11047
    %11049 = vrot.lane.b32.xlu0 %v11035, 32
    %v11050 = vpop.permute.xlu0 %11049
    %11051 = vrot.lane.b32.xlu0 %v11036, 32
    %v11052 = vpop.permute.xlu0 %11051
    %v11069 = vunpack.c.l.b16 %v10445
    %v11070 = vunpack.c.l.b16 %v10446
    %v11071 = vunpack.c.l.b16 %v10447
    %v11072 = vunpack.c.l.b16 %v10448
    %v11073 = vunpack.c.l.b16 %v10449
    %v11074 = vunpack.c.l.b16 %v10450
    %v11075 = vunpack.c.l.b16 %v10451
    %v11076 = vunpack.c.l.b16 %v10452
    %v11077 = vunpack.c.l.b16 %v10453
    %v11078 = vunpack.c.l.b16 %v10454
    %v11079 = vunpack.c.l.b16 %v10455
    %v11080 = vunpack.c.l.b16 %v10456
    %v11081 = vunpack.c.l.b16 %v10457
    %v11082 = vunpack.c.l.b16 %v10458
    %v11083 = vunpack.c.l.b16 %v10459
    %v11084 = vunpack.c.l.b16 %v10460
    %v11085 = vpack.c.b16 %v11070, %v11069
    %v11086 = vpack.c.b16 %v11072, %v11071
    %v11087 = vpack.c.b16 %v11074, %v11073
    %v11088 = vpack.c.b16 %v11076, %v11075
    %v11089 = vpack.c.b16 %v11078, %v11077
    %v11090 = vpack.c.b16 %v11080, %v11079
    %v11091 = vpack.c.b16 %v11082, %v11081
    %v11092 = vpack.c.b16 %v11084, %v11083
    %11093 = vrot.lane.b32.xlu0 %v11085, 64
    %v11094 = vpop.permute.xlu0 %11093
    %11095 = vrot.lane.b32.xlu0 %v11086, 64
    %v11096 = vpop.permute.xlu0 %11095
    %11097 = vrot.lane.b32.xlu0 %v11087, 64
    %v11098 = vpop.permute.xlu0 %11097
    %11099 = vrot.lane.b32.xlu0 %v11088, 64
    %v11100 = vpop.permute.xlu0 %11099
    %11101 = vrot.lane.b32.xlu0 %v11089, 64
    %v11102 = vpop.permute.xlu0 %11101
    %11103 = vrot.lane.b32.xlu0 %v11090, 64
    %v11104 = vpop.permute.xlu0 %11103
    %11105 = vrot.lane.b32.xlu0 %v11091, 64
    %v11106 = vpop.permute.xlu0 %11105
    %11107 = vrot.lane.b32.xlu0 %v11092, 64
    %v11108 = vpop.permute.xlu0 %11107
    %v11109 = vunpack.c.l.b16 %v10490
    %v11110 = vunpack.c.l.b16 %v10504
    %v11111 = vunpack.c.l.b16 %v10518
    %v11112 = vunpack.c.l.b16 %v10532
    %v11113 = vunpack.c.l.b16 %v10546
    %v11114 = vunpack.c.l.b16 %v10560
    %v11115 = vunpack.c.l.b16 %v10574
    %v11116 = vunpack.c.l.b16 %v10588
    %v11117 = vunpack.c.l.b16 %v10602
    %v11118 = vunpack.c.l.b16 %v10616
    %v11119 = vunpack.c.l.b16 %v10630
    %v11120 = vunpack.c.l.b16 %v10644
    %v11121 = vunpack.c.l.b16 %v10658
    %v11122 = vunpack.c.l.b16 %v10672
    %v11123 = vunpack.c.l.b16 %v10686
    %v11124 = vunpack.c.l.b16 %v10700
    %v11125 = vpack.c.b16 %v11110, %v11109
    %v11126 = vpack.c.b16 %v11112, %v11111
    %v11127 = vpack.c.b16 %v11114, %v11113
    %v11128 = vpack.c.b16 %v11116, %v11115
    %v11129 = vpack.c.b16 %v11118, %v11117
    %v11130 = vpack.c.b16 %v11120, %v11119
    %v11131 = vpack.c.b16 %v11122, %v11121
    %v11132 = vpack.c.b16 %v11124, %v11123
    %11133 = vrot.lane.b32.xlu0 %v11125, 96
    %v11134 = vpop.permute.xlu0 %11133
    %11135 = vrot.lane.b32.xlu0 %v11126, 96
    %v11136 = vpop.permute.xlu0 %11135
    %11137 = vrot.lane.b32.xlu0 %v11127, 96
    %v11138 = vpop.permute.xlu0 %11137
    %11139 = vrot.lane.b32.xlu0 %v11128, 96
    %v11140 = vpop.permute.xlu0 %11139
    %11141 = vrot.lane.b32.xlu0 %v11129, 96
    %v11142 = vpop.permute.xlu0 %11141
    %11143 = vrot.lane.b32.xlu0 %v11130, 96
    %v11144 = vpop.permute.xlu0 %11143
    %11145 = vrot.lane.b32.xlu0 %v11131, 96
    %v11146 = vpop.permute.xlu0 %11145
    %11147 = vrot.lane.b32.xlu0 %v11132, 96
    %v11148 = vpop.permute.xlu0 %11147
    %v11149 = vunpack.c.l.b16 %v10752
    %v11150 = vunpack.c.l.b16 %v10756
    %v11151 = vunpack.c.l.b16 %v10760
    %v11152 = vunpack.c.l.b16 %v10764
    %v11153 = vunpack.c.l.b16 %v10768
    %v11154 = vunpack.c.l.b16 %v10772
    %v11155 = vunpack.c.l.b16 %v10776
    %v11156 = vunpack.c.l.b16 %v10780
    %v11157 = vunpack.c.l.b16 %v10784
    %v11158 = vunpack.c.l.b16 %v10788
    %v11159 = vunpack.c.l.b16 %v10792
    %v11160 = vunpack.c.l.b16 %v10796
    %v11161 = vunpack.c.l.b16 %v10800
    %v11162 = vunpack.c.l.b16 %v10804
    %v11163 = vunpack.c.l.b16 %v10808
    %v11164 = vunpack.c.l.b16 %v10812
    %v11165 = vpack.c.b16 %v11150, %v11149
    %v11166 = vpack.c.b16 %v11152, %v11151
    %v11167 = vpack.c.b16 %v11154, %v11153
    %v11168 = vpack.c.b16 %v11156, %v11155
    %v11169 = vpack.c.b16 %v11158, %v11157
    %v11170 = vpack.c.b16 %v11160, %v11159
    %v11171 = vpack.c.b16 %v11162, %v11161
    %v11172 = vpack.c.b16 %v11164, %v11163
    %v11175 = vsel %vm1864, %v10845, %v10878
    %v11178 = vsel %vm1864, %v10846, %v10880
    %v11181 = vsel %vm1864, %v10847, %v10882
    %v11184 = vsel %vm1864, %v10848, %v10884
    %v11187 = vsel %vm1864, %v10849, %v10886
    %v11190 = vsel %vm1864, %v10850, %v10888
    %v11193 = vsel %vm1864, %v10851, %v10890
    %v11196 = vsel %vm1864, %v10852, %v10892
    %v11198 = vsel %vm1889, %v11175, %v10918
    %v11200 = vsel %vm1889, %v11178, %v10920
    %v11202 = vsel %vm1889, %v11181, %v10922
    %v11204 = vsel %vm1889, %v11184, %v10924
    %v11206 = vsel %vm1889, %v11187, %v10926
    %v11208 = vsel %vm1889, %v11190, %v10928
    %v11210 = vsel %vm1889, %v11193, %v10930
    %v11212 = vsel %vm1889, %v11196, %v10932
    %v11214 = vsel %vm1906, %v11198, %v10974
    %v11217 = vsel %vm1906, %v11200, %v10976
    %v11220 = vsel %vm1906, %v11202, %v10978
    %v11223 = vsel %vm1906, %v11204, %v10980
    %v11226 = vsel %vm1906, %v11206, %v10982
    %v11229 = vsel %vm1906, %v11208, %v10984
    %v11232 = vsel %vm1906, %v11210, %v10986
    %v11235 = vsel %vm1906, %v11212, %v10988
    %v11239 = vsel %vm1864, %v11005, %v11038
    %v11242 = vsel %vm1864, %v11006, %v11040
    %v11245 = vsel %vm1864, %v11007, %v11042
    %v11248 = vsel %vm1864, %v11008, %v11044
    %v11251 = vsel %vm1864, %v11009, %v11046
    %v11254 = vsel %vm1864, %v11010, %v11048
    %v11257 = vsel %vm1864, %v11011, %v11050
    %v11260 = vsel %vm1864, %v11012, %v11052
    %v11262 = vsel %vm1889, %v11239, %v11094
    %v11264 = vsel %vm1889, %v11242, %v11096
    %v11266 = vsel %vm1889, %v11245, %v11098
    %v11268 = vsel %vm1889, %v11248, %v11100
    %v11270 = vsel %vm1889, %v11251, %v11102
    %v11272 = vsel %vm1889, %v11254, %v11104
    %v11274 = vsel %vm1889, %v11257, %v11106
    %v11276 = vsel %vm1889, %v11260, %v11108
    %v11278 = vsel %vm1906, %v11262, %v11134
    %v11281 = vsel %vm1906, %v11264, %v11136
    %v11284 = vsel %vm1906, %v11266, %v11138
    %v11287 = vsel %vm1906, %v11268, %v11140
    %v11290 = vsel %vm1906, %v11270, %v11142
    %v11293 = vsel %vm1906, %v11272, %v11144
    %v11296 = vsel %vm1906, %v11274, %v11146
    %v11299 = vsel %vm1906, %v11276, %v11148
    %s11301 = scalar_lea.vmem [#allocation4], 576
    %v11302 = vld [vmem:[%s11301] sm:$0xf]
    %v11303 = vld [vmem:[%s11301 + $0x4] sm:$0xf]
    %v11304 = vld [vmem:[%s11301 + $0x8] sm:$0xf]
    %v11305 = vld [vmem:[%s11301 + $0xc] sm:$0xf]
    %v11306 = vld [vmem:[%s11301 + $0x10] sm:$0xf]
    %v11307 = vld [vmem:[%s11301 + $0x14] sm:$0xf]
    %v11308 = vld [vmem:[%s11301 + $0x18] sm:$0xf]
    %v11309 = vld [vmem:[%s11301 + $0x1c] sm:$0xf]
    %v11310 = vld [vmem:[%s11301 + $0x20] sm:$0xf]
    %v11311 = vld [vmem:[%s11301 + $0x24] sm:$0xf]
    %v11312 = vld [vmem:[%s11301 + $0x28] sm:$0xf]
    %v11313 = vld [vmem:[%s11301 + $0x2c] sm:$0xf]
    %v11314 = vld [vmem:[%s11301 + $0x30] sm:$0xf]
    %v11315 = vld [vmem:[%s11301 + $0x34] sm:$0xf]
    %v11316 = vld [vmem:[%s11301 + $0x38] sm:$0xf]
    %v11317 = vld [vmem:[%s11301 + $0x3c] sm:$0xf]
    %v11318 = vld [vmem:[%s11301 + $0x40] sm:$0xf]
    %v11319 = vld [vmem:[%s11301 + $0x44] sm:$0xf]
    %v11320 = vld [vmem:[%s11301 + $0x48] sm:$0xf]
    %v11321 = vld [vmem:[%s11301 + $0x4c] sm:$0xf]
    %v11322 = vld [vmem:[%s11301 + $0x50] sm:$0xf]
    %v11323 = vld [vmem:[%s11301 + $0x54] sm:$0xf]
    %v11324 = vld [vmem:[%s11301 + $0x58] sm:$0xf]
    %v11325 = vld [vmem:[%s11301 + $0x5c] sm:$0xf]
    %v11326 = vld [vmem:[%s11301 + $0x60] sm:$0xf]
    %v11327 = vld [vmem:[%s11301 + $0x64] sm:$0xf]
    %v11328 = vld [vmem:[%s11301 + $0x68] sm:$0xf]
    %v11329 = vld [vmem:[%s11301 + $0x6c] sm:$0xf]
    %v11330 = vld [vmem:[%s11301 + $0x70] sm:$0xf]
    %v11331 = vld [vmem:[%s11301 + $0x74] sm:$0xf]
    %v11332 = vld [vmem:[%s11301 + $0x78] sm:$0xf]
    %v11333 = vld [vmem:[%s11301 + $0x7c] sm:$0xf]
    %v11334 = vld [vmem:[%s11301 + $0x80] sm:$0xf]
    %v11335 = vld [vmem:[%s11301 + $0x84] sm:$0xf]
    %v11336 = vld [vmem:[%s11301 + $0x88] sm:$0xf]
    %v11337 = vld [vmem:[%s11301 + $0x8c] sm:$0xf]
    %v11374 = vunpack.c.l.b16 %v11302
    %v11375 = vunpack.c.l.b16 %v11303
    %v11376 = vunpack.c.l.b16 %v11304
    %v11377 = vunpack.c.l.b16 %v11305
    %v11378 = vunpack.c.l.b16 %v11306
    %v11379 = vunpack.c.l.b16 %v11307
    %v11380 = vunpack.c.l.b16 %v11308
    %v11381 = vunpack.c.l.b16 %v11309
    %v11382 = vunpack.c.l.b16 %v11310
    %v11383 = vunpack.c.l.b16 %v11311
    %v11384 = vunpack.c.l.b16 %v11312
    %v11385 = vunpack.c.l.b16 %v11313
    %v11386 = vunpack.c.l.b16 %v11314
    %v11387 = vunpack.c.l.b16 %v11315
    %v11388 = vunpack.c.l.b16 %v11316
    %v11389 = vunpack.c.l.b16 %v11317
    %v11390 = vunpack.c.l.b16 %v11318
    %v11391 = vunpack.c.l.b16 %v11319
    %v11392 = vunpack.c.l.b16 %v11320
    %v11393 = vunpack.c.l.b16 %v11321
    %v11394 = vunpack.c.l.b16 %v11322
    %v11395 = vunpack.c.l.b16 %v11323
    %v11396 = vunpack.c.l.b16 %v11324
    %v11397 = vunpack.c.l.b16 %v11325
    %v11398 = vunpack.c.l.b16 %v11326
    %v11399 = vunpack.c.l.b16 %v11327
    %v11400 = vunpack.c.l.b16 %v11328
    %v11401 = vunpack.c.l.b16 %v11329
    %v11402 = vunpack.c.l.b16 %v11330
    %v11403 = vunpack.c.l.b16 %v11331
    %v11404 = vunpack.c.l.b16 %v11332
    %v11405 = vunpack.c.l.b16 %v11333
    %v11406 = vunpack.c.l.b16 %v11334
    %v11407 = vunpack.c.l.b16 %v11335
    %v11408 = vunpack.c.l.b16 %v11336
    %v11409 = vunpack.c.l.b16 %v11337
    %v11410 = vpack.c.b16 %v11375, %v11374
    %v11411 = vpack.c.b16 %v11377, %v11376
    %v11412 = vpack.c.b16 %v11379, %v11378
    %v11413 = vpack.c.b16 %v11381, %v11380
    %v11414 = vpack.c.b16 %v11383, %v11382
    %v11415 = vpack.c.b16 %v11385, %v11384
    %v11416 = vpack.c.b16 %v11387, %v11386
    %v11417 = vpack.c.b16 %v11389, %v11388
    %v11418 = vpack.c.b16 %v11391, %v11390
    %v11419 = vpack.c.b16 %v11393, %v11392
    %v11420 = vpack.c.b16 %v11395, %v11394
    %v11421 = vpack.c.b16 %v11397, %v11396
    %v11422 = vpack.c.b16 %v11399, %v11398
    %v11423 = vpack.c.b16 %v11401, %v11400
    %v11424 = vpack.c.b16 %v11403, %v11402
    %v11425 = vpack.c.b16 %v11405, %v11404
    %v11426 = vpack.c.b16 %v11407, %v11406
    %v11427 = vpack.c.b16 %v11409, %v11408
    %v11447 = vsel %vm1864, %v11165, 0
    %v11450 = vsel %vm1864, %v11166, 0
    %v11453 = vsel %vm1864, %v11167, 0
    %v11456 = vsel %vm1864, %v11168, 0
    %v11459 = vsel %vm1864, %v11169, 0
    %v11462 = vsel %vm1864, %v11170, 0
    %v11465 = vsel %vm1864, %v11171, 0
    %v11468 = vsel %vm1864, %v11172, 0
    %11470 = vmatprep.subr.bf16.mxu0 0
    %11471 = vmatpush1.bf16.msra.mxu0 %v11417
    %11472 = vmatprep.subr.bf16.mxu0 0
    %11473 = vmatpush1.bf16.msra.mxu0 %v11416
    %11474 = vmatprep.subr.bf16.mxu0 0
    %11475 = vmatpush1.bf16.msra.mxu0 %v11415
    %11476 = vmatprep.subr.bf16.mxu0 0
    %11477 = vmatpush1.bf16.msra.mxu0 %v11414
    %11478 = vmatprep.subr.bf16.mxu0 0
    %11479 = vmatpush1.bf16.msra.mxu0 %v11413
    %11480 = vmatprep.subr.bf16.mxu0 0
    %11481 = vmatpush1.bf16.msra.mxu0 %v11412
    %11482 = vmatprep.subr.bf16.mxu0 0
    %11483 = vmatpush1.bf16.msra.mxu0 %v11411
    %11484 = vmatprep.subr.bf16.mxu0 0
    %11485 = vmatpush1.bf16.msra.mxu0 %v11410
    %11486 = vmatprep.subr.bf16.mxu0 0
    %11487 = vmatpush2.bf16.msra.mxu0 %v11425
    %11488 = vmatprep.subr.bf16.mxu0 0
    %11489 = vmatpush2.bf16.msra.mxu0 %v11424
    %11490 = vmatprep.subr.bf16.mxu0 0
    %11491 = vmatpush2.bf16.msra.mxu0 %v11423
    %11492 = vmatprep.subr.bf16.mxu0 0
    %11493 = vmatpush2.bf16.msra.mxu0 %v11422
    %11494 = vmatprep.subr.bf16.mxu0 0
    %11495 = vmatpush2.bf16.msra.mxu0 %v11421
    %11496 = vmatprep.subr.bf16.mxu0 0
    %11497 = vmatpush2.bf16.msra.mxu0 %v11420
    %11498 = vmatprep.subr.bf16.mxu0 0
    %11499 = vmatpush2.bf16.msra.mxu0 %v11419
    %11500 = vmatprep.subr.bf16.mxu0 0
    %11501 = vmatpush2.bf16.msra.mxu0 %v11418
    %11502 = vmatprep.mubr.bf16.mxu0 %v11278
    %11503 = vmatmul.mubr.bf16.gmra.mxu0 %v11214
    %v11504 = vpop.f32.mrf.mxu0
    %v11505 = vadd.f32 0.0, %v11504
    %v11506 = vpop.f32.mrf.mxu0
    %v11507 = vpop.f32.mrf.mxu0
    %v11508 = vadd.f32 0.0, %v11507
    %v11509 = vpop.f32.mrf.mxu0
    %11510 = vmatprep.mubr.bf16.mxu0 %v11281
    %11511 = vmatmul.mubr.bf16.gmra.mxu0 %v11217
    %v11512 = vpop.f32.mrf.mxu0
    %v11513 = vadd.f32 0.0, %v11512
    %v11514 = vpop.f32.mrf.mxu0
    %v11515 = vpop.f32.mrf.mxu0
    %v11516 = vadd.f32 0.0, %v11515
    %v11517 = vpop.f32.mrf.mxu0
    %11518 = vmatprep.mubr.bf16.mxu0 %v11284
    %11519 = vmatmul.mubr.bf16.gmra.mxu0 %v11220
    %v11520 = vpop.f32.mrf.mxu0
    %v11521 = vadd.f32 0.0, %v11520
    %v11522 = vpop.f32.mrf.mxu0
    %v11523 = vpop.f32.mrf.mxu0
    %v11524 = vadd.f32 0.0, %v11523
    %v11525 = vpop.f32.mrf.mxu0
    %11526 = vmatprep.mubr.bf16.mxu0 %v11287
    %11527 = vmatmul.mubr.bf16.gmra.mxu0 %v11223
    %v11528 = vpop.f32.mrf.mxu0
    %v11529 = vadd.f32 0.0, %v11528
    %v11530 = vpop.f32.mrf.mxu0
    %v11531 = vpop.f32.mrf.mxu0
    %v11532 = vadd.f32 0.0, %v11531
    %v11533 = vpop.f32.mrf.mxu0
    %11534 = vmatprep.mubr.bf16.mxu0 %v11290
    %11535 = vmatmul.mubr.bf16.gmra.mxu0 %v11226
    %v11536 = vpop.f32.mrf.mxu0
    %v11537 = vadd.f32 0.0, %v11536
    %v11538 = vpop.f32.mrf.mxu0
    %v11539 = vpop.f32.mrf.mxu0
    %v11540 = vadd.f32 0.0, %v11539
    %v11541 = vpop.f32.mrf.mxu0
    %11542 = vmatprep.mubr.bf16.mxu0 %v11293
    %11543 = vmatmul.mubr.bf16.gmra.mxu0 %v11229
    %v11544 = vpop.f32.mrf.mxu0
    %v11545 = vadd.f32 0.0, %v11544
    %v11546 = vpop.f32.mrf.mxu0
    %v11547 = vpop.f32.mrf.mxu0
    %v11548 = vadd.f32 0.0, %v11547
    %v11549 = vpop.f32.mrf.mxu0
    %11550 = vmatprep.mubr.bf16.mxu0 %v11296
    %11551 = vmatmul.mubr.bf16.gmra.mxu0 %v11232
    %v11552 = vpop.f32.mrf.mxu0
    %v11553 = vadd.f32 0.0, %v11552
    %v11554 = vpop.f32.mrf.mxu0
    %v11555 = vpop.f32.mrf.mxu0
    %v11556 = vadd.f32 0.0, %v11555
    %v11557 = vpop.f32.mrf.mxu0
    %11558 = vmatprep.mubr.bf16.mxu0 %v11299
    %11559 = vmatmul.mubr.bf16.gmra.mxu0 %v11235
    %v11560 = vpop.f32.mrf.mxu0
    %v11561 = vadd.f32 0.0, %v11560
    %v11562 = vpop.f32.mrf.mxu0
    %v11563 = vpop.f32.mrf.mxu0
    %v11564 = vadd.f32 0.0, %v11563
    %v11565 = vpop.f32.mrf.mxu0
    %11566 = vdwg.mxu0
    %11567 = vmatprep.subr.bf16.mxu0 0
    %11568 = vmatpush1.bf16.msra.mxu0 0
    %11569 = vmatprep.subr.bf16.mxu0 0
    %11570 = vmatpush1.bf16.msra.mxu0 0
    %11571 = vmatprep.subr.bf16.mxu0 0
    %11572 = vmatpush1.bf16.msra.mxu0 0
    %11573 = vmatprep.subr.bf16.mxu0 0
    %11574 = vmatpush1.bf16.msra.mxu0 0
    %11575 = vmatprep.subr.bf16.mxu0 0
    %11576 = vmatpush1.bf16.msra.mxu0 0
    %11577 = vmatprep.subr.bf16.mxu0 0
    %11578 = vmatpush1.bf16.msra.mxu0 0
    %11579 = vmatprep.subr.bf16.mxu0 0
    %11580 = vmatpush1.bf16.msra.mxu0 %v11427
    %11581 = vmatprep.subr.bf16.mxu0 0
    %11582 = vmatpush1.bf16.msra.mxu0 %v11426
    %11583 = vmatprep.subr.bf16.mxu0 0
    %11584 = vmatpush2.bf16.msra.mxu0 0
    %11585 = vmatprep.subr.bf16.mxu0 0
    %11586 = vmatpush2.bf16.msra.mxu0 0
    %11587 = vmatprep.subr.bf16.mxu0 0
    %11588 = vmatpush2.bf16.msra.mxu0 0
    %11589 = vmatprep.subr.bf16.mxu0 0
    %11590 = vmatpush2.bf16.msra.mxu0 0
    %11591 = vmatprep.subr.bf16.mxu0 0
    %11592 = vmatpush2.bf16.msra.mxu0 0
    %11593 = vmatprep.subr.bf16.mxu0 0
    %11594 = vmatpush2.bf16.msra.mxu0 0
    %11595 = vmatprep.subr.bf16.mxu0 0
    %11596 = vmatpush2.bf16.msra.mxu0 0
    %11597 = vmatprep.subr.bf16.mxu0 0
    %11598 = vmatpush2.bf16.msra.mxu0 0
    %11599 = vmatprep.mubr.bf16.mxu0 0
    %11600 = vmatmul.mubr.bf16.gmra.mxu0 %v11447
    %v11601 = vpop.f32.mrf.mxu0
    %v11602 = vadd.f32 %v11505, %v11601
    %v11603 = vpop.f32.mrf.mxu0
    %v11604 = vpop.f32.mrf.mxu0
    %v11605 = vadd.f32 %v11508, %v11604
    %v11606 = vpop.f32.mrf.mxu0
    %11607 = vmatprep.mubr.bf16.mxu0 0
    %11608 = vmatmul.mubr.bf16.gmra.mxu0 %v11450
    %v11609 = vpop.f32.mrf.mxu0
    %v11610 = vadd.f32 %v11513, %v11609
    %v11611 = vpop.f32.mrf.mxu0
    %v11612 = vpop.f32.mrf.mxu0
    %v11613 = vadd.f32 %v11516, %v11612
    %v11614 = vpop.f32.mrf.mxu0
    %11615 = vmatprep.mubr.bf16.mxu0 0
    %11616 = vmatmul.mubr.bf16.gmra.mxu0 %v11453
    %v11617 = vpop.f32.mrf.mxu0
    %v11618 = vadd.f32 %v11521, %v11617
    %v11619 = vpop.f32.mrf.mxu0
    %v11620 = vpop.f32.mrf.mxu0
    %v11621 = vadd.f32 %v11524, %v11620
    %v11622 = vpop.f32.mrf.mxu0
    %11623 = vmatprep.mubr.bf16.mxu0 0
    %11624 = vmatmul.mubr.bf16.gmra.mxu0 %v11456
    %v11625 = vpop.f32.mrf.mxu0
    %v11626 = vadd.f32 %v11529, %v11625
    %v11627 = vpop.f32.mrf.mxu0
    %v11628 = vpop.f32.mrf.mxu0
    %v11629 = vadd.f32 %v11532, %v11628
    %v11630 = vpop.f32.mrf.mxu0
    %11631 = vmatprep.mubr.bf16.mxu0 0
    %11632 = vmatmul.mubr.bf16.gmra.mxu0 %v11459
    %v11633 = vpop.f32.mrf.mxu0
    %v11634 = vadd.f32 %v11537, %v11633
    %v11635 = vpop.f32.mrf.mxu0
    %v11636 = vpop.f32.mrf.mxu0
    %v11637 = vadd.f32 %v11540, %v11636
    %v11638 = vpop.f32.mrf.mxu0
    %11639 = vmatprep.mubr.bf16.mxu0 0
    %11640 = vmatmul.mubr.bf16.gmra.mxu0 %v11462
    %v11641 = vpop.f32.mrf.mxu0
    %v11642 = vadd.f32 %v11545, %v11641
    %v11643 = vpop.f32.mrf.mxu0
    %v11644 = vpop.f32.mrf.mxu0
    %v11645 = vadd.f32 %v11548, %v11644
    %v11646 = vpop.f32.mrf.mxu0
    %11647 = vmatprep.mubr.bf16.mxu0 0
    %11648 = vmatmul.mubr.bf16.gmra.mxu0 %v11465
    %v11649 = vpop.f32.mrf.mxu0
    %v11650 = vadd.f32 %v11553, %v11649
    %v11651 = vpop.f32.mrf.mxu0
    %v11652 = vpop.f32.mrf.mxu0
    %v11653 = vadd.f32 %v11556, %v11652
    %v11654 = vpop.f32.mrf.mxu0
    %11655 = vmatprep.mubr.bf16.mxu0 0
    %11656 = vmatmul.mubr.bf16.gmra.mxu0 %v11468
    %v11657 = vpop.f32.mrf.mxu0
    %v11658 = vadd.f32 %v11561, %v11657
    %v11659 = vpop.f32.mrf.mxu0
    %v11660 = vpop.f32.mrf.mxu0
    %v11661 = vadd.f32 %v11564, %v11660
    %v11662 = vpop.f32.mrf.mxu0
    %11663 = vdwg.mxu0
    %s11664 = scalar_lea.vmem %s2, 4
    %v11665 = vld [vmem:[%s11664] sm:$0x1]
    %v11667 = vlaneseq
    %v11668 = vshrl.u32 %v11667, 7
    %v11669 = vsub.s32 0, %v11668
    %v11670 = vrot.slane %v11665, %v11669
    %v11672 = vmul.f32 %v11602, %v11670
    %v11673 = vmul.f32 %v11605, %v11670
    %v11674 = vmul.f32 %v11610, %v11670
    %v11675 = vmul.f32 %v11613, %v11670
    %v11676 = vmul.f32 %v11618, %v11670
    %v11677 = vmul.f32 %v11621, %v11670
    %v11678 = vmul.f32 %v11626, %v11670
    %v11679 = vmul.f32 %v11629, %v11670
    %v11680 = vmul.f32 %v11634, %v11670
    %v11681 = vmul.f32 %v11637, %v11670
    %v11682 = vmul.f32 %v11642, %v11670
    %v11683 = vmul.f32 %v11645, %v11670
    %v11684 = vmul.f32 %v11650, %v11670
    %v11685 = vmul.f32 %v11653, %v11670
    %v11686 = vmul.f32 %v11658, %v11670
    %v11687 = vmul.f32 %v11661, %v11670
    %s11688 = scalar_lea.vmem %s3, 4
    %v11689 = vld [vmem:[%s11688] sm:$0x1]
    %v11691 = vlaneseq
    %v11692 = vshrl.u32 %v11691, 7
    %v11693 = vsub.s32 0, %v11692
    %v11694 = vrot.slane %v11689, %v11693
    %v11696 = vadd.f32 %v11672, %v11694
    %v11697 = vadd.f32 %v11673, %v11694
    %v11698 = vadd.f32 %v11674, %v11694
    %v11699 = vadd.f32 %v11675, %v11694
    %v11700 = vadd.f32 %v11676, %v11694
    %v11701 = vadd.f32 %v11677, %v11694
    %v11702 = vadd.f32 %v11678, %v11694
    %v11703 = vadd.f32 %v11679, %v11694
    %v11704 = vadd.f32 %v11680, %v11694
    %v11705 = vadd.f32 %v11681, %v11694
    %v11706 = vadd.f32 %v11682, %v11694
    %v11707 = vadd.f32 %v11683, %v11694
    %v11708 = vadd.f32 %v11684, %v11694
    %v11709 = vadd.f32 %v11685, %v11694
    %v11710 = vadd.f32 %v11686, %v11694
    %v11711 = vadd.f32 %v11687, %v11694
    %v11712 = vadd.f32 %v11696, %v7066
    %v11713 = vadd.f32 %v11697, %v7067
    %v11714 = vadd.f32 %v11698, %v7068
    %v11715 = vadd.f32 %v11699, %v7069
    %v11716 = vadd.f32 %v11700, %v7070
    %v11717 = vadd.f32 %v11701, %v7071
    %v11718 = vadd.f32 %v11702, %v7072
    %v11719 = vadd.f32 %v11703, %v7073
    %v11720 = vadd.f32 %v11704, %v7074
    %v11721 = vadd.f32 %v11705, %v7075
    %v11722 = vadd.f32 %v11706, %v7076
    %v11723 = vadd.f32 %v11707, %v7077
    %v11724 = vadd.f32 %v11708, %v7078
    %v11725 = vadd.f32 %v11709, %v7079
    %v11726 = vadd.f32 %v11710, %v7080
    %v11727 = vadd.f32 %v11711, %v7081
    %v11728 = vmax.f32 %v11712, 0.0
    %v11729 = vmax.f32 %v11713, 0.0
    %v11730 = vmax.f32 %v11714, 0.0
    %v11731 = vmax.f32 %v11715, 0.0
    %v11732 = vmax.f32 %v11716, 0.0
    %v11733 = vmax.f32 %v11717, 0.0
    %v11734 = vmax.f32 %v11718, 0.0
    %v11735 = vmax.f32 %v11719, 0.0
    %v11736 = vmax.f32 %v11720, 0.0
    %v11737 = vmax.f32 %v11721, 0.0
    %v11738 = vmax.f32 %v11722, 0.0
    %v11739 = vmax.f32 %v11723, 0.0
    %v11740 = vmax.f32 %v11724, 0.0
    %v11741 = vmax.f32 %v11725, 0.0
    %v11742 = vmax.f32 %v11726, 0.0
    %v11743 = vmax.f32 %v11727, 0.0
    %v11744 = vpack.c.bf16 %v11729, %v11728
    %v11745 = vpack.c.bf16 %v11731, %v11730
    %v11746 = vpack.c.bf16 %v11733, %v11732
    %v11747 = vpack.c.bf16 %v11735, %v11734
    %v11748 = vpack.c.bf16 %v11737, %v11736
    %v11749 = vpack.c.bf16 %v11739, %v11738
    %v11750 = vpack.c.bf16 %v11741, %v11740
    %v11751 = vpack.c.bf16 %v11743, %v11742
    %v11760 = vunpack.c.l.b16 %v11744
    %v11761 = vunpack.c.h.b16 %v11744
    %v11762 = vunpack.c.l.b16 %v11745
    %v11763 = vunpack.c.h.b16 %v11745
    %v11764 = vunpack.c.l.b16 %v11746
    %v11765 = vunpack.c.h.b16 %v11746
    %v11766 = vunpack.c.l.b16 %v11747
    %v11767 = vunpack.c.h.b16 %v11747
    %v11768 = vunpack.c.l.b16 %v11748
    %v11769 = vunpack.c.h.b16 %v11748
    %v11770 = vunpack.c.l.b16 %v11749
    %v11771 = vunpack.c.h.b16 %v11749
    %v11772 = vunpack.c.l.b16 %v11750
    %v11773 = vunpack.c.h.b16 %v11750
    %v11774 = vunpack.c.l.b16 %v11751
    %v11775 = vunpack.c.h.b16 %v11751
    %v11776 = vpack.c.b16 %v11760, %v11760
    %v11777 = vpack.c.b16 %v11761, %v11761
    %v11778 = vpack.c.b16 %v11762, %v11762
    %v11779 = vpack.c.b16 %v11763, %v11763
    %v11780 = vpack.c.b16 %v11764, %v11764
    %v11781 = vpack.c.b16 %v11765, %v11765
    %v11782 = vpack.c.b16 %v11766, %v11766
    %v11783 = vpack.c.b16 %v11767, %v11767
    %v11784 = vpack.c.b16 %v11768, %v11768
    %v11785 = vpack.c.b16 %v11769, %v11769
    %v11786 = vpack.c.b16 %v11770, %v11770
    %v11787 = vpack.c.b16 %v11771, %v11771
    %v11788 = vpack.c.b16 %v11772, %v11772
    %v11789 = vpack.c.b16 %v11773, %v11773
    %v11790 = vpack.c.b16 %v11774, %v11774
    %v11791 = vpack.c.b16 %v11775, %v11775
    %11808 = vst.msk [vmem:[%s4] sm:$0xf] %vm32, %v11776
    %11809 = vst.msk [vmem:[%s4 + $0x4] sm:$0xf] %vm32, %v11777
    %11810 = vst.msk [vmem:[%s4 + $0x8] sm:$0xf] %vm32, %v11778
    %11811 = vst.msk [vmem:[%s4 + $0xc] sm:$0xf] %vm32, %v11779
    %11812 = vst.msk [vmem:[%s4 + $0x10] sm:$0xf] %vm32, %v11780
    %11813 = vst.msk [vmem:[%s4 + $0x14] sm:$0xf] %vm32, %v11781
    %11814 = vst.msk [vmem:[%s4 + $0x18] sm:$0xf] %vm32, %v11782
    %11815 = vst.msk [vmem:[%s4 + $0x1c] sm:$0xf] %vm32, %v11783
    %11816 = vst.msk [vmem:[%s4 + $0x20] sm:$0xf] %vm32, %v11784
    %11817 = vst.msk [vmem:[%s4 + $0x24] sm:$0xf] %vm32, %v11785
    %11818 = vst.msk [vmem:[%s4 + $0x28] sm:$0xf] %vm32, %v11786
    %11819 = vst.msk [vmem:[%s4 + $0x2c] sm:$0xf] %vm32, %v11787
    %11820 = vst.msk [vmem:[%s4 + $0x30] sm:$0xf] %vm32, %v11788
    %11821 = vst.msk [vmem:[%s4 + $0x34] sm:$0xf] %vm32, %v11789
    %11822 = vst.msk [vmem:[%s4 + $0x38] sm:$0xf] %vm32, %v11790
    %11823 = vst.msk [vmem:[%s4 + $0x3c] sm:$0xf] %vm32, %v11791
    // Predicated region
    $region22: #{policy_value_forward.3} parent=1 // pred_check
      _
    $region23: #{policy_value_forward.3} parent=1 // pred_check_branch
      %11825 = sbr.rel (0) target = $region25
    $region24: #{policy_value_forward.3} parent=1 // pred_region
      _
    $region25: #{policy_value_forward.3} parent=1 // pred_fallthru
      _
    // Predicated region
    $region26: #{policy_value_forward.3} parent=1 // pred_check
      _
    $region27: #{policy_value_forward.3} parent=1 // pred_check_branch
      %11827 = sbr.rel (0) target = $region29
    $region28: #{policy_value_forward.3} parent=1 // pred_region
      _
    $region29: #{policy_value_forward.3} parent=1 // pred_fallthru
      _
    %11828 = vsyncpa [#allocation5], 1

</llo_original>
